<compile_context>
chip_gen: v6e
topology: v6e:2x2x1
jax: 0.10.0
libtpu: 0.0.40
codegen_flags: <defaults>
</compile_context>

<pallas_src>
import jax
import jax.numpy as jnp
from jax import lax
from jax.experimental import pallas as pl
from jax.experimental.pallas import tpu as pltpu


def rnn_net_kernel(x_ref, wir_ref, wiz_ref, win_ref,
                   whr_ref, whz_ref, whn_ref,
                   br_ref, bz_ref, bin_ref, bhn_ref,
                   lw_ref, gamma_ref, gw_ref, c_ref,
                   out_ref):
    f32 = jnp.float32
    T, H = lw_ref.shape
    B = out_ref.shape[0]

    # ---- hoisted input projections (one MXU pass per gate, off the serial chain) ----
    x = x_ref[...]                                                    # (T*B, F)
    gi_r = jnp.dot(x, wir_ref[...], preferred_element_type=f32) + br_ref[...]
    gi_z = jnp.dot(x, wiz_ref[...], preferred_element_type=f32) + bz_ref[...]
    gi_n = jnp.dot(x, win_ref[...], preferred_element_type=f32) + bin_ref[...]

    whr = whr_ref[...]                                                # (H, H)
    whz = whz_ref[...]
    whn = whn_ref[...]
    bhn = bhn_ref[...]                                                # (1, H)
    lw = lw_ref[...]                                                  # (T, H)

    inv_bh = 1.0 / (B * H)
    eps = 1e-5

    h = jnp.zeros((B, H), f32)
    logits = jnp.zeros((B, 1), f32)

    # ---- GRU recurrence, fully unrolled (static T), PyTorch gate order (r, z, n) ----
    for t in range(T):
        lo = t * B
        gh_r = jnp.dot(h, whr, preferred_element_type=f32)
        gh_z = jnp.dot(h, whz, preferred_element_type=f32)
        gh_n = jnp.dot(h, whn, preferred_element_type=f32)
        r = jax.nn.sigmoid(gi_r[lo:lo + B, :] + gh_r)
        z = jax.nn.sigmoid(gi_z[lo:lo + B, :] + gh_z)
        n = jnp.tanh(gi_n[lo:lo + B, :] + r * (gh_n + bhn))
        h = n + z * (h - n)                       # == (1 - z) * n + z * h

        # ---- fused BatchNorm1d(channel = t, train-mode batch stats) + Linear ----
        s_t = jnp.sum(h * lw[t:t + 1, :], axis=-1, keepdims=True)     # (B, 1)
        sum_t = jnp.sum(h, keepdims=True)                             # (1, 1)
        sumsq_t = jnp.sum(h * h, keepdims=True)                       # (1, 1)
        mean_t = sum_t * inv_bh
        var_t = sumsq_t * inv_bh - mean_t * mean_t                    # biased variance
        inv_t = lax.rsqrt(var_t + eps)
        logits = logits + inv_t * (gamma_ref[t] * s_t - gw_ref[t] * mean_t)

    # TODO(synk): BatchNorm1d running_mean/running_var updates (train-mode side
    # effect) are not reproduced; only the forward value is.
    out_ref[...] = jax.nn.sigmoid(logits + c_ref[0])


def rnn_net_forward(x, params):
    """x: (B, T, F) float32, batch-first like the PyTorch module."""
    B, T, F = x.shape
    H = params["w_hh"].shape[1]
    f32 = jnp.float32

    # Time-major flatten: row t*B + b of x_flat is (time t, batch b).
    x_flat = jnp.transpose(x, (1, 0, 2)).reshape(T * B, F).astype(f32)

    w_ih = params["w_ih"].astype(f32)                  # (3H, F)
    w_hh = params["w_hh"].astype(f32)                  # (3H, H)
    b_ih = params["b_ih"].astype(f32)                  # (3H,)
    b_hh = params["b_hh"].astype(f32)                  # (3H,)
    gamma = params["gamma"].astype(f32)                # (T,)
    beta = params["beta"].astype(f32)                  # (T,)
    lin_w = params["lin_w"].reshape(T, H).astype(f32)  # (T, H): PyTorch t*H + h flatten
    lin_b = params["lin_b"].astype(f32)                # (1,)

    # Per-gate layouts (PyTorch gate order r, z, n), pre-transposed for x @ W.
    wir, wiz, win = (w_ih[g * H:(g + 1) * H].T for g in range(3))   # (F, H) each
    whr, whz, whn = (w_hh[g * H:(g + 1) * H].T for g in range(3))   # (H, H) each
    b_r = (b_ih[0:H] + b_hh[0:H])[None, :]             # folded once into gi_r
    b_z = (b_ih[H:2 * H] + b_hh[H:2 * H])[None, :]     # folded once into gi_z
    b_in = b_ih[2 * H:3 * H][None, :]                  # folded once into gi_n
    b_hn = b_hh[2 * H:3 * H][None, :]                  # must stay inside r * (.)

    # BatchNorm + Linear fusion constants.
    wsum = jnp.sum(lin_w, axis=1)                      # (T,)
    gw = gamma * wsum                                  # (T,)
    c_const = (lin_b[0] + jnp.sum(beta * wsum)).reshape(1)

    vmem = pl.BlockSpec(memory_space=pltpu.MemorySpace.VMEM)
    smem = pl.BlockSpec(memory_space=pltpu.MemorySpace.SMEM)
    return pl.pallas_call(
        rnn_net_kernel,
        out_shape=jax.ShapeDtypeStruct((B, 1), f32),
        in_specs=[vmem] * 12 + [smem] * 3,
        out_specs=vmem,
    )(x_flat, wir, wiz, win, whr, whz, whn, b_r, b_z, b_in, b_hn,
      lin_w, gamma, gw, c_const)


def init_params(key, num_features=9, seq_len=16, hidden=5):
    """Deterministic synthetic parameters with raw PyTorch-module shapes."""
    ks = jax.random.split(key, 8)
    s = 1.0 / jnp.sqrt(hidden)
    w_ih = jax.random.uniform(ks[0], (3 * hidden, num_features), jnp.float32, -s, s)
    w_hh = jax.random.uniform(ks[1], (3 * hidden, hidden), jnp.float32, -s, s)
    b_ih = jax.random.uniform(ks[2], (3 * hidden,), jnp.float32, -s, s)
    b_hh = jax.random.uniform(ks[3], (3 * hidden,), jnp.float32, -s, s)
    gamma = 1.0 + 0.1 * jax.random.uniform(ks[4], (seq_len,), jnp.float32, -1.0, 1.0)
    beta = 0.1 * jax.random.uniform(ks[5], (seq_len,), jnp.float32, -1.0, 1.0)
    sl = 1.0 / jnp.sqrt(hidden * seq_len)
    lin_w = jax.random.uniform(ks[6], (1, hidden * seq_len), jnp.float32, -sl, sl)
    lin_b = jax.random.uniform(ks[7], (1,), jnp.float32, -sl, sl)
    return dict(w_ih=w_ih, w_hh=w_hh, b_ih=b_ih, b_hh=b_hh,
                gamma=gamma, beta=beta, lin_w=lin_w, lin_b=lin_b)


def rnn_net_reference(x, params):
    """Pure-JAX reference replicating the PyTorch forward (train-mode BN)."""
    B, T, F = x.shape
    H = params["w_hh"].shape[1]
    w_ih_t = params["w_ih"].T                # (F, 3H)
    w_hh_t = params["w_hh"].T                # (H, 3H)
    b_ih, b_hh = params["b_ih"], params["b_hh"]

    def step(h, xt):
        gi = xt @ w_ih_t + b_ih
        gh = h @ w_hh_t + b_hh
        r = jax.nn.sigmoid(gi[:, :H] + gh[:, :H])
        z = jax.nn.sigmoid(gi[:, H:2 * H] + gh[:, H:2 * H])
        n = jnp.tanh(gi[:, 2 * H:] + r * gh[:, 2 * H:])
        h_new = (1.0 - z) * n + z * h
        return h_new, h_new

    h0 = jnp.zeros((B, H), jnp.float32)
    _, seq = lax.scan(step, h0, jnp.transpose(x, (1, 0, 2)))   # (T, B, H)
    seq = jnp.transpose(seq, (1, 0, 2))                        # (B, T, H)
    mean = jnp.mean(seq, axis=(0, 2), keepdims=True)
    var = jnp.mean((seq - mean) ** 2, axis=(0, 2), keepdims=True)
    y = (seq - mean) / jnp.sqrt(var + 1e-5)
    y = y * params["gamma"][None, :, None] + params["beta"][None, :, None]
    flat = y.reshape(B, -1)
    logits = flat @ params["lin_w"].reshape(-1, 1) + params["lin_b"][0]
    return jax.nn.sigmoid(logits)


if __name__ == "__main__":
    B, F, T, H = 8, 9, 16, 5     # hidden=5 is fixed by the module; T*B = 128 rows
    key = jax.random.PRNGKey(0)
    kx, kp = jax.random.split(key)
    x = jax.random.normal(kx, (B, T, F), jnp.float32)
    params = init_params(kp, num_features=F, seq_len=T, hidden=H)

    out = jax.block_until_ready(rnn_net_forward(x, params))
    ref = jax.block_until_ready(rnn_net_reference(x, params))

    assert out.shape == (B, 1), out.shape
    assert jnp.allclose(out, ref, atol=2e-3, rtol=2e-3), (out, ref)
    print("KERNEL_OK")
</pallas_src>

<mosaic_0001>
module attributes {stable_mosaic.version = 11 : i64} {
  func.func @rnn_net_kernel(%arg0: memref<128x9xf32, #tpu.memory_space<vmem>>, %arg1: memref<9x5xf32, #tpu.memory_space<vmem>>, %arg2: memref<9x5xf32, #tpu.memory_space<vmem>>, %arg3: memref<9x5xf32, #tpu.memory_space<vmem>>, %arg4: memref<5x5xf32, #tpu.memory_space<vmem>>, %arg5: memref<5x5xf32, #tpu.memory_space<vmem>>, %arg6: memref<5x5xf32, #tpu.memory_space<vmem>>, %arg7: memref<1x5xf32, #tpu.memory_space<vmem>>, %arg8: memref<1x5xf32, #tpu.memory_space<vmem>>, %arg9: memref<1x5xf32, #tpu.memory_space<vmem>>, %arg10: memref<1x5xf32, #tpu.memory_space<vmem>>, %arg11: memref<16x5xf32, #tpu.memory_space<vmem>>, %arg12: memref<16xf32, #tpu.memory_space<smem>>, %arg13: memref<16xf32, #tpu.memory_space<smem>>, %arg14: memref<1xf32, #tpu.memory_space<smem>>, %arg15: memref<8x1xf32, #tpu.memory_space<vmem>>) attributes {dimension_semantics = [], scalar_prefetch = 0 : i64, scratch_operands = 0 : i64, tpu.core_type = #tpu.core_type<tc>} {
    %c0 = arith.constant 0 : index
    %c0_0 = arith.constant 0 : index
    %0 = vector.load %arg0[%c0, %c0_0] : memref<128x9xf32, #tpu.memory_space<vmem>>, vector<128x9xf32>
    %c0_1 = arith.constant 0 : index
    %c0_2 = arith.constant 0 : index
    %1 = vector.load %arg1[%c0_1, %c0_2] : memref<9x5xf32, #tpu.memory_space<vmem>>, vector<9x5xf32>
    %cst = arith.constant dense<0.000000e+00> : vector<128x5xf32>
    %2 = tpu.matmul %0, %1, %cst {dimension_numbers = #tpu.dot_dimension_numbers<[1], [0], [0], [1], [0, 0, 1, 1], [], []>} : vector<128x9xf32>, vector<9x5xf32>, vector<128x5xf32> -> vector<128x5xf32>
    %c0_3 = arith.constant 0 : index
    %c0_4 = arith.constant 0 : index
    %3 = vector.load %arg7[%c0_3, %c0_4] : memref<1x5xf32, #tpu.memory_space<vmem>>, vector<1x5xf32>
    %4 = vector.broadcast %3 : vector<1x5xf32> to vector<128x5xf32>
    %5 = arith.addf %2, %4 : vector<128x5xf32>
    %c0_5 = arith.constant 0 : index
    %c0_6 = arith.constant 0 : index
    %6 = vector.load %arg2[%c0_5, %c0_6] : memref<9x5xf32, #tpu.memory_space<vmem>>, vector<9x5xf32>
    %cst_7 = arith.constant dense<0.000000e+00> : vector<128x5xf32>
    %7 = tpu.matmul %0, %6, %cst_7 {dimension_numbers = #tpu.dot_dimension_numbers<[1], [0], [0], [1], [0, 0, 1, 1], [], []>} : vector<128x9xf32>, vector<9x5xf32>, vector<128x5xf32> -> vector<128x5xf32>
    %c0_8 = arith.constant 0 : index
    %c0_9 = arith.constant 0 : index
    %8 = vector.load %arg8[%c0_8, %c0_9] : memref<1x5xf32, #tpu.memory_space<vmem>>, vector<1x5xf32>
    %9 = vector.broadcast %8 : vector<1x5xf32> to vector<128x5xf32>
    %10 = arith.addf %7, %9 : vector<128x5xf32>
    %c0_10 = arith.constant 0 : index
    %c0_11 = arith.constant 0 : index
    %11 = vector.load %arg3[%c0_10, %c0_11] : memref<9x5xf32, #tpu.memory_space<vmem>>, vector<9x5xf32>
    %cst_12 = arith.constant dense<0.000000e+00> : vector<128x5xf32>
    %12 = tpu.matmul %0, %11, %cst_12 {dimension_numbers = #tpu.dot_dimension_numbers<[1], [0], [0], [1], [0, 0, 1, 1], [], []>} : vector<128x9xf32>, vector<9x5xf32>, vector<128x5xf32> -> vector<128x5xf32>
    %c0_13 = arith.constant 0 : index
    %c0_14 = arith.constant 0 : index
    %13 = vector.load %arg9[%c0_13, %c0_14] : memref<1x5xf32, #tpu.memory_space<vmem>>, vector<1x5xf32>
    %14 = vector.broadcast %13 : vector<1x5xf32> to vector<128x5xf32>
    %15 = arith.addf %12, %14 : vector<128x5xf32>
    %c0_15 = arith.constant 0 : index
    %c0_16 = arith.constant 0 : index
    %16 = vector.load %arg4[%c0_15, %c0_16] : memref<5x5xf32, #tpu.memory_space<vmem>>, vector<5x5xf32>
    %c0_17 = arith.constant 0 : index
    %c0_18 = arith.constant 0 : index
    %17 = vector.load %arg5[%c0_17, %c0_18] : memref<5x5xf32, #tpu.memory_space<vmem>>, vector<5x5xf32>
    %c0_19 = arith.constant 0 : index
    %c0_20 = arith.constant 0 : index
    %18 = vector.load %arg6[%c0_19, %c0_20] : memref<5x5xf32, #tpu.memory_space<vmem>>, vector<5x5xf32>
    %c0_21 = arith.constant 0 : index
    %c0_22 = arith.constant 0 : index
    %19 = vector.load %arg10[%c0_21, %c0_22] : memref<1x5xf32, #tpu.memory_space<vmem>>, vector<1x5xf32>
    %c0_23 = arith.constant 0 : index
    %c0_24 = arith.constant 0 : index
    %20 = vector.load %arg11[%c0_23, %c0_24] : memref<16x5xf32, #tpu.memory_space<vmem>>, vector<16x5xf32>
    %cst_25 = arith.constant 0.000000e+00 : f32
    %21 = vector.broadcast %cst_25 : f32 to vector<8x5xf32>
    %cst_26 = arith.constant 0.000000e+00 : f32
    %22 = vector.broadcast %cst_26 : f32 to vector<8x1xf32>
    %cst_27 = arith.constant dense<0.000000e+00> : vector<8x5xf32>
    %23 = tpu.matmul %21, %16, %cst_27 {dimension_numbers = #tpu.dot_dimension_numbers<[1], [0], [0], [1], [0, 0, 1, 1], [], []>} : vector<8x5xf32>, vector<5x5xf32>, vector<8x5xf32> -> vector<8x5xf32>
    %cst_28 = arith.constant dense<0.000000e+00> : vector<8x5xf32>
    %24 = tpu.matmul %21, %17, %cst_28 {dimension_numbers = #tpu.dot_dimension_numbers<[1], [0], [0], [1], [0, 0, 1, 1], [], []>} : vector<8x5xf32>, vector<5x5xf32>, vector<8x5xf32> -> vector<8x5xf32>
    %cst_29 = arith.constant dense<0.000000e+00> : vector<8x5xf32>
    %25 = tpu.matmul %21, %18, %cst_29 {dimension_numbers = #tpu.dot_dimension_numbers<[1], [0], [0], [1], [0, 0, 1, 1], [], []>} : vector<8x5xf32>, vector<5x5xf32>, vector<8x5xf32> -> vector<8x5xf32>
    %26 = vector.extract_strided_slice %5 {offsets = [0, 0], sizes = [8, 5], strides = [1, 1]} : vector<128x5xf32> to vector<8x5xf32>
    %27 = arith.addf %26, %23 : vector<8x5xf32>
    %28 = arith.negf %27 : vector<8x5xf32>
    %29 = math.exp %28 : vector<8x5xf32>
    %cst_30 = arith.constant 1.000000e+00 : f32
    %30 = vector.broadcast %cst_30 : f32 to vector<8x5xf32>
    %31 = arith.addf %30, %29 : vector<8x5xf32>
    %32 = arith.divf %30, %31 : vector<8x5xf32>
    %33 = vector.extract_strided_slice %10 {offsets = [0, 0], sizes = [8, 5], strides = [1, 1]} : vector<128x5xf32> to vector<8x5xf32>
    %34 = arith.addf %33, %24 : vector<8x5xf32>
    %35 = arith.negf %34 : vector<8x5xf32>
    %36 = math.exp %35 : vector<8x5xf32>
    %cst_31 = arith.constant 1.000000e+00 : f32
    %37 = vector.broadcast %cst_31 : f32 to vector<8x5xf32>
    %38 = arith.addf %37, %36 : vector<8x5xf32>
    %39 = arith.divf %37, %38 : vector<8x5xf32>
    %40 = vector.extract_strided_slice %15 {offsets = [0, 0], sizes = [8, 5], strides = [1, 1]} : vector<128x5xf32> to vector<8x5xf32>
    %41 = vector.broadcast %19 : vector<1x5xf32> to vector<8x5xf32>
    %42 = arith.addf %25, %41 : vector<8x5xf32>
    %43 = arith.mulf %32, %42 : vector<8x5xf32>
    %44 = arith.addf %40, %43 : vector<8x5xf32>
    %45 = math.tanh %44 : vector<8x5xf32>
    %46 = arith.subf %21, %45 : vector<8x5xf32>
    %47 = arith.mulf %39, %46 : vector<8x5xf32>
    %48 = arith.addf %45, %47 : vector<8x5xf32>
    %49 = vector.extract_strided_slice %20 {offsets = [0, 0], sizes = [1, 5], strides = [1, 1]} : vector<16x5xf32> to vector<1x5xf32>
    %50 = vector.broadcast %49 : vector<1x5xf32> to vector<8x5xf32>
    %51 = arith.mulf %48, %50 : vector<8x5xf32>
    %cst_32 = arith.constant dense<0.000000e+00> : vector<8xf32>
    %52 = vector.multi_reduction <add>, %51, %cst_32 [1] : vector<8x5xf32> to vector<8xf32>
    %53 = vector.shape_cast %52 : vector<8xf32> to vector<8x1xf32>
    %54 = vector.shape_cast %48 : vector<8x5xf32> to vector<1x8x5xf32>
    %cst_33 = arith.constant dense<0.000000e+00> : vector<1xf32>
    %55 = vector.multi_reduction <add>, %54, %cst_33 [1, 2] : vector<1x8x5xf32> to vector<1xf32>
    %56 = vector.shape_cast %55 : vector<1xf32> to vector<1x1x1xf32>
    %57 = vector.extract %56[0, 0, 0] : f32 from vector<1x1x1xf32>
    %58 = vector.broadcast %57 : f32 to vector<1x1xf32>
    %59 = arith.mulf %48, %48 : vector<8x5xf32>
    %60 = vector.shape_cast %59 : vector<8x5xf32> to vector<1x8x5xf32>
    %cst_34 = arith.constant dense<0.000000e+00> : vector<1xf32>
    %61 = vector.multi_reduction <add>, %60, %cst_34 [1, 2] : vector<1x8x5xf32> to vector<1xf32>
    %62 = vector.shape_cast %61 : vector<1xf32> to vector<1x1x1xf32>
    %63 = vector.extract %62[0, 0, 0] : f32 from vector<1x1x1xf32>
    %64 = vector.broadcast %63 : f32 to vector<1x1xf32>
    %cst_35 = arith.constant 2.500000e-02 : f32
    %65 = vector.broadcast %cst_35 : f32 to vector<1x1xf32>
    %66 = arith.mulf %58, %65 : vector<1x1xf32>
    %cst_36 = arith.constant 2.500000e-02 : f32
    %67 = vector.broadcast %cst_36 : f32 to vector<1x1xf32>
    %68 = arith.mulf %64, %67 : vector<1x1xf32>
    %69 = arith.mulf %66, %66 : vector<1x1xf32>
    %70 = arith.subf %68, %69 : vector<1x1xf32>
    %cst_37 = arith.constant 9.99999974E-6 : f32
    %71 = vector.broadcast %cst_37 : f32 to vector<1x1xf32>
    %72 = arith.addf %70, %71 : vector<1x1xf32>
    %73 = math.rsqrt %72 : vector<1x1xf32>
    %c0_38 = arith.constant 0 : index
    %74 = memref.load %arg12[%c0_38] : memref<16xf32, #tpu.memory_space<smem>>
    %75 = vector.broadcast %74 : f32 to vector<8x1xf32>
    %76 = arith.mulf %75, %53 : vector<8x1xf32>
    %c0_39 = arith.constant 0 : index
    %77 = memref.load %arg13[%c0_39] : memref<16xf32, #tpu.memory_space<smem>>
    %78 = vector.broadcast %77 : f32 to vector<1x1xf32>
    %79 = arith.mulf %78, %66 : vector<1x1xf32>
    %80 = vector.broadcast %79 : vector<1x1xf32> to vector<8x1xf32>
    %81 = arith.subf %76, %80 : vector<8x1xf32>
    %82 = vector.broadcast %73 : vector<1x1xf32> to vector<8x1xf32>
    %83 = arith.mulf %82, %81 : vector<8x1xf32>
    %84 = arith.addf %22, %83 : vector<8x1xf32>
    %cst_40 = arith.constant dense<0.000000e+00> : vector<8x5xf32>
    %85 = tpu.matmul %48, %16, %cst_40 {dimension_numbers = #tpu.dot_dimension_numbers<[1], [0], [0], [1], [0, 0, 1, 1], [], []>} : vector<8x5xf32>, vector<5x5xf32>, vector<8x5xf32> -> vector<8x5xf32>
    %cst_41 = arith.constant dense<0.000000e+00> : vector<8x5xf32>
    %86 = tpu.matmul %48, %17, %cst_41 {dimension_numbers = #tpu.dot_dimension_numbers<[1], [0], [0], [1], [0, 0, 1, 1], [], []>} : vector<8x5xf32>, vector<5x5xf32>, vector<8x5xf32> -> vector<8x5xf32>
    %cst_42 = arith.constant dense<0.000000e+00> : vector<8x5xf32>
    %87 = tpu.matmul %48, %18, %cst_42 {dimension_numbers = #tpu.dot_dimension_numbers<[1], [0], [0], [1], [0, 0, 1, 1], [], []>} : vector<8x5xf32>, vector<5x5xf32>, vector<8x5xf32> -> vector<8x5xf32>
    %88 = vector.extract_strided_slice %5 {offsets = [8, 0], sizes = [8, 5], strides = [1, 1]} : vector<128x5xf32> to vector<8x5xf32>
    %89 = arith.addf %88, %85 : vector<8x5xf32>
    %90 = arith.negf %89 : vector<8x5xf32>
    %91 = math.exp %90 : vector<8x5xf32>
    %cst_43 = arith.constant 1.000000e+00 : f32
    %92 = vector.broadcast %cst_43 : f32 to vector<8x5xf32>
    %93 = arith.addf %92, %91 : vector<8x5xf32>
    %94 = arith.divf %92, %93 : vector<8x5xf32>
    %95 = vector.extract_strided_slice %10 {offsets = [8, 0], sizes = [8, 5], strides = [1, 1]} : vector<128x5xf32> to vector<8x5xf32>
    %96 = arith.addf %95, %86 : vector<8x5xf32>
    %97 = arith.negf %96 : vector<8x5xf32>
    %98 = math.exp %97 : vector<8x5xf32>
    %cst_44 = arith.constant 1.000000e+00 : f32
    %99 = vector.broadcast %cst_44 : f32 to vector<8x5xf32>
    %100 = arith.addf %99, %98 : vector<8x5xf32>
    %101 = arith.divf %99, %100 : vector<8x5xf32>
    %102 = vector.extract_strided_slice %15 {offsets = [8, 0], sizes = [8, 5], strides = [1, 1]} : vector<128x5xf32> to vector<8x5xf32>
    %103 = vector.broadcast %19 : vector<1x5xf32> to vector<8x5xf32>
    %104 = arith.addf %87, %103 : vector<8x5xf32>
    %105 = arith.mulf %94, %104 : vector<8x5xf32>
    %106 = arith.addf %102, %105 : vector<8x5xf32>
    %107 = math.tanh %106 : vector<8x5xf32>
    %108 = arith.subf %48, %107 : vector<8x5xf32>
    %109 = arith.mulf %101, %108 : vector<8x5xf32>
    %110 = arith.addf %107, %109 : vector<8x5xf32>
    %111 = vector.extract_strided_slice %20 {offsets = [1, 0], sizes = [1, 5], strides = [1, 1]} : vector<16x5xf32> to vector<1x5xf32>
    %112 = vector.broadcast %111 : vector<1x5xf32> to vector<8x5xf32>
    %113 = arith.mulf %110, %112 : vector<8x5xf32>
    %cst_45 = arith.constant dense<0.000000e+00> : vector<8xf32>
    %114 = vector.multi_reduction <add>, %113, %cst_45 [1] : vector<8x5xf32> to vector<8xf32>
    %115 = vector.shape_cast %114 : vector<8xf32> to vector<8x1xf32>
    %116 = vector.shape_cast %110 : vector<8x5xf32> to vector<1x8x5xf32>
    %cst_46 = arith.constant dense<0.000000e+00> : vector<1xf32>
    %117 = vector.multi_reduction <add>, %116, %cst_46 [1, 2] : vector<1x8x5xf32> to vector<1xf32>
    %118 = vector.shape_cast %117 : vector<1xf32> to vector<1x1x1xf32>
    %119 = vector.extract %118[0, 0, 0] : f32 from vector<1x1x1xf32>
    %120 = vector.broadcast %119 : f32 to vector<1x1xf32>
    %121 = arith.mulf %110, %110 : vector<8x5xf32>
    %122 = vector.shape_cast %121 : vector<8x5xf32> to vector<1x8x5xf32>
    %cst_47 = arith.constant dense<0.000000e+00> : vector<1xf32>
    %123 = vector.multi_reduction <add>, %122, %cst_47 [1, 2] : vector<1x8x5xf32> to vector<1xf32>
    %124 = vector.shape_cast %123 : vector<1xf32> to vector<1x1x1xf32>
    %125 = vector.extract %124[0, 0, 0] : f32 from vector<1x1x1xf32>
    %126 = vector.broadcast %125 : f32 to vector<1x1xf32>
    %cst_48 = arith.constant 2.500000e-02 : f32
    %127 = vector.broadcast %cst_48 : f32 to vector<1x1xf32>
    %128 = arith.mulf %120, %127 : vector<1x1xf32>
    %cst_49 = arith.constant 2.500000e-02 : f32
    %129 = vector.broadcast %cst_49 : f32 to vector<1x1xf32>
    %130 = arith.mulf %126, %129 : vector<1x1xf32>
    %131 = arith.mulf %128, %128 : vector<1x1xf32>
    %132 = arith.subf %130, %131 : vector<1x1xf32>
    %cst_50 = arith.constant 9.99999974E-6 : f32
    %133 = vector.broadcast %cst_50 : f32 to vector<1x1xf32>
    %134 = arith.addf %132, %133 : vector<1x1xf32>
    %135 = math.rsqrt %134 : vector<1x1xf32>
    %c1 = arith.constant 1 : index
    %136 = memref.load %arg12[%c1] : memref<16xf32, #tpu.memory_space<smem>>
    %137 = vector.broadcast %136 : f32 to vector<8x1xf32>
    %138 = arith.mulf %137, %115 : vector<8x1xf32>
    %c1_51 = arith.constant 1 : index
    %139 = memref.load %arg13[%c1_51] : memref<16xf32, #tpu.memory_space<smem>>
    %140 = vector.broadcast %139 : f32 to vector<1x1xf32>
    %141 = arith.mulf %140, %128 : vector<1x1xf32>
    %142 = vector.broadcast %141 : vector<1x1xf32> to vector<8x1xf32>
    %143 = arith.subf %138, %142 : vector<8x1xf32>
    %144 = vector.broadcast %135 : vector<1x1xf32> to vector<8x1xf32>
    %145 = arith.mulf %144, %143 : vector<8x1xf32>
    %146 = arith.addf %84, %145 : vector<8x1xf32>
    %cst_52 = arith.constant dense<0.000000e+00> : vector<8x5xf32>
    %147 = tpu.matmul %110, %16, %cst_52 {dimension_numbers = #tpu.dot_dimension_numbers<[1], [0], [0], [1], [0, 0, 1, 1], [], []>} : vector<8x5xf32>, vector<5x5xf32>, vector<8x5xf32> -> vector<8x5xf32>
    %cst_53 = arith.constant dense<0.000000e+00> : vector<8x5xf32>
    %148 = tpu.matmul %110, %17, %cst_53 {dimension_numbers = #tpu.dot_dimension_numbers<[1], [0], [0], [1], [0, 0, 1, 1], [], []>} : vector<8x5xf32>, vector<5x5xf32>, vector<8x5xf32> -> vector<8x5xf32>
    %cst_54 = arith.constant dense<0.000000e+00> : vector<8x5xf32>
    %149 = tpu.matmul %110, %18, %cst_54 {dimension_numbers = #tpu.dot_dimension_numbers<[1], [0], [0], [1], [0, 0, 1, 1], [], []>} : vector<8x5xf32>, vector<5x5xf32>, vector<8x5xf32> -> vector<8x5xf32>
    %150 = vector.extract_strided_slice %5 {offsets = [16, 0], sizes = [8, 5], strides = [1, 1]} : vector<128x5xf32> to vector<8x5xf32>
    %151 = arith.addf %150, %147 : vector<8x5xf32>
    %152 = arith.negf %151 : vector<8x5xf32>
    %153 = math.exp %152 : vector<8x5xf32>
    %cst_55 = arith.constant 1.000000e+00 : f32
    %154 = vector.broadcast %cst_55 : f32 to vector<8x5xf32>
    %155 = arith.addf %154, %153 : vector<8x5xf32>
    %156 = arith.divf %154, %155 : vector<8x5xf32>
    %157 = vector.extract_strided_slice %10 {offsets = [16, 0], sizes = [8, 5], strides = [1, 1]} : vector<128x5xf32> to vector<8x5xf32>
    %158 = arith.addf %157, %148 : vector<8x5xf32>
    %159 = arith.negf %158 : vector<8x5xf32>
    %160 = math.exp %159 : vector<8x5xf32>
    %cst_56 = arith.constant 1.000000e+00 : f32
    %161 = vector.broadcast %cst_56 : f32 to vector<8x5xf32>
    %162 = arith.addf %161, %160 : vector<8x5xf32>
    %163 = arith.divf %161, %162 : vector<8x5xf32>
    %164 = vector.extract_strided_slice %15 {offsets = [16, 0], sizes = [8, 5], strides = [1, 1]} : vector<128x5xf32> to vector<8x5xf32>
    %165 = vector.broadcast %19 : vector<1x5xf32> to vector<8x5xf32>
    %166 = arith.addf %149, %165 : vector<8x5xf32>
    %167 = arith.mulf %156, %166 : vector<8x5xf32>
    %168 = arith.addf %164, %167 : vector<8x5xf32>
    %169 = math.tanh %168 : vector<8x5xf32>
    %170 = arith.subf %110, %169 : vector<8x5xf32>
    %171 = arith.mulf %163, %170 : vector<8x5xf32>
    %172 = arith.addf %169, %171 : vector<8x5xf32>
    %173 = vector.extract_strided_slice %20 {offsets = [2, 0], sizes = [1, 5], strides = [1, 1]} : vector<16x5xf32> to vector<1x5xf32>
    %174 = vector.broadcast %173 : vector<1x5xf32> to vector<8x5xf32>
    %175 = arith.mulf %172, %174 : vector<8x5xf32>
    %cst_57 = arith.constant dense<0.000000e+00> : vector<8xf32>
    %176 = vector.multi_reduction <add>, %175, %cst_57 [1] : vector<8x5xf32> to vector<8xf32>
    %177 = vector.shape_cast %176 : vector<8xf32> to vector<8x1xf32>
    %178 = vector.shape_cast %172 : vector<8x5xf32> to vector<1x8x5xf32>
    %cst_58 = arith.constant dense<0.000000e+00> : vector<1xf32>
    %179 = vector.multi_reduction <add>, %178, %cst_58 [1, 2] : vector<1x8x5xf32> to vector<1xf32>
    %180 = vector.shape_cast %179 : vector<1xf32> to vector<1x1x1xf32>
    %181 = vector.extract %180[0, 0, 0] : f32 from vector<1x1x1xf32>
    %182 = vector.broadcast %181 : f32 to vector<1x1xf32>
    %183 = arith.mulf %172, %172 : vector<8x5xf32>
    %184 = vector.shape_cast %183 : vector<8x5xf32> to vector<1x8x5xf32>
    %cst_59 = arith.constant dense<0.000000e+00> : vector<1xf32>
    %185 = vector.multi_reduction <add>, %184, %cst_59 [1, 2] : vector<1x8x5xf32> to vector<1xf32>
    %186 = vector.shape_cast %185 : vector<1xf32> to vector<1x1x1xf32>
    %187 = vector.extract %186[0, 0, 0] : f32 from vector<1x1x1xf32>
    %188 = vector.broadcast %187 : f32 to vector<1x1xf32>
    %cst_60 = arith.constant 2.500000e-02 : f32
    %189 = vector.broadcast %cst_60 : f32 to vector<1x1xf32>
    %190 = arith.mulf %182, %189 : vector<1x1xf32>
    %cst_61 = arith.constant 2.500000e-02 : f32
    %191 = vector.broadcast %cst_61 : f32 to vector<1x1xf32>
    %192 = arith.mulf %188, %191 : vector<1x1xf32>
    %193 = arith.mulf %190, %190 : vector<1x1xf32>
    %194 = arith.subf %192, %193 : vector<1x1xf32>
    %cst_62 = arith.constant 9.99999974E-6 : f32
    %195 = vector.broadcast %cst_62 : f32 to vector<1x1xf32>
    %196 = arith.addf %194, %195 : vector<1x1xf32>
    %197 = math.rsqrt %196 : vector<1x1xf32>
    %c2 = arith.constant 2 : index
    %198 = memref.load %arg12[%c2] : memref<16xf32, #tpu.memory_space<smem>>
    %199 = vector.broadcast %198 : f32 to vector<8x1xf32>
    %200 = arith.mulf %199, %177 : vector<8x1xf32>
    %c2_63 = arith.constant 2 : index
    %201 = memref.load %arg13[%c2_63] : memref<16xf32, #tpu.memory_space<smem>>
    %202 = vector.broadcast %201 : f32 to vector<1x1xf32>
    %203 = arith.mulf %202, %190 : vector<1x1xf32>
    %204 = vector.broadcast %203 : vector<1x1xf32> to vector<8x1xf32>
    %205 = arith.subf %200, %204 : vector<8x1xf32>
    %206 = vector.broadcast %197 : vector<1x1xf32> to vector<8x1xf32>
    %207 = arith.mulf %206, %205 : vector<8x1xf32>
    %208 = arith.addf %146, %207 : vector<8x1xf32>
    %cst_64 = arith.constant dense<0.000000e+00> : vector<8x5xf32>
    %209 = tpu.matmul %172, %16, %cst_64 {dimension_numbers = #tpu.dot_dimension_numbers<[1], [0], [0], [1], [0, 0, 1, 1], [], []>} : vector<8x5xf32>, vector<5x5xf32>, vector<8x5xf32> -> vector<8x5xf32>
    %cst_65 = arith.constant dense<0.000000e+00> : vector<8x5xf32>
    %210 = tpu.matmul %172, %17, %cst_65 {dimension_numbers = #tpu.dot_dimension_numbers<[1], [0], [0], [1], [0, 0, 1, 1], [], []>} : vector<8x5xf32>, vector<5x5xf32>, vector<8x5xf32> -> vector<8x5xf32>
    %cst_66 = arith.constant dense<0.000000e+00> : vector<8x5xf32>
    %211 = tpu.matmul %172, %18, %cst_66 {dimension_numbers = #tpu.dot_dimension_numbers<[1], [0], [0], [1], [0, 0, 1, 1], [], []>} : vector<8x5xf32>, vector<5x5xf32>, vector<8x5xf32> -> vector<8x5xf32>
    %212 = vector.extract_strided_slice %5 {offsets = [24, 0], sizes = [8, 5], strides = [1, 1]} : vector<128x5xf32> to vector<8x5xf32>
    %213 = arith.addf %212, %209 : vector<8x5xf32>
    %214 = arith.negf %213 : vector<8x5xf32>
    %215 = math.exp %214 : vector<8x5xf32>
    %cst_67 = arith.constant 1.000000e+00 : f32
    %216 = vector.broadcast %cst_67 : f32 to vector<8x5xf32>
    %217 = arith.addf %216, %215 : vector<8x5xf32>
    %218 = arith.divf %216, %217 : vector<8x5xf32>
    %219 = vector.extract_strided_slice %10 {offsets = [24, 0], sizes = [8, 5], strides = [1, 1]} : vector<128x5xf32> to vector<8x5xf32>
    %220 = arith.addf %219, %210 : vector<8x5xf32>
    %221 = arith.negf %220 : vector<8x5xf32>
    %222 = math.exp %221 : vector<8x5xf32>
    %cst_68 = arith.constant 1.000000e+00 : f32
    %223 = vector.broadcast %cst_68 : f32 to vector<8x5xf32>
    %224 = arith.addf %223, %222 : vector<8x5xf32>
    %225 = arith.divf %223, %224 : vector<8x5xf32>
    %226 = vector.extract_strided_slice %15 {offsets = [24, 0], sizes = [8, 5], strides = [1, 1]} : vector<128x5xf32> to vector<8x5xf32>
    %227 = vector.broadcast %19 : vector<1x5xf32> to vector<8x5xf32>
    %228 = arith.addf %211, %227 : vector<8x5xf32>
    %229 = arith.mulf %218, %228 : vector<8x5xf32>
    %230 = arith.addf %226, %229 : vector<8x5xf32>
    %231 = math.tanh %230 : vector<8x5xf32>
    %232 = arith.subf %172, %231 : vector<8x5xf32>
    %233 = arith.mulf %225, %232 : vector<8x5xf32>
    %234 = arith.addf %231, %233 : vector<8x5xf32>
    %235 = vector.extract_strided_slice %20 {offsets = [3, 0], sizes = [1, 5], strides = [1, 1]} : vector<16x5xf32> to vector<1x5xf32>
    %236 = vector.broadcast %235 : vector<1x5xf32> to vector<8x5xf32>
    %237 = arith.mulf %234, %236 : vector<8x5xf32>
    %cst_69 = arith.constant dense<0.000000e+00> : vector<8xf32>
    %238 = vector.multi_reduction <add>, %237, %cst_69 [1] : vector<8x5xf32> to vector<8xf32>
    %239 = vector.shape_cast %238 : vector<8xf32> to vector<8x1xf32>
    %240 = vector.shape_cast %234 : vector<8x5xf32> to vector<1x8x5xf32>
    %cst_70 = arith.constant dense<0.000000e+00> : vector<1xf32>
    %241 = vector.multi_reduction <add>, %240, %cst_70 [1, 2] : vector<1x8x5xf32> to vector<1xf32>
    %242 = vector.shape_cast %241 : vector<1xf32> to vector<1x1x1xf32>
    %243 = vector.extract %242[0, 0, 0] : f32 from vector<1x1x1xf32>
    %244 = vector.broadcast %243 : f32 to vector<1x1xf32>
    %245 = arith.mulf %234, %234 : vector<8x5xf32>
    %246 = vector.shape_cast %245 : vector<8x5xf32> to vector<1x8x5xf32>
    %cst_71 = arith.constant dense<0.000000e+00> : vector<1xf32>
    %247 = vector.multi_reduction <add>, %246, %cst_71 [1, 2] : vector<1x8x5xf32> to vector<1xf32>
    %248 = vector.shape_cast %247 : vector<1xf32> to vector<1x1x1xf32>
    %249 = vector.extract %248[0, 0, 0] : f32 from vector<1x1x1xf32>
    %250 = vector.broadcast %249 : f32 to vector<1x1xf32>
    %cst_72 = arith.constant 2.500000e-02 : f32
    %251 = vector.broadcast %cst_72 : f32 to vector<1x1xf32>
    %252 = arith.mulf %244, %251 : vector<1x1xf32>
    %cst_73 = arith.constant 2.500000e-02 : f32
    %253 = vector.broadcast %cst_73 : f32 to vector<1x1xf32>
    %254 = arith.mulf %250, %253 : vector<1x1xf32>
    %255 = arith.mulf %252, %252 : vector<1x1xf32>
    %256 = arith.subf %254, %255 : vector<1x1xf32>
    %cst_74 = arith.constant 9.99999974E-6 : f32
    %257 = vector.broadcast %cst_74 : f32 to vector<1x1xf32>
    %258 = arith.addf %256, %257 : vector<1x1xf32>
    %259 = math.rsqrt %258 : vector<1x1xf32>
    %c3 = arith.constant 3 : index
    %260 = memref.load %arg12[%c3] : memref<16xf32, #tpu.memory_space<smem>>
    %261 = vector.broadcast %260 : f32 to vector<8x1xf32>
    %262 = arith.mulf %261, %239 : vector<8x1xf32>
    %c3_75 = arith.constant 3 : index
    %263 = memref.load %arg13[%c3_75] : memref<16xf32, #tpu.memory_space<smem>>
    %264 = vector.broadcast %263 : f32 to vector<1x1xf32>
    %265 = arith.mulf %264, %252 : vector<1x1xf32>
    %266 = vector.broadcast %265 : vector<1x1xf32> to vector<8x1xf32>
    %267 = arith.subf %262, %266 : vector<8x1xf32>
    %268 = vector.broadcast %259 : vector<1x1xf32> to vector<8x1xf32>
    %269 = arith.mulf %268, %267 : vector<8x1xf32>
    %270 = arith.addf %208, %269 : vector<8x1xf32>
    %cst_76 = arith.constant dense<0.000000e+00> : vector<8x5xf32>
    %271 = tpu.matmul %234, %16, %cst_76 {dimension_numbers = #tpu.dot_dimension_numbers<[1], [0], [0], [1], [0, 0, 1, 1], [], []>} : vector<8x5xf32>, vector<5x5xf32>, vector<8x5xf32> -> vector<8x5xf32>
    %cst_77 = arith.constant dense<0.000000e+00> : vector<8x5xf32>
    %272 = tpu.matmul %234, %17, %cst_77 {dimension_numbers = #tpu.dot_dimension_numbers<[1], [0], [0], [1], [0, 0, 1, 1], [], []>} : vector<8x5xf32>, vector<5x5xf32>, vector<8x5xf32> -> vector<8x5xf32>
    %cst_78 = arith.constant dense<0.000000e+00> : vector<8x5xf32>
    %273 = tpu.matmul %234, %18, %cst_78 {dimension_numbers = #tpu.dot_dimension_numbers<[1], [0], [0], [1], [0, 0, 1, 1], [], []>} : vector<8x5xf32>, vector<5x5xf32>, vector<8x5xf32> -> vector<8x5xf32>
    %274 = vector.extract_strided_slice %5 {offsets = [32, 0], sizes = [8, 5], strides = [1, 1]} : vector<128x5xf32> to vector<8x5xf32>
    %275 = arith.addf %274, %271 : vector<8x5xf32>
    %276 = arith.negf %275 : vector<8x5xf32>
    %277 = math.exp %276 : vector<8x5xf32>
    %cst_79 = arith.constant 1.000000e+00 : f32
    %278 = vector.broadcast %cst_79 : f32 to vector<8x5xf32>
    %279 = arith.addf %278, %277 : vector<8x5xf32>
    %280 = arith.divf %278, %279 : vector<8x5xf32>
    %281 = vector.extract_strided_slice %10 {offsets = [32, 0], sizes = [8, 5], strides = [1, 1]} : vector<128x5xf32> to vector<8x5xf32>
    %282 = arith.addf %281, %272 : vector<8x5xf32>
    %283 = arith.negf %282 : vector<8x5xf32>
    %284 = math.exp %283 : vector<8x5xf32>
    %cst_80 = arith.constant 1.000000e+00 : f32
    %285 = vector.broadcast %cst_80 : f32 to vector<8x5xf32>
    %286 = arith.addf %285, %284 : vector<8x5xf32>
    %287 = arith.divf %285, %286 : vector<8x5xf32>
    %288 = vector.extract_strided_slice %15 {offsets = [32, 0], sizes = [8, 5], strides = [1, 1]} : vector<128x5xf32> to vector<8x5xf32>
    %289 = vector.broadcast %19 : vector<1x5xf32> to vector<8x5xf32>
    %290 = arith.addf %273, %289 : vector<8x5xf32>
    %291 = arith.mulf %280, %290 : vector<8x5xf32>
    %292 = arith.addf %288, %291 : vector<8x5xf32>
    %293 = math.tanh %292 : vector<8x5xf32>
    %294 = arith.subf %234, %293 : vector<8x5xf32>
    %295 = arith.mulf %287, %294 : vector<8x5xf32>
    %296 = arith.addf %293, %295 : vector<8x5xf32>
    %297 = vector.extract_strided_slice %20 {offsets = [4, 0], sizes = [1, 5], strides = [1, 1]} : vector<16x5xf32> to vector<1x5xf32>
    %298 = vector.broadcast %297 : vector<1x5xf32> to vector<8x5xf32>
    %299 = arith.mulf %296, %298 : vector<8x5xf32>
    %cst_81 = arith.constant dense<0.000000e+00> : vector<8xf32>
    %300 = vector.multi_reduction <add>, %299, %cst_81 [1] : vector<8x5xf32> to vector<8xf32>
    %301 = vector.shape_cast %300 : vector<8xf32> to vector<8x1xf32>
    %302 = vector.shape_cast %296 : vector<8x5xf32> to vector<1x8x5xf32>
    %cst_82 = arith.constant dense<0.000000e+00> : vector<1xf32>
    %303 = vector.multi_reduction <add>, %302, %cst_82 [1, 2] : vector<1x8x5xf32> to vector<1xf32>
    %304 = vector.shape_cast %303 : vector<1xf32> to vector<1x1x1xf32>
    %305 = vector.extract %304[0, 0, 0] : f32 from vector<1x1x1xf32>
    %306 = vector.broadcast %305 : f32 to vector<1x1xf32>
    %307 = arith.mulf %296, %296 : vector<8x5xf32>
    %308 = vector.shape_cast %307 : vector<8x5xf32> to vector<1x8x5xf32>
    %cst_83 = arith.constant dense<0.000000e+00> : vector<1xf32>
    %309 = vector.multi_reduction <add>, %308, %cst_83 [1, 2] : vector<1x8x5xf32> to vector<1xf32>
    %310 = vector.shape_cast %309 : vector<1xf32> to vector<1x1x1xf32>
    %311 = vector.extract %310[0, 0, 0] : f32 from vector<1x1x1xf32>
    %312 = vector.broadcast %311 : f32 to vector<1x1xf32>
    %cst_84 = arith.constant 2.500000e-02 : f32
    %313 = vector.broadcast %cst_84 : f32 to vector<1x1xf32>
    %314 = arith.mulf %306, %313 : vector<1x1xf32>
    %cst_85 = arith.constant 2.500000e-02 : f32
    %315 = vector.broadcast %cst_85 : f32 to vector<1x1xf32>
    %316 = arith.mulf %312, %315 : vector<1x1xf32>
    %317 = arith.mulf %314, %314 : vector<1x1xf32>
    %318 = arith.subf %316, %317 : vector<1x1xf32>
    %cst_86 = arith.constant 9.99999974E-6 : f32
    %319 = vector.broadcast %cst_86 : f32 to vector<1x1xf32>
    %320 = arith.addf %318, %319 : vector<1x1xf32>
    %321 = math.rsqrt %320 : vector<1x1xf32>
    %c4 = arith.constant 4 : index
    %322 = memref.load %arg12[%c4] : memref<16xf32, #tpu.memory_space<smem>>
    %323 = vector.broadcast %322 : f32 to vector<8x1xf32>
    %324 = arith.mulf %323, %301 : vector<8x1xf32>
    %c4_87 = arith.constant 4 : index
    %325 = memref.load %arg13[%c4_87] : memref<16xf32, #tpu.memory_space<smem>>
    %326 = vector.broadcast %325 : f32 to vector<1x1xf32>
    %327 = arith.mulf %326, %314 : vector<1x1xf32>
    %328 = vector.broadcast %327 : vector<1x1xf32> to vector<8x1xf32>
    %329 = arith.subf %324, %328 : vector<8x1xf32>
    %330 = vector.broadcast %321 : vector<1x1xf32> to vector<8x1xf32>
    %331 = arith.mulf %330, %329 : vector<8x1xf32>
    %332 = arith.addf %270, %331 : vector<8x1xf32>
    %cst_88 = arith.constant dense<0.000000e+00> : vector<8x5xf32>
    %333 = tpu.matmul %296, %16, %cst_88 {dimension_numbers = #tpu.dot_dimension_numbers<[1], [0], [0], [1], [0, 0, 1, 1], [], []>} : vector<8x5xf32>, vector<5x5xf32>, vector<8x5xf32> -> vector<8x5xf32>
    %cst_89 = arith.constant dense<0.000000e+00> : vector<8x5xf32>
    %334 = tpu.matmul %296, %17, %cst_89 {dimension_numbers = #tpu.dot_dimension_numbers<[1], [0], [0], [1], [0, 0, 1, 1], [], []>} : vector<8x5xf32>, vector<5x5xf32>, vector<8x5xf32> -> vector<8x5xf32>
    %cst_90 = arith.constant dense<0.000000e+00> : vector<8x5xf32>
    %335 = tpu.matmul %296, %18, %cst_90 {dimension_numbers = #tpu.dot_dimension_numbers<[1], [0], [0], [1], [0, 0, 1, 1], [], []>} : vector<8x5xf32>, vector<5x5xf32>, vector<8x5xf32> -> vector<8x5xf32>
    %336 = vector.extract_strided_slice %5 {offsets = [40, 0], sizes = [8, 5], strides = [1, 1]} : vector<128x5xf32> to vector<8x5xf32>
    %337 = arith.addf %336, %333 : vector<8x5xf32>
    %338 = arith.negf %337 : vector<8x5xf32>
    %339 = math.exp %338 : vector<8x5xf32>
    %cst_91 = arith.constant 1.000000e+00 : f32
    %340 = vector.broadcast %cst_91 : f32 to vector<8x5xf32>
    %341 = arith.addf %340, %339 : vector<8x5xf32>
    %342 = arith.divf %340, %341 : vector<8x5xf32>
    %343 = vector.extract_strided_slice %10 {offsets = [40, 0], sizes = [8, 5], strides = [1, 1]} : vector<128x5xf32> to vector<8x5xf32>
    %344 = arith.addf %343, %334 : vector<8x5xf32>
    %345 = arith.negf %344 : vector<8x5xf32>
    %346 = math.exp %345 : vector<8x5xf32>
    %cst_92 = arith.constant 1.000000e+00 : f32
    %347 = vector.broadcast %cst_92 : f32 to vector<8x5xf32>
    %348 = arith.addf %347, %346 : vector<8x5xf32>
    %349 = arith.divf %347, %348 : vector<8x5xf32>
    %350 = vector.extract_strided_slice %15 {offsets = [40, 0], sizes = [8, 5], strides = [1, 1]} : vector<128x5xf32> to vector<8x5xf32>
    %351 = vector.broadcast %19 : vector<1x5xf32> to vector<8x5xf32>
    %352 = arith.addf %335, %351 : vector<8x5xf32>
    %353 = arith.mulf %342, %352 : vector<8x5xf32>
    %354 = arith.addf %350, %353 : vector<8x5xf32>
    %355 = math.tanh %354 : vector<8x5xf32>
    %356 = arith.subf %296, %355 : vector<8x5xf32>
    %357 = arith.mulf %349, %356 : vector<8x5xf32>
    %358 = arith.addf %355, %357 : vector<8x5xf32>
    %359 = vector.extract_strided_slice %20 {offsets = [5, 0], sizes = [1, 5], strides = [1, 1]} : vector<16x5xf32> to vector<1x5xf32>
    %360 = vector.broadcast %359 : vector<1x5xf32> to vector<8x5xf32>
    %361 = arith.mulf %358, %360 : vector<8x5xf32>
    %cst_93 = arith.constant dense<0.000000e+00> : vector<8xf32>
    %362 = vector.multi_reduction <add>, %361, %cst_93 [1] : vector<8x5xf32> to vector<8xf32>
    %363 = vector.shape_cast %362 : vector<8xf32> to vector<8x1xf32>
    %364 = vector.shape_cast %358 : vector<8x5xf32> to vector<1x8x5xf32>
    %cst_94 = arith.constant dense<0.000000e+00> : vector<1xf32>
    %365 = vector.multi_reduction <add>, %364, %cst_94 [1, 2] : vector<1x8x5xf32> to vector<1xf32>
    %366 = vector.shape_cast %365 : vector<1xf32> to vector<1x1x1xf32>
    %367 = vector.extract %366[0, 0, 0] : f32 from vector<1x1x1xf32>
    %368 = vector.broadcast %367 : f32 to vector<1x1xf32>
    %369 = arith.mulf %358, %358 : vector<8x5xf32>
    %370 = vector.shape_cast %369 : vector<8x5xf32> to vector<1x8x5xf32>
    %cst_95 = arith.constant dense<0.000000e+00> : vector<1xf32>
    %371 = vector.multi_reduction <add>, %370, %cst_95 [1, 2] : vector<1x8x5xf32> to vector<1xf32>
    %372 = vector.shape_cast %371 : vector<1xf32> to vector<1x1x1xf32>
    %373 = vector.extract %372[0, 0, 0] : f32 from vector<1x1x1xf32>
    %374 = vector.broadcast %373 : f32 to vector<1x1xf32>
    %cst_96 = arith.constant 2.500000e-02 : f32
    %375 = vector.broadcast %cst_96 : f32 to vector<1x1xf32>
    %376 = arith.mulf %368, %375 : vector<1x1xf32>
    %cst_97 = arith.constant 2.500000e-02 : f32
    %377 = vector.broadcast %cst_97 : f32 to vector<1x1xf32>
    %378 = arith.mulf %374, %377 : vector<1x1xf32>
    %379 = arith.mulf %376, %376 : vector<1x1xf32>
    %380 = arith.subf %378, %379 : vector<1x1xf32>
    %cst_98 = arith.constant 9.99999974E-6 : f32
    %381 = vector.broadcast %cst_98 : f32 to vector<1x1xf32>
    %382 = arith.addf %380, %381 : vector<1x1xf32>
    %383 = math.rsqrt %382 : vector<1x1xf32>
    %c5 = arith.constant 5 : index
    %384 = memref.load %arg12[%c5] : memref<16xf32, #tpu.memory_space<smem>>
    %385 = vector.broadcast %384 : f32 to vector<8x1xf32>
    %386 = arith.mulf %385, %363 : vector<8x1xf32>
    %c5_99 = arith.constant 5 : index
    %387 = memref.load %arg13[%c5_99] : memref<16xf32, #tpu.memory_space<smem>>
    %388 = vector.broadcast %387 : f32 to vector<1x1xf32>
    %389 = arith.mulf %388, %376 : vector<1x1xf32>
    %390 = vector.broadcast %389 : vector<1x1xf32> to vector<8x1xf32>
    %391 = arith.subf %386, %390 : vector<8x1xf32>
    %392 = vector.broadcast %383 : vector<1x1xf32> to vector<8x1xf32>
    %393 = arith.mulf %392, %391 : vector<8x1xf32>
    %394 = arith.addf %332, %393 : vector<8x1xf32>
    %cst_100 = arith.constant dense<0.000000e+00> : vector<8x5xf32>
    %395 = tpu.matmul %358, %16, %cst_100 {dimension_numbers = #tpu.dot_dimension_numbers<[1], [0], [0], [1], [0, 0, 1, 1], [], []>} : vector<8x5xf32>, vector<5x5xf32>, vector<8x5xf32> -> vector<8x5xf32>
    %cst_101 = arith.constant dense<0.000000e+00> : vector<8x5xf32>
    %396 = tpu.matmul %358, %17, %cst_101 {dimension_numbers = #tpu.dot_dimension_numbers<[1], [0], [0], [1], [0, 0, 1, 1], [], []>} : vector<8x5xf32>, vector<5x5xf32>, vector<8x5xf32> -> vector<8x5xf32>
    %cst_102 = arith.constant dense<0.000000e+00> : vector<8x5xf32>
    %397 = tpu.matmul %358, %18, %cst_102 {dimension_numbers = #tpu.dot_dimension_numbers<[1], [0], [0], [1], [0, 0, 1, 1], [], []>} : vector<8x5xf32>, vector<5x5xf32>, vector<8x5xf32> -> vector<8x5xf32>
    %398 = vector.extract_strided_slice %5 {offsets = [48, 0], sizes = [8, 5], strides = [1, 1]} : vector<128x5xf32> to vector<8x5xf32>
    %399 = arith.addf %398, %395 : vector<8x5xf32>
    %400 = arith.negf %399 : vector<8x5xf32>
    %401 = math.exp %400 : vector<8x5xf32>
    %cst_103 = arith.constant 1.000000e+00 : f32
    %402 = vector.broadcast %cst_103 : f32 to vector<8x5xf32>
    %403 = arith.addf %402, %401 : vector<8x5xf32>
    %404 = arith.divf %402, %403 : vector<8x5xf32>
    %405 = vector.extract_strided_slice %10 {offsets = [48, 0], sizes = [8, 5], strides = [1, 1]} : vector<128x5xf32> to vector<8x5xf32>
    %406 = arith.addf %405, %396 : vector<8x5xf32>
    %407 = arith.negf %406 : vector<8x5xf32>
    %408 = math.exp %407 : vector<8x5xf32>
    %cst_104 = arith.constant 1.000000e+00 : f32
    %409 = vector.broadcast %cst_104 : f32 to vector<8x5xf32>
    %410 = arith.addf %409, %408 : vector<8x5xf32>
    %411 = arith.divf %409, %410 : vector<8x5xf32>
    %412 = vector.extract_strided_slice %15 {offsets = [48, 0], sizes = [8, 5], strides = [1, 1]} : vector<128x5xf32> to vector<8x5xf32>
    %413 = vector.broadcast %19 : vector<1x5xf32> to vector<8x5xf32>
    %414 = arith.addf %397, %413 : vector<8x5xf32>
    %415 = arith.mulf %404, %414 : vector<8x5xf32>
    %416 = arith.addf %412, %415 : vector<8x5xf32>
    %417 = math.tanh %416 : vector<8x5xf32>
    %418 = arith.subf %358, %417 : vector<8x5xf32>
    %419 = arith.mulf %411, %418 : vector<8x5xf32>
    %420 = arith.addf %417, %419 : vector<8x5xf32>
    %421 = vector.extract_strided_slice %20 {offsets = [6, 0], sizes = [1, 5], strides = [1, 1]} : vector<16x5xf32> to vector<1x5xf32>
    %422 = vector.broadcast %421 : vector<1x5xf32> to vector<8x5xf32>
    %423 = arith.mulf %420, %422 : vector<8x5xf32>
    %cst_105 = arith.constant dense<0.000000e+00> : vector<8xf32>
    %424 = vector.multi_reduction <add>, %423, %cst_105 [1] : vector<8x5xf32> to vector<8xf32>
    %425 = vector.shape_cast %424 : vector<8xf32> to vector<8x1xf32>
    %426 = vector.shape_cast %420 : vector<8x5xf32> to vector<1x8x5xf32>
    %cst_106 = arith.constant dense<0.000000e+00> : vector<1xf32>
    %427 = vector.multi_reduction <add>, %426, %cst_106 [1, 2] : vector<1x8x5xf32> to vector<1xf32>
    %428 = vector.shape_cast %427 : vector<1xf32> to vector<1x1x1xf32>
    %429 = vector.extract %428[0, 0, 0] : f32 from vector<1x1x1xf32>
    %430 = vector.broadcast %429 : f32 to vector<1x1xf32>
    %431 = arith.mulf %420, %420 : vector<8x5xf32>
    %432 = vector.shape_cast %431 : vector<8x5xf32> to vector<1x8x5xf32>
    %cst_107 = arith.constant dense<0.000000e+00> : vector<1xf32>
    %433 = vector.multi_reduction <add>, %432, %cst_107 [1, 2] : vector<1x8x5xf32> to vector<1xf32>
    %434 = vector.shape_cast %433 : vector<1xf32> to vector<1x1x1xf32>
    %435 = vector.extract %434[0, 0, 0] : f32 from vector<1x1x1xf32>
    %436 = vector.broadcast %435 : f32 to vector<1x1xf32>
    %cst_108 = arith.constant 2.500000e-02 : f32
    %437 = vector.broadcast %cst_108 : f32 to vector<1x1xf32>
    %438 = arith.mulf %430, %437 : vector<1x1xf32>
    %cst_109 = arith.constant 2.500000e-02 : f32
    %439 = vector.broadcast %cst_109 : f32 to vector<1x1xf32>
    %440 = arith.mulf %436, %439 : vector<1x1xf32>
    %441 = arith.mulf %438, %438 : vector<1x1xf32>
    %442 = arith.subf %440, %441 : vector<1x1xf32>
    %cst_110 = arith.constant 9.99999974E-6 : f32
    %443 = vector.broadcast %cst_110 : f32 to vector<1x1xf32>
    %444 = arith.addf %442, %443 : vector<1x1xf32>
    %445 = math.rsqrt %444 : vector<1x1xf32>
    %c6 = arith.constant 6 : index
    %446 = memref.load %arg12[%c6] : memref<16xf32, #tpu.memory_space<smem>>
    %447 = vector.broadcast %446 : f32 to vector<8x1xf32>
    %448 = arith.mulf %447, %425 : vector<8x1xf32>
    %c6_111 = arith.constant 6 : index
    %449 = memref.load %arg13[%c6_111] : memref<16xf32, #tpu.memory_space<smem>>
    %450 = vector.broadcast %449 : f32 to vector<1x1xf32>
    %451 = arith.mulf %450, %438 : vector<1x1xf32>
    %452 = vector.broadcast %451 : vector<1x1xf32> to vector<8x1xf32>
    %453 = arith.subf %448, %452 : vector<8x1xf32>
    %454 = vector.broadcast %445 : vector<1x1xf32> to vector<8x1xf32>
    %455 = arith.mulf %454, %453 : vector<8x1xf32>
    %456 = arith.addf %394, %455 : vector<8x1xf32>
    %cst_112 = arith.constant dense<0.000000e+00> : vector<8x5xf32>
    %457 = tpu.matmul %420, %16, %cst_112 {dimension_numbers = #tpu.dot_dimension_numbers<[1], [0], [0], [1], [0, 0, 1, 1], [], []>} : vector<8x5xf32>, vector<5x5xf32>, vector<8x5xf32> -> vector<8x5xf32>
    %cst_113 = arith.constant dense<0.000000e+00> : vector<8x5xf32>
    %458 = tpu.matmul %420, %17, %cst_113 {dimension_numbers = #tpu.dot_dimension_numbers<[1], [0], [0], [1], [0, 0, 1, 1], [], []>} : vector<8x5xf32>, vector<5x5xf32>, vector<8x5xf32> -> vector<8x5xf32>
    %cst_114 = arith.constant dense<0.000000e+00> : vector<8x5xf32>
    %459 = tpu.matmul %420, %18, %cst_114 {dimension_numbers = #tpu.dot_dimension_numbers<[1], [0], [0], [1], [0, 0, 1, 1], [], []>} : vector<8x5xf32>, vector<5x5xf32>, vector<8x5xf32> -> vector<8x5xf32>
    %460 = vector.extract_strided_slice %5 {offsets = [56, 0], sizes = [8, 5], strides = [1, 1]} : vector<128x5xf32> to vector<8x5xf32>
    %461 = arith.addf %460, %457 : vector<8x5xf32>
    %462 = arith.negf %461 : vector<8x5xf32>
    %463 = math.exp %462 : vector<8x5xf32>
    %cst_115 = arith.constant 1.000000e+00 : f32
    %464 = vector.broadcast %cst_115 : f32 to vector<8x5xf32>
    %465 = arith.addf %464, %463 : vector<8x5xf32>
    %466 = arith.divf %464, %465 : vector<8x5xf32>
    %467 = vector.extract_strided_slice %10 {offsets = [56, 0], sizes = [8, 5], strides = [1, 1]} : vector<128x5xf32> to vector<8x5xf32>
    %468 = arith.addf %467, %458 : vector<8x5xf32>
    %469 = arith.negf %468 : vector<8x5xf32>
    %470 = math.exp %469 : vector<8x5xf32>
    %cst_116 = arith.constant 1.000000e+00 : f32
    %471 = vector.broadcast %cst_116 : f32 to vector<8x5xf32>
    %472 = arith.addf %471, %470 : vector<8x5xf32>
    %473 = arith.divf %471, %472 : vector<8x5xf32>
    %474 = vector.extract_strided_slice %15 {offsets = [56, 0], sizes = [8, 5], strides = [1, 1]} : vector<128x5xf32> to vector<8x5xf32>
    %475 = vector.broadcast %19 : vector<1x5xf32> to vector<8x5xf32>
    %476 = arith.addf %459, %475 : vector<8x5xf32>
    %477 = arith.mulf %466, %476 : vector<8x5xf32>
    %478 = arith.addf %474, %477 : vector<8x5xf32>
    %479 = math.tanh %478 : vector<8x5xf32>
    %480 = arith.subf %420, %479 : vector<8x5xf32>
    %481 = arith.mulf %473, %480 : vector<8x5xf32>
    %482 = arith.addf %479, %481 : vector<8x5xf32>
    %483 = vector.extract_strided_slice %20 {offsets = [7, 0], sizes = [1, 5], strides = [1, 1]} : vector<16x5xf32> to vector<1x5xf32>
    %484 = vector.broadcast %483 : vector<1x5xf32> to vector<8x5xf32>
    %485 = arith.mulf %482, %484 : vector<8x5xf32>
    %cst_117 = arith.constant dense<0.000000e+00> : vector<8xf32>
    %486 = vector.multi_reduction <add>, %485, %cst_117 [1] : vector<8x5xf32> to vector<8xf32>
    %487 = vector.shape_cast %486 : vector<8xf32> to vector<8x1xf32>
    %488 = vector.shape_cast %482 : vector<8x5xf32> to vector<1x8x5xf32>
    %cst_118 = arith.constant dense<0.000000e+00> : vector<1xf32>
    %489 = vector.multi_reduction <add>, %488, %cst_118 [1, 2] : vector<1x8x5xf32> to vector<1xf32>
    %490 = vector.shape_cast %489 : vector<1xf32> to vector<1x1x1xf32>
    %491 = vector.extract %490[0, 0, 0] : f32 from vector<1x1x1xf32>
    %492 = vector.broadcast %491 : f32 to vector<1x1xf32>
    %493 = arith.mulf %482, %482 : vector<8x5xf32>
    %494 = vector.shape_cast %493 : vector<8x5xf32> to vector<1x8x5xf32>
    %cst_119 = arith.constant dense<0.000000e+00> : vector<1xf32>
    %495 = vector.multi_reduction <add>, %494, %cst_119 [1, 2] : vector<1x8x5xf32> to vector<1xf32>
    %496 = vector.shape_cast %495 : vector<1xf32> to vector<1x1x1xf32>
    %497 = vector.extract %496[0, 0, 0] : f32 from vector<1x1x1xf32>
    %498 = vector.broadcast %497 : f32 to vector<1x1xf32>
    %cst_120 = arith.constant 2.500000e-02 : f32
    %499 = vector.broadcast %cst_120 : f32 to vector<1x1xf32>
    %500 = arith.mulf %492, %499 : vector<1x1xf32>
    %cst_121 = arith.constant 2.500000e-02 : f32
    %501 = vector.broadcast %cst_121 : f32 to vector<1x1xf32>
    %502 = arith.mulf %498, %501 : vector<1x1xf32>
    %503 = arith.mulf %500, %500 : vector<1x1xf32>
    %504 = arith.subf %502, %503 : vector<1x1xf32>
    %cst_122 = arith.constant 9.99999974E-6 : f32
    %505 = vector.broadcast %cst_122 : f32 to vector<1x1xf32>
    %506 = arith.addf %504, %505 : vector<1x1xf32>
    %507 = math.rsqrt %506 : vector<1x1xf32>
    %c7 = arith.constant 7 : index
    %508 = memref.load %arg12[%c7] : memref<16xf32, #tpu.memory_space<smem>>
    %509 = vector.broadcast %508 : f32 to vector<8x1xf32>
    %510 = arith.mulf %509, %487 : vector<8x1xf32>
    %c7_123 = arith.constant 7 : index
    %511 = memref.load %arg13[%c7_123] : memref<16xf32, #tpu.memory_space<smem>>
    %512 = vector.broadcast %511 : f32 to vector<1x1xf32>
    %513 = arith.mulf %512, %500 : vector<1x1xf32>
    %514 = vector.broadcast %513 : vector<1x1xf32> to vector<8x1xf32>
    %515 = arith.subf %510, %514 : vector<8x1xf32>
    %516 = vector.broadcast %507 : vector<1x1xf32> to vector<8x1xf32>
    %517 = arith.mulf %516, %515 : vector<8x1xf32>
    %518 = arith.addf %456, %517 : vector<8x1xf32>
    %cst_124 = arith.constant dense<0.000000e+00> : vector<8x5xf32>
    %519 = tpu.matmul %482, %16, %cst_124 {dimension_numbers = #tpu.dot_dimension_numbers<[1], [0], [0], [1], [0, 0, 1, 1], [], []>} : vector<8x5xf32>, vector<5x5xf32>, vector<8x5xf32> -> vector<8x5xf32>
    %cst_125 = arith.constant dense<0.000000e+00> : vector<8x5xf32>
    %520 = tpu.matmul %482, %17, %cst_125 {dimension_numbers = #tpu.dot_dimension_numbers<[1], [0], [0], [1], [0, 0, 1, 1], [], []>} : vector<8x5xf32>, vector<5x5xf32>, vector<8x5xf32> -> vector<8x5xf32>
    %cst_126 = arith.constant dense<0.000000e+00> : vector<8x5xf32>
    %521 = tpu.matmul %482, %18, %cst_126 {dimension_numbers = #tpu.dot_dimension_numbers<[1], [0], [0], [1], [0, 0, 1, 1], [], []>} : vector<8x5xf32>, vector<5x5xf32>, vector<8x5xf32> -> vector<8x5xf32>
    %522 = vector.extract_strided_slice %5 {offsets = [64, 0], sizes = [8, 5], strides = [1, 1]} : vector<128x5xf32> to vector<8x5xf32>
    %523 = arith.addf %522, %519 : vector<8x5xf32>
    %524 = arith.negf %523 : vector<8x5xf32>
    %525 = math.exp %524 : vector<8x5xf32>
    %cst_127 = arith.constant 1.000000e+00 : f32
    %526 = vector.broadcast %cst_127 : f32 to vector<8x5xf32>
    %527 = arith.addf %526, %525 : vector<8x5xf32>
    %528 = arith.divf %526, %527 : vector<8x5xf32>
    %529 = vector.extract_strided_slice %10 {offsets = [64, 0], sizes = [8, 5], strides = [1, 1]} : vector<128x5xf32> to vector<8x5xf32>
    %530 = arith.addf %529, %520 : vector<8x5xf32>
    %531 = arith.negf %530 : vector<8x5xf32>
    %532 = math.exp %531 : vector<8x5xf32>
    %cst_128 = arith.constant 1.000000e+00 : f32
    %533 = vector.broadcast %cst_128 : f32 to vector<8x5xf32>
    %534 = arith.addf %533, %532 : vector<8x5xf32>
    %535 = arith.divf %533, %534 : vector<8x5xf32>
    %536 = vector.extract_strided_slice %15 {offsets = [64, 0], sizes = [8, 5], strides = [1, 1]} : vector<128x5xf32> to vector<8x5xf32>
    %537 = vector.broadcast %19 : vector<1x5xf32> to vector<8x5xf32>
    %538 = arith.addf %521, %537 : vector<8x5xf32>
    %539 = arith.mulf %528, %538 : vector<8x5xf32>
    %540 = arith.addf %536, %539 : vector<8x5xf32>
    %541 = math.tanh %540 : vector<8x5xf32>
    %542 = arith.subf %482, %541 : vector<8x5xf32>
    %543 = arith.mulf %535, %542 : vector<8x5xf32>
    %544 = arith.addf %541, %543 : vector<8x5xf32>
    %545 = vector.extract_strided_slice %20 {offsets = [8, 0], sizes = [1, 5], strides = [1, 1]} : vector<16x5xf32> to vector<1x5xf32>
    %546 = vector.broadcast %545 : vector<1x5xf32> to vector<8x5xf32>
    %547 = arith.mulf %544, %546 : vector<8x5xf32>
    %cst_129 = arith.constant dense<0.000000e+00> : vector<8xf32>
    %548 = vector.multi_reduction <add>, %547, %cst_129 [1] : vector<8x5xf32> to vector<8xf32>
    %549 = vector.shape_cast %548 : vector<8xf32> to vector<8x1xf32>
    %550 = vector.shape_cast %544 : vector<8x5xf32> to vector<1x8x5xf32>
    %cst_130 = arith.constant dense<0.000000e+00> : vector<1xf32>
    %551 = vector.multi_reduction <add>, %550, %cst_130 [1, 2] : vector<1x8x5xf32> to vector<1xf32>
    %552 = vector.shape_cast %551 : vector<1xf32> to vector<1x1x1xf32>
    %553 = vector.extract %552[0, 0, 0] : f32 from vector<1x1x1xf32>
    %554 = vector.broadcast %553 : f32 to vector<1x1xf32>
    %555 = arith.mulf %544, %544 : vector<8x5xf32>
    %556 = vector.shape_cast %555 : vector<8x5xf32> to vector<1x8x5xf32>
    %cst_131 = arith.constant dense<0.000000e+00> : vector<1xf32>
    %557 = vector.multi_reduction <add>, %556, %cst_131 [1, 2] : vector<1x8x5xf32> to vector<1xf32>
    %558 = vector.shape_cast %557 : vector<1xf32> to vector<1x1x1xf32>
    %559 = vector.extract %558[0, 0, 0] : f32 from vector<1x1x1xf32>
    %560 = vector.broadcast %559 : f32 to vector<1x1xf32>
    %cst_132 = arith.constant 2.500000e-02 : f32
    %561 = vector.broadcast %cst_132 : f32 to vector<1x1xf32>
    %562 = arith.mulf %554, %561 : vector<1x1xf32>
    %cst_133 = arith.constant 2.500000e-02 : f32
    %563 = vector.broadcast %cst_133 : f32 to vector<1x1xf32>
    %564 = arith.mulf %560, %563 : vector<1x1xf32>
    %565 = arith.mulf %562, %562 : vector<1x1xf32>
    %566 = arith.subf %564, %565 : vector<1x1xf32>
    %cst_134 = arith.constant 9.99999974E-6 : f32
    %567 = vector.broadcast %cst_134 : f32 to vector<1x1xf32>
    %568 = arith.addf %566, %567 : vector<1x1xf32>
    %569 = math.rsqrt %568 : vector<1x1xf32>
    %c8 = arith.constant 8 : index
    %570 = memref.load %arg12[%c8] : memref<16xf32, #tpu.memory_space<smem>>
    %571 = vector.broadcast %570 : f32 to vector<8x1xf32>
    %572 = arith.mulf %571, %549 : vector<8x1xf32>
    %c8_135 = arith.constant 8 : index
    %573 = memref.load %arg13[%c8_135] : memref<16xf32, #tpu.memory_space<smem>>
    %574 = vector.broadcast %573 : f32 to vector<1x1xf32>
    %575 = arith.mulf %574, %562 : vector<1x1xf32>
    %576 = vector.broadcast %575 : vector<1x1xf32> to vector<8x1xf32>
    %577 = arith.subf %572, %576 : vector<8x1xf32>
    %578 = vector.broadcast %569 : vector<1x1xf32> to vector<8x1xf32>
    %579 = arith.mulf %578, %577 : vector<8x1xf32>
    %580 = arith.addf %518, %579 : vector<8x1xf32>
    %cst_136 = arith.constant dense<0.000000e+00> : vector<8x5xf32>
    %581 = tpu.matmul %544, %16, %cst_136 {dimension_numbers = #tpu.dot_dimension_numbers<[1], [0], [0], [1], [0, 0, 1, 1], [], []>} : vector<8x5xf32>, vector<5x5xf32>, vector<8x5xf32> -> vector<8x5xf32>
    %cst_137 = arith.constant dense<0.000000e+00> : vector<8x5xf32>
    %582 = tpu.matmul %544, %17, %cst_137 {dimension_numbers = #tpu.dot_dimension_numbers<[1], [0], [0], [1], [0, 0, 1, 1], [], []>} : vector<8x5xf32>, vector<5x5xf32>, vector<8x5xf32> -> vector<8x5xf32>
    %cst_138 = arith.constant dense<0.000000e+00> : vector<8x5xf32>
    %583 = tpu.matmul %544, %18, %cst_138 {dimension_numbers = #tpu.dot_dimension_numbers<[1], [0], [0], [1], [0, 0, 1, 1], [], []>} : vector<8x5xf32>, vector<5x5xf32>, vector<8x5xf32> -> vector<8x5xf32>
    %584 = vector.extract_strided_slice %5 {offsets = [72, 0], sizes = [8, 5], strides = [1, 1]} : vector<128x5xf32> to vector<8x5xf32>
    %585 = arith.addf %584, %581 : vector<8x5xf32>
    %586 = arith.negf %585 : vector<8x5xf32>
    %587 = math.exp %586 : vector<8x5xf32>
    %cst_139 = arith.constant 1.000000e+00 : f32
    %588 = vector.broadcast %cst_139 : f32 to vector<8x5xf32>
    %589 = arith.addf %588, %587 : vector<8x5xf32>
    %590 = arith.divf %588, %589 : vector<8x5xf32>
    %591 = vector.extract_strided_slice %10 {offsets = [72, 0], sizes = [8, 5], strides = [1, 1]} : vector<128x5xf32> to vector<8x5xf32>
    %592 = arith.addf %591, %582 : vector<8x5xf32>
    %593 = arith.negf %592 : vector<8x5xf32>
    %594 = math.exp %593 : vector<8x5xf32>
    %cst_140 = arith.constant 1.000000e+00 : f32
    %595 = vector.broadcast %cst_140 : f32 to vector<8x5xf32>
    %596 = arith.addf %595, %594 : vector<8x5xf32>
    %597 = arith.divf %595, %596 : vector<8x5xf32>
    %598 = vector.extract_strided_slice %15 {offsets = [72, 0], sizes = [8, 5], strides = [1, 1]} : vector<128x5xf32> to vector<8x5xf32>
    %599 = vector.broadcast %19 : vector<1x5xf32> to vector<8x5xf32>
    %600 = arith.addf %583, %599 : vector<8x5xf32>
    %601 = arith.mulf %590, %600 : vector<8x5xf32>
    %602 = arith.addf %598, %601 : vector<8x5xf32>
    %603 = math.tanh %602 : vector<8x5xf32>
    %604 = arith.subf %544, %603 : vector<8x5xf32>
    %605 = arith.mulf %597, %604 : vector<8x5xf32>
    %606 = arith.addf %603, %605 : vector<8x5xf32>
    %607 = vector.extract_strided_slice %20 {offsets = [9, 0], sizes = [1, 5], strides = [1, 1]} : vector<16x5xf32> to vector<1x5xf32>
    %608 = vector.broadcast %607 : vector<1x5xf32> to vector<8x5xf32>
    %609 = arith.mulf %606, %608 : vector<8x5xf32>
    %cst_141 = arith.constant dense<0.000000e+00> : vector<8xf32>
    %610 = vector.multi_reduction <add>, %609, %cst_141 [1] : vector<8x5xf32> to vector<8xf32>
    %611 = vector.shape_cast %610 : vector<8xf32> to vector<8x1xf32>
    %612 = vector.shape_cast %606 : vector<8x5xf32> to vector<1x8x5xf32>
    %cst_142 = arith.constant dense<0.000000e+00> : vector<1xf32>
    %613 = vector.multi_reduction <add>, %612, %cst_142 [1, 2] : vector<1x8x5xf32> to vector<1xf32>
    %614 = vector.shape_cast %613 : vector<1xf32> to vector<1x1x1xf32>
    %615 = vector.extract %614[0, 0, 0] : f32 from vector<1x1x1xf32>
    %616 = vector.broadcast %615 : f32 to vector<1x1xf32>
    %617 = arith.mulf %606, %606 : vector<8x5xf32>
    %618 = vector.shape_cast %617 : vector<8x5xf32> to vector<1x8x5xf32>
    %cst_143 = arith.constant dense<0.000000e+00> : vector<1xf32>
    %619 = vector.multi_reduction <add>, %618, %cst_143 [1, 2] : vector<1x8x5xf32> to vector<1xf32>
    %620 = vector.shape_cast %619 : vector<1xf32> to vector<1x1x1xf32>
    %621 = vector.extract %620[0, 0, 0] : f32 from vector<1x1x1xf32>
    %622 = vector.broadcast %621 : f32 to vector<1x1xf32>
    %cst_144 = arith.constant 2.500000e-02 : f32
    %623 = vector.broadcast %cst_144 : f32 to vector<1x1xf32>
    %624 = arith.mulf %616, %623 : vector<1x1xf32>
    %cst_145 = arith.constant 2.500000e-02 : f32
    %625 = vector.broadcast %cst_145 : f32 to vector<1x1xf32>
    %626 = arith.mulf %622, %625 : vector<1x1xf32>
    %627 = arith.mulf %624, %624 : vector<1x1xf32>
    %628 = arith.subf %626, %627 : vector<1x1xf32>
    %cst_146 = arith.constant 9.99999974E-6 : f32
    %629 = vector.broadcast %cst_146 : f32 to vector<1x1xf32>
    %630 = arith.addf %628, %629 : vector<1x1xf32>
    %631 = math.rsqrt %630 : vector<1x1xf32>
    %c9 = arith.constant 9 : index
    %632 = memref.load %arg12[%c9] : memref<16xf32, #tpu.memory_space<smem>>
    %633 = vector.broadcast %632 : f32 to vector<8x1xf32>
    %634 = arith.mulf %633, %611 : vector<8x1xf32>
    %c9_147 = arith.constant 9 : index
    %635 = memref.load %arg13[%c9_147] : memref<16xf32, #tpu.memory_space<smem>>
    %636 = vector.broadcast %635 : f32 to vector<1x1xf32>
    %637 = arith.mulf %636, %624 : vector<1x1xf32>
    %638 = vector.broadcast %637 : vector<1x1xf32> to vector<8x1xf32>
    %639 = arith.subf %634, %638 : vector<8x1xf32>
    %640 = vector.broadcast %631 : vector<1x1xf32> to vector<8x1xf32>
    %641 = arith.mulf %640, %639 : vector<8x1xf32>
    %642 = arith.addf %580, %641 : vector<8x1xf32>
    %cst_148 = arith.constant dense<0.000000e+00> : vector<8x5xf32>
    %643 = tpu.matmul %606, %16, %cst_148 {dimension_numbers = #tpu.dot_dimension_numbers<[1], [0], [0], [1], [0, 0, 1, 1], [], []>} : vector<8x5xf32>, vector<5x5xf32>, vector<8x5xf32> -> vector<8x5xf32>
    %cst_149 = arith.constant dense<0.000000e+00> : vector<8x5xf32>
    %644 = tpu.matmul %606, %17, %cst_149 {dimension_numbers = #tpu.dot_dimension_numbers<[1], [0], [0], [1], [0, 0, 1, 1], [], []>} : vector<8x5xf32>, vector<5x5xf32>, vector<8x5xf32> -> vector<8x5xf32>
    %cst_150 = arith.constant dense<0.000000e+00> : vector<8x5xf32>
    %645 = tpu.matmul %606, %18, %cst_150 {dimension_numbers = #tpu.dot_dimension_numbers<[1], [0], [0], [1], [0, 0, 1, 1], [], []>} : vector<8x5xf32>, vector<5x5xf32>, vector<8x5xf32> -> vector<8x5xf32>
    %646 = vector.extract_strided_slice %5 {offsets = [80, 0], sizes = [8, 5], strides = [1, 1]} : vector<128x5xf32> to vector<8x5xf32>
    %647 = arith.addf %646, %643 : vector<8x5xf32>
    %648 = arith.negf %647 : vector<8x5xf32>
    %649 = math.exp %648 : vector<8x5xf32>
    %cst_151 = arith.constant 1.000000e+00 : f32
    %650 = vector.broadcast %cst_151 : f32 to vector<8x5xf32>
    %651 = arith.addf %650, %649 : vector<8x5xf32>
    %652 = arith.divf %650, %651 : vector<8x5xf32>
    %653 = vector.extract_strided_slice %10 {offsets = [80, 0], sizes = [8, 5], strides = [1, 1]} : vector<128x5xf32> to vector<8x5xf32>
    %654 = arith.addf %653, %644 : vector<8x5xf32>
    %655 = arith.negf %654 : vector<8x5xf32>
    %656 = math.exp %655 : vector<8x5xf32>
    %cst_152 = arith.constant 1.000000e+00 : f32
    %657 = vector.broadcast %cst_152 : f32 to vector<8x5xf32>
    %658 = arith.addf %657, %656 : vector<8x5xf32>
    %659 = arith.divf %657, %658 : vector<8x5xf32>
    %660 = vector.extract_strided_slice %15 {offsets = [80, 0], sizes = [8, 5], strides = [1, 1]} : vector<128x5xf32> to vector<8x5xf32>
    %661 = vector.broadcast %19 : vector<1x5xf32> to vector<8x5xf32>
    %662 = arith.addf %645, %661 : vector<8x5xf32>
    %663 = arith.mulf %652, %662 : vector<8x5xf32>
    %664 = arith.addf %660, %663 : vector<8x5xf32>
    %665 = math.tanh %664 : vector<8x5xf32>
    %666 = arith.subf %606, %665 : vector<8x5xf32>
    %667 = arith.mulf %659, %666 : vector<8x5xf32>
    %668 = arith.addf %665, %667 : vector<8x5xf32>
    %669 = vector.extract_strided_slice %20 {offsets = [10, 0], sizes = [1, 5], strides = [1, 1]} : vector<16x5xf32> to vector<1x5xf32>
    %670 = vector.broadcast %669 : vector<1x5xf32> to vector<8x5xf32>
    %671 = arith.mulf %668, %670 : vector<8x5xf32>
    %cst_153 = arith.constant dense<0.000000e+00> : vector<8xf32>
    %672 = vector.multi_reduction <add>, %671, %cst_153 [1] : vector<8x5xf32> to vector<8xf32>
    %673 = vector.shape_cast %672 : vector<8xf32> to vector<8x1xf32>
    %674 = vector.shape_cast %668 : vector<8x5xf32> to vector<1x8x5xf32>
    %cst_154 = arith.constant dense<0.000000e+00> : vector<1xf32>
    %675 = vector.multi_reduction <add>, %674, %cst_154 [1, 2] : vector<1x8x5xf32> to vector<1xf32>
    %676 = vector.shape_cast %675 : vector<1xf32> to vector<1x1x1xf32>
    %677 = vector.extract %676[0, 0, 0] : f32 from vector<1x1x1xf32>
    %678 = vector.broadcast %677 : f32 to vector<1x1xf32>
    %679 = arith.mulf %668, %668 : vector<8x5xf32>
    %680 = vector.shape_cast %679 : vector<8x5xf32> to vector<1x8x5xf32>
    %cst_155 = arith.constant dense<0.000000e+00> : vector<1xf32>
    %681 = vector.multi_reduction <add>, %680, %cst_155 [1, 2] : vector<1x8x5xf32> to vector<1xf32>
    %682 = vector.shape_cast %681 : vector<1xf32> to vector<1x1x1xf32>
    %683 = vector.extract %682[0, 0, 0] : f32 from vector<1x1x1xf32>
    %684 = vector.broadcast %683 : f32 to vector<1x1xf32>
    %cst_156 = arith.constant 2.500000e-02 : f32
    %685 = vector.broadcast %cst_156 : f32 to vector<1x1xf32>
    %686 = arith.mulf %678, %685 : vector<1x1xf32>
    %cst_157 = arith.constant 2.500000e-02 : f32
    %687 = vector.broadcast %cst_157 : f32 to vector<1x1xf32>
    %688 = arith.mulf %684, %687 : vector<1x1xf32>
    %689 = arith.mulf %686, %686 : vector<1x1xf32>
    %690 = arith.subf %688, %689 : vector<1x1xf32>
    %cst_158 = arith.constant 9.99999974E-6 : f32
    %691 = vector.broadcast %cst_158 : f32 to vector<1x1xf32>
    %692 = arith.addf %690, %691 : vector<1x1xf32>
    %693 = math.rsqrt %692 : vector<1x1xf32>
    %c10 = arith.constant 10 : index
    %694 = memref.load %arg12[%c10] : memref<16xf32, #tpu.memory_space<smem>>
    %695 = vector.broadcast %694 : f32 to vector<8x1xf32>
    %696 = arith.mulf %695, %673 : vector<8x1xf32>
    %c10_159 = arith.constant 10 : index
    %697 = memref.load %arg13[%c10_159] : memref<16xf32, #tpu.memory_space<smem>>
    %698 = vector.broadcast %697 : f32 to vector<1x1xf32>
    %699 = arith.mulf %698, %686 : vector<1x1xf32>
    %700 = vector.broadcast %699 : vector<1x1xf32> to vector<8x1xf32>
    %701 = arith.subf %696, %700 : vector<8x1xf32>
    %702 = vector.broadcast %693 : vector<1x1xf32> to vector<8x1xf32>
    %703 = arith.mulf %702, %701 : vector<8x1xf32>
    %704 = arith.addf %642, %703 : vector<8x1xf32>
    %cst_160 = arith.constant dense<0.000000e+00> : vector<8x5xf32>
    %705 = tpu.matmul %668, %16, %cst_160 {dimension_numbers = #tpu.dot_dimension_numbers<[1], [0], [0], [1], [0, 0, 1, 1], [], []>} : vector<8x5xf32>, vector<5x5xf32>, vector<8x5xf32> -> vector<8x5xf32>
    %cst_161 = arith.constant dense<0.000000e+00> : vector<8x5xf32>
    %706 = tpu.matmul %668, %17, %cst_161 {dimension_numbers = #tpu.dot_dimension_numbers<[1], [0], [0], [1], [0, 0, 1, 1], [], []>} : vector<8x5xf32>, vector<5x5xf32>, vector<8x5xf32> -> vector<8x5xf32>
    %cst_162 = arith.constant dense<0.000000e+00> : vector<8x5xf32>
    %707 = tpu.matmul %668, %18, %cst_162 {dimension_numbers = #tpu.dot_dimension_numbers<[1], [0], [0], [1], [0, 0, 1, 1], [], []>} : vector<8x5xf32>, vector<5x5xf32>, vector<8x5xf32> -> vector<8x5xf32>
    %708 = vector.extract_strided_slice %5 {offsets = [88, 0], sizes = [8, 5], strides = [1, 1]} : vector<128x5xf32> to vector<8x5xf32>
    %709 = arith.addf %708, %705 : vector<8x5xf32>
    %710 = arith.negf %709 : vector<8x5xf32>
    %711 = math.exp %710 : vector<8x5xf32>
    %cst_163 = arith.constant 1.000000e+00 : f32
    %712 = vector.broadcast %cst_163 : f32 to vector<8x5xf32>
    %713 = arith.addf %712, %711 : vector<8x5xf32>
    %714 = arith.divf %712, %713 : vector<8x5xf32>
    %715 = vector.extract_strided_slice %10 {offsets = [88, 0], sizes = [8, 5], strides = [1, 1]} : vector<128x5xf32> to vector<8x5xf32>
    %716 = arith.addf %715, %706 : vector<8x5xf32>
    %717 = arith.negf %716 : vector<8x5xf32>
    %718 = math.exp %717 : vector<8x5xf32>
    %cst_164 = arith.constant 1.000000e+00 : f32
    %719 = vector.broadcast %cst_164 : f32 to vector<8x5xf32>
    %720 = arith.addf %719, %718 : vector<8x5xf32>
    %721 = arith.divf %719, %720 : vector<8x5xf32>
    %722 = vector.extract_strided_slice %15 {offsets = [88, 0], sizes = [8, 5], strides = [1, 1]} : vector<128x5xf32> to vector<8x5xf32>
    %723 = vector.broadcast %19 : vector<1x5xf32> to vector<8x5xf32>
    %724 = arith.addf %707, %723 : vector<8x5xf32>
    %725 = arith.mulf %714, %724 : vector<8x5xf32>
    %726 = arith.addf %722, %725 : vector<8x5xf32>
    %727 = math.tanh %726 : vector<8x5xf32>
    %728 = arith.subf %668, %727 : vector<8x5xf32>
    %729 = arith.mulf %721, %728 : vector<8x5xf32>
    %730 = arith.addf %727, %729 : vector<8x5xf32>
    %731 = vector.extract_strided_slice %20 {offsets = [11, 0], sizes = [1, 5], strides = [1, 1]} : vector<16x5xf32> to vector<1x5xf32>
    %732 = vector.broadcast %731 : vector<1x5xf32> to vector<8x5xf32>
    %733 = arith.mulf %730, %732 : vector<8x5xf32>
    %cst_165 = arith.constant dense<0.000000e+00> : vector<8xf32>
    %734 = vector.multi_reduction <add>, %733, %cst_165 [1] : vector<8x5xf32> to vector<8xf32>
    %735 = vector.shape_cast %734 : vector<8xf32> to vector<8x1xf32>
    %736 = vector.shape_cast %730 : vector<8x5xf32> to vector<1x8x5xf32>
    %cst_166 = arith.constant dense<0.000000e+00> : vector<1xf32>
    %737 = vector.multi_reduction <add>, %736, %cst_166 [1, 2] : vector<1x8x5xf32> to vector<1xf32>
    %738 = vector.shape_cast %737 : vector<1xf32> to vector<1x1x1xf32>
    %739 = vector.extract %738[0, 0, 0] : f32 from vector<1x1x1xf32>
    %740 = vector.broadcast %739 : f32 to vector<1x1xf32>
    %741 = arith.mulf %730, %730 : vector<8x5xf32>
    %742 = vector.shape_cast %741 : vector<8x5xf32> to vector<1x8x5xf32>
    %cst_167 = arith.constant dense<0.000000e+00> : vector<1xf32>
    %743 = vector.multi_reduction <add>, %742, %cst_167 [1, 2] : vector<1x8x5xf32> to vector<1xf32>
    %744 = vector.shape_cast %743 : vector<1xf32> to vector<1x1x1xf32>
    %745 = vector.extract %744[0, 0, 0] : f32 from vector<1x1x1xf32>
    %746 = vector.broadcast %745 : f32 to vector<1x1xf32>
    %cst_168 = arith.constant 2.500000e-02 : f32
    %747 = vector.broadcast %cst_168 : f32 to vector<1x1xf32>
    %748 = arith.mulf %740, %747 : vector<1x1xf32>
    %cst_169 = arith.constant 2.500000e-02 : f32
    %749 = vector.broadcast %cst_169 : f32 to vector<1x1xf32>
    %750 = arith.mulf %746, %749 : vector<1x1xf32>
    %751 = arith.mulf %748, %748 : vector<1x1xf32>
    %752 = arith.subf %750, %751 : vector<1x1xf32>
    %cst_170 = arith.constant 9.99999974E-6 : f32
    %753 = vector.broadcast %cst_170 : f32 to vector<1x1xf32>
    %754 = arith.addf %752, %753 : vector<1x1xf32>
    %755 = math.rsqrt %754 : vector<1x1xf32>
    %c11 = arith.constant 11 : index
    %756 = memref.load %arg12[%c11] : memref<16xf32, #tpu.memory_space<smem>>
    %757 = vector.broadcast %756 : f32 to vector<8x1xf32>
    %758 = arith.mulf %757, %735 : vector<8x1xf32>
    %c11_171 = arith.constant 11 : index
    %759 = memref.load %arg13[%c11_171] : memref<16xf32, #tpu.memory_space<smem>>
    %760 = vector.broadcast %759 : f32 to vector<1x1xf32>
    %761 = arith.mulf %760, %748 : vector<1x1xf32>
    %762 = vector.broadcast %761 : vector<1x1xf32> to vector<8x1xf32>
    %763 = arith.subf %758, %762 : vector<8x1xf32>
    %764 = vector.broadcast %755 : vector<1x1xf32> to vector<8x1xf32>
    %765 = arith.mulf %764, %763 : vector<8x1xf32>
    %766 = arith.addf %704, %765 : vector<8x1xf32>
    %cst_172 = arith.constant dense<0.000000e+00> : vector<8x5xf32>
    %767 = tpu.matmul %730, %16, %cst_172 {dimension_numbers = #tpu.dot_dimension_numbers<[1], [0], [0], [1], [0, 0, 1, 1], [], []>} : vector<8x5xf32>, vector<5x5xf32>, vector<8x5xf32> -> vector<8x5xf32>
    %cst_173 = arith.constant dense<0.000000e+00> : vector<8x5xf32>
    %768 = tpu.matmul %730, %17, %cst_173 {dimension_numbers = #tpu.dot_dimension_numbers<[1], [0], [0], [1], [0, 0, 1, 1], [], []>} : vector<8x5xf32>, vector<5x5xf32>, vector<8x5xf32> -> vector<8x5xf32>
    %cst_174 = arith.constant dense<0.000000e+00> : vector<8x5xf32>
    %769 = tpu.matmul %730, %18, %cst_174 {dimension_numbers = #tpu.dot_dimension_numbers<[1], [0], [0], [1], [0, 0, 1, 1], [], []>} : vector<8x5xf32>, vector<5x5xf32>, vector<8x5xf32> -> vector<8x5xf32>
    %770 = vector.extract_strided_slice %5 {offsets = [96, 0], sizes = [8, 5], strides = [1, 1]} : vector<128x5xf32> to vector<8x5xf32>
    %771 = arith.addf %770, %767 : vector<8x5xf32>
    %772 = arith.negf %771 : vector<8x5xf32>
    %773 = math.exp %772 : vector<8x5xf32>
    %cst_175 = arith.constant 1.000000e+00 : f32
    %774 = vector.broadcast %cst_175 : f32 to vector<8x5xf32>
    %775 = arith.addf %774, %773 : vector<8x5xf32>
    %776 = arith.divf %774, %775 : vector<8x5xf32>
    %777 = vector.extract_strided_slice %10 {offsets = [96, 0], sizes = [8, 5], strides = [1, 1]} : vector<128x5xf32> to vector<8x5xf32>
    %778 = arith.addf %777, %768 : vector<8x5xf32>
    %779 = arith.negf %778 : vector<8x5xf32>
    %780 = math.exp %779 : vector<8x5xf32>
    %cst_176 = arith.constant 1.000000e+00 : f32
    %781 = vector.broadcast %cst_176 : f32 to vector<8x5xf32>
    %782 = arith.addf %781, %780 : vector<8x5xf32>
    %783 = arith.divf %781, %782 : vector<8x5xf32>
    %784 = vector.extract_strided_slice %15 {offsets = [96, 0], sizes = [8, 5], strides = [1, 1]} : vector<128x5xf32> to vector<8x5xf32>
    %785 = vector.broadcast %19 : vector<1x5xf32> to vector<8x5xf32>
    %786 = arith.addf %769, %785 : vector<8x5xf32>
    %787 = arith.mulf %776, %786 : vector<8x5xf32>
    %788 = arith.addf %784, %787 : vector<8x5xf32>
    %789 = math.tanh %788 : vector<8x5xf32>
    %790 = arith.subf %730, %789 : vector<8x5xf32>
    %791 = arith.mulf %783, %790 : vector<8x5xf32>
    %792 = arith.addf %789, %791 : vector<8x5xf32>
    %793 = vector.extract_strided_slice %20 {offsets = [12, 0], sizes = [1, 5], strides = [1, 1]} : vector<16x5xf32> to vector<1x5xf32>
    %794 = vector.broadcast %793 : vector<1x5xf32> to vector<8x5xf32>
    %795 = arith.mulf %792, %794 : vector<8x5xf32>
    %cst_177 = arith.constant dense<0.000000e+00> : vector<8xf32>
    %796 = vector.multi_reduction <add>, %795, %cst_177 [1] : vector<8x5xf32> to vector<8xf32>
    %797 = vector.shape_cast %796 : vector<8xf32> to vector<8x1xf32>
    %798 = vector.shape_cast %792 : vector<8x5xf32> to vector<1x8x5xf32>
    %cst_178 = arith.constant dense<0.000000e+00> : vector<1xf32>
    %799 = vector.multi_reduction <add>, %798, %cst_178 [1, 2] : vector<1x8x5xf32> to vector<1xf32>
    %800 = vector.shape_cast %799 : vector<1xf32> to vector<1x1x1xf32>
    %801 = vector.extract %800[0, 0, 0] : f32 from vector<1x1x1xf32>
    %802 = vector.broadcast %801 : f32 to vector<1x1xf32>
    %803 = arith.mulf %792, %792 : vector<8x5xf32>
    %804 = vector.shape_cast %803 : vector<8x5xf32> to vector<1x8x5xf32>
    %cst_179 = arith.constant dense<0.000000e+00> : vector<1xf32>
    %805 = vector.multi_reduction <add>, %804, %cst_179 [1, 2] : vector<1x8x5xf32> to vector<1xf32>
    %806 = vector.shape_cast %805 : vector<1xf32> to vector<1x1x1xf32>
    %807 = vector.extract %806[0, 0, 0] : f32 from vector<1x1x1xf32>
    %808 = vector.broadcast %807 : f32 to vector<1x1xf32>
    %cst_180 = arith.constant 2.500000e-02 : f32
    %809 = vector.broadcast %cst_180 : f32 to vector<1x1xf32>
    %810 = arith.mulf %802, %809 : vector<1x1xf32>
    %cst_181 = arith.constant 2.500000e-02 : f32
    %811 = vector.broadcast %cst_181 : f32 to vector<1x1xf32>
    %812 = arith.mulf %808, %811 : vector<1x1xf32>
    %813 = arith.mulf %810, %810 : vector<1x1xf32>
    %814 = arith.subf %812, %813 : vector<1x1xf32>
    %cst_182 = arith.constant 9.99999974E-6 : f32
    %815 = vector.broadcast %cst_182 : f32 to vector<1x1xf32>
    %816 = arith.addf %814, %815 : vector<1x1xf32>
    %817 = math.rsqrt %816 : vector<1x1xf32>
    %c12 = arith.constant 12 : index
    %818 = memref.load %arg12[%c12] : memref<16xf32, #tpu.memory_space<smem>>
    %819 = vector.broadcast %818 : f32 to vector<8x1xf32>
    %820 = arith.mulf %819, %797 : vector<8x1xf32>
    %c12_183 = arith.constant 12 : index
    %821 = memref.load %arg13[%c12_183] : memref<16xf32, #tpu.memory_space<smem>>
    %822 = vector.broadcast %821 : f32 to vector<1x1xf32>
    %823 = arith.mulf %822, %810 : vector<1x1xf32>
    %824 = vector.broadcast %823 : vector<1x1xf32> to vector<8x1xf32>
    %825 = arith.subf %820, %824 : vector<8x1xf32>
    %826 = vector.broadcast %817 : vector<1x1xf32> to vector<8x1xf32>
    %827 = arith.mulf %826, %825 : vector<8x1xf32>
    %828 = arith.addf %766, %827 : vector<8x1xf32>
    %cst_184 = arith.constant dense<0.000000e+00> : vector<8x5xf32>
    %829 = tpu.matmul %792, %16, %cst_184 {dimension_numbers = #tpu.dot_dimension_numbers<[1], [0], [0], [1], [0, 0, 1, 1], [], []>} : vector<8x5xf32>, vector<5x5xf32>, vector<8x5xf32> -> vector<8x5xf32>
    %cst_185 = arith.constant dense<0.000000e+00> : vector<8x5xf32>
    %830 = tpu.matmul %792, %17, %cst_185 {dimension_numbers = #tpu.dot_dimension_numbers<[1], [0], [0], [1], [0, 0, 1, 1], [], []>} : vector<8x5xf32>, vector<5x5xf32>, vector<8x5xf32> -> vector<8x5xf32>
    %cst_186 = arith.constant dense<0.000000e+00> : vector<8x5xf32>
    %831 = tpu.matmul %792, %18, %cst_186 {dimension_numbers = #tpu.dot_dimension_numbers<[1], [0], [0], [1], [0, 0, 1, 1], [], []>} : vector<8x5xf32>, vector<5x5xf32>, vector<8x5xf32> -> vector<8x5xf32>
    %832 = vector.extract_strided_slice %5 {offsets = [104, 0], sizes = [8, 5], strides = [1, 1]} : vector<128x5xf32> to vector<8x5xf32>
    %833 = arith.addf %832, %829 : vector<8x5xf32>
    %834 = arith.negf %833 : vector<8x5xf32>
    %835 = math.exp %834 : vector<8x5xf32>
    %cst_187 = arith.constant 1.000000e+00 : f32
    %836 = vector.broadcast %cst_187 : f32 to vector<8x5xf32>
    %837 = arith.addf %836, %835 : vector<8x5xf32>
    %838 = arith.divf %836, %837 : vector<8x5xf32>
    %839 = vector.extract_strided_slice %10 {offsets = [104, 0], sizes = [8, 5], strides = [1, 1]} : vector<128x5xf32> to vector<8x5xf32>
    %840 = arith.addf %839, %830 : vector<8x5xf32>
    %841 = arith.negf %840 : vector<8x5xf32>
    %842 = math.exp %841 : vector<8x5xf32>
    %cst_188 = arith.constant 1.000000e+00 : f32
    %843 = vector.broadcast %cst_188 : f32 to vector<8x5xf32>
    %844 = arith.addf %843, %842 : vector<8x5xf32>
    %845 = arith.divf %843, %844 : vector<8x5xf32>
    %846 = vector.extract_strided_slice %15 {offsets = [104, 0], sizes = [8, 5], strides = [1, 1]} : vector<128x5xf32> to vector<8x5xf32>
    %847 = vector.broadcast %19 : vector<1x5xf32> to vector<8x5xf32>
    %848 = arith.addf %831, %847 : vector<8x5xf32>
    %849 = arith.mulf %838, %848 : vector<8x5xf32>
    %850 = arith.addf %846, %849 : vector<8x5xf32>
    %851 = math.tanh %850 : vector<8x5xf32>
    %852 = arith.subf %792, %851 : vector<8x5xf32>
    %853 = arith.mulf %845, %852 : vector<8x5xf32>
    %854 = arith.addf %851, %853 : vector<8x5xf32>
    %855 = vector.extract_strided_slice %20 {offsets = [13, 0], sizes = [1, 5], strides = [1, 1]} : vector<16x5xf32> to vector<1x5xf32>
    %856 = vector.broadcast %855 : vector<1x5xf32> to vector<8x5xf32>
    %857 = arith.mulf %854, %856 : vector<8x5xf32>
    %cst_189 = arith.constant dense<0.000000e+00> : vector<8xf32>
    %858 = vector.multi_reduction <add>, %857, %cst_189 [1] : vector<8x5xf32> to vector<8xf32>
    %859 = vector.shape_cast %858 : vector<8xf32> to vector<8x1xf32>
    %860 = vector.shape_cast %854 : vector<8x5xf32> to vector<1x8x5xf32>
    %cst_190 = arith.constant dense<0.000000e+00> : vector<1xf32>
    %861 = vector.multi_reduction <add>, %860, %cst_190 [1, 2] : vector<1x8x5xf32> to vector<1xf32>
    %862 = vector.shape_cast %861 : vector<1xf32> to vector<1x1x1xf32>
    %863 = vector.extract %862[0, 0, 0] : f32 from vector<1x1x1xf32>
    %864 = vector.broadcast %863 : f32 to vector<1x1xf32>
    %865 = arith.mulf %854, %854 : vector<8x5xf32>
    %866 = vector.shape_cast %865 : vector<8x5xf32> to vector<1x8x5xf32>
    %cst_191 = arith.constant dense<0.000000e+00> : vector<1xf32>
    %867 = vector.multi_reduction <add>, %866, %cst_191 [1, 2] : vector<1x8x5xf32> to vector<1xf32>
    %868 = vector.shape_cast %867 : vector<1xf32> to vector<1x1x1xf32>
    %869 = vector.extract %868[0, 0, 0] : f32 from vector<1x1x1xf32>
    %870 = vector.broadcast %869 : f32 to vector<1x1xf32>
    %cst_192 = arith.constant 2.500000e-02 : f32
    %871 = vector.broadcast %cst_192 : f32 to vector<1x1xf32>
    %872 = arith.mulf %864, %871 : vector<1x1xf32>
    %cst_193 = arith.constant 2.500000e-02 : f32
    %873 = vector.broadcast %cst_193 : f32 to vector<1x1xf32>
    %874 = arith.mulf %870, %873 : vector<1x1xf32>
    %875 = arith.mulf %872, %872 : vector<1x1xf32>
    %876 = arith.subf %874, %875 : vector<1x1xf32>
    %cst_194 = arith.constant 9.99999974E-6 : f32
    %877 = vector.broadcast %cst_194 : f32 to vector<1x1xf32>
    %878 = arith.addf %876, %877 : vector<1x1xf32>
    %879 = math.rsqrt %878 : vector<1x1xf32>
    %c13 = arith.constant 13 : index
    %880 = memref.load %arg12[%c13] : memref<16xf32, #tpu.memory_space<smem>>
    %881 = vector.broadcast %880 : f32 to vector<8x1xf32>
    %882 = arith.mulf %881, %859 : vector<8x1xf32>
    %c13_195 = arith.constant 13 : index
    %883 = memref.load %arg13[%c13_195] : memref<16xf32, #tpu.memory_space<smem>>
    %884 = vector.broadcast %883 : f32 to vector<1x1xf32>
    %885 = arith.mulf %884, %872 : vector<1x1xf32>
    %886 = vector.broadcast %885 : vector<1x1xf32> to vector<8x1xf32>
    %887 = arith.subf %882, %886 : vector<8x1xf32>
    %888 = vector.broadcast %879 : vector<1x1xf32> to vector<8x1xf32>
    %889 = arith.mulf %888, %887 : vector<8x1xf32>
    %890 = arith.addf %828, %889 : vector<8x1xf32>
    %cst_196 = arith.constant dense<0.000000e+00> : vector<8x5xf32>
    %891 = tpu.matmul %854, %16, %cst_196 {dimension_numbers = #tpu.dot_dimension_numbers<[1], [0], [0], [1], [0, 0, 1, 1], [], []>} : vector<8x5xf32>, vector<5x5xf32>, vector<8x5xf32> -> vector<8x5xf32>
    %cst_197 = arith.constant dense<0.000000e+00> : vector<8x5xf32>
    %892 = tpu.matmul %854, %17, %cst_197 {dimension_numbers = #tpu.dot_dimension_numbers<[1], [0], [0], [1], [0, 0, 1, 1], [], []>} : vector<8x5xf32>, vector<5x5xf32>, vector<8x5xf32> -> vector<8x5xf32>
    %cst_198 = arith.constant dense<0.000000e+00> : vector<8x5xf32>
    %893 = tpu.matmul %854, %18, %cst_198 {dimension_numbers = #tpu.dot_dimension_numbers<[1], [0], [0], [1], [0, 0, 1, 1], [], []>} : vector<8x5xf32>, vector<5x5xf32>, vector<8x5xf32> -> vector<8x5xf32>
    %894 = vector.extract_strided_slice %5 {offsets = [112, 0], sizes = [8, 5], strides = [1, 1]} : vector<128x5xf32> to vector<8x5xf32>
    %895 = arith.addf %894, %891 : vector<8x5xf32>
    %896 = arith.negf %895 : vector<8x5xf32>
    %897 = math.exp %896 : vector<8x5xf32>
    %cst_199 = arith.constant 1.000000e+00 : f32
    %898 = vector.broadcast %cst_199 : f32 to vector<8x5xf32>
    %899 = arith.addf %898, %897 : vector<8x5xf32>
    %900 = arith.divf %898, %899 : vector<8x5xf32>
    %901 = vector.extract_strided_slice %10 {offsets = [112, 0], sizes = [8, 5], strides = [1, 1]} : vector<128x5xf32> to vector<8x5xf32>
    %902 = arith.addf %901, %892 : vector<8x5xf32>
    %903 = arith.negf %902 : vector<8x5xf32>
    %904 = math.exp %903 : vector<8x5xf32>
    %cst_200 = arith.constant 1.000000e+00 : f32
    %905 = vector.broadcast %cst_200 : f32 to vector<8x5xf32>
    %906 = arith.addf %905, %904 : vector<8x5xf32>
    %907 = arith.divf %905, %906 : vector<8x5xf32>
    %908 = vector.extract_strided_slice %15 {offsets = [112, 0], sizes = [8, 5], strides = [1, 1]} : vector<128x5xf32> to vector<8x5xf32>
    %909 = vector.broadcast %19 : vector<1x5xf32> to vector<8x5xf32>
    %910 = arith.addf %893, %909 : vector<8x5xf32>
    %911 = arith.mulf %900, %910 : vector<8x5xf32>
    %912 = arith.addf %908, %911 : vector<8x5xf32>
    %913 = math.tanh %912 : vector<8x5xf32>
    %914 = arith.subf %854, %913 : vector<8x5xf32>
    %915 = arith.mulf %907, %914 : vector<8x5xf32>
    %916 = arith.addf %913, %915 : vector<8x5xf32>
    %917 = vector.extract_strided_slice %20 {offsets = [14, 0], sizes = [1, 5], strides = [1, 1]} : vector<16x5xf32> to vector<1x5xf32>
    %918 = vector.broadcast %917 : vector<1x5xf32> to vector<8x5xf32>
    %919 = arith.mulf %916, %918 : vector<8x5xf32>
    %cst_201 = arith.constant dense<0.000000e+00> : vector<8xf32>
    %920 = vector.multi_reduction <add>, %919, %cst_201 [1] : vector<8x5xf32> to vector<8xf32>
    %921 = vector.shape_cast %920 : vector<8xf32> to vector<8x1xf32>
    %922 = vector.shape_cast %916 : vector<8x5xf32> to vector<1x8x5xf32>
    %cst_202 = arith.constant dense<0.000000e+00> : vector<1xf32>
    %923 = vector.multi_reduction <add>, %922, %cst_202 [1, 2] : vector<1x8x5xf32> to vector<1xf32>
    %924 = vector.shape_cast %923 : vector<1xf32> to vector<1x1x1xf32>
    %925 = vector.extract %924[0, 0, 0] : f32 from vector<1x1x1xf32>
    %926 = vector.broadcast %925 : f32 to vector<1x1xf32>
    %927 = arith.mulf %916, %916 : vector<8x5xf32>
    %928 = vector.shape_cast %927 : vector<8x5xf32> to vector<1x8x5xf32>
    %cst_203 = arith.constant dense<0.000000e+00> : vector<1xf32>
    %929 = vector.multi_reduction <add>, %928, %cst_203 [1, 2] : vector<1x8x5xf32> to vector<1xf32>
    %930 = vector.shape_cast %929 : vector<1xf32> to vector<1x1x1xf32>
    %931 = vector.extract %930[0, 0, 0] : f32 from vector<1x1x1xf32>
    %932 = vector.broadcast %931 : f32 to vector<1x1xf32>
    %cst_204 = arith.constant 2.500000e-02 : f32
    %933 = vector.broadcast %cst_204 : f32 to vector<1x1xf32>
    %934 = arith.mulf %926, %933 : vector<1x1xf32>
    %cst_205 = arith.constant 2.500000e-02 : f32
    %935 = vector.broadcast %cst_205 : f32 to vector<1x1xf32>
    %936 = arith.mulf %932, %935 : vector<1x1xf32>
    %937 = arith.mulf %934, %934 : vector<1x1xf32>
    %938 = arith.subf %936, %937 : vector<1x1xf32>
    %cst_206 = arith.constant 9.99999974E-6 : f32
    %939 = vector.broadcast %cst_206 : f32 to vector<1x1xf32>
    %940 = arith.addf %938, %939 : vector<1x1xf32>
    %941 = math.rsqrt %940 : vector<1x1xf32>
    %c14 = arith.constant 14 : index
    %942 = memref.load %arg12[%c14] : memref<16xf32, #tpu.memory_space<smem>>
    %943 = vector.broadcast %942 : f32 to vector<8x1xf32>
    %944 = arith.mulf %943, %921 : vector<8x1xf32>
    %c14_207 = arith.constant 14 : index
    %945 = memref.load %arg13[%c14_207] : memref<16xf32, #tpu.memory_space<smem>>
    %946 = vector.broadcast %945 : f32 to vector<1x1xf32>
    %947 = arith.mulf %946, %934 : vector<1x1xf32>
    %948 = vector.broadcast %947 : vector<1x1xf32> to vector<8x1xf32>
    %949 = arith.subf %944, %948 : vector<8x1xf32>
    %950 = vector.broadcast %941 : vector<1x1xf32> to vector<8x1xf32>
    %951 = arith.mulf %950, %949 : vector<8x1xf32>
    %952 = arith.addf %890, %951 : vector<8x1xf32>
    %cst_208 = arith.constant dense<0.000000e+00> : vector<8x5xf32>
    %953 = tpu.matmul %916, %16, %cst_208 {dimension_numbers = #tpu.dot_dimension_numbers<[1], [0], [0], [1], [0, 0, 1, 1], [], []>} : vector<8x5xf32>, vector<5x5xf32>, vector<8x5xf32> -> vector<8x5xf32>
    %cst_209 = arith.constant dense<0.000000e+00> : vector<8x5xf32>
    %954 = tpu.matmul %916, %17, %cst_209 {dimension_numbers = #tpu.dot_dimension_numbers<[1], [0], [0], [1], [0, 0, 1, 1], [], []>} : vector<8x5xf32>, vector<5x5xf32>, vector<8x5xf32> -> vector<8x5xf32>
    %cst_210 = arith.constant dense<0.000000e+00> : vector<8x5xf32>
    %955 = tpu.matmul %916, %18, %cst_210 {dimension_numbers = #tpu.dot_dimension_numbers<[1], [0], [0], [1], [0, 0, 1, 1], [], []>} : vector<8x5xf32>, vector<5x5xf32>, vector<8x5xf32> -> vector<8x5xf32>
    %956 = vector.extract_strided_slice %5 {offsets = [120, 0], sizes = [8, 5], strides = [1, 1]} : vector<128x5xf32> to vector<8x5xf32>
    %957 = arith.addf %956, %953 : vector<8x5xf32>
    %958 = arith.negf %957 : vector<8x5xf32>
    %959 = math.exp %958 : vector<8x5xf32>
    %cst_211 = arith.constant 1.000000e+00 : f32
    %960 = vector.broadcast %cst_211 : f32 to vector<8x5xf32>
    %961 = arith.addf %960, %959 : vector<8x5xf32>
    %962 = arith.divf %960, %961 : vector<8x5xf32>
    %963 = vector.extract_strided_slice %10 {offsets = [120, 0], sizes = [8, 5], strides = [1, 1]} : vector<128x5xf32> to vector<8x5xf32>
    %964 = arith.addf %963, %954 : vector<8x5xf32>
    %965 = arith.negf %964 : vector<8x5xf32>
    %966 = math.exp %965 : vector<8x5xf32>
    %cst_212 = arith.constant 1.000000e+00 : f32
    %967 = vector.broadcast %cst_212 : f32 to vector<8x5xf32>
    %968 = arith.addf %967, %966 : vector<8x5xf32>
    %969 = arith.divf %967, %968 : vector<8x5xf32>
    %970 = vector.extract_strided_slice %15 {offsets = [120, 0], sizes = [8, 5], strides = [1, 1]} : vector<128x5xf32> to vector<8x5xf32>
    %971 = vector.broadcast %19 : vector<1x5xf32> to vector<8x5xf32>
    %972 = arith.addf %955, %971 : vector<8x5xf32>
    %973 = arith.mulf %962, %972 : vector<8x5xf32>
    %974 = arith.addf %970, %973 : vector<8x5xf32>
    %975 = math.tanh %974 : vector<8x5xf32>
    %976 = arith.subf %916, %975 : vector<8x5xf32>
    %977 = arith.mulf %969, %976 : vector<8x5xf32>
    %978 = arith.addf %975, %977 : vector<8x5xf32>
    %979 = vector.extract_strided_slice %20 {offsets = [15, 0], sizes = [1, 5], strides = [1, 1]} : vector<16x5xf32> to vector<1x5xf32>
    %980 = vector.broadcast %979 : vector<1x5xf32> to vector<8x5xf32>
    %981 = arith.mulf %978, %980 : vector<8x5xf32>
    %cst_213 = arith.constant dense<0.000000e+00> : vector<8xf32>
    %982 = vector.multi_reduction <add>, %981, %cst_213 [1] : vector<8x5xf32> to vector<8xf32>
    %983 = vector.shape_cast %982 : vector<8xf32> to vector<8x1xf32>
    %984 = vector.shape_cast %978 : vector<8x5xf32> to vector<1x8x5xf32>
    %cst_214 = arith.constant dense<0.000000e+00> : vector<1xf32>
    %985 = vector.multi_reduction <add>, %984, %cst_214 [1, 2] : vector<1x8x5xf32> to vector<1xf32>
    %986 = vector.shape_cast %985 : vector<1xf32> to vector<1x1x1xf32>
    %987 = vector.extract %986[0, 0, 0] : f32 from vector<1x1x1xf32>
    %988 = vector.broadcast %987 : f32 to vector<1x1xf32>
    %989 = arith.mulf %978, %978 : vector<8x5xf32>
    %990 = vector.shape_cast %989 : vector<8x5xf32> to vector<1x8x5xf32>
    %cst_215 = arith.constant dense<0.000000e+00> : vector<1xf32>
    %991 = vector.multi_reduction <add>, %990, %cst_215 [1, 2] : vector<1x8x5xf32> to vector<1xf32>
    %992 = vector.shape_cast %991 : vector<1xf32> to vector<1x1x1xf32>
    %993 = vector.extract %992[0, 0, 0] : f32 from vector<1x1x1xf32>
    %994 = vector.broadcast %993 : f32 to vector<1x1xf32>
    %cst_216 = arith.constant 2.500000e-02 : f32
    %995 = vector.broadcast %cst_216 : f32 to vector<1x1xf32>
    %996 = arith.mulf %988, %995 : vector<1x1xf32>
    %cst_217 = arith.constant 2.500000e-02 : f32
    %997 = vector.broadcast %cst_217 : f32 to vector<1x1xf32>
    %998 = arith.mulf %994, %997 : vector<1x1xf32>
    %999 = arith.mulf %996, %996 : vector<1x1xf32>
    %1000 = arith.subf %998, %999 : vector<1x1xf32>
    %cst_218 = arith.constant 9.99999974E-6 : f32
    %1001 = vector.broadcast %cst_218 : f32 to vector<1x1xf32>
    %1002 = arith.addf %1000, %1001 : vector<1x1xf32>
    %1003 = math.rsqrt %1002 : vector<1x1xf32>
    %c15 = arith.constant 15 : index
    %1004 = memref.load %arg12[%c15] : memref<16xf32, #tpu.memory_space<smem>>
    %1005 = vector.broadcast %1004 : f32 to vector<8x1xf32>
    %1006 = arith.mulf %1005, %983 : vector<8x1xf32>
    %c15_219 = arith.constant 15 : index
    %1007 = memref.load %arg13[%c15_219] : memref<16xf32, #tpu.memory_space<smem>>
    %1008 = vector.broadcast %1007 : f32 to vector<1x1xf32>
    %1009 = arith.mulf %1008, %996 : vector<1x1xf32>
    %1010 = vector.broadcast %1009 : vector<1x1xf32> to vector<8x1xf32>
    %1011 = arith.subf %1006, %1010 : vector<8x1xf32>
    %1012 = vector.broadcast %1003 : vector<1x1xf32> to vector<8x1xf32>
    %1013 = arith.mulf %1012, %1011 : vector<8x1xf32>
    %1014 = arith.addf %952, %1013 : vector<8x1xf32>
    %c0_220 = arith.constant 0 : index
    %1015 = memref.load %arg14[%c0_220] : memref<1xf32, #tpu.memory_space<smem>>
    %1016 = vector.broadcast %1015 : f32 to vector<8x1xf32>
    %1017 = arith.addf %1014, %1016 : vector<8x1xf32>
    %1018 = arith.negf %1017 : vector<8x1xf32>
    %1019 = math.exp %1018 : vector<8x1xf32>
    %cst_221 = arith.constant 1.000000e+00 : f32
    %1020 = vector.broadcast %cst_221 : f32 to vector<8x1xf32>
    %1021 = arith.addf %1020, %1019 : vector<8x1xf32>
    %1022 = arith.divf %1020, %1021 : vector<8x1xf32>
    %c0_222 = arith.constant 0 : index
    %c0_223 = arith.constant 0 : index
    %1023 = vector.load %arg15[%c0_222, %c0_223] : memref<8x1xf32, #tpu.memory_space<vmem>>, vector<8x1xf32>
    tpu.vector_store %arg15[%c0_222, %c0_223], %1022 {strides = array<i32>} : memref<8x1xf32, #tpu.memory_space<vmem>>, vector<8x1xf32>,
    return
  }
}

</mosaic_0001>

<llo_original>
// kernel: tpu_custom_call.1
$region0: #{tpu_custom_call.1}
  #allocation0 [shape = 'u32[]', space=smem, size = 0x4, offset = 0x4, fixed_abs, tag = 'smem constant byte address 0x4 - core index']
  #allocation1 [shape = 'u32[144,128]{1,0:T(1,128)}', space=vmem, size = 0x12000, scoped, tag = 'internal scratch']
  #allocation2 [shape = 'f32[1]{0:T(128)S(6)}', space=smem, size = 0x200, scoped, tag = 'scoped memory for tpu_custom_call.1']
  %s0 = inlined_call_operand.vmem [shape: f32[128,9], index: 0, kind: input, shape index: {}]
  %s1 = inlined_call_operand.vmem [shape: f32[9,5], index: 1, kind: input, shape index: {}]
  %s2 = inlined_call_operand.vmem [shape: f32[9,5], index: 2, kind: input, shape index: {}]
  %s3 = inlined_call_operand.vmem [shape: f32[9,5], index: 3, kind: input, shape index: {}]
  %s4 = inlined_call_operand.vmem [shape: f32[5,5], index: 4, kind: input, shape index: {}]
  %s5 = inlined_call_operand.vmem [shape: f32[5,5], index: 5, kind: input, shape index: {}]
  %s6 = inlined_call_operand.vmem [shape: f32[5,5], index: 6, kind: input, shape index: {}]
  %s7 = inlined_call_operand.vmem [shape: f32[1,5], index: 7, kind: input, shape index: {}]
  %s8 = inlined_call_operand.vmem [shape: f32[1,5], index: 8, kind: input, shape index: {}]
  %s9 = inlined_call_operand.vmem [shape: f32[1,5], index: 9, kind: input, shape index: {}]
  %s10 = inlined_call_operand.vmem [shape: f32[1,5], index: 10, kind: input, shape index: {}]
  %s11 = inlined_call_operand.vmem [shape: f32[16,5], index: 11, kind: input, shape index: {}]
  %s12 = inlined_call_operand.vmem [shape: f32[16], index: 12, kind: input, shape index: {}]
  %s13 = inlined_call_operand.vmem [shape: f32[16], index: 13, kind: input, shape index: {}]
  %s14 = inlined_call_operand.<no memory space> [shape: f32[1], index: 14, kind: input, shape index: {}]
  %s15 = inlined_call_operand.vmem [shape: f32[8,1], index: 15, kind: output, shape index: {}]
  %s16 = sld [smem:[#allocation0]]
  $region78: #{tpu_custom_call.1} parent=0
    _
  %s18 = ssub.s32 1, %s16
  %s19 = scalar_select 0, %s18, %s16
  %20 = sst [smem:[#allocation2]] %s14
  $region1: #{tpu_custom_call.1} parent=0
    #allocation3 [shape = 'u8[512]{0}', space=smem, size = 0x200, scoped, tag = 'input window, operand 12, single buffered']
    #allocation4 [shape = 's32[1]{0}', space=sflag, size = 0x4, scoped, tag = 'scoped memory for tpu_custom_call.1']
    #allocation5 [shape = 'u8[512]{0}', space=smem, size = 0x200, scoped, tag = 'input window, operand 13, single buffered']
    #allocation6 [shape = 's32[1]{0}', space=sflag, size = 0x4, scoped, tag = 'scoped memory for tpu_custom_call.1']
    %21 = vsyncpa [#allocation4], 0
    %22 = vsyncpa [#allocation6], 0
    // Predicated region
    $region2: #{tpu_custom_call.1} parent=1 // pred_check
      _
    $region3: #{tpu_custom_call.1} parent=1 // pred_check_branch
      %24 = sbr.rel (0) target = $region5
    $region4: #{tpu_custom_call.1} parent=1 // pred_region
      _
    $region5: #{tpu_custom_call.1} parent=1 // pred_fallthru
      _
    // Predicated region
    $region6: #{tpu_custom_call.1} parent=1 // pred_check
      _
    $region7: #{tpu_custom_call.1} parent=1 // pred_check_branch
      %26 = sbr.rel (0) target = $region9
    $region8: #{tpu_custom_call.1} parent=1 // pred_region
      _
    $region9: #{tpu_custom_call.1} parent=1 // pred_fallthru
      _
    // Predicated region
    $region10: #{tpu_custom_call.1} parent=1 // pred_check
      _
    $region11: #{tpu_custom_call.1} parent=1 // pred_check_branch
      %28 = sbr.rel (0) target = $region13
    $region12: #{tpu_custom_call.1} parent=1 // pred_region
      _
    $region13: #{tpu_custom_call.1} parent=1 // pred_fallthru
      _
    // Predicated region
    $region14: #{tpu_custom_call.1} parent=1 // pred_check
      _
    $region15: #{tpu_custom_call.1} parent=1 // pred_check_branch
      %30 = sbr.rel (0) target = $region17
    $region16: #{tpu_custom_call.1} parent=1 // pred_region
      _
    $region17: #{tpu_custom_call.1} parent=1 // pred_fallthru
      _
    // Predicated region
    $region18: #{tpu_custom_call.1} parent=1 // pred_check
      _
    $region19: #{tpu_custom_call.1} parent=1 // pred_check_branch
      %32 = sbr.rel (0) target = $region21
    $region20: #{tpu_custom_call.1} parent=1 // pred_region
      _
    $region21: #{tpu_custom_call.1} parent=1 // pred_fallthru
      _
    // Predicated region
    $region22: #{tpu_custom_call.1} parent=1 // pred_check
      _
    $region23: #{tpu_custom_call.1} parent=1 // pred_check_branch
      %34 = sbr.rel (0) target = $region25
    $region24: #{tpu_custom_call.1} parent=1 // pred_region
      _
    $region25: #{tpu_custom_call.1} parent=1 // pred_fallthru
      _
    // Predicated region
    $region26: #{tpu_custom_call.1} parent=1 // pred_check
      _
    $region27: #{tpu_custom_call.1} parent=1 // pred_check_branch
      %36 = sbr.rel (0) target = $region29
    $region28: #{tpu_custom_call.1} parent=1 // pred_region
      _
    $region29: #{tpu_custom_call.1} parent=1 // pred_fallthru
      _
    // Predicated region
    $region30: #{tpu_custom_call.1} parent=1 // pred_check
      _
    $region31: #{tpu_custom_call.1} parent=1 // pred_check_branch
      %38 = sbr.rel (0) target = $region33
    $region32: #{tpu_custom_call.1} parent=1 // pred_region
      _
    $region33: #{tpu_custom_call.1} parent=1 // pred_fallthru
      _
    // Predicated region
    $region34: #{tpu_custom_call.1} parent=1 // pred_check
      _
    $region35: #{tpu_custom_call.1} parent=1 // pred_check_branch
      %40 = sbr.rel (0) target = $region37
    $region36: #{tpu_custom_call.1} parent=1 // pred_region
      _
    $region37: #{tpu_custom_call.1} parent=1 // pred_fallthru
      _
    // Predicated region
    $region38: #{tpu_custom_call.1} parent=1 // pred_check
      _
    $region39: #{tpu_custom_call.1} parent=1 // pred_check_branch
      %42 = sbr.rel (0) target = $region41
    $region40: #{tpu_custom_call.1} parent=1 // pred_region
      _
    $region41: #{tpu_custom_call.1} parent=1 // pred_fallthru
      _
    // Predicated region
    $region42: #{tpu_custom_call.1} parent=1 // pred_check
      _
    $region43: #{tpu_custom_call.1} parent=1 // pred_check_branch
      %44 = sbr.rel (0) target = $region45
    $region44: #{tpu_custom_call.1} parent=1 // pred_region
      _
    $region45: #{tpu_custom_call.1} parent=1 // pred_fallthru
      _
    // Predicated region
    $region46: #{tpu_custom_call.1} parent=1 // pred_check
      _
    $region47: #{tpu_custom_call.1} parent=1 // pred_check_branch
      %46 = sbr.rel (0) target = $region49
    $region48: #{tpu_custom_call.1} parent=1 // pred_region
      _
    $region49: #{tpu_custom_call.1} parent=1 // pred_fallthru
      _
    // Predicated region
    $region50: #{tpu_custom_call.1} parent=1 // pred_check
      _
    $region51: #{tpu_custom_call.1} parent=1 // pred_check_branch
      %48 = sbr.rel (0) target = $region53
    $region52: #{tpu_custom_call.1} parent=1 // pred_region
      %s50 = ssub.s32 16, 16
      %51 = vsyncadd [#allocation4], %s50
      %s53 = sshll.u32 %s12, 4
      %s54 = int_to_ptr.vmem [resolvable:$true] %s53
      %56 = dma.vmem_to_smem %s54, 16, [#allocation3], [#allocation4]
    $region53: #{tpu_custom_call.1} parent=1 // pred_fallthru
      _
    // Predicated region
    $region54: #{tpu_custom_call.1} parent=1 // pred_check
      _
    $region55: #{tpu_custom_call.1} parent=1 // pred_check_branch
      %58 = sbr.rel (0) target = $region57
    $region56: #{tpu_custom_call.1} parent=1 // pred_region
      %s60 = ssub.s32 16, 16
      %61 = vsyncadd [#allocation6], %s60
      %s63 = sshll.u32 %s13, 4
      %s64 = int_to_ptr.vmem [resolvable:$true] %s63
      %66 = dma.vmem_to_smem %s64, 16, [#allocation5], [#allocation6]
    $region57: #{tpu_custom_call.1} parent=1 // pred_fallthru
      _
    // Predicated region
    $region58: #{tpu_custom_call.1} parent=1 // pred_check
      _
    $region59: #{tpu_custom_call.1} parent=1 // pred_check_branch
      %68 = sbr.rel (0) target = $region61
    $region60: #{tpu_custom_call.1} parent=1 // pred_region
      _
    $region61: #{tpu_custom_call.1} parent=1 // pred_fallthru
      _
    // Predicated region
    $region62: #{tpu_custom_call.1} parent=1 // pred_check
      _
    $region63: #{tpu_custom_call.1} parent=1 // pred_check_branch
      %70 = sbr.rel (0) target = $region65
    $region64: #{tpu_custom_call.1} parent=1 // pred_region
      %71 = dma.done [#allocation4], 16
    $region65: #{tpu_custom_call.1} parent=1 // pred_fallthru
      _
    // Predicated region
    $region66: #{tpu_custom_call.1} parent=1 // pred_check
      _
    $region67: #{tpu_custom_call.1} parent=1 // pred_check_branch
      %73 = sbr.rel (0) target = $region69
    $region68: #{tpu_custom_call.1} parent=1 // pred_region
      %74 = dma.done [#allocation6], 16
    $region69: #{tpu_custom_call.1} parent=1 // pred_fallthru
      _
    %75 = sfence
    %v76 = vld [vmem:[%s0] sm:$0xff]
    %v77 = vld [vmem:[%s0 + $0x8] sm:$0xff]
    %v78 = vld [vmem:[%s0 + $0x10] sm:$0xff]
    %v79 = vld [vmem:[%s0 + $0x18] sm:$0xff]
    %v80 = vld [vmem:[%s0 + $0x20] sm:$0xff]
    %v81 = vld [vmem:[%s0 + $0x28] sm:$0xff]
    %v82 = vld [vmem:[%s0 + $0x30] sm:$0xff]
    %v83 = vld [vmem:[%s0 + $0x38] sm:$0xff]
    %v84 = vld [vmem:[%s0 + $0x40] sm:$0xff]
    %v85 = vld [vmem:[%s0 + $0x48] sm:$0xff]
    %v86 = vld [vmem:[%s0 + $0x50] sm:$0xff]
    %v87 = vld [vmem:[%s0 + $0x58] sm:$0xff]
    %v88 = vld [vmem:[%s0 + $0x60] sm:$0xff]
    %v89 = vld [vmem:[%s0 + $0x68] sm:$0xff]
    %v90 = vld [vmem:[%s0 + $0x70] sm:$0xff]
    %v91 = vld [vmem:[%s0 + $0x78] sm:$0xff]
    %v92 = vld [vmem:[%s1] sm:$0xff]
    %v93 = vld [vmem:[%s1 + $0x8] sm:$0x1]
    %v94 = vld [vmem:[%s7] sm:$0x1]
    %v96 = vlaneseq
    %v97 = vshrl.u32 %v96, 7
    %v98 = vsub.s32 0, %v97
    %v99 = vrot.slane %v94, %v98
    %vm101 = vcmask 72704
    %v103 = vsel %vm101, %v76, 0
    %v106 = vsel %vm101, %v77, 0
    %v109 = vsel %vm101, %v78, 0
    %v112 = vsel %vm101, %v79, 0
    %v115 = vsel %vm101, %v80, 0
    %v118 = vsel %vm101, %v81, 0
    %v121 = vsel %vm101, %v82, 0
    %v124 = vsel %vm101, %v83, 0
    %v127 = vsel %vm101, %v84, 0
    %v130 = vsel %vm101, %v85, 0
    %v133 = vsel %vm101, %v86, 0
    %v136 = vsel %vm101, %v87, 0
    %v139 = vsel %vm101, %v88, 0
    %v142 = vsel %vm101, %v89, 0
    %v145 = vsel %vm101, %v90, 0
    %v148 = vsel %vm101, %v91, 0
    %vm150 = vcmask 1040384
    %v152 = vsel %vm150, %v93, 0
    %154 = vmatprep.subr.mxu0 0.0
    %155 = vmatpush1.msra.mxu0 0.0
    %156 = vmatprep.subr.mxu0 0.0
    %157 = vmatpush1.msra.mxu0 0.0
    %158 = vmatprep.subr.mxu0 0.0
    %159 = vmatpush1.msra.mxu0 0.0
    %160 = vmatprep.subr.mxu0 0.0
    %161 = vmatpush1.msra.mxu0 0.0
    %162 = vmatprep.subr.mxu0 0.0
    %163 = vmatpush1.msra.mxu0 0.0
    %164 = vmatprep.subr.mxu0 0.0
    %165 = vmatpush1.msra.mxu0 0.0
    %166 = vmatprep.subr.mxu0 0.0
    %167 = vmatpush1.msra.mxu0 0.0
    %168 = vmatprep.subr.mxu0 0.0
    %169 = vmatpush1.msra.mxu0 0.0
    %170 = vmatprep.subr.mxu0 0.0
    %171 = vmatpush1.msra.mxu0 0.0
    %172 = vmatprep.subr.mxu0 0.0
    %173 = vmatpush1.msra.mxu0 0.0
    %174 = vmatprep.subr.mxu0 0.0
    %175 = vmatpush1.msra.mxu0 0.0
    %176 = vmatprep.subr.mxu0 0.0
    %177 = vmatpush1.msra.mxu0 0.0
    %178 = vmatprep.subr.mxu0 0.0
    %179 = vmatpush1.msra.mxu0 0.0
    %180 = vmatprep.subr.mxu0 0.0
    %181 = vmatpush1.msra.mxu0 0.0
    %182 = vmatprep.subr.mxu0 0.0
    %183 = vmatpush1.msra.mxu0 %v152
    %184 = vmatprep.subr.mxu0 0.0
    %185 = vmatpush1.msra.mxu0 %v92
    %186 = vmatprep.subr.mxu0 0.0
    %187 = vmatpush2.msra.mxu0 0.0
    %188 = vmatprep.subr.mxu0 0.0
    %189 = vmatpush2.msra.mxu0 0.0
    %190 = vmatprep.subr.mxu0 0.0
    %191 = vmatpush2.msra.mxu0 0.0
    %192 = vmatprep.subr.mxu0 0.0
    %193 = vmatpush2.msra.mxu0 0.0
    %194 = vmatprep.subr.mxu0 0.0
    %195 = vmatpush2.msra.mxu0 0.0
    %196 = vmatprep.subr.mxu0 0.0
    %197 = vmatpush2.msra.mxu0 0.0
    %198 = vmatprep.subr.mxu0 0.0
    %199 = vmatpush2.msra.mxu0 0.0
    %200 = vmatprep.subr.mxu0 0.0
    %201 = vmatpush2.msra.mxu0 0.0
    %202 = vmatprep.subr.mxu0 0.0
    %203 = vmatpush2.msra.mxu0 0.0
    %204 = vmatprep.subr.mxu0 0.0
    %205 = vmatpush2.msra.mxu0 0.0
    %206 = vmatprep.subr.mxu0 0.0
    %207 = vmatpush2.msra.mxu0 0.0
    %208 = vmatprep.subr.mxu0 0.0
    %209 = vmatpush2.msra.mxu0 0.0
    %210 = vmatprep.subr.mxu0 0.0
    %211 = vmatpush2.msra.mxu0 0.0
    %212 = vmatprep.subr.mxu0 0.0
    %213 = vmatpush2.msra.mxu0 0.0
    %214 = vmatprep.subr.mxu0 0.0
    %215 = vmatpush2.msra.mxu0 0.0
    %216 = vmatprep.subr.mxu0 0.0
    %217 = vmatpush2.msra.mxu0 0.0
    %218 = vmatprep.mubr.f32.mxu0 0.0
    %219 = vmatmul.mubr.f32.gmra.mxu0 %v103
    %v220 = vpop.f32.mrf.mxu0
    %v221 = vadd.f32 %v99, %v220
    %v222 = vpop.f32.mrf.mxu0
    %223 = vmatprep.mubr.f32.mxu0 0.0
    %224 = vmatmul.mubr.f32.gmra.mxu0 %v106
    %v225 = vpop.f32.mrf.mxu0
    %v226 = vadd.f32 %v99, %v225
    %v227 = vpop.f32.mrf.mxu0
    %228 = vmatprep.mubr.f32.mxu0 0.0
    %229 = vmatmul.mubr.f32.gmra.mxu0 %v109
    %v230 = vpop.f32.mrf.mxu0
    %v231 = vadd.f32 %v99, %v230
    %v232 = vpop.f32.mrf.mxu0
    %233 = vmatprep.mubr.f32.mxu0 0.0
    %234 = vmatmul.mubr.f32.gmra.mxu0 %v112
    %v235 = vpop.f32.mrf.mxu0
    %v236 = vadd.f32 %v99, %v235
    %v237 = vpop.f32.mrf.mxu0
    %238 = vmatprep.mubr.f32.mxu0 0.0
    %239 = vmatmul.mubr.f32.gmra.mxu0 %v115
    %v240 = vpop.f32.mrf.mxu0
    %v241 = vadd.f32 %v99, %v240
    %v242 = vpop.f32.mrf.mxu0
    %243 = vmatprep.mubr.f32.mxu0 0.0
    %244 = vmatmul.mubr.f32.gmra.mxu0 %v118
    %v245 = vpop.f32.mrf.mxu0
    %v246 = vadd.f32 %v99, %v245
    %v247 = vpop.f32.mrf.mxu0
    %248 = vmatprep.mubr.f32.mxu0 0.0
    %249 = vmatmul.mubr.f32.gmra.mxu0 %v121
    %v250 = vpop.f32.mrf.mxu0
    %v251 = vadd.f32 %v99, %v250
    %v252 = vpop.f32.mrf.mxu0
    %253 = vmatprep.mubr.f32.mxu0 0.0
    %254 = vmatmul.mubr.f32.gmra.mxu0 %v124
    %v255 = vpop.f32.mrf.mxu0
    %v256 = vadd.f32 %v99, %v255
    %v257 = vpop.f32.mrf.mxu0
    %258 = vmatprep.mubr.f32.mxu0 0.0
    %259 = vmatmul.mubr.f32.gmra.mxu0 %v127
    %v260 = vpop.f32.mrf.mxu0
    %v261 = vadd.f32 %v99, %v260
    %v262 = vpop.f32.mrf.mxu0
    %263 = vmatprep.mubr.f32.mxu0 0.0
    %264 = vmatmul.mubr.f32.gmra.mxu0 %v130
    %v265 = vpop.f32.mrf.mxu0
    %v266 = vadd.f32 %v99, %v265
    %v267 = vpop.f32.mrf.mxu0
    %268 = vmatprep.mubr.f32.mxu0 0.0
    %269 = vmatmul.mubr.f32.gmra.mxu0 %v133
    %v270 = vpop.f32.mrf.mxu0
    %v271 = vadd.f32 %v99, %v270
    %v272 = vpop.f32.mrf.mxu0
    %273 = vmatprep.mubr.f32.mxu0 0.0
    %274 = vmatmul.mubr.f32.gmra.mxu0 %v136
    %v275 = vpop.f32.mrf.mxu0
    %v276 = vadd.f32 %v99, %v275
    %v277 = vpop.f32.mrf.mxu0
    %278 = vmatprep.mubr.f32.mxu0 0.0
    %279 = vmatmul.mubr.f32.gmra.mxu0 %v139
    %v280 = vpop.f32.mrf.mxu0
    %v281 = vadd.f32 %v99, %v280
    %v282 = vpop.f32.mrf.mxu0
    %283 = vmatprep.mubr.f32.mxu0 0.0
    %284 = vmatmul.mubr.f32.gmra.mxu0 %v142
    %v285 = vpop.f32.mrf.mxu0
    %v286 = vadd.f32 %v99, %v285
    %v287 = vpop.f32.mrf.mxu0
    %288 = vmatprep.mubr.f32.mxu0 0.0
    %289 = vmatmul.mubr.f32.gmra.mxu0 %v145
    %v290 = vpop.f32.mrf.mxu0
    %v291 = vadd.f32 %v99, %v290
    %v292 = vpop.f32.mrf.mxu0
    %293 = vmatprep.mubr.f32.mxu0 0.0
    %294 = vmatmul.mubr.f32.gmra.mxu0 %v148
    %v295 = vpop.f32.mrf.mxu0
    %v296 = vadd.f32 %v99, %v295
    %v297 = vpop.f32.mrf.mxu0
    %298 = vdwg.mxu0
    %v299 = vld [vmem:[%s2] sm:$0xff]
    %v300 = vld [vmem:[%s2 + $0x8] sm:$0x1]
    %v301 = vld [vmem:[%s8] sm:$0x1]
    %v303 = vlaneseq
    %v304 = vshrl.u32 %v303, 7
    %v305 = vsub.s32 0, %v304
    %v306 = vrot.slane %v301, %v305
    %v309 = vsel %vm150, %v300, 0
    %311 = vmatprep.subr.mxu0 0.0
    %312 = vmatpush1.msra.mxu0 0.0
    %313 = vmatprep.subr.mxu0 0.0
    %314 = vmatpush1.msra.mxu0 0.0
    %315 = vmatprep.subr.mxu0 0.0
    %316 = vmatpush1.msra.mxu0 0.0
    %317 = vmatprep.subr.mxu0 0.0
    %318 = vmatpush1.msra.mxu0 0.0
    %319 = vmatprep.subr.mxu0 0.0
    %320 = vmatpush1.msra.mxu0 0.0
    %321 = vmatprep.subr.mxu0 0.0
    %322 = vmatpush1.msra.mxu0 0.0
    %323 = vmatprep.subr.mxu0 0.0
    %324 = vmatpush1.msra.mxu0 0.0
    %325 = vmatprep.subr.mxu0 0.0
    %326 = vmatpush1.msra.mxu0 0.0
    %327 = vmatprep.subr.mxu0 0.0
    %328 = vmatpush1.msra.mxu0 0.0
    %329 = vmatprep.subr.mxu0 0.0
    %330 = vmatpush1.msra.mxu0 0.0
    %331 = vmatprep.subr.mxu0 0.0
    %332 = vmatpush1.msra.mxu0 0.0
    %333 = vmatprep.subr.mxu0 0.0
    %334 = vmatpush1.msra.mxu0 0.0
    %335 = vmatprep.subr.mxu0 0.0
    %336 = vmatpush1.msra.mxu0 0.0
    %337 = vmatprep.subr.mxu0 0.0
    %338 = vmatpush1.msra.mxu0 0.0
    %339 = vmatprep.subr.mxu0 0.0
    %340 = vmatpush1.msra.mxu0 %v309
    %341 = vmatprep.subr.mxu0 0.0
    %342 = vmatpush1.msra.mxu0 %v299
    %343 = vmatprep.subr.mxu0 0.0
    %344 = vmatpush2.msra.mxu0 0.0
    %345 = vmatprep.subr.mxu0 0.0
    %346 = vmatpush2.msra.mxu0 0.0
    %347 = vmatprep.subr.mxu0 0.0
    %348 = vmatpush2.msra.mxu0 0.0
    %349 = vmatprep.subr.mxu0 0.0
    %350 = vmatpush2.msra.mxu0 0.0
    %351 = vmatprep.subr.mxu0 0.0
    %352 = vmatpush2.msra.mxu0 0.0
    %353 = vmatprep.subr.mxu0 0.0
    %354 = vmatpush2.msra.mxu0 0.0
    %355 = vmatprep.subr.mxu0 0.0
    %356 = vmatpush2.msra.mxu0 0.0
    %357 = vmatprep.subr.mxu0 0.0
    %358 = vmatpush2.msra.mxu0 0.0
    %359 = vmatprep.subr.mxu0 0.0
    %360 = vmatpush2.msra.mxu0 0.0
    %361 = vmatprep.subr.mxu0 0.0
    %362 = vmatpush2.msra.mxu0 0.0
    %363 = vmatprep.subr.mxu0 0.0
    %364 = vmatpush2.msra.mxu0 0.0
    %365 = vmatprep.subr.mxu0 0.0
    %366 = vmatpush2.msra.mxu0 0.0
    %367 = vmatprep.subr.mxu0 0.0
    %368 = vmatpush2.msra.mxu0 0.0
    %369 = vmatprep.subr.mxu0 0.0
    %370 = vmatpush2.msra.mxu0 0.0
    %371 = vmatprep.subr.mxu0 0.0
    %372 = vmatpush2.msra.mxu0 0.0
    %373 = vmatprep.subr.mxu0 0.0
    %374 = vmatpush2.msra.mxu0 0.0
    %375 = vmatprep.mubr.f32.mxu0 0.0
    %376 = vmatmul.mubr.f32.gmra.mxu0 %v103
    %v377 = vpop.f32.mrf.mxu0
    %v378 = vadd.f32 %v306, %v377
    %v379 = vpop.f32.mrf.mxu0
    %380 = vmatprep.mubr.f32.mxu0 0.0
    %381 = vmatmul.mubr.f32.gmra.mxu0 %v106
    %v382 = vpop.f32.mrf.mxu0
    %v383 = vadd.f32 %v306, %v382
    %v384 = vpop.f32.mrf.mxu0
    %385 = vmatprep.mubr.f32.mxu0 0.0
    %386 = vmatmul.mubr.f32.gmra.mxu0 %v109
    %v387 = vpop.f32.mrf.mxu0
    %v388 = vadd.f32 %v306, %v387
    %v389 = vpop.f32.mrf.mxu0
    %390 = vmatprep.mubr.f32.mxu0 0.0
    %391 = vmatmul.mubr.f32.gmra.mxu0 %v112
    %v392 = vpop.f32.mrf.mxu0
    %v393 = vadd.f32 %v306, %v392
    %v394 = vpop.f32.mrf.mxu0
    %395 = vmatprep.mubr.f32.mxu0 0.0
    %396 = vmatmul.mubr.f32.gmra.mxu0 %v115
    %v397 = vpop.f32.mrf.mxu0
    %v398 = vadd.f32 %v306, %v397
    %v399 = vpop.f32.mrf.mxu0
    %400 = vmatprep.mubr.f32.mxu0 0.0
    %401 = vmatmul.mubr.f32.gmra.mxu0 %v118
    %v402 = vpop.f32.mrf.mxu0
    %v403 = vadd.f32 %v306, %v402
    %v404 = vpop.f32.mrf.mxu0
    %405 = vmatprep.mubr.f32.mxu0 0.0
    %406 = vmatmul.mubr.f32.gmra.mxu0 %v121
    %v407 = vpop.f32.mrf.mxu0
    %v408 = vadd.f32 %v306, %v407
    %v409 = vpop.f32.mrf.mxu0
    %410 = vmatprep.mubr.f32.mxu0 0.0
    %411 = vmatmul.mubr.f32.gmra.mxu0 %v124
    %v412 = vpop.f32.mrf.mxu0
    %v413 = vadd.f32 %v306, %v412
    %v414 = vpop.f32.mrf.mxu0
    %415 = vmatprep.mubr.f32.mxu0 0.0
    %416 = vmatmul.mubr.f32.gmra.mxu0 %v127
    %v417 = vpop.f32.mrf.mxu0
    %v418 = vadd.f32 %v306, %v417
    %v419 = vpop.f32.mrf.mxu0
    %420 = vmatprep.mubr.f32.mxu0 0.0
    %421 = vmatmul.mubr.f32.gmra.mxu0 %v130
    %v422 = vpop.f32.mrf.mxu0
    %v423 = vadd.f32 %v306, %v422
    %v424 = vpop.f32.mrf.mxu0
    %425 = vmatprep.mubr.f32.mxu0 0.0
    %426 = vmatmul.mubr.f32.gmra.mxu0 %v133
    %v427 = vpop.f32.mrf.mxu0
    %v428 = vadd.f32 %v306, %v427
    %v429 = vpop.f32.mrf.mxu0
    %430 = vmatprep.mubr.f32.mxu0 0.0
    %431 = vmatmul.mubr.f32.gmra.mxu0 %v136
    %v432 = vpop.f32.mrf.mxu0
    %v433 = vadd.f32 %v306, %v432
    %v434 = vpop.f32.mrf.mxu0
    %435 = vmatprep.mubr.f32.mxu0 0.0
    %436 = vmatmul.mubr.f32.gmra.mxu0 %v139
    %v437 = vpop.f32.mrf.mxu0
    %v438 = vadd.f32 %v306, %v437
    %v439 = vpop.f32.mrf.mxu0
    %440 = vmatprep.mubr.f32.mxu0 0.0
    %441 = vmatmul.mubr.f32.gmra.mxu0 %v142
    %v442 = vpop.f32.mrf.mxu0
    %v443 = vadd.f32 %v306, %v442
    %v444 = vpop.f32.mrf.mxu0
    %445 = vmatprep.mubr.f32.mxu0 0.0
    %446 = vmatmul.mubr.f32.gmra.mxu0 %v145
    %v447 = vpop.f32.mrf.mxu0
    %v448 = vadd.f32 %v306, %v447
    %v449 = vpop.f32.mrf.mxu0
    %450 = vmatprep.mubr.f32.mxu0 0.0
    %451 = vmatmul.mubr.f32.gmra.mxu0 %v148
    %v452 = vpop.f32.mrf.mxu0
    %v453 = vadd.f32 %v306, %v452
    %v454 = vpop.f32.mrf.mxu0
    %455 = vdwg.mxu0
    %v456 = vld [vmem:[%s3] sm:$0xff]
    %v457 = vld [vmem:[%s3 + $0x8] sm:$0x1]
    %v458 = vld [vmem:[%s9] sm:$0x1]
    %v460 = vlaneseq
    %v461 = vshrl.u32 %v460, 7
    %v462 = vsub.s32 0, %v461
    %v463 = vrot.slane %v458, %v462
    %v466 = vsel %vm150, %v457, 0
    %468 = vmatprep.subr.mxu0 0.0
    %469 = vmatpush1.msra.mxu0 0.0
    %470 = vmatprep.subr.mxu0 0.0
    %471 = vmatpush1.msra.mxu0 0.0
    %472 = vmatprep.subr.mxu0 0.0
    %473 = vmatpush1.msra.mxu0 0.0
    %474 = vmatprep.subr.mxu0 0.0
    %475 = vmatpush1.msra.mxu0 0.0
    %476 = vmatprep.subr.mxu0 0.0
    %477 = vmatpush1.msra.mxu0 0.0
    %478 = vmatprep.subr.mxu0 0.0
    %479 = vmatpush1.msra.mxu0 0.0
    %480 = vmatprep.subr.mxu0 0.0
    %481 = vmatpush1.msra.mxu0 0.0
    %482 = vmatprep.subr.mxu0 0.0
    %483 = vmatpush1.msra.mxu0 0.0
    %484 = vmatprep.subr.mxu0 0.0
    %485 = vmatpush1.msra.mxu0 0.0
    %486 = vmatprep.subr.mxu0 0.0
    %487 = vmatpush1.msra.mxu0 0.0
    %488 = vmatprep.subr.mxu0 0.0
    %489 = vmatpush1.msra.mxu0 0.0
    %490 = vmatprep.subr.mxu0 0.0
    %491 = vmatpush1.msra.mxu0 0.0
    %492 = vmatprep.subr.mxu0 0.0
    %493 = vmatpush1.msra.mxu0 0.0
    %494 = vmatprep.subr.mxu0 0.0
    %495 = vmatpush1.msra.mxu0 0.0
    %496 = vmatprep.subr.mxu0 0.0
    %497 = vmatpush1.msra.mxu0 %v466
    %498 = vmatprep.subr.mxu0 0.0
    %499 = vmatpush1.msra.mxu0 %v456
    %500 = vmatprep.subr.mxu0 0.0
    %501 = vmatpush2.msra.mxu0 0.0
    %502 = vmatprep.subr.mxu0 0.0
    %503 = vmatpush2.msra.mxu0 0.0
    %504 = vmatprep.subr.mxu0 0.0
    %505 = vmatpush2.msra.mxu0 0.0
    %506 = vmatprep.subr.mxu0 0.0
    %507 = vmatpush2.msra.mxu0 0.0
    %508 = vmatprep.subr.mxu0 0.0
    %509 = vmatpush2.msra.mxu0 0.0
    %510 = vmatprep.subr.mxu0 0.0
    %511 = vmatpush2.msra.mxu0 0.0
    %512 = vmatprep.subr.mxu0 0.0
    %513 = vmatpush2.msra.mxu0 0.0
    %514 = vmatprep.subr.mxu0 0.0
    %515 = vmatpush2.msra.mxu0 0.0
    %516 = vmatprep.subr.mxu0 0.0
    %517 = vmatpush2.msra.mxu0 0.0
    %518 = vmatprep.subr.mxu0 0.0
    %519 = vmatpush2.msra.mxu0 0.0
    %520 = vmatprep.subr.mxu0 0.0
    %521 = vmatpush2.msra.mxu0 0.0
    %522 = vmatprep.subr.mxu0 0.0
    %523 = vmatpush2.msra.mxu0 0.0
    %524 = vmatprep.subr.mxu0 0.0
    %525 = vmatpush2.msra.mxu0 0.0
    %526 = vmatprep.subr.mxu0 0.0
    %527 = vmatpush2.msra.mxu0 0.0
    %528 = vmatprep.subr.mxu0 0.0
    %529 = vmatpush2.msra.mxu0 0.0
    %530 = vmatprep.subr.mxu0 0.0
    %531 = vmatpush2.msra.mxu0 0.0
    %532 = vmatprep.mubr.f32.mxu0 0.0
    %533 = vmatmul.mubr.f32.gmra.mxu0 %v103
    %v534 = vpop.f32.mrf.mxu0
    %v535 = vadd.f32 %v463, %v534
    %v536 = vpop.f32.mrf.mxu0
    %537 = vmatprep.mubr.f32.mxu0 0.0
    %538 = vmatmul.mubr.f32.gmra.mxu0 %v106
    %v539 = vpop.f32.mrf.mxu0
    %v540 = vadd.f32 %v463, %v539
    %v541 = vpop.f32.mrf.mxu0
    %542 = vmatprep.mubr.f32.mxu0 0.0
    %543 = vmatmul.mubr.f32.gmra.mxu0 %v109
    %v544 = vpop.f32.mrf.mxu0
    %v545 = vadd.f32 %v463, %v544
    %v546 = vpop.f32.mrf.mxu0
    %547 = vmatprep.mubr.f32.mxu0 0.0
    %548 = vmatmul.mubr.f32.gmra.mxu0 %v112
    %v549 = vpop.f32.mrf.mxu0
    %v550 = vadd.f32 %v463, %v549
    %v551 = vpop.f32.mrf.mxu0
    %552 = vmatprep.mubr.f32.mxu0 0.0
    %553 = vmatmul.mubr.f32.gmra.mxu0 %v115
    %v554 = vpop.f32.mrf.mxu0
    %v555 = vadd.f32 %v463, %v554
    %v556 = vpop.f32.mrf.mxu0
    %557 = vmatprep.mubr.f32.mxu0 0.0
    %558 = vmatmul.mubr.f32.gmra.mxu0 %v118
    %v559 = vpop.f32.mrf.mxu0
    %v560 = vadd.f32 %v463, %v559
    %v561 = vpop.f32.mrf.mxu0
    %562 = vmatprep.mubr.f32.mxu0 0.0
    %563 = vmatmul.mubr.f32.gmra.mxu0 %v121
    %v564 = vpop.f32.mrf.mxu0
    %v565 = vadd.f32 %v463, %v564
    %v566 = vpop.f32.mrf.mxu0
    %567 = vmatprep.mubr.f32.mxu0 0.0
    %568 = vmatmul.mubr.f32.gmra.mxu0 %v124
    %v569 = vpop.f32.mrf.mxu0
    %v570 = vadd.f32 %v463, %v569
    %v571 = vpop.f32.mrf.mxu0
    %572 = vmatprep.mubr.f32.mxu0 0.0
    %573 = vmatmul.mubr.f32.gmra.mxu0 %v127
    %v574 = vpop.f32.mrf.mxu0
    %v575 = vadd.f32 %v463, %v574
    %v576 = vpop.f32.mrf.mxu0
    %577 = vmatprep.mubr.f32.mxu0 0.0
    %578 = vmatmul.mubr.f32.gmra.mxu0 %v130
    %v579 = vpop.f32.mrf.mxu0
    %v580 = vadd.f32 %v463, %v579
    %v581 = vpop.f32.mrf.mxu0
    %582 = vmatprep.mubr.f32.mxu0 0.0
    %583 = vmatmul.mubr.f32.gmra.mxu0 %v133
    %v584 = vpop.f32.mrf.mxu0
    %v585 = vadd.f32 %v463, %v584
    %v586 = vpop.f32.mrf.mxu0
    %587 = vmatprep.mubr.f32.mxu0 0.0
    %588 = vmatmul.mubr.f32.gmra.mxu0 %v136
    %v589 = vpop.f32.mrf.mxu0
    %v590 = vadd.f32 %v463, %v589
    %v591 = vpop.f32.mrf.mxu0
    %592 = vmatprep.mubr.f32.mxu0 0.0
    %593 = vmatmul.mubr.f32.gmra.mxu0 %v139
    %v594 = vpop.f32.mrf.mxu0
    %v595 = vadd.f32 %v463, %v594
    %v596 = vpop.f32.mrf.mxu0
    %597 = vmatprep.mubr.f32.mxu0 0.0
    %598 = vmatmul.mubr.f32.gmra.mxu0 %v142
    %v599 = vpop.f32.mrf.mxu0
    %v600 = vadd.f32 %v463, %v599
    %v601 = vpop.f32.mrf.mxu0
    %602 = vmatprep.mubr.f32.mxu0 0.0
    %603 = vmatmul.mubr.f32.gmra.mxu0 %v145
    %v604 = vpop.f32.mrf.mxu0
    %v605 = vadd.f32 %v463, %v604
    %v606 = vpop.f32.mrf.mxu0
    %607 = vmatprep.mubr.f32.mxu0 0.0
    %608 = vmatmul.mubr.f32.gmra.mxu0 %v148
    %v609 = vpop.f32.mrf.mxu0
    %v610 = vadd.f32 %v463, %v609
    %v611 = vpop.f32.mrf.mxu0
    %612 = vdwg.mxu0
    %v613 = vld [vmem:[%s4] sm:$0x1f]
    %v614 = vld [vmem:[%s5] sm:$0x1f]
    %v615 = vld [vmem:[%s6] sm:$0x1f]
    %v616 = vld [vmem:[%s10] sm:$0x1]
    %v617 = vld [vmem:[%s11] sm:$0xff]
    %v618 = vld [vmem:[%s11 + $0x8] sm:$0xff]
    %vm619 = vcmask 39936
    %v621 = vsel %vm619, 0.0, 0
    %vm623 = vcmask 1044480
    %v625 = vsel %vm623, %v613, 0
    %627 = vmatprep.subr.mxu0 0.0
    %628 = vmatpush1.msra.mxu0 0.0
    %629 = vmatprep.subr.mxu0 0.0
    %630 = vmatpush1.msra.mxu0 0.0
    %631 = vmatprep.subr.mxu0 0.0
    %632 = vmatpush1.msra.mxu0 0.0
    %633 = vmatprep.subr.mxu0 0.0
    %634 = vmatpush1.msra.mxu0 0.0
    %635 = vmatprep.subr.mxu0 0.0
    %636 = vmatpush1.msra.mxu0 0.0
    %637 = vmatprep.subr.mxu0 0.0
    %638 = vmatpush1.msra.mxu0 0.0
    %639 = vmatprep.subr.mxu0 0.0
    %640 = vmatpush1.msra.mxu0 0.0
    %641 = vmatprep.subr.mxu0 0.0
    %642 = vmatpush1.msra.mxu0 0.0
    %643 = vmatprep.subr.mxu0 0.0
    %644 = vmatpush1.msra.mxu0 0.0
    %645 = vmatprep.subr.mxu0 0.0
    %646 = vmatpush1.msra.mxu0 0.0
    %647 = vmatprep.subr.mxu0 0.0
    %648 = vmatpush1.msra.mxu0 0.0
    %649 = vmatprep.subr.mxu0 0.0
    %650 = vmatpush1.msra.mxu0 0.0
    %651 = vmatprep.subr.mxu0 0.0
    %652 = vmatpush1.msra.mxu0 0.0
    %653 = vmatprep.subr.mxu0 0.0
    %654 = vmatpush1.msra.mxu0 0.0
    %655 = vmatprep.subr.mxu0 0.0
    %656 = vmatpush1.msra.mxu0 0.0
    %657 = vmatprep.subr.mxu0 0.0
    %658 = vmatpush1.msra.mxu0 %v625
    %659 = vmatprep.subr.mxu0 0.0
    %660 = vmatpush2.msra.mxu0 0.0
    %661 = vmatprep.subr.mxu0 0.0
    %662 = vmatpush2.msra.mxu0 0.0
    %663 = vmatprep.subr.mxu0 0.0
    %664 = vmatpush2.msra.mxu0 0.0
    %665 = vmatprep.subr.mxu0 0.0
    %666 = vmatpush2.msra.mxu0 0.0
    %667 = vmatprep.subr.mxu0 0.0
    %668 = vmatpush2.msra.mxu0 0.0
    %669 = vmatprep.subr.mxu0 0.0
    %670 = vmatpush2.msra.mxu0 0.0
    %671 = vmatprep.subr.mxu0 0.0
    %672 = vmatpush2.msra.mxu0 0.0
    %673 = vmatprep.subr.mxu0 0.0
    %674 = vmatpush2.msra.mxu0 0.0
    %675 = vmatprep.subr.mxu0 0.0
    %676 = vmatpush2.msra.mxu0 0.0
    %677 = vmatprep.subr.mxu0 0.0
    %678 = vmatpush2.msra.mxu0 0.0
    %679 = vmatprep.subr.mxu0 0.0
    %680 = vmatpush2.msra.mxu0 0.0
    %681 = vmatprep.subr.mxu0 0.0
    %682 = vmatpush2.msra.mxu0 0.0
    %683 = vmatprep.subr.mxu0 0.0
    %684 = vmatpush2.msra.mxu0 0.0
    %685 = vmatprep.subr.mxu0 0.0
    %686 = vmatpush2.msra.mxu0 0.0
    %687 = vmatprep.subr.mxu0 0.0
    %688 = vmatpush2.msra.mxu0 0.0
    %689 = vmatprep.subr.mxu0 0.0
    %690 = vmatpush2.msra.mxu0 0.0
    %691 = vmatprep.mubr.f32.mxu0 0.0
    %692 = vmatmul.mubr.f32.gmra.mxu0 %v621
    %v693 = vpop.f32.mrf.mxu0
    %v694 = vadd.f32 0.0, %v693
    %v695 = vpop.f32.mrf.mxu0
    %696 = vdwg.mxu0
    %v698 = vsel %vm623, %v614, 0
    %700 = vmatprep.subr.mxu0 0.0
    %701 = vmatpush1.msra.mxu0 0.0
    %702 = vmatprep.subr.mxu0 0.0
    %703 = vmatpush1.msra.mxu0 0.0
    %704 = vmatprep.subr.mxu0 0.0
    %705 = vmatpush1.msra.mxu0 0.0
    %706 = vmatprep.subr.mxu0 0.0
    %707 = vmatpush1.msra.mxu0 0.0
    %708 = vmatprep.subr.mxu0 0.0
    %709 = vmatpush1.msra.mxu0 0.0
    %710 = vmatprep.subr.mxu0 0.0
    %711 = vmatpush1.msra.mxu0 0.0
    %712 = vmatprep.subr.mxu0 0.0
    %713 = vmatpush1.msra.mxu0 0.0
    %714 = vmatprep.subr.mxu0 0.0
    %715 = vmatpush1.msra.mxu0 0.0
    %716 = vmatprep.subr.mxu0 0.0
    %717 = vmatpush1.msra.mxu0 0.0
    %718 = vmatprep.subr.mxu0 0.0
    %719 = vmatpush1.msra.mxu0 0.0
    %720 = vmatprep.subr.mxu0 0.0
    %721 = vmatpush1.msra.mxu0 0.0
    %722 = vmatprep.subr.mxu0 0.0
    %723 = vmatpush1.msra.mxu0 0.0
    %724 = vmatprep.subr.mxu0 0.0
    %725 = vmatpush1.msra.mxu0 0.0
    %726 = vmatprep.subr.mxu0 0.0
    %727 = vmatpush1.msra.mxu0 0.0
    %728 = vmatprep.subr.mxu0 0.0
    %729 = vmatpush1.msra.mxu0 0.0
    %730 = vmatprep.subr.mxu0 0.0
    %731 = vmatpush1.msra.mxu0 %v698
    %732 = vmatprep.subr.mxu0 0.0
    %733 = vmatpush2.msra.mxu0 0.0
    %734 = vmatprep.subr.mxu0 0.0
    %735 = vmatpush2.msra.mxu0 0.0
    %736 = vmatprep.subr.mxu0 0.0
    %737 = vmatpush2.msra.mxu0 0.0
    %738 = vmatprep.subr.mxu0 0.0
    %739 = vmatpush2.msra.mxu0 0.0
    %740 = vmatprep.subr.mxu0 0.0
    %741 = vmatpush2.msra.mxu0 0.0
    %742 = vmatprep.subr.mxu0 0.0
    %743 = vmatpush2.msra.mxu0 0.0
    %744 = vmatprep.subr.mxu0 0.0
    %745 = vmatpush2.msra.mxu0 0.0
    %746 = vmatprep.subr.mxu0 0.0
    %747 = vmatpush2.msra.mxu0 0.0
    %748 = vmatprep.subr.mxu0 0.0
    %749 = vmatpush2.msra.mxu0 0.0
    %750 = vmatprep.subr.mxu0 0.0
    %751 = vmatpush2.msra.mxu0 0.0
    %752 = vmatprep.subr.mxu0 0.0
    %753 = vmatpush2.msra.mxu0 0.0
    %754 = vmatprep.subr.mxu0 0.0
    %755 = vmatpush2.msra.mxu0 0.0
    %756 = vmatprep.subr.mxu0 0.0
    %757 = vmatpush2.msra.mxu0 0.0
    %758 = vmatprep.subr.mxu0 0.0
    %759 = vmatpush2.msra.mxu0 0.0
    %760 = vmatprep.subr.mxu0 0.0
    %761 = vmatpush2.msra.mxu0 0.0
    %762 = vmatprep.subr.mxu0 0.0
    %763 = vmatpush2.msra.mxu0 0.0
    %764 = vmatprep.mubr.f32.mxu0 0.0
    %765 = vmatmul.mubr.f32.gmra.mxu0 %v621
    %v766 = vpop.f32.mrf.mxu0
    %v767 = vadd.f32 0.0, %v766
    %v768 = vpop.f32.mrf.mxu0
    %769 = vdwg.mxu0
    %v770 = vadd.f32 %v221, %v694
    %v771 = vxor.u32 %v770, 2147483648
    %v772 = vmul.f32 %v771, 1.442695
    %v773 = vpow.pop %v772
    %v774 = vadd.f32 %v773, 1.0
    %v775 = vrcp.pop %v774
    %v776 = vmul.f32 1.0, %v775
    %v777 = vadd.f32 %v378, %v767
    %v778 = vxor.u32 %v777, 2147483648
    %v779 = vmul.f32 %v778, 1.442695
    %v780 = vpow.pop %v779
    %v781 = vadd.f32 %v780, 1.0
    %v782 = vrcp.pop %v781
    %v783 = vmul.f32 1.0, %v782
    %v785 = vlaneseq
    %v786 = vshrl.u32 %v785, 7
    %v787 = vsub.s32 0, %v786
    %v788 = vrot.slane %v616, %v787
    %v791 = vsel %vm623, %v615, 0
    %793 = vmatprep.subr.mxu0 0.0
    %794 = vmatpush1.msra.mxu0 0.0
    %795 = vmatprep.subr.mxu0 0.0
    %796 = vmatpush1.msra.mxu0 0.0
    %797 = vmatprep.subr.mxu0 0.0
    %798 = vmatpush1.msra.mxu0 0.0
    %799 = vmatprep.subr.mxu0 0.0
    %800 = vmatpush1.msra.mxu0 0.0
    %801 = vmatprep.subr.mxu0 0.0
    %802 = vmatpush1.msra.mxu0 0.0
    %803 = vmatprep.subr.mxu0 0.0
    %804 = vmatpush1.msra.mxu0 0.0
    %805 = vmatprep.subr.mxu0 0.0
    %806 = vmatpush1.msra.mxu0 0.0
    %807 = vmatprep.subr.mxu0 0.0
    %808 = vmatpush1.msra.mxu0 0.0
    %809 = vmatprep.subr.mxu0 0.0
    %810 = vmatpush1.msra.mxu0 0.0
    %811 = vmatprep.subr.mxu0 0.0
    %812 = vmatpush1.msra.mxu0 0.0
    %813 = vmatprep.subr.mxu0 0.0
    %814 = vmatpush1.msra.mxu0 0.0
    %815 = vmatprep.subr.mxu0 0.0
    %816 = vmatpush1.msra.mxu0 0.0
    %817 = vmatprep.subr.mxu0 0.0
    %818 = vmatpush1.msra.mxu0 0.0
    %819 = vmatprep.subr.mxu0 0.0
    %820 = vmatpush1.msra.mxu0 0.0
    %821 = vmatprep.subr.mxu0 0.0
    %822 = vmatpush1.msra.mxu0 0.0
    %823 = vmatprep.subr.mxu0 0.0
    %824 = vmatpush1.msra.mxu0 %v791
    %825 = vmatprep.subr.mxu0 0.0
    %826 = vmatpush2.msra.mxu0 0.0
    %827 = vmatprep.subr.mxu0 0.0
    %828 = vmatpush2.msra.mxu0 0.0
    %829 = vmatprep.subr.mxu0 0.0
    %830 = vmatpush2.msra.mxu0 0.0
    %831 = vmatprep.subr.mxu0 0.0
    %832 = vmatpush2.msra.mxu0 0.0
    %833 = vmatprep.subr.mxu0 0.0
    %834 = vmatpush2.msra.mxu0 0.0
    %835 = vmatprep.subr.mxu0 0.0
    %836 = vmatpush2.msra.mxu0 0.0
    %837 = vmatprep.subr.mxu0 0.0
    %838 = vmatpush2.msra.mxu0 0.0
    %839 = vmatprep.subr.mxu0 0.0
    %840 = vmatpush2.msra.mxu0 0.0
    %841 = vmatprep.subr.mxu0 0.0
    %842 = vmatpush2.msra.mxu0 0.0
    %843 = vmatprep.subr.mxu0 0.0
    %844 = vmatpush2.msra.mxu0 0.0
    %845 = vmatprep.subr.mxu0 0.0
    %846 = vmatpush2.msra.mxu0 0.0
    %847 = vmatprep.subr.mxu0 0.0
    %848 = vmatpush2.msra.mxu0 0.0
    %849 = vmatprep.subr.mxu0 0.0
    %850 = vmatpush2.msra.mxu0 0.0
    %851 = vmatprep.subr.mxu0 0.0
    %852 = vmatpush2.msra.mxu0 0.0
    %853 = vmatprep.subr.mxu0 0.0
    %854 = vmatpush2.msra.mxu0 0.0
    %855 = vmatprep.subr.mxu0 0.0
    %856 = vmatpush2.msra.mxu0 0.0
    %857 = vmatprep.mubr.f32.mxu0 0.0
    %858 = vmatmul.mubr.f32.gmra.mxu0 %v621
    %v859 = vpop.f32.mrf.mxu0
    %v860 = vadd.f32 %v788, %v859
    %v861 = vpop.f32.mrf.mxu0
    %862 = vdwg.mxu0
    %v863 = vmul.f32 %v776, %v860
    %v864 = vadd.f32 %v535, %v863
    %v865 = vtanh.pop %v864
    %v866 = vsub.f32 0.0, %v865
    %v867 = vmul.f32 %v783, %v866
    %v868 = vadd.f32 %v865, %v867
    %v869 = vlaneseq
    %v870 = vshrl.u32 %v869, 7
    %v871 = vsub.s32 0, %v870
    %v872 = vrot.slane %v617, %v871
    %v873 = vmul.f32 %v868, %v872
    %v874 = vsel %vm619, %v873, 0.0
    %875 = vadd.xlane.f32.xlu0 %v874
    %v876 = vpop.xlane.xlu0 %875
    %v877 = vsel %vm619, %v868, 0.0
    %878 = vadd.xlane.f32.xlu0 %v877
    %v879 = vpop.xlane.xlu0 %878
    %v880 = vrot.slane %v879, 4
    %v881 = vadd.f32 %v879, %v880
    %v882 = vrot.slane %v881, 2
    %v883 = vadd.f32 %v881, %v882
    %v884 = vrot.slane %v883, 1
    %v885 = vadd.f32 %v883, %v884
    %s886 = vtos %v885
    %v887 = vstv %s886
    %v888 = vmul.f32 %v868, %v868
    %v889 = vsel %vm619, %v888, 0.0
    %890 = vadd.xlane.f32.xlu0 %v889
    %v891 = vpop.xlane.xlu0 %890
    %v892 = vrot.slane %v891, 4
    %v893 = vadd.f32 %v891, %v892
    %v894 = vrot.slane %v893, 2
    %v895 = vadd.f32 %v893, %v894
    %v896 = vrot.slane %v895, 1
    %v897 = vadd.f32 %v895, %v896
    %s898 = vtos %v897
    %v899 = vstv %s898
    %v900 = vmul.f32 %v887, 0.025
    %v901 = vmul.f32 %v899, 0.025
    %v902 = vmul.f32 %v900, %v900
    %v903 = vsub.f32 %v901, %v902
    %v904 = vadd.f32 %v903, 1e-05
    %v905 = vrsqrt.pop %v904
    %s906 = sld [smem:[#allocation3]]
    %v907 = vstv %s906
    %v908 = vmul.f32 %v907, %v876
    %s909 = sld [smem:[#allocation5]]
    %v910 = vstv %s909
    %v911 = vmul.f32 %v910, %v900
    %v912 = vsub.f32 %v908, %v911
    %v913 = vmul.f32 %v905, %v912
    %v914 = vadd.f32 %v913, 0.0
    %v916 = vsel %vm619, %v868, 0
    %918 = vmatprep.subr.mxu0 0.0
    %919 = vmatpush1.msra.mxu0 0.0
    %920 = vmatprep.subr.mxu0 0.0
    %921 = vmatpush1.msra.mxu0 0.0
    %922 = vmatprep.subr.mxu0 0.0
    %923 = vmatpush1.msra.mxu0 0.0
    %924 = vmatprep.subr.mxu0 0.0
    %925 = vmatpush1.msra.mxu0 0.0
    %926 = vmatprep.subr.mxu0 0.0
    %927 = vmatpush1.msra.mxu0 0.0
    %928 = vmatprep.subr.mxu0 0.0
    %929 = vmatpush1.msra.mxu0 0.0
    %930 = vmatprep.subr.mxu0 0.0
    %931 = vmatpush1.msra.mxu0 0.0
    %932 = vmatprep.subr.mxu0 0.0
    %933 = vmatpush1.msra.mxu0 0.0
    %934 = vmatprep.subr.mxu0 0.0
    %935 = vmatpush1.msra.mxu0 0.0
    %936 = vmatprep.subr.mxu0 0.0
    %937 = vmatpush1.msra.mxu0 0.0
    %938 = vmatprep.subr.mxu0 0.0
    %939 = vmatpush1.msra.mxu0 0.0
    %940 = vmatprep.subr.mxu0 0.0
    %941 = vmatpush1.msra.mxu0 0.0
    %942 = vmatprep.subr.mxu0 0.0
    %943 = vmatpush1.msra.mxu0 0.0
    %944 = vmatprep.subr.mxu0 0.0
    %945 = vmatpush1.msra.mxu0 0.0
    %946 = vmatprep.subr.mxu0 0.0
    %947 = vmatpush1.msra.mxu0 0.0
    %948 = vmatprep.subr.mxu0 0.0
    %949 = vmatpush1.msra.mxu0 %v625
    %950 = vmatprep.subr.mxu0 0.0
    %951 = vmatpush2.msra.mxu0 0.0
    %952 = vmatprep.subr.mxu0 0.0
    %953 = vmatpush2.msra.mxu0 0.0
    %954 = vmatprep.subr.mxu0 0.0
    %955 = vmatpush2.msra.mxu0 0.0
    %956 = vmatprep.subr.mxu0 0.0
    %957 = vmatpush2.msra.mxu0 0.0
    %958 = vmatprep.subr.mxu0 0.0
    %959 = vmatpush2.msra.mxu0 0.0
    %960 = vmatprep.subr.mxu0 0.0
    %961 = vmatpush2.msra.mxu0 0.0
    %962 = vmatprep.subr.mxu0 0.0
    %963 = vmatpush2.msra.mxu0 0.0
    %964 = vmatprep.subr.mxu0 0.0
    %965 = vmatpush2.msra.mxu0 0.0
    %966 = vmatprep.subr.mxu0 0.0
    %967 = vmatpush2.msra.mxu0 0.0
    %968 = vmatprep.subr.mxu0 0.0
    %969 = vmatpush2.msra.mxu0 0.0
    %970 = vmatprep.subr.mxu0 0.0
    %971 = vmatpush2.msra.mxu0 0.0
    %972 = vmatprep.subr.mxu0 0.0
    %973 = vmatpush2.msra.mxu0 0.0
    %974 = vmatprep.subr.mxu0 0.0
    %975 = vmatpush2.msra.mxu0 0.0
    %976 = vmatprep.subr.mxu0 0.0
    %977 = vmatpush2.msra.mxu0 0.0
    %978 = vmatprep.subr.mxu0 0.0
    %979 = vmatpush2.msra.mxu0 0.0
    %980 = vmatprep.subr.mxu0 0.0
    %981 = vmatpush2.msra.mxu0 0.0
    %982 = vmatprep.mubr.f32.mxu0 0.0
    %983 = vmatmul.mubr.f32.gmra.mxu0 %v916
    %v984 = vpop.f32.mrf.mxu0
    %v985 = vadd.f32 0.0, %v984
    %v986 = vpop.f32.mrf.mxu0
    %987 = vdwg.mxu0
    %988 = vmatprep.subr.mxu0 0.0
    %989 = vmatpush1.msra.mxu0 0.0
    %990 = vmatprep.subr.mxu0 0.0
    %991 = vmatpush1.msra.mxu0 0.0
    %992 = vmatprep.subr.mxu0 0.0
    %993 = vmatpush1.msra.mxu0 0.0
    %994 = vmatprep.subr.mxu0 0.0
    %995 = vmatpush1.msra.mxu0 0.0
    %996 = vmatprep.subr.mxu0 0.0
    %997 = vmatpush1.msra.mxu0 0.0
    %998 = vmatprep.subr.mxu0 0.0
    %999 = vmatpush1.msra.mxu0 0.0
    %1000 = vmatprep.subr.mxu0 0.0
    %1001 = vmatpush1.msra.mxu0 0.0
    %1002 = vmatprep.subr.mxu0 0.0
    %1003 = vmatpush1.msra.mxu0 0.0
    %1004 = vmatprep.subr.mxu0 0.0
    %1005 = vmatpush1.msra.mxu0 0.0
    %1006 = vmatprep.subr.mxu0 0.0
    %1007 = vmatpush1.msra.mxu0 0.0
    %1008 = vmatprep.subr.mxu0 0.0
    %1009 = vmatpush1.msra.mxu0 0.0
    %1010 = vmatprep.subr.mxu0 0.0
    %1011 = vmatpush1.msra.mxu0 0.0
    %1012 = vmatprep.subr.mxu0 0.0
    %1013 = vmatpush1.msra.mxu0 0.0
    %1014 = vmatprep.subr.mxu0 0.0
    %1015 = vmatpush1.msra.mxu0 0.0
    %1016 = vmatprep.subr.mxu0 0.0
    %1017 = vmatpush1.msra.mxu0 0.0
    %1018 = vmatprep.subr.mxu0 0.0
    %1019 = vmatpush1.msra.mxu0 %v698
    %1020 = vmatprep.subr.mxu0 0.0
    %1021 = vmatpush2.msra.mxu0 0.0
    %1022 = vmatprep.subr.mxu0 0.0
    %1023 = vmatpush2.msra.mxu0 0.0
    %1024 = vmatprep.subr.mxu0 0.0
    %1025 = vmatpush2.msra.mxu0 0.0
    %1026 = vmatprep.subr.mxu0 0.0
    %1027 = vmatpush2.msra.mxu0 0.0
    %1028 = vmatprep.subr.mxu0 0.0
    %1029 = vmatpush2.msra.mxu0 0.0
    %1030 = vmatprep.subr.mxu0 0.0
    %1031 = vmatpush2.msra.mxu0 0.0
    %1032 = vmatprep.subr.mxu0 0.0
    %1033 = vmatpush2.msra.mxu0 0.0
    %1034 = vmatprep.subr.mxu0 0.0
    %1035 = vmatpush2.msra.mxu0 0.0
    %1036 = vmatprep.subr.mxu0 0.0
    %1037 = vmatpush2.msra.mxu0 0.0
    %1038 = vmatprep.subr.mxu0 0.0
    %1039 = vmatpush2.msra.mxu0 0.0
    %1040 = vmatprep.subr.mxu0 0.0
    %1041 = vmatpush2.msra.mxu0 0.0
    %1042 = vmatprep.subr.mxu0 0.0
    %1043 = vmatpush2.msra.mxu0 0.0
    %1044 = vmatprep.subr.mxu0 0.0
    %1045 = vmatpush2.msra.mxu0 0.0
    %1046 = vmatprep.subr.mxu0 0.0
    %1047 = vmatpush2.msra.mxu0 0.0
    %1048 = vmatprep.subr.mxu0 0.0
    %1049 = vmatpush2.msra.mxu0 0.0
    %1050 = vmatprep.subr.mxu0 0.0
    %1051 = vmatpush2.msra.mxu0 0.0
    %1052 = vmatprep.mubr.f32.mxu0 0.0
    %1053 = vmatmul.mubr.f32.gmra.mxu0 %v916
    %v1054 = vpop.f32.mrf.mxu0
    %v1055 = vadd.f32 0.0, %v1054
    %v1056 = vpop.f32.mrf.mxu0
    %1057 = vdwg.mxu0
    %v1058 = vadd.f32 %v226, %v985
    %v1059 = vxor.u32 %v1058, 2147483648
    %v1060 = vmul.f32 %v1059, 1.442695
    %v1061 = vpow.pop %v1060
    %v1062 = vadd.f32 %v1061, 1.0
    %v1063 = vrcp.pop %v1062
    %v1064 = vmul.f32 1.0, %v1063
    %v1065 = vadd.f32 %v383, %v1055
    %v1066 = vxor.u32 %v1065, 2147483648
    %v1067 = vmul.f32 %v1066, 1.442695
    %v1068 = vpow.pop %v1067
    %v1069 = vadd.f32 %v1068, 1.0
    %v1070 = vrcp.pop %v1069
    %v1071 = vmul.f32 1.0, %v1070
    %1072 = vmatprep.subr.mxu0 0.0
    %1073 = vmatpush1.msra.mxu0 0.0
    %1074 = vmatprep.subr.mxu0 0.0
    %1075 = vmatpush1.msra.mxu0 0.0
    %1076 = vmatprep.subr.mxu0 0.0
    %1077 = vmatpush1.msra.mxu0 0.0
    %1078 = vmatprep.subr.mxu0 0.0
    %1079 = vmatpush1.msra.mxu0 0.0
    %1080 = vmatprep.subr.mxu0 0.0
    %1081 = vmatpush1.msra.mxu0 0.0
    %1082 = vmatprep.subr.mxu0 0.0
    %1083 = vmatpush1.msra.mxu0 0.0
    %1084 = vmatprep.subr.mxu0 0.0
    %1085 = vmatpush1.msra.mxu0 0.0
    %1086 = vmatprep.subr.mxu0 0.0
    %1087 = vmatpush1.msra.mxu0 0.0
    %1088 = vmatprep.subr.mxu0 0.0
    %1089 = vmatpush1.msra.mxu0 0.0
    %1090 = vmatprep.subr.mxu0 0.0
    %1091 = vmatpush1.msra.mxu0 0.0
    %1092 = vmatprep.subr.mxu0 0.0
    %1093 = vmatpush1.msra.mxu0 0.0
    %1094 = vmatprep.subr.mxu0 0.0
    %1095 = vmatpush1.msra.mxu0 0.0
    %1096 = vmatprep.subr.mxu0 0.0
    %1097 = vmatpush1.msra.mxu0 0.0
    %1098 = vmatprep.subr.mxu0 0.0
    %1099 = vmatpush1.msra.mxu0 0.0
    %1100 = vmatprep.subr.mxu0 0.0
    %1101 = vmatpush1.msra.mxu0 0.0
    %1102 = vmatprep.subr.mxu0 0.0
    %1103 = vmatpush1.msra.mxu0 %v791
    %1104 = vmatprep.subr.mxu0 0.0
    %1105 = vmatpush2.msra.mxu0 0.0
    %1106 = vmatprep.subr.mxu0 0.0
    %1107 = vmatpush2.msra.mxu0 0.0
    %1108 = vmatprep.subr.mxu0 0.0
    %1109 = vmatpush2.msra.mxu0 0.0
    %1110 = vmatprep.subr.mxu0 0.0
    %1111 = vmatpush2.msra.mxu0 0.0
    %1112 = vmatprep.subr.mxu0 0.0
    %1113 = vmatpush2.msra.mxu0 0.0
    %1114 = vmatprep.subr.mxu0 0.0
    %1115 = vmatpush2.msra.mxu0 0.0
    %1116 = vmatprep.subr.mxu0 0.0
    %1117 = vmatpush2.msra.mxu0 0.0
    %1118 = vmatprep.subr.mxu0 0.0
    %1119 = vmatpush2.msra.mxu0 0.0
    %1120 = vmatprep.subr.mxu0 0.0
    %1121 = vmatpush2.msra.mxu0 0.0
    %1122 = vmatprep.subr.mxu0 0.0
    %1123 = vmatpush2.msra.mxu0 0.0
    %1124 = vmatprep.subr.mxu0 0.0
    %1125 = vmatpush2.msra.mxu0 0.0
    %1126 = vmatprep.subr.mxu0 0.0
    %1127 = vmatpush2.msra.mxu0 0.0
    %1128 = vmatprep.subr.mxu0 0.0
    %1129 = vmatpush2.msra.mxu0 0.0
    %1130 = vmatprep.subr.mxu0 0.0
    %1131 = vmatpush2.msra.mxu0 0.0
    %1132 = vmatprep.subr.mxu0 0.0
    %1133 = vmatpush2.msra.mxu0 0.0
    %1134 = vmatprep.subr.mxu0 0.0
    %1135 = vmatpush2.msra.mxu0 0.0
    %1136 = vmatprep.mubr.f32.mxu0 0.0
    %1137 = vmatmul.mubr.f32.gmra.mxu0 %v916
    %v1138 = vpop.f32.mrf.mxu0
    %v1139 = vadd.f32 %v788, %v1138
    %v1140 = vpop.f32.mrf.mxu0
    %1141 = vdwg.mxu0
    %v1142 = vmul.f32 %v1064, %v1139
    %v1143 = vadd.f32 %v540, %v1142
    %v1144 = vtanh.pop %v1143
    %v1145 = vsub.f32 %v868, %v1144
    %v1146 = vmul.f32 %v1071, %v1145
    %v1147 = vadd.f32 %v1144, %v1146
    %v1148 = vlaneseq
    %v1149 = vshrl.u32 %v1148, 7
    %v1150 = vsub.s32 1, %v1149
    %v1151 = vrot.slane %v617, %v1150
    %v1152 = vmul.f32 %v1147, %v1151
    %v1153 = vsel %vm619, %v1152, 0.0
    %1154 = vadd.xlane.f32.xlu0 %v1153
    %v1155 = vpop.xlane.xlu0 %1154
    %v1156 = vsel %vm619, %v1147, 0.0
    %1157 = vadd.xlane.f32.xlu0 %v1156
    %v1158 = vpop.xlane.xlu0 %1157
    %v1159 = vrot.slane %v1158, 4
    %v1160 = vadd.f32 %v1158, %v1159
    %v1161 = vrot.slane %v1160, 2
    %v1162 = vadd.f32 %v1160, %v1161
    %v1163 = vrot.slane %v1162, 1
    %v1164 = vadd.f32 %v1162, %v1163
    %s1165 = vtos %v1164
    %v1166 = vstv %s1165
    %v1167 = vmul.f32 %v1147, %v1147
    %v1168 = vsel %vm619, %v1167, 0.0
    %1169 = vadd.xlane.f32.xlu0 %v1168
    %v1170 = vpop.xlane.xlu0 %1169
    %v1171 = vrot.slane %v1170, 4
    %v1172 = vadd.f32 %v1170, %v1171
    %v1173 = vrot.slane %v1172, 2
    %v1174 = vadd.f32 %v1172, %v1173
    %v1175 = vrot.slane %v1174, 1
    %v1176 = vadd.f32 %v1174, %v1175
    %s1177 = vtos %v1176
    %v1178 = vstv %s1177
    %v1179 = vmul.f32 %v1166, 0.025
    %v1180 = vmul.f32 %v1178, 0.025
    %v1181 = vmul.f32 %v1179, %v1179
    %v1182 = vsub.f32 %v1180, %v1181
    %v1183 = vadd.f32 %v1182, 1e-05
    %v1184 = vrsqrt.pop %v1183
    %s1185 = sld [smem:[#allocation3 + $0x1]]
    %v1186 = vstv %s1185
    %v1187 = vmul.f32 %v1186, %v1155
    %s1188 = sld [smem:[#allocation5 + $0x1]]
    %v1189 = vstv %s1188
    %v1190 = vmul.f32 %v1189, %v1179
    %v1191 = vsub.f32 %v1187, %v1190
    %v1192 = vmul.f32 %v1184, %v1191
    %v1193 = vadd.f32 %v914, %v1192
    %v1195 = vsel %vm619, %v1147, 0
    %1197 = vmatprep.subr.mxu0 0.0
    %1198 = vmatpush1.msra.mxu0 0.0
    %1199 = vmatprep.subr.mxu0 0.0
    %1200 = vmatpush1.msra.mxu0 0.0
    %1201 = vmatprep.subr.mxu0 0.0
    %1202 = vmatpush1.msra.mxu0 0.0
    %1203 = vmatprep.subr.mxu0 0.0
    %1204 = vmatpush1.msra.mxu0 0.0
    %1205 = vmatprep.subr.mxu0 0.0
    %1206 = vmatpush1.msra.mxu0 0.0
    %1207 = vmatprep.subr.mxu0 0.0
    %1208 = vmatpush1.msra.mxu0 0.0
    %1209 = vmatprep.subr.mxu0 0.0
    %1210 = vmatpush1.msra.mxu0 0.0
    %1211 = vmatprep.subr.mxu0 0.0
    %1212 = vmatpush1.msra.mxu0 0.0
    %1213 = vmatprep.subr.mxu0 0.0
    %1214 = vmatpush1.msra.mxu0 0.0
    %1215 = vmatprep.subr.mxu0 0.0
    %1216 = vmatpush1.msra.mxu0 0.0
    %1217 = vmatprep.subr.mxu0 0.0
    %1218 = vmatpush1.msra.mxu0 0.0
    %1219 = vmatprep.subr.mxu0 0.0
    %1220 = vmatpush1.msra.mxu0 0.0
    %1221 = vmatprep.subr.mxu0 0.0
    %1222 = vmatpush1.msra.mxu0 0.0
    %1223 = vmatprep.subr.mxu0 0.0
    %1224 = vmatpush1.msra.mxu0 0.0
    %1225 = vmatprep.subr.mxu0 0.0
    %1226 = vmatpush1.msra.mxu0 0.0
    %1227 = vmatprep.subr.mxu0 0.0
    %1228 = vmatpush1.msra.mxu0 %v625
    %1229 = vmatprep.subr.mxu0 0.0
    %1230 = vmatpush2.msra.mxu0 0.0
    %1231 = vmatprep.subr.mxu0 0.0
    %1232 = vmatpush2.msra.mxu0 0.0
    %1233 = vmatprep.subr.mxu0 0.0
    %1234 = vmatpush2.msra.mxu0 0.0
    %1235 = vmatprep.subr.mxu0 0.0
    %1236 = vmatpush2.msra.mxu0 0.0
    %1237 = vmatprep.subr.mxu0 0.0
    %1238 = vmatpush2.msra.mxu0 0.0
    %1239 = vmatprep.subr.mxu0 0.0
    %1240 = vmatpush2.msra.mxu0 0.0
    %1241 = vmatprep.subr.mxu0 0.0
    %1242 = vmatpush2.msra.mxu0 0.0
    %1243 = vmatprep.subr.mxu0 0.0
    %1244 = vmatpush2.msra.mxu0 0.0
    %1245 = vmatprep.subr.mxu0 0.0
    %1246 = vmatpush2.msra.mxu0 0.0
    %1247 = vmatprep.subr.mxu0 0.0
    %1248 = vmatpush2.msra.mxu0 0.0
    %1249 = vmatprep.subr.mxu0 0.0
    %1250 = vmatpush2.msra.mxu0 0.0
    %1251 = vmatprep.subr.mxu0 0.0
    %1252 = vmatpush2.msra.mxu0 0.0
    %1253 = vmatprep.subr.mxu0 0.0
    %1254 = vmatpush2.msra.mxu0 0.0
    %1255 = vmatprep.subr.mxu0 0.0
    %1256 = vmatpush2.msra.mxu0 0.0
    %1257 = vmatprep.subr.mxu0 0.0
    %1258 = vmatpush2.msra.mxu0 0.0
    %1259 = vmatprep.subr.mxu0 0.0
    %1260 = vmatpush2.msra.mxu0 0.0
    %1261 = vmatprep.mubr.f32.mxu0 0.0
    %1262 = vmatmul.mubr.f32.gmra.mxu0 %v1195
    %v1263 = vpop.f32.mrf.mxu0
    %v1264 = vadd.f32 0.0, %v1263
    %v1265 = vpop.f32.mrf.mxu0
    %1266 = vdwg.mxu0
    %1267 = vmatprep.subr.mxu0 0.0
    %1268 = vmatpush1.msra.mxu0 0.0
    %1269 = vmatprep.subr.mxu0 0.0
    %1270 = vmatpush1.msra.mxu0 0.0
    %1271 = vmatprep.subr.mxu0 0.0
    %1272 = vmatpush1.msra.mxu0 0.0
    %1273 = vmatprep.subr.mxu0 0.0
    %1274 = vmatpush1.msra.mxu0 0.0
    %1275 = vmatprep.subr.mxu0 0.0
    %1276 = vmatpush1.msra.mxu0 0.0
    %1277 = vmatprep.subr.mxu0 0.0
    %1278 = vmatpush1.msra.mxu0 0.0
    %1279 = vmatprep.subr.mxu0 0.0
    %1280 = vmatpush1.msra.mxu0 0.0
    %1281 = vmatprep.subr.mxu0 0.0
    %1282 = vmatpush1.msra.mxu0 0.0
    %1283 = vmatprep.subr.mxu0 0.0
    %1284 = vmatpush1.msra.mxu0 0.0
    %1285 = vmatprep.subr.mxu0 0.0
    %1286 = vmatpush1.msra.mxu0 0.0
    %1287 = vmatprep.subr.mxu0 0.0
    %1288 = vmatpush1.msra.mxu0 0.0
    %1289 = vmatprep.subr.mxu0 0.0
    %1290 = vmatpush1.msra.mxu0 0.0
    %1291 = vmatprep.subr.mxu0 0.0
    %1292 = vmatpush1.msra.mxu0 0.0
    %1293 = vmatprep.subr.mxu0 0.0
    %1294 = vmatpush1.msra.mxu0 0.0
    %1295 = vmatprep.subr.mxu0 0.0
    %1296 = vmatpush1.msra.mxu0 0.0
    %1297 = vmatprep.subr.mxu0 0.0
    %1298 = vmatpush1.msra.mxu0 %v698
    %1299 = vmatprep.subr.mxu0 0.0
    %1300 = vmatpush2.msra.mxu0 0.0
    %1301 = vmatprep.subr.mxu0 0.0
    %1302 = vmatpush2.msra.mxu0 0.0
    %1303 = vmatprep.subr.mxu0 0.0
    %1304 = vmatpush2.msra.mxu0 0.0
    %1305 = vmatprep.subr.mxu0 0.0
    %1306 = vmatpush2.msra.mxu0 0.0
    %1307 = vmatprep.subr.mxu0 0.0
    %1308 = vmatpush2.msra.mxu0 0.0
    %1309 = vmatprep.subr.mxu0 0.0
    %1310 = vmatpush2.msra.mxu0 0.0
    %1311 = vmatprep.subr.mxu0 0.0
    %1312 = vmatpush2.msra.mxu0 0.0
    %1313 = vmatprep.subr.mxu0 0.0
    %1314 = vmatpush2.msra.mxu0 0.0
    %1315 = vmatprep.subr.mxu0 0.0
    %1316 = vmatpush2.msra.mxu0 0.0
    %1317 = vmatprep.subr.mxu0 0.0
    %1318 = vmatpush2.msra.mxu0 0.0
    %1319 = vmatprep.subr.mxu0 0.0
    %1320 = vmatpush2.msra.mxu0 0.0
    %1321 = vmatprep.subr.mxu0 0.0
    %1322 = vmatpush2.msra.mxu0 0.0
    %1323 = vmatprep.subr.mxu0 0.0
    %1324 = vmatpush2.msra.mxu0 0.0
    %1325 = vmatprep.subr.mxu0 0.0
    %1326 = vmatpush2.msra.mxu0 0.0
    %1327 = vmatprep.subr.mxu0 0.0
    %1328 = vmatpush2.msra.mxu0 0.0
    %1329 = vmatprep.subr.mxu0 0.0
    %1330 = vmatpush2.msra.mxu0 0.0
    %1331 = vmatprep.mubr.f32.mxu0 0.0
    %1332 = vmatmul.mubr.f32.gmra.mxu0 %v1195
    %v1333 = vpop.f32.mrf.mxu0
    %v1334 = vadd.f32 0.0, %v1333
    %v1335 = vpop.f32.mrf.mxu0
    %1336 = vdwg.mxu0
    %v1337 = vadd.f32 %v231, %v1264
    %v1338 = vxor.u32 %v1337, 2147483648
    %v1339 = vmul.f32 %v1338, 1.442695
    %v1340 = vpow.pop %v1339
    %v1341 = vadd.f32 %v1340, 1.0
    %v1342 = vrcp.pop %v1341
    %v1343 = vmul.f32 1.0, %v1342
    %v1344 = vadd.f32 %v388, %v1334
    %v1345 = vxor.u32 %v1344, 2147483648
    %v1346 = vmul.f32 %v1345, 1.442695
    %v1347 = vpow.pop %v1346
    %v1348 = vadd.f32 %v1347, 1.0
    %v1349 = vrcp.pop %v1348
    %v1350 = vmul.f32 1.0, %v1349
    %1351 = vmatprep.subr.mxu0 0.0
    %1352 = vmatpush1.msra.mxu0 0.0
    %1353 = vmatprep.subr.mxu0 0.0
    %1354 = vmatpush1.msra.mxu0 0.0
    %1355 = vmatprep.subr.mxu0 0.0
    %1356 = vmatpush1.msra.mxu0 0.0
    %1357 = vmatprep.subr.mxu0 0.0
    %1358 = vmatpush1.msra.mxu0 0.0
    %1359 = vmatprep.subr.mxu0 0.0
    %1360 = vmatpush1.msra.mxu0 0.0
    %1361 = vmatprep.subr.mxu0 0.0
    %1362 = vmatpush1.msra.mxu0 0.0
    %1363 = vmatprep.subr.mxu0 0.0
    %1364 = vmatpush1.msra.mxu0 0.0
    %1365 = vmatprep.subr.mxu0 0.0
    %1366 = vmatpush1.msra.mxu0 0.0
    %1367 = vmatprep.subr.mxu0 0.0
    %1368 = vmatpush1.msra.mxu0 0.0
    %1369 = vmatprep.subr.mxu0 0.0
    %1370 = vmatpush1.msra.mxu0 0.0
    %1371 = vmatprep.subr.mxu0 0.0
    %1372 = vmatpush1.msra.mxu0 0.0
    %1373 = vmatprep.subr.mxu0 0.0
    %1374 = vmatpush1.msra.mxu0 0.0
    %1375 = vmatprep.subr.mxu0 0.0
    %1376 = vmatpush1.msra.mxu0 0.0
    %1377 = vmatprep.subr.mxu0 0.0
    %1378 = vmatpush1.msra.mxu0 0.0
    %1379 = vmatprep.subr.mxu0 0.0
    %1380 = vmatpush1.msra.mxu0 0.0
    %1381 = vmatprep.subr.mxu0 0.0
    %1382 = vmatpush1.msra.mxu0 %v791
    %1383 = vmatprep.subr.mxu0 0.0
    %1384 = vmatpush2.msra.mxu0 0.0
    %1385 = vmatprep.subr.mxu0 0.0
    %1386 = vmatpush2.msra.mxu0 0.0
    %1387 = vmatprep.subr.mxu0 0.0
    %1388 = vmatpush2.msra.mxu0 0.0
    %1389 = vmatprep.subr.mxu0 0.0
    %1390 = vmatpush2.msra.mxu0 0.0
    %1391 = vmatprep.subr.mxu0 0.0
    %1392 = vmatpush2.msra.mxu0 0.0
    %1393 = vmatprep.subr.mxu0 0.0
    %1394 = vmatpush2.msra.mxu0 0.0
    %1395 = vmatprep.subr.mxu0 0.0
    %1396 = vmatpush2.msra.mxu0 0.0
    %1397 = vmatprep.subr.mxu0 0.0
    %1398 = vmatpush2.msra.mxu0 0.0
    %1399 = vmatprep.subr.mxu0 0.0
    %1400 = vmatpush2.msra.mxu0 0.0
    %1401 = vmatprep.subr.mxu0 0.0
    %1402 = vmatpush2.msra.mxu0 0.0
    %1403 = vmatprep.subr.mxu0 0.0
    %1404 = vmatpush2.msra.mxu0 0.0
    %1405 = vmatprep.subr.mxu0 0.0
    %1406 = vmatpush2.msra.mxu0 0.0
    %1407 = vmatprep.subr.mxu0 0.0
    %1408 = vmatpush2.msra.mxu0 0.0
    %1409 = vmatprep.subr.mxu0 0.0
    %1410 = vmatpush2.msra.mxu0 0.0
    %1411 = vmatprep.subr.mxu0 0.0
    %1412 = vmatpush2.msra.mxu0 0.0
    %1413 = vmatprep.subr.mxu0 0.0
    %1414 = vmatpush2.msra.mxu0 0.0
    %1415 = vmatprep.mubr.f32.mxu0 0.0
    %1416 = vmatmul.mubr.f32.gmra.mxu0 %v1195
    %v1417 = vpop.f32.mrf.mxu0
    %v1418 = vadd.f32 %v788, %v1417
    %v1419 = vpop.f32.mrf.mxu0
    %1420 = vdwg.mxu0
    %v1421 = vmul.f32 %v1343, %v1418
    %v1422 = vadd.f32 %v545, %v1421
    %v1423 = vtanh.pop %v1422
    %v1424 = vsub.f32 %v1147, %v1423
    %v1425 = vmul.f32 %v1350, %v1424
    %v1426 = vadd.f32 %v1423, %v1425
    %v1427 = vlaneseq
    %v1428 = vshrl.u32 %v1427, 7
    %v1429 = vsub.s32 2, %v1428
    %v1430 = vrot.slane %v617, %v1429
    %v1431 = vmul.f32 %v1426, %v1430
    %v1432 = vsel %vm619, %v1431, 0.0
    %1433 = vadd.xlane.f32.xlu0 %v1432
    %v1434 = vpop.xlane.xlu0 %1433
    %v1435 = vsel %vm619, %v1426, 0.0
    %1436 = vadd.xlane.f32.xlu0 %v1435
    %v1437 = vpop.xlane.xlu0 %1436
    %v1438 = vrot.slane %v1437, 4
    %v1439 = vadd.f32 %v1437, %v1438
    %v1440 = vrot.slane %v1439, 2
    %v1441 = vadd.f32 %v1439, %v1440
    %v1442 = vrot.slane %v1441, 1
    %v1443 = vadd.f32 %v1441, %v1442
    %s1444 = vtos %v1443
    %v1445 = vstv %s1444
    %v1446 = vmul.f32 %v1426, %v1426
    %v1447 = vsel %vm619, %v1446, 0.0
    %1448 = vadd.xlane.f32.xlu0 %v1447
    %v1449 = vpop.xlane.xlu0 %1448
    %v1450 = vrot.slane %v1449, 4
    %v1451 = vadd.f32 %v1449, %v1450
    %v1452 = vrot.slane %v1451, 2
    %v1453 = vadd.f32 %v1451, %v1452
    %v1454 = vrot.slane %v1453, 1
    %v1455 = vadd.f32 %v1453, %v1454
    %s1456 = vtos %v1455
    %v1457 = vstv %s1456
    %v1458 = vmul.f32 %v1445, 0.025
    %v1459 = vmul.f32 %v1457, 0.025
    %v1460 = vmul.f32 %v1458, %v1458
    %v1461 = vsub.f32 %v1459, %v1460
    %v1462 = vadd.f32 %v1461, 1e-05
    %v1463 = vrsqrt.pop %v1462
    %s1464 = sld [smem:[#allocation3 + $0x2]]
    %v1465 = vstv %s1464
    %v1466 = vmul.f32 %v1465, %v1434
    %s1467 = sld [smem:[#allocation5 + $0x2]]
    %v1468 = vstv %s1467
    %v1469 = vmul.f32 %v1468, %v1458
    %v1470 = vsub.f32 %v1466, %v1469
    %v1471 = vmul.f32 %v1463, %v1470
    %v1472 = vadd.f32 %v1193, %v1471
    %v1474 = vsel %vm619, %v1426, 0
    %1476 = vmatprep.subr.mxu0 0.0
    %1477 = vmatpush1.msra.mxu0 0.0
    %1478 = vmatprep.subr.mxu0 0.0
    %1479 = vmatpush1.msra.mxu0 0.0
    %1480 = vmatprep.subr.mxu0 0.0
    %1481 = vmatpush1.msra.mxu0 0.0
    %1482 = vmatprep.subr.mxu0 0.0
    %1483 = vmatpush1.msra.mxu0 0.0
    %1484 = vmatprep.subr.mxu0 0.0
    %1485 = vmatpush1.msra.mxu0 0.0
    %1486 = vmatprep.subr.mxu0 0.0
    %1487 = vmatpush1.msra.mxu0 0.0
    %1488 = vmatprep.subr.mxu0 0.0
    %1489 = vmatpush1.msra.mxu0 0.0
    %1490 = vmatprep.subr.mxu0 0.0
    %1491 = vmatpush1.msra.mxu0 0.0
    %1492 = vmatprep.subr.mxu0 0.0
    %1493 = vmatpush1.msra.mxu0 0.0
    %1494 = vmatprep.subr.mxu0 0.0
    %1495 = vmatpush1.msra.mxu0 0.0
    %1496 = vmatprep.subr.mxu0 0.0
    %1497 = vmatpush1.msra.mxu0 0.0
    %1498 = vmatprep.subr.mxu0 0.0
    %1499 = vmatpush1.msra.mxu0 0.0
    %1500 = vmatprep.subr.mxu0 0.0
    %1501 = vmatpush1.msra.mxu0 0.0
    %1502 = vmatprep.subr.mxu0 0.0
    %1503 = vmatpush1.msra.mxu0 0.0
    %1504 = vmatprep.subr.mxu0 0.0
    %1505 = vmatpush1.msra.mxu0 0.0
    %1506 = vmatprep.subr.mxu0 0.0
    %1507 = vmatpush1.msra.mxu0 %v625
    %1508 = vmatprep.subr.mxu0 0.0
    %1509 = vmatpush2.msra.mxu0 0.0
    %1510 = vmatprep.subr.mxu0 0.0
    %1511 = vmatpush2.msra.mxu0 0.0
    %1512 = vmatprep.subr.mxu0 0.0
    %1513 = vmatpush2.msra.mxu0 0.0
    %1514 = vmatprep.subr.mxu0 0.0
    %1515 = vmatpush2.msra.mxu0 0.0
    %1516 = vmatprep.subr.mxu0 0.0
    %1517 = vmatpush2.msra.mxu0 0.0
    %1518 = vmatprep.subr.mxu0 0.0
    %1519 = vmatpush2.msra.mxu0 0.0
    %1520 = vmatprep.subr.mxu0 0.0
    %1521 = vmatpush2.msra.mxu0 0.0
    %1522 = vmatprep.subr.mxu0 0.0
    %1523 = vmatpush2.msra.mxu0 0.0
    %1524 = vmatprep.subr.mxu0 0.0
    %1525 = vmatpush2.msra.mxu0 0.0
    %1526 = vmatprep.subr.mxu0 0.0
    %1527 = vmatpush2.msra.mxu0 0.0
    %1528 = vmatprep.subr.mxu0 0.0
    %1529 = vmatpush2.msra.mxu0 0.0
    %1530 = vmatprep.subr.mxu0 0.0
    %1531 = vmatpush2.msra.mxu0 0.0
    %1532 = vmatprep.subr.mxu0 0.0
    %1533 = vmatpush2.msra.mxu0 0.0
    %1534 = vmatprep.subr.mxu0 0.0
    %1535 = vmatpush2.msra.mxu0 0.0
    %1536 = vmatprep.subr.mxu0 0.0
    %1537 = vmatpush2.msra.mxu0 0.0
    %1538 = vmatprep.subr.mxu0 0.0
    %1539 = vmatpush2.msra.mxu0 0.0
    %1540 = vmatprep.mubr.f32.mxu0 0.0
    %1541 = vmatmul.mubr.f32.gmra.mxu0 %v1474
    %v1542 = vpop.f32.mrf.mxu0
    %v1543 = vadd.f32 0.0, %v1542
    %v1544 = vpop.f32.mrf.mxu0
    %1545 = vdwg.mxu0
    %1546 = vmatprep.subr.mxu0 0.0
    %1547 = vmatpush1.msra.mxu0 0.0
    %1548 = vmatprep.subr.mxu0 0.0
    %1549 = vmatpush1.msra.mxu0 0.0
    %1550 = vmatprep.subr.mxu0 0.0
    %1551 = vmatpush1.msra.mxu0 0.0
    %1552 = vmatprep.subr.mxu0 0.0
    %1553 = vmatpush1.msra.mxu0 0.0
    %1554 = vmatprep.subr.mxu0 0.0
    %1555 = vmatpush1.msra.mxu0 0.0
    %1556 = vmatprep.subr.mxu0 0.0
    %1557 = vmatpush1.msra.mxu0 0.0
    %1558 = vmatprep.subr.mxu0 0.0
    %1559 = vmatpush1.msra.mxu0 0.0
    %1560 = vmatprep.subr.mxu0 0.0
    %1561 = vmatpush1.msra.mxu0 0.0
    %1562 = vmatprep.subr.mxu0 0.0
    %1563 = vmatpush1.msra.mxu0 0.0
    %1564 = vmatprep.subr.mxu0 0.0
    %1565 = vmatpush1.msra.mxu0 0.0
    %1566 = vmatprep.subr.mxu0 0.0
    %1567 = vmatpush1.msra.mxu0 0.0
    %1568 = vmatprep.subr.mxu0 0.0
    %1569 = vmatpush1.msra.mxu0 0.0
    %1570 = vmatprep.subr.mxu0 0.0
    %1571 = vmatpush1.msra.mxu0 0.0
    %1572 = vmatprep.subr.mxu0 0.0
    %1573 = vmatpush1.msra.mxu0 0.0
    %1574 = vmatprep.subr.mxu0 0.0
    %1575 = vmatpush1.msra.mxu0 0.0
    %1576 = vmatprep.subr.mxu0 0.0
    %1577 = vmatpush1.msra.mxu0 %v698
    %1578 = vmatprep.subr.mxu0 0.0
    %1579 = vmatpush2.msra.mxu0 0.0
    %1580 = vmatprep.subr.mxu0 0.0
    %1581 = vmatpush2.msra.mxu0 0.0
    %1582 = vmatprep.subr.mxu0 0.0
    %1583 = vmatpush2.msra.mxu0 0.0
    %1584 = vmatprep.subr.mxu0 0.0
    %1585 = vmatpush2.msra.mxu0 0.0
    %1586 = vmatprep.subr.mxu0 0.0
    %1587 = vmatpush2.msra.mxu0 0.0
    %1588 = vmatprep.subr.mxu0 0.0
    %1589 = vmatpush2.msra.mxu0 0.0
    %1590 = vmatprep.subr.mxu0 0.0
    %1591 = vmatpush2.msra.mxu0 0.0
    %1592 = vmatprep.subr.mxu0 0.0
    %1593 = vmatpush2.msra.mxu0 0.0
    %1594 = vmatprep.subr.mxu0 0.0
    %1595 = vmatpush2.msra.mxu0 0.0
    %1596 = vmatprep.subr.mxu0 0.0
    %1597 = vmatpush2.msra.mxu0 0.0
    %1598 = vmatprep.subr.mxu0 0.0
    %1599 = vmatpush2.msra.mxu0 0.0
    %1600 = vmatprep.subr.mxu0 0.0
    %1601 = vmatpush2.msra.mxu0 0.0
    %1602 = vmatprep.subr.mxu0 0.0
    %1603 = vmatpush2.msra.mxu0 0.0
    %1604 = vmatprep.subr.mxu0 0.0
    %1605 = vmatpush2.msra.mxu0 0.0
    %1606 = vmatprep.subr.mxu0 0.0
    %1607 = vmatpush2.msra.mxu0 0.0
    %1608 = vmatprep.subr.mxu0 0.0
    %1609 = vmatpush2.msra.mxu0 0.0
    %1610 = vmatprep.mubr.f32.mxu0 0.0
    %1611 = vmatmul.mubr.f32.gmra.mxu0 %v1474
    %v1612 = vpop.f32.mrf.mxu0
    %v1613 = vadd.f32 0.0, %v1612
    %v1614 = vpop.f32.mrf.mxu0
    %1615 = vdwg.mxu0
    %v1616 = vadd.f32 %v236, %v1543
    %v1617 = vxor.u32 %v1616, 2147483648
    %v1618 = vmul.f32 %v1617, 1.442695
    %v1619 = vpow.pop %v1618
    %v1620 = vadd.f32 %v1619, 1.0
    %v1621 = vrcp.pop %v1620
    %v1622 = vmul.f32 1.0, %v1621
    %v1623 = vadd.f32 %v393, %v1613
    %v1624 = vxor.u32 %v1623, 2147483648
    %v1625 = vmul.f32 %v1624, 1.442695
    %v1626 = vpow.pop %v1625
    %v1627 = vadd.f32 %v1626, 1.0
    %v1628 = vrcp.pop %v1627
    %v1629 = vmul.f32 1.0, %v1628
    %1630 = vmatprep.subr.mxu0 0.0
    %1631 = vmatpush1.msra.mxu0 0.0
    %1632 = vmatprep.subr.mxu0 0.0
    %1633 = vmatpush1.msra.mxu0 0.0
    %1634 = vmatprep.subr.mxu0 0.0
    %1635 = vmatpush1.msra.mxu0 0.0
    %1636 = vmatprep.subr.mxu0 0.0
    %1637 = vmatpush1.msra.mxu0 0.0
    %1638 = vmatprep.subr.mxu0 0.0
    %1639 = vmatpush1.msra.mxu0 0.0
    %1640 = vmatprep.subr.mxu0 0.0
    %1641 = vmatpush1.msra.mxu0 0.0
    %1642 = vmatprep.subr.mxu0 0.0
    %1643 = vmatpush1.msra.mxu0 0.0
    %1644 = vmatprep.subr.mxu0 0.0
    %1645 = vmatpush1.msra.mxu0 0.0
    %1646 = vmatprep.subr.mxu0 0.0
    %1647 = vmatpush1.msra.mxu0 0.0
    %1648 = vmatprep.subr.mxu0 0.0
    %1649 = vmatpush1.msra.mxu0 0.0
    %1650 = vmatprep.subr.mxu0 0.0
    %1651 = vmatpush1.msra.mxu0 0.0
    %1652 = vmatprep.subr.mxu0 0.0
    %1653 = vmatpush1.msra.mxu0 0.0
    %1654 = vmatprep.subr.mxu0 0.0
    %1655 = vmatpush1.msra.mxu0 0.0
    %1656 = vmatprep.subr.mxu0 0.0
    %1657 = vmatpush1.msra.mxu0 0.0
    %1658 = vmatprep.subr.mxu0 0.0
    %1659 = vmatpush1.msra.mxu0 0.0
    %1660 = vmatprep.subr.mxu0 0.0
    %1661 = vmatpush1.msra.mxu0 %v791
    %1662 = vmatprep.subr.mxu0 0.0
    %1663 = vmatpush2.msra.mxu0 0.0
    %1664 = vmatprep.subr.mxu0 0.0
    %1665 = vmatpush2.msra.mxu0 0.0
    %1666 = vmatprep.subr.mxu0 0.0
    %1667 = vmatpush2.msra.mxu0 0.0
    %1668 = vmatprep.subr.mxu0 0.0
    %1669 = vmatpush2.msra.mxu0 0.0
    %1670 = vmatprep.subr.mxu0 0.0
    %1671 = vmatpush2.msra.mxu0 0.0
    %1672 = vmatprep.subr.mxu0 0.0
    %1673 = vmatpush2.msra.mxu0 0.0
    %1674 = vmatprep.subr.mxu0 0.0
    %1675 = vmatpush2.msra.mxu0 0.0
    %1676 = vmatprep.subr.mxu0 0.0
    %1677 = vmatpush2.msra.mxu0 0.0
    %1678 = vmatprep.subr.mxu0 0.0
    %1679 = vmatpush2.msra.mxu0 0.0
    %1680 = vmatprep.subr.mxu0 0.0
    %1681 = vmatpush2.msra.mxu0 0.0
    %1682 = vmatprep.subr.mxu0 0.0
    %1683 = vmatpush2.msra.mxu0 0.0
    %1684 = vmatprep.subr.mxu0 0.0
    %1685 = vmatpush2.msra.mxu0 0.0
    %1686 = vmatprep.subr.mxu0 0.0
    %1687 = vmatpush2.msra.mxu0 0.0
    %1688 = vmatprep.subr.mxu0 0.0
    %1689 = vmatpush2.msra.mxu0 0.0
    %1690 = vmatprep.subr.mxu0 0.0
    %1691 = vmatpush2.msra.mxu0 0.0
    %1692 = vmatprep.subr.mxu0 0.0
    %1693 = vmatpush2.msra.mxu0 0.0
    %1694 = vmatprep.mubr.f32.mxu0 0.0
    %1695 = vmatmul.mubr.f32.gmra.mxu0 %v1474
    %v1696 = vpop.f32.mrf.mxu0
    %v1697 = vadd.f32 %v788, %v1696
    %v1698 = vpop.f32.mrf.mxu0
    %1699 = vdwg.mxu0
    %v1700 = vmul.f32 %v1622, %v1697
    %v1701 = vadd.f32 %v550, %v1700
    %v1702 = vtanh.pop %v1701
    %v1703 = vsub.f32 %v1426, %v1702
    %v1704 = vmul.f32 %v1629, %v1703
    %v1705 = vadd.f32 %v1702, %v1704
    %v1706 = vlaneseq
    %v1707 = vshrl.u32 %v1706, 7
    %v1708 = vsub.s32 3, %v1707
    %v1709 = vrot.slane %v617, %v1708
    %v1710 = vmul.f32 %v1705, %v1709
    %v1711 = vsel %vm619, %v1710, 0.0
    %1712 = vadd.xlane.f32.xlu0 %v1711
    %v1713 = vpop.xlane.xlu0 %1712
    %v1714 = vsel %vm619, %v1705, 0.0
    %1715 = vadd.xlane.f32.xlu0 %v1714
    %v1716 = vpop.xlane.xlu0 %1715
    %v1717 = vrot.slane %v1716, 4
    %v1718 = vadd.f32 %v1716, %v1717
    %v1719 = vrot.slane %v1718, 2
    %v1720 = vadd.f32 %v1718, %v1719
    %v1721 = vrot.slane %v1720, 1
    %v1722 = vadd.f32 %v1720, %v1721
    %s1723 = vtos %v1722
    %v1724 = vstv %s1723
    %v1725 = vmul.f32 %v1705, %v1705
    %v1726 = vsel %vm619, %v1725, 0.0
    %1727 = vadd.xlane.f32.xlu0 %v1726
    %v1728 = vpop.xlane.xlu0 %1727
    %v1729 = vrot.slane %v1728, 4
    %v1730 = vadd.f32 %v1728, %v1729
    %v1731 = vrot.slane %v1730, 2
    %v1732 = vadd.f32 %v1730, %v1731
    %v1733 = vrot.slane %v1732, 1
    %v1734 = vadd.f32 %v1732, %v1733
    %s1735 = vtos %v1734
    %v1736 = vstv %s1735
    %v1737 = vmul.f32 %v1724, 0.025
    %v1738 = vmul.f32 %v1736, 0.025
    %v1739 = vmul.f32 %v1737, %v1737
    %v1740 = vsub.f32 %v1738, %v1739
    %v1741 = vadd.f32 %v1740, 1e-05
    %v1742 = vrsqrt.pop %v1741
    %s1743 = sld [smem:[#allocation3 + $0x3]]
    %v1744 = vstv %s1743
    %v1745 = vmul.f32 %v1744, %v1713
    %s1746 = sld [smem:[#allocation5 + $0x3]]
    %v1747 = vstv %s1746
    %v1748 = vmul.f32 %v1747, %v1737
    %v1749 = vsub.f32 %v1745, %v1748
    %v1750 = vmul.f32 %v1742, %v1749
    %v1751 = vadd.f32 %v1472, %v1750
    %v1753 = vsel %vm619, %v1705, 0
    %1755 = vmatprep.subr.mxu0 0.0
    %1756 = vmatpush1.msra.mxu0 0.0
    %1757 = vmatprep.subr.mxu0 0.0
    %1758 = vmatpush1.msra.mxu0 0.0
    %1759 = vmatprep.subr.mxu0 0.0
    %1760 = vmatpush1.msra.mxu0 0.0
    %1761 = vmatprep.subr.mxu0 0.0
    %1762 = vmatpush1.msra.mxu0 0.0
    %1763 = vmatprep.subr.mxu0 0.0
    %1764 = vmatpush1.msra.mxu0 0.0
    %1765 = vmatprep.subr.mxu0 0.0
    %1766 = vmatpush1.msra.mxu0 0.0
    %1767 = vmatprep.subr.mxu0 0.0
    %1768 = vmatpush1.msra.mxu0 0.0
    %1769 = vmatprep.subr.mxu0 0.0
    %1770 = vmatpush1.msra.mxu0 0.0
    %1771 = vmatprep.subr.mxu0 0.0
    %1772 = vmatpush1.msra.mxu0 0.0
    %1773 = vmatprep.subr.mxu0 0.0
    %1774 = vmatpush1.msra.mxu0 0.0
    %1775 = vmatprep.subr.mxu0 0.0
    %1776 = vmatpush1.msra.mxu0 0.0
    %1777 = vmatprep.subr.mxu0 0.0
    %1778 = vmatpush1.msra.mxu0 0.0
    %1779 = vmatprep.subr.mxu0 0.0
    %1780 = vmatpush1.msra.mxu0 0.0
    %1781 = vmatprep.subr.mxu0 0.0
    %1782 = vmatpush1.msra.mxu0 0.0
    %1783 = vmatprep.subr.mxu0 0.0
    %1784 = vmatpush1.msra.mxu0 0.0
    %1785 = vmatprep.subr.mxu0 0.0
    %1786 = vmatpush1.msra.mxu0 %v625
    %1787 = vmatprep.subr.mxu0 0.0
    %1788 = vmatpush2.msra.mxu0 0.0
    %1789 = vmatprep.subr.mxu0 0.0
    %1790 = vmatpush2.msra.mxu0 0.0
    %1791 = vmatprep.subr.mxu0 0.0
    %1792 = vmatpush2.msra.mxu0 0.0
    %1793 = vmatprep.subr.mxu0 0.0
    %1794 = vmatpush2.msra.mxu0 0.0
    %1795 = vmatprep.subr.mxu0 0.0
    %1796 = vmatpush2.msra.mxu0 0.0
    %1797 = vmatprep.subr.mxu0 0.0
    %1798 = vmatpush2.msra.mxu0 0.0
    %1799 = vmatprep.subr.mxu0 0.0
    %1800 = vmatpush2.msra.mxu0 0.0
    %1801 = vmatprep.subr.mxu0 0.0
    %1802 = vmatpush2.msra.mxu0 0.0
    %1803 = vmatprep.subr.mxu0 0.0
    %1804 = vmatpush2.msra.mxu0 0.0
    %1805 = vmatprep.subr.mxu0 0.0
    %1806 = vmatpush2.msra.mxu0 0.0
    %1807 = vmatprep.subr.mxu0 0.0
    %1808 = vmatpush2.msra.mxu0 0.0
    %1809 = vmatprep.subr.mxu0 0.0
    %1810 = vmatpush2.msra.mxu0 0.0
    %1811 = vmatprep.subr.mxu0 0.0
    %1812 = vmatpush2.msra.mxu0 0.0
    %1813 = vmatprep.subr.mxu0 0.0
    %1814 = vmatpush2.msra.mxu0 0.0
    %1815 = vmatprep.subr.mxu0 0.0
    %1816 = vmatpush2.msra.mxu0 0.0
    %1817 = vmatprep.subr.mxu0 0.0
    %1818 = vmatpush2.msra.mxu0 0.0
    %1819 = vmatprep.mubr.f32.mxu0 0.0
    %1820 = vmatmul.mubr.f32.gmra.mxu0 %v1753
    %v1821 = vpop.f32.mrf.mxu0
    %v1822 = vadd.f32 0.0, %v1821
    %v1823 = vpop.f32.mrf.mxu0
    %1824 = vdwg.mxu0
    %1825 = vmatprep.subr.mxu0 0.0
    %1826 = vmatpush1.msra.mxu0 0.0
    %1827 = vmatprep.subr.mxu0 0.0
    %1828 = vmatpush1.msra.mxu0 0.0
    %1829 = vmatprep.subr.mxu0 0.0
    %1830 = vmatpush1.msra.mxu0 0.0
    %1831 = vmatprep.subr.mxu0 0.0
    %1832 = vmatpush1.msra.mxu0 0.0
    %1833 = vmatprep.subr.mxu0 0.0
    %1834 = vmatpush1.msra.mxu0 0.0
    %1835 = vmatprep.subr.mxu0 0.0
    %1836 = vmatpush1.msra.mxu0 0.0
    %1837 = vmatprep.subr.mxu0 0.0
    %1838 = vmatpush1.msra.mxu0 0.0
    %1839 = vmatprep.subr.mxu0 0.0
    %1840 = vmatpush1.msra.mxu0 0.0
    %1841 = vmatprep.subr.mxu0 0.0
    %1842 = vmatpush1.msra.mxu0 0.0
    %1843 = vmatprep.subr.mxu0 0.0
    %1844 = vmatpush1.msra.mxu0 0.0
    %1845 = vmatprep.subr.mxu0 0.0
    %1846 = vmatpush1.msra.mxu0 0.0
    %1847 = vmatprep.subr.mxu0 0.0
    %1848 = vmatpush1.msra.mxu0 0.0
    %1849 = vmatprep.subr.mxu0 0.0
    %1850 = vmatpush1.msra.mxu0 0.0
    %1851 = vmatprep.subr.mxu0 0.0
    %1852 = vmatpush1.msra.mxu0 0.0
    %1853 = vmatprep.subr.mxu0 0.0
    %1854 = vmatpush1.msra.mxu0 0.0
    %1855 = vmatprep.subr.mxu0 0.0
    %1856 = vmatpush1.msra.mxu0 %v698
    %1857 = vmatprep.subr.mxu0 0.0
    %1858 = vmatpush2.msra.mxu0 0.0
    %1859 = vmatprep.subr.mxu0 0.0
    %1860 = vmatpush2.msra.mxu0 0.0
    %1861 = vmatprep.subr.mxu0 0.0
    %1862 = vmatpush2.msra.mxu0 0.0
    %1863 = vmatprep.subr.mxu0 0.0
    %1864 = vmatpush2.msra.mxu0 0.0
    %1865 = vmatprep.subr.mxu0 0.0
    %1866 = vmatpush2.msra.mxu0 0.0
    %1867 = vmatprep.subr.mxu0 0.0
    %1868 = vmatpush2.msra.mxu0 0.0
    %1869 = vmatprep.subr.mxu0 0.0
    %1870 = vmatpush2.msra.mxu0 0.0
    %1871 = vmatprep.subr.mxu0 0.0
    %1872 = vmatpush2.msra.mxu0 0.0
    %1873 = vmatprep.subr.mxu0 0.0
    %1874 = vmatpush2.msra.mxu0 0.0
    %1875 = vmatprep.subr.mxu0 0.0
    %1876 = vmatpush2.msra.mxu0 0.0
    %1877 = vmatprep.subr.mxu0 0.0
    %1878 = vmatpush2.msra.mxu0 0.0
    %1879 = vmatprep.subr.mxu0 0.0
    %1880 = vmatpush2.msra.mxu0 0.0
    %1881 = vmatprep.subr.mxu0 0.0
    %1882 = vmatpush2.msra.mxu0 0.0
    %1883 = vmatprep.subr.mxu0 0.0
    %1884 = vmatpush2.msra.mxu0 0.0
    %1885 = vmatprep.subr.mxu0 0.0
    %1886 = vmatpush2.msra.mxu0 0.0
    %1887 = vmatprep.subr.mxu0 0.0
    %1888 = vmatpush2.msra.mxu0 0.0
    %1889 = vmatprep.mubr.f32.mxu0 0.0
    %1890 = vmatmul.mubr.f32.gmra.mxu0 %v1753
    %v1891 = vpop.f32.mrf.mxu0
    %v1892 = vadd.f32 0.0, %v1891
    %v1893 = vpop.f32.mrf.mxu0
    %1894 = vdwg.mxu0
    %v1895 = vadd.f32 %v241, %v1822
    %v1896 = vxor.u32 %v1895, 2147483648
    %v1897 = vmul.f32 %v1896, 1.442695
    %v1898 = vpow.pop %v1897
    %v1899 = vadd.f32 %v1898, 1.0
    %v1900 = vrcp.pop %v1899
    %v1901 = vmul.f32 1.0, %v1900
    %v1902 = vadd.f32 %v398, %v1892
    %v1903 = vxor.u32 %v1902, 2147483648
    %v1904 = vmul.f32 %v1903, 1.442695
    %v1905 = vpow.pop %v1904
    %v1906 = vadd.f32 %v1905, 1.0
    %v1907 = vrcp.pop %v1906
    %v1908 = vmul.f32 1.0, %v1907
    %1909 = vmatprep.subr.mxu0 0.0
    %1910 = vmatpush1.msra.mxu0 0.0
    %1911 = vmatprep.subr.mxu0 0.0
    %1912 = vmatpush1.msra.mxu0 0.0
    %1913 = vmatprep.subr.mxu0 0.0
    %1914 = vmatpush1.msra.mxu0 0.0
    %1915 = vmatprep.subr.mxu0 0.0
    %1916 = vmatpush1.msra.mxu0 0.0
    %1917 = vmatprep.subr.mxu0 0.0
    %1918 = vmatpush1.msra.mxu0 0.0
    %1919 = vmatprep.subr.mxu0 0.0
    %1920 = vmatpush1.msra.mxu0 0.0
    %1921 = vmatprep.subr.mxu0 0.0
    %1922 = vmatpush1.msra.mxu0 0.0
    %1923 = vmatprep.subr.mxu0 0.0
    %1924 = vmatpush1.msra.mxu0 0.0
    %1925 = vmatprep.subr.mxu0 0.0
    %1926 = vmatpush1.msra.mxu0 0.0
    %1927 = vmatprep.subr.mxu0 0.0
    %1928 = vmatpush1.msra.mxu0 0.0
    %1929 = vmatprep.subr.mxu0 0.0
    %1930 = vmatpush1.msra.mxu0 0.0
    %1931 = vmatprep.subr.mxu0 0.0
    %1932 = vmatpush1.msra.mxu0 0.0
    %1933 = vmatprep.subr.mxu0 0.0
    %1934 = vmatpush1.msra.mxu0 0.0
    %1935 = vmatprep.subr.mxu0 0.0
    %1936 = vmatpush1.msra.mxu0 0.0
    %1937 = vmatprep.subr.mxu0 0.0
    %1938 = vmatpush1.msra.mxu0 0.0
    %1939 = vmatprep.subr.mxu0 0.0
    %1940 = vmatpush1.msra.mxu0 %v791
    %1941 = vmatprep.subr.mxu0 0.0
    %1942 = vmatpush2.msra.mxu0 0.0
    %1943 = vmatprep.subr.mxu0 0.0
    %1944 = vmatpush2.msra.mxu0 0.0
    %1945 = vmatprep.subr.mxu0 0.0
    %1946 = vmatpush2.msra.mxu0 0.0
    %1947 = vmatprep.subr.mxu0 0.0
    %1948 = vmatpush2.msra.mxu0 0.0
    %1949 = vmatprep.subr.mxu0 0.0
    %1950 = vmatpush2.msra.mxu0 0.0
    %1951 = vmatprep.subr.mxu0 0.0
    %1952 = vmatpush2.msra.mxu0 0.0
    %1953 = vmatprep.subr.mxu0 0.0
    %1954 = vmatpush2.msra.mxu0 0.0
    %1955 = vmatprep.subr.mxu0 0.0
    %1956 = vmatpush2.msra.mxu0 0.0
    %1957 = vmatprep.subr.mxu0 0.0
    %1958 = vmatpush2.msra.mxu0 0.0
    %1959 = vmatprep.subr.mxu0 0.0
    %1960 = vmatpush2.msra.mxu0 0.0
    %1961 = vmatprep.subr.mxu0 0.0
    %1962 = vmatpush2.msra.mxu0 0.0
    %1963 = vmatprep.subr.mxu0 0.0
    %1964 = vmatpush2.msra.mxu0 0.0
    %1965 = vmatprep.subr.mxu0 0.0
    %1966 = vmatpush2.msra.mxu0 0.0
    %1967 = vmatprep.subr.mxu0 0.0
    %1968 = vmatpush2.msra.mxu0 0.0
    %1969 = vmatprep.subr.mxu0 0.0
    %1970 = vmatpush2.msra.mxu0 0.0
    %1971 = vmatprep.subr.mxu0 0.0
    %1972 = vmatpush2.msra.mxu0 0.0
    %1973 = vmatprep.mubr.f32.mxu0 0.0
    %1974 = vmatmul.mubr.f32.gmra.mxu0 %v1753
    %v1975 = vpop.f32.mrf.mxu0
    %v1976 = vadd.f32 %v788, %v1975
    %v1977 = vpop.f32.mrf.mxu0
    %1978 = vdwg.mxu0
    %v1979 = vmul.f32 %v1901, %v1976
    %v1980 = vadd.f32 %v555, %v1979
    %v1981 = vtanh.pop %v1980
    %v1982 = vsub.f32 %v1705, %v1981
    %v1983 = vmul.f32 %v1908, %v1982
    %v1984 = vadd.f32 %v1981, %v1983
    %v1985 = vlaneseq
    %v1986 = vshrl.u32 %v1985, 7
    %v1987 = vsub.s32 4, %v1986
    %v1988 = vrot.slane %v617, %v1987
    %v1989 = vmul.f32 %v1984, %v1988
    %v1990 = vsel %vm619, %v1989, 0.0
    %1991 = vadd.xlane.f32.xlu0 %v1990
    %v1992 = vpop.xlane.xlu0 %1991
    %v1993 = vsel %vm619, %v1984, 0.0
    %1994 = vadd.xlane.f32.xlu0 %v1993
    %v1995 = vpop.xlane.xlu0 %1994
    %v1996 = vrot.slane %v1995, 4
    %v1997 = vadd.f32 %v1995, %v1996
    %v1998 = vrot.slane %v1997, 2
    %v1999 = vadd.f32 %v1997, %v1998
    %v2000 = vrot.slane %v1999, 1
    %v2001 = vadd.f32 %v1999, %v2000
    %s2002 = vtos %v2001
    %v2003 = vstv %s2002
    %v2004 = vmul.f32 %v1984, %v1984
    %v2005 = vsel %vm619, %v2004, 0.0
    %2006 = vadd.xlane.f32.xlu0 %v2005
    %v2007 = vpop.xlane.xlu0 %2006
    %v2008 = vrot.slane %v2007, 4
    %v2009 = vadd.f32 %v2007, %v2008
    %v2010 = vrot.slane %v2009, 2
    %v2011 = vadd.f32 %v2009, %v2010
    %v2012 = vrot.slane %v2011, 1
    %v2013 = vadd.f32 %v2011, %v2012
    %s2014 = vtos %v2013
    %v2015 = vstv %s2014
    %v2016 = vmul.f32 %v2003, 0.025
    %v2017 = vmul.f32 %v2015, 0.025
    %v2018 = vmul.f32 %v2016, %v2016
    %v2019 = vsub.f32 %v2017, %v2018
    %v2020 = vadd.f32 %v2019, 1e-05
    %v2021 = vrsqrt.pop %v2020
    %s2022 = sld [smem:[#allocation3 + $0x4]]
    %v2023 = vstv %s2022
    %v2024 = vmul.f32 %v2023, %v1992
    %s2025 = sld [smem:[#allocation5 + $0x4]]
    %v2026 = vstv %s2025
    %v2027 = vmul.f32 %v2026, %v2016
    %v2028 = vsub.f32 %v2024, %v2027
    %v2029 = vmul.f32 %v2021, %v2028
    %v2030 = vadd.f32 %v1751, %v2029
    %v2032 = vsel %vm619, %v1984, 0
    %2034 = vmatprep.subr.mxu0 0.0
    %2035 = vmatpush1.msra.mxu0 0.0
    %2036 = vmatprep.subr.mxu0 0.0
    %2037 = vmatpush1.msra.mxu0 0.0
    %2038 = vmatprep.subr.mxu0 0.0
    %2039 = vmatpush1.msra.mxu0 0.0
    %2040 = vmatprep.subr.mxu0 0.0
    %2041 = vmatpush1.msra.mxu0 0.0
    %2042 = vmatprep.subr.mxu0 0.0
    %2043 = vmatpush1.msra.mxu0 0.0
    %2044 = vmatprep.subr.mxu0 0.0
    %2045 = vmatpush1.msra.mxu0 0.0
    %2046 = vmatprep.subr.mxu0 0.0
    %2047 = vmatpush1.msra.mxu0 0.0
    %2048 = vmatprep.subr.mxu0 0.0
    %2049 = vmatpush1.msra.mxu0 0.0
    %2050 = vmatprep.subr.mxu0 0.0
    %2051 = vmatpush1.msra.mxu0 0.0
    %2052 = vmatprep.subr.mxu0 0.0
    %2053 = vmatpush1.msra.mxu0 0.0
    %2054 = vmatprep.subr.mxu0 0.0
    %2055 = vmatpush1.msra.mxu0 0.0
    %2056 = vmatprep.subr.mxu0 0.0
    %2057 = vmatpush1.msra.mxu0 0.0
    %2058 = vmatprep.subr.mxu0 0.0
    %2059 = vmatpush1.msra.mxu0 0.0
    %2060 = vmatprep.subr.mxu0 0.0
    %2061 = vmatpush1.msra.mxu0 0.0
    %2062 = vmatprep.subr.mxu0 0.0
    %2063 = vmatpush1.msra.mxu0 0.0
    %2064 = vmatprep.subr.mxu0 0.0
    %2065 = vmatpush1.msra.mxu0 %v625
    %2066 = vmatprep.subr.mxu0 0.0
    %2067 = vmatpush2.msra.mxu0 0.0
    %2068 = vmatprep.subr.mxu0 0.0
    %2069 = vmatpush2.msra.mxu0 0.0
    %2070 = vmatprep.subr.mxu0 0.0
    %2071 = vmatpush2.msra.mxu0 0.0
    %2072 = vmatprep.subr.mxu0 0.0
    %2073 = vmatpush2.msra.mxu0 0.0
    %2074 = vmatprep.subr.mxu0 0.0
    %2075 = vmatpush2.msra.mxu0 0.0
    %2076 = vmatprep.subr.mxu0 0.0
    %2077 = vmatpush2.msra.mxu0 0.0
    %2078 = vmatprep.subr.mxu0 0.0
    %2079 = vmatpush2.msra.mxu0 0.0
    %2080 = vmatprep.subr.mxu0 0.0
    %2081 = vmatpush2.msra.mxu0 0.0
    %2082 = vmatprep.subr.mxu0 0.0
    %2083 = vmatpush2.msra.mxu0 0.0
    %2084 = vmatprep.subr.mxu0 0.0
    %2085 = vmatpush2.msra.mxu0 0.0
    %2086 = vmatprep.subr.mxu0 0.0
    %2087 = vmatpush2.msra.mxu0 0.0
    %2088 = vmatprep.subr.mxu0 0.0
    %2089 = vmatpush2.msra.mxu0 0.0
    %2090 = vmatprep.subr.mxu0 0.0
    %2091 = vmatpush2.msra.mxu0 0.0
    %2092 = vmatprep.subr.mxu0 0.0
    %2093 = vmatpush2.msra.mxu0 0.0
    %2094 = vmatprep.subr.mxu0 0.0
    %2095 = vmatpush2.msra.mxu0 0.0
    %2096 = vmatprep.subr.mxu0 0.0
    %2097 = vmatpush2.msra.mxu0 0.0
    %2098 = vmatprep.mubr.f32.mxu0 0.0
    %2099 = vmatmul.mubr.f32.gmra.mxu0 %v2032
    %v2100 = vpop.f32.mrf.mxu0
    %v2101 = vadd.f32 0.0, %v2100
    %v2102 = vpop.f32.mrf.mxu0
    %2103 = vdwg.mxu0
    %2104 = vmatprep.subr.mxu0 0.0
    %2105 = vmatpush1.msra.mxu0 0.0
    %2106 = vmatprep.subr.mxu0 0.0
    %2107 = vmatpush1.msra.mxu0 0.0
    %2108 = vmatprep.subr.mxu0 0.0
    %2109 = vmatpush1.msra.mxu0 0.0
    %2110 = vmatprep.subr.mxu0 0.0
    %2111 = vmatpush1.msra.mxu0 0.0
    %2112 = vmatprep.subr.mxu0 0.0
    %2113 = vmatpush1.msra.mxu0 0.0
    %2114 = vmatprep.subr.mxu0 0.0
    %2115 = vmatpush1.msra.mxu0 0.0
    %2116 = vmatprep.subr.mxu0 0.0
    %2117 = vmatpush1.msra.mxu0 0.0
    %2118 = vmatprep.subr.mxu0 0.0
    %2119 = vmatpush1.msra.mxu0 0.0
    %2120 = vmatprep.subr.mxu0 0.0
    %2121 = vmatpush1.msra.mxu0 0.0
    %2122 = vmatprep.subr.mxu0 0.0
    %2123 = vmatpush1.msra.mxu0 0.0
    %2124 = vmatprep.subr.mxu0 0.0
    %2125 = vmatpush1.msra.mxu0 0.0
    %2126 = vmatprep.subr.mxu0 0.0
    %2127 = vmatpush1.msra.mxu0 0.0
    %2128 = vmatprep.subr.mxu0 0.0
    %2129 = vmatpush1.msra.mxu0 0.0
    %2130 = vmatprep.subr.mxu0 0.0
    %2131 = vmatpush1.msra.mxu0 0.0
    %2132 = vmatprep.subr.mxu0 0.0
    %2133 = vmatpush1.msra.mxu0 0.0
    %2134 = vmatprep.subr.mxu0 0.0
    %2135 = vmatpush1.msra.mxu0 %v698
    %2136 = vmatprep.subr.mxu0 0.0
    %2137 = vmatpush2.msra.mxu0 0.0
    %2138 = vmatprep.subr.mxu0 0.0
    %2139 = vmatpush2.msra.mxu0 0.0
    %2140 = vmatprep.subr.mxu0 0.0
    %2141 = vmatpush2.msra.mxu0 0.0
    %2142 = vmatprep.subr.mxu0 0.0
    %2143 = vmatpush2.msra.mxu0 0.0
    %2144 = vmatprep.subr.mxu0 0.0
    %2145 = vmatpush2.msra.mxu0 0.0
    %2146 = vmatprep.subr.mxu0 0.0
    %2147 = vmatpush2.msra.mxu0 0.0
    %2148 = vmatprep.subr.mxu0 0.0
    %2149 = vmatpush2.msra.mxu0 0.0
    %2150 = vmatprep.subr.mxu0 0.0
    %2151 = vmatpush2.msra.mxu0 0.0
    %2152 = vmatprep.subr.mxu0 0.0
    %2153 = vmatpush2.msra.mxu0 0.0
    %2154 = vmatprep.subr.mxu0 0.0
    %2155 = vmatpush2.msra.mxu0 0.0
    %2156 = vmatprep.subr.mxu0 0.0
    %2157 = vmatpush2.msra.mxu0 0.0
    %2158 = vmatprep.subr.mxu0 0.0
    %2159 = vmatpush2.msra.mxu0 0.0
    %2160 = vmatprep.subr.mxu0 0.0
    %2161 = vmatpush2.msra.mxu0 0.0
    %2162 = vmatprep.subr.mxu0 0.0
    %2163 = vmatpush2.msra.mxu0 0.0
    %2164 = vmatprep.subr.mxu0 0.0
    %2165 = vmatpush2.msra.mxu0 0.0
    %2166 = vmatprep.subr.mxu0 0.0
    %2167 = vmatpush2.msra.mxu0 0.0
    %2168 = vmatprep.mubr.f32.mxu0 0.0
    %2169 = vmatmul.mubr.f32.gmra.mxu0 %v2032
    %v2170 = vpop.f32.mrf.mxu0
    %v2171 = vadd.f32 0.0, %v2170
    %v2172 = vpop.f32.mrf.mxu0
    %2173 = vdwg.mxu0
    %v2174 = vadd.f32 %v246, %v2101
    %v2175 = vxor.u32 %v2174, 2147483648
    %v2176 = vmul.f32 %v2175, 1.442695
    %v2177 = vpow.pop %v2176
    %v2178 = vadd.f32 %v2177, 1.0
    %v2179 = vrcp.pop %v2178
    %v2180 = vmul.f32 1.0, %v2179
    %v2181 = vadd.f32 %v403, %v2171
    %v2182 = vxor.u32 %v2181, 2147483648
    %v2183 = vmul.f32 %v2182, 1.442695
    %v2184 = vpow.pop %v2183
    %v2185 = vadd.f32 %v2184, 1.0
    %v2186 = vrcp.pop %v2185
    %v2187 = vmul.f32 1.0, %v2186
    %2188 = vmatprep.subr.mxu0 0.0
    %2189 = vmatpush1.msra.mxu0 0.0
    %2190 = vmatprep.subr.mxu0 0.0
    %2191 = vmatpush1.msra.mxu0 0.0
    %2192 = vmatprep.subr.mxu0 0.0
    %2193 = vmatpush1.msra.mxu0 0.0
    %2194 = vmatprep.subr.mxu0 0.0
    %2195 = vmatpush1.msra.mxu0 0.0
    %2196 = vmatprep.subr.mxu0 0.0
    %2197 = vmatpush1.msra.mxu0 0.0
    %2198 = vmatprep.subr.mxu0 0.0
    %2199 = vmatpush1.msra.mxu0 0.0
    %2200 = vmatprep.subr.mxu0 0.0
    %2201 = vmatpush1.msra.mxu0 0.0
    %2202 = vmatprep.subr.mxu0 0.0
    %2203 = vmatpush1.msra.mxu0 0.0
    %2204 = vmatprep.subr.mxu0 0.0
    %2205 = vmatpush1.msra.mxu0 0.0
    %2206 = vmatprep.subr.mxu0 0.0
    %2207 = vmatpush1.msra.mxu0 0.0
    %2208 = vmatprep.subr.mxu0 0.0
    %2209 = vmatpush1.msra.mxu0 0.0
    %2210 = vmatprep.subr.mxu0 0.0
    %2211 = vmatpush1.msra.mxu0 0.0
    %2212 = vmatprep.subr.mxu0 0.0
    %2213 = vmatpush1.msra.mxu0 0.0
    %2214 = vmatprep.subr.mxu0 0.0
    %2215 = vmatpush1.msra.mxu0 0.0
    %2216 = vmatprep.subr.mxu0 0.0
    %2217 = vmatpush1.msra.mxu0 0.0
    %2218 = vmatprep.subr.mxu0 0.0
    %2219 = vmatpush1.msra.mxu0 %v791
    %2220 = vmatprep.subr.mxu0 0.0
    %2221 = vmatpush2.msra.mxu0 0.0
    %2222 = vmatprep.subr.mxu0 0.0
    %2223 = vmatpush2.msra.mxu0 0.0
    %2224 = vmatprep.subr.mxu0 0.0
    %2225 = vmatpush2.msra.mxu0 0.0
    %2226 = vmatprep.subr.mxu0 0.0
    %2227 = vmatpush2.msra.mxu0 0.0
    %2228 = vmatprep.subr.mxu0 0.0
    %2229 = vmatpush2.msra.mxu0 0.0
    %2230 = vmatprep.subr.mxu0 0.0
    %2231 = vmatpush2.msra.mxu0 0.0
    %2232 = vmatprep.subr.mxu0 0.0
    %2233 = vmatpush2.msra.mxu0 0.0
    %2234 = vmatprep.subr.mxu0 0.0
    %2235 = vmatpush2.msra.mxu0 0.0
    %2236 = vmatprep.subr.mxu0 0.0
    %2237 = vmatpush2.msra.mxu0 0.0
    %2238 = vmatprep.subr.mxu0 0.0
    %2239 = vmatpush2.msra.mxu0 0.0
    %2240 = vmatprep.subr.mxu0 0.0
    %2241 = vmatpush2.msra.mxu0 0.0
    %2242 = vmatprep.subr.mxu0 0.0
    %2243 = vmatpush2.msra.mxu0 0.0
    %2244 = vmatprep.subr.mxu0 0.0
    %2245 = vmatpush2.msra.mxu0 0.0
    %2246 = vmatprep.subr.mxu0 0.0
    %2247 = vmatpush2.msra.mxu0 0.0
    %2248 = vmatprep.subr.mxu0 0.0
    %2249 = vmatpush2.msra.mxu0 0.0
    %2250 = vmatprep.subr.mxu0 0.0
    %2251 = vmatpush2.msra.mxu0 0.0
    %2252 = vmatprep.mubr.f32.mxu0 0.0
    %2253 = vmatmul.mubr.f32.gmra.mxu0 %v2032
    %v2254 = vpop.f32.mrf.mxu0
    %v2255 = vadd.f32 %v788, %v2254
    %v2256 = vpop.f32.mrf.mxu0
    %2257 = vdwg.mxu0
    %v2258 = vmul.f32 %v2180, %v2255
    %v2259 = vadd.f32 %v560, %v2258
    %v2260 = vtanh.pop %v2259
    %v2261 = vsub.f32 %v1984, %v2260
    %v2262 = vmul.f32 %v2187, %v2261
    %v2263 = vadd.f32 %v2260, %v2262
    %v2264 = vlaneseq
    %v2265 = vshrl.u32 %v2264, 7
    %v2266 = vsub.s32 5, %v2265
    %v2267 = vrot.slane %v617, %v2266
    %v2268 = vmul.f32 %v2263, %v2267
    %v2269 = vsel %vm619, %v2268, 0.0
    %2270 = vadd.xlane.f32.xlu0 %v2269
    %v2271 = vpop.xlane.xlu0 %2270
    %v2272 = vsel %vm619, %v2263, 0.0
    %2273 = vadd.xlane.f32.xlu0 %v2272
    %v2274 = vpop.xlane.xlu0 %2273
    %v2275 = vrot.slane %v2274, 4
    %v2276 = vadd.f32 %v2274, %v2275
    %v2277 = vrot.slane %v2276, 2
    %v2278 = vadd.f32 %v2276, %v2277
    %v2279 = vrot.slane %v2278, 1
    %v2280 = vadd.f32 %v2278, %v2279
    %s2281 = vtos %v2280
    %v2282 = vstv %s2281
    %v2283 = vmul.f32 %v2263, %v2263
    %v2284 = vsel %vm619, %v2283, 0.0
    %2285 = vadd.xlane.f32.xlu0 %v2284
    %v2286 = vpop.xlane.xlu0 %2285
    %v2287 = vrot.slane %v2286, 4
    %v2288 = vadd.f32 %v2286, %v2287
    %v2289 = vrot.slane %v2288, 2
    %v2290 = vadd.f32 %v2288, %v2289
    %v2291 = vrot.slane %v2290, 1
    %v2292 = vadd.f32 %v2290, %v2291
    %s2293 = vtos %v2292
    %v2294 = vstv %s2293
    %v2295 = vmul.f32 %v2282, 0.025
    %v2296 = vmul.f32 %v2294, 0.025
    %v2297 = vmul.f32 %v2295, %v2295
    %v2298 = vsub.f32 %v2296, %v2297
    %v2299 = vadd.f32 %v2298, 1e-05
    %v2300 = vrsqrt.pop %v2299
    %s2301 = sld [smem:[#allocation3 + $0x5]]
    %v2302 = vstv %s2301
    %v2303 = vmul.f32 %v2302, %v2271
    %s2304 = sld [smem:[#allocation5 + $0x5]]
    %v2305 = vstv %s2304
    %v2306 = vmul.f32 %v2305, %v2295
    %v2307 = vsub.f32 %v2303, %v2306
    %v2308 = vmul.f32 %v2300, %v2307
    %v2309 = vadd.f32 %v2030, %v2308
    %v2311 = vsel %vm619, %v2263, 0
    %2313 = vmatprep.subr.mxu0 0.0
    %2314 = vmatpush1.msra.mxu0 0.0
    %2315 = vmatprep.subr.mxu0 0.0
    %2316 = vmatpush1.msra.mxu0 0.0
    %2317 = vmatprep.subr.mxu0 0.0
    %2318 = vmatpush1.msra.mxu0 0.0
    %2319 = vmatprep.subr.mxu0 0.0
    %2320 = vmatpush1.msra.mxu0 0.0
    %2321 = vmatprep.subr.mxu0 0.0
    %2322 = vmatpush1.msra.mxu0 0.0
    %2323 = vmatprep.subr.mxu0 0.0
    %2324 = vmatpush1.msra.mxu0 0.0
    %2325 = vmatprep.subr.mxu0 0.0
    %2326 = vmatpush1.msra.mxu0 0.0
    %2327 = vmatprep.subr.mxu0 0.0
    %2328 = vmatpush1.msra.mxu0 0.0
    %2329 = vmatprep.subr.mxu0 0.0
    %2330 = vmatpush1.msra.mxu0 0.0
    %2331 = vmatprep.subr.mxu0 0.0
    %2332 = vmatpush1.msra.mxu0 0.0
    %2333 = vmatprep.subr.mxu0 0.0
    %2334 = vmatpush1.msra.mxu0 0.0
    %2335 = vmatprep.subr.mxu0 0.0
    %2336 = vmatpush1.msra.mxu0 0.0
    %2337 = vmatprep.subr.mxu0 0.0
    %2338 = vmatpush1.msra.mxu0 0.0
    %2339 = vmatprep.subr.mxu0 0.0
    %2340 = vmatpush1.msra.mxu0 0.0
    %2341 = vmatprep.subr.mxu0 0.0
    %2342 = vmatpush1.msra.mxu0 0.0
    %2343 = vmatprep.subr.mxu0 0.0
    %2344 = vmatpush1.msra.mxu0 %v625
    %2345 = vmatprep.subr.mxu0 0.0
    %2346 = vmatpush2.msra.mxu0 0.0
    %2347 = vmatprep.subr.mxu0 0.0
    %2348 = vmatpush2.msra.mxu0 0.0
    %2349 = vmatprep.subr.mxu0 0.0
    %2350 = vmatpush2.msra.mxu0 0.0
    %2351 = vmatprep.subr.mxu0 0.0
    %2352 = vmatpush2.msra.mxu0 0.0
    %2353 = vmatprep.subr.mxu0 0.0
    %2354 = vmatpush2.msra.mxu0 0.0
    %2355 = vmatprep.subr.mxu0 0.0
    %2356 = vmatpush2.msra.mxu0 0.0
    %2357 = vmatprep.subr.mxu0 0.0
    %2358 = vmatpush2.msra.mxu0 0.0
    %2359 = vmatprep.subr.mxu0 0.0
    %2360 = vmatpush2.msra.mxu0 0.0
    %2361 = vmatprep.subr.mxu0 0.0
    %2362 = vmatpush2.msra.mxu0 0.0
    %2363 = vmatprep.subr.mxu0 0.0
    %2364 = vmatpush2.msra.mxu0 0.0
    %2365 = vmatprep.subr.mxu0 0.0
    %2366 = vmatpush2.msra.mxu0 0.0
    %2367 = vmatprep.subr.mxu0 0.0
    %2368 = vmatpush2.msra.mxu0 0.0
    %2369 = vmatprep.subr.mxu0 0.0
    %2370 = vmatpush2.msra.mxu0 0.0
    %2371 = vmatprep.subr.mxu0 0.0
    %2372 = vmatpush2.msra.mxu0 0.0
    %2373 = vmatprep.subr.mxu0 0.0
    %2374 = vmatpush2.msra.mxu0 0.0
    %2375 = vmatprep.subr.mxu0 0.0
    %2376 = vmatpush2.msra.mxu0 0.0
    %2377 = vmatprep.mubr.f32.mxu0 0.0
    %2378 = vmatmul.mubr.f32.gmra.mxu0 %v2311
    %v2379 = vpop.f32.mrf.mxu0
    %v2380 = vadd.f32 0.0, %v2379
    %v2381 = vpop.f32.mrf.mxu0
    %2382 = vdwg.mxu0
    %2383 = vmatprep.subr.mxu0 0.0
    %2384 = vmatpush1.msra.mxu0 0.0
    %2385 = vmatprep.subr.mxu0 0.0
    %2386 = vmatpush1.msra.mxu0 0.0
    %2387 = vmatprep.subr.mxu0 0.0
    %2388 = vmatpush1.msra.mxu0 0.0
    %2389 = vmatprep.subr.mxu0 0.0
    %2390 = vmatpush1.msra.mxu0 0.0
    %2391 = vmatprep.subr.mxu0 0.0
    %2392 = vmatpush1.msra.mxu0 0.0
    %2393 = vmatprep.subr.mxu0 0.0
    %2394 = vmatpush1.msra.mxu0 0.0
    %2395 = vmatprep.subr.mxu0 0.0
    %2396 = vmatpush1.msra.mxu0 0.0
    %2397 = vmatprep.subr.mxu0 0.0
    %2398 = vmatpush1.msra.mxu0 0.0
    %2399 = vmatprep.subr.mxu0 0.0
    %2400 = vmatpush1.msra.mxu0 0.0
    %2401 = vmatprep.subr.mxu0 0.0
    %2402 = vmatpush1.msra.mxu0 0.0
    %2403 = vmatprep.subr.mxu0 0.0
    %2404 = vmatpush1.msra.mxu0 0.0
    %2405 = vmatprep.subr.mxu0 0.0
    %2406 = vmatpush1.msra.mxu0 0.0
    %2407 = vmatprep.subr.mxu0 0.0
    %2408 = vmatpush1.msra.mxu0 0.0
    %2409 = vmatprep.subr.mxu0 0.0
    %2410 = vmatpush1.msra.mxu0 0.0
    %2411 = vmatprep.subr.mxu0 0.0
    %2412 = vmatpush1.msra.mxu0 0.0
    %2413 = vmatprep.subr.mxu0 0.0
    %2414 = vmatpush1.msra.mxu0 %v698
    %2415 = vmatprep.subr.mxu0 0.0
    %2416 = vmatpush2.msra.mxu0 0.0
    %2417 = vmatprep.subr.mxu0 0.0
    %2418 = vmatpush2.msra.mxu0 0.0
    %2419 = vmatprep.subr.mxu0 0.0
    %2420 = vmatpush2.msra.mxu0 0.0
    %2421 = vmatprep.subr.mxu0 0.0
    %2422 = vmatpush2.msra.mxu0 0.0
    %2423 = vmatprep.subr.mxu0 0.0
    %2424 = vmatpush2.msra.mxu0 0.0
    %2425 = vmatprep.subr.mxu0 0.0
    %2426 = vmatpush2.msra.mxu0 0.0
    %2427 = vmatprep.subr.mxu0 0.0
    %2428 = vmatpush2.msra.mxu0 0.0
    %2429 = vmatprep.subr.mxu0 0.0
    %2430 = vmatpush2.msra.mxu0 0.0
    %2431 = vmatprep.subr.mxu0 0.0
    %2432 = vmatpush2.msra.mxu0 0.0
    %2433 = vmatprep.subr.mxu0 0.0
    %2434 = vmatpush2.msra.mxu0 0.0
    %2435 = vmatprep.subr.mxu0 0.0
    %2436 = vmatpush2.msra.mxu0 0.0
    %2437 = vmatprep.subr.mxu0 0.0
    %2438 = vmatpush2.msra.mxu0 0.0
    %2439 = vmatprep.subr.mxu0 0.0
    %2440 = vmatpush2.msra.mxu0 0.0
    %2441 = vmatprep.subr.mxu0 0.0
    %2442 = vmatpush2.msra.mxu0 0.0
    %2443 = vmatprep.subr.mxu0 0.0
    %2444 = vmatpush2.msra.mxu0 0.0
    %2445 = vmatprep.subr.mxu0 0.0
    %2446 = vmatpush2.msra.mxu0 0.0
    %2447 = vmatprep.mubr.f32.mxu0 0.0
    %2448 = vmatmul.mubr.f32.gmra.mxu0 %v2311
    %v2449 = vpop.f32.mrf.mxu0
    %v2450 = vadd.f32 0.0, %v2449
    %v2451 = vpop.f32.mrf.mxu0
    %2452 = vdwg.mxu0
    %v2453 = vadd.f32 %v251, %v2380
    %v2454 = vxor.u32 %v2453, 2147483648
    %v2455 = vmul.f32 %v2454, 1.442695
    %v2456 = vpow.pop %v2455
    %v2457 = vadd.f32 %v2456, 1.0
    %v2458 = vrcp.pop %v2457
    %v2459 = vmul.f32 1.0, %v2458
    %v2460 = vadd.f32 %v408, %v2450
    %v2461 = vxor.u32 %v2460, 2147483648
    %v2462 = vmul.f32 %v2461, 1.442695
    %v2463 = vpow.pop %v2462
    %v2464 = vadd.f32 %v2463, 1.0
    %v2465 = vrcp.pop %v2464
    %v2466 = vmul.f32 1.0, %v2465
    %2467 = vmatprep.subr.mxu0 0.0
    %2468 = vmatpush1.msra.mxu0 0.0
    %2469 = vmatprep.subr.mxu0 0.0
    %2470 = vmatpush1.msra.mxu0 0.0
    %2471 = vmatprep.subr.mxu0 0.0
    %2472 = vmatpush1.msra.mxu0 0.0
    %2473 = vmatprep.subr.mxu0 0.0
    %2474 = vmatpush1.msra.mxu0 0.0
    %2475 = vmatprep.subr.mxu0 0.0
    %2476 = vmatpush1.msra.mxu0 0.0
    %2477 = vmatprep.subr.mxu0 0.0
    %2478 = vmatpush1.msra.mxu0 0.0
    %2479 = vmatprep.subr.mxu0 0.0
    %2480 = vmatpush1.msra.mxu0 0.0
    %2481 = vmatprep.subr.mxu0 0.0
    %2482 = vmatpush1.msra.mxu0 0.0
    %2483 = vmatprep.subr.mxu0 0.0
    %2484 = vmatpush1.msra.mxu0 0.0
    %2485 = vmatprep.subr.mxu0 0.0
    %2486 = vmatpush1.msra.mxu0 0.0
    %2487 = vmatprep.subr.mxu0 0.0
    %2488 = vmatpush1.msra.mxu0 0.0
    %2489 = vmatprep.subr.mxu0 0.0
    %2490 = vmatpush1.msra.mxu0 0.0
    %2491 = vmatprep.subr.mxu0 0.0
    %2492 = vmatpush1.msra.mxu0 0.0
    %2493 = vmatprep.subr.mxu0 0.0
    %2494 = vmatpush1.msra.mxu0 0.0
    %2495 = vmatprep.subr.mxu0 0.0
    %2496 = vmatpush1.msra.mxu0 0.0
    %2497 = vmatprep.subr.mxu0 0.0
    %2498 = vmatpush1.msra.mxu0 %v791
    %2499 = vmatprep.subr.mxu0 0.0
    %2500 = vmatpush2.msra.mxu0 0.0
    %2501 = vmatprep.subr.mxu0 0.0
    %2502 = vmatpush2.msra.mxu0 0.0
    %2503 = vmatprep.subr.mxu0 0.0
    %2504 = vmatpush2.msra.mxu0 0.0
    %2505 = vmatprep.subr.mxu0 0.0
    %2506 = vmatpush2.msra.mxu0 0.0
    %2507 = vmatprep.subr.mxu0 0.0
    %2508 = vmatpush2.msra.mxu0 0.0
    %2509 = vmatprep.subr.mxu0 0.0
    %2510 = vmatpush2.msra.mxu0 0.0
    %2511 = vmatprep.subr.mxu0 0.0
    %2512 = vmatpush2.msra.mxu0 0.0
    %2513 = vmatprep.subr.mxu0 0.0
    %2514 = vmatpush2.msra.mxu0 0.0
    %2515 = vmatprep.subr.mxu0 0.0
    %2516 = vmatpush2.msra.mxu0 0.0
    %2517 = vmatprep.subr.mxu0 0.0
    %2518 = vmatpush2.msra.mxu0 0.0
    %2519 = vmatprep.subr.mxu0 0.0
    %2520 = vmatpush2.msra.mxu0 0.0
    %2521 = vmatprep.subr.mxu0 0.0
    %2522 = vmatpush2.msra.mxu0 0.0
    %2523 = vmatprep.subr.mxu0 0.0
    %2524 = vmatpush2.msra.mxu0 0.0
    %2525 = vmatprep.subr.mxu0 0.0
    %2526 = vmatpush2.msra.mxu0 0.0
    %2527 = vmatprep.subr.mxu0 0.0
    %2528 = vmatpush2.msra.mxu0 0.0
    %2529 = vmatprep.subr.mxu0 0.0
    %2530 = vmatpush2.msra.mxu0 0.0
    %2531 = vmatprep.mubr.f32.mxu0 0.0
    %2532 = vmatmul.mubr.f32.gmra.mxu0 %v2311
    %v2533 = vpop.f32.mrf.mxu0
    %v2534 = vadd.f32 %v788, %v2533
    %v2535 = vpop.f32.mrf.mxu0
    %2536 = vdwg.mxu0
    %v2537 = vmul.f32 %v2459, %v2534
    %v2538 = vadd.f32 %v565, %v2537
    %v2539 = vtanh.pop %v2538
    %v2540 = vsub.f32 %v2263, %v2539
    %v2541 = vmul.f32 %v2466, %v2540
    %v2542 = vadd.f32 %v2539, %v2541
    %v2543 = vlaneseq
    %v2544 = vshrl.u32 %v2543, 7
    %v2545 = vsub.s32 6, %v2544
    %v2546 = vrot.slane %v617, %v2545
    %v2547 = vmul.f32 %v2542, %v2546
    %v2548 = vsel %vm619, %v2547, 0.0
    %2549 = vadd.xlane.f32.xlu0 %v2548
    %v2550 = vpop.xlane.xlu0 %2549
    %v2551 = vsel %vm619, %v2542, 0.0
    %2552 = vadd.xlane.f32.xlu0 %v2551
    %v2553 = vpop.xlane.xlu0 %2552
    %v2554 = vrot.slane %v2553, 4
    %v2555 = vadd.f32 %v2553, %v2554
    %v2556 = vrot.slane %v2555, 2
    %v2557 = vadd.f32 %v2555, %v2556
    %v2558 = vrot.slane %v2557, 1
    %v2559 = vadd.f32 %v2557, %v2558
    %s2560 = vtos %v2559
    %v2561 = vstv %s2560
    %v2562 = vmul.f32 %v2542, %v2542
    %v2563 = vsel %vm619, %v2562, 0.0
    %2564 = vadd.xlane.f32.xlu0 %v2563
    %v2565 = vpop.xlane.xlu0 %2564
    %v2566 = vrot.slane %v2565, 4
    %v2567 = vadd.f32 %v2565, %v2566
    %v2568 = vrot.slane %v2567, 2
    %v2569 = vadd.f32 %v2567, %v2568
    %v2570 = vrot.slane %v2569, 1
    %v2571 = vadd.f32 %v2569, %v2570
    %s2572 = vtos %v2571
    %v2573 = vstv %s2572
    %v2574 = vmul.f32 %v2561, 0.025
    %v2575 = vmul.f32 %v2573, 0.025
    %v2576 = vmul.f32 %v2574, %v2574
    %v2577 = vsub.f32 %v2575, %v2576
    %v2578 = vadd.f32 %v2577, 1e-05
    %v2579 = vrsqrt.pop %v2578
    %s2580 = sld [smem:[#allocation3 + $0x6]]
    %v2581 = vstv %s2580
    %v2582 = vmul.f32 %v2581, %v2550
    %s2583 = sld [smem:[#allocation5 + $0x6]]
    %v2584 = vstv %s2583
    %v2585 = vmul.f32 %v2584, %v2574
    %v2586 = vsub.f32 %v2582, %v2585
    %v2587 = vmul.f32 %v2579, %v2586
    %v2588 = vadd.f32 %v2309, %v2587
    %v2590 = vsel %vm619, %v2542, 0
    %2592 = vmatprep.subr.mxu0 0.0
    %2593 = vmatpush1.msra.mxu0 0.0
    %2594 = vmatprep.subr.mxu0 0.0
    %2595 = vmatpush1.msra.mxu0 0.0
    %2596 = vmatprep.subr.mxu0 0.0
    %2597 = vmatpush1.msra.mxu0 0.0
    %2598 = vmatprep.subr.mxu0 0.0
    %2599 = vmatpush1.msra.mxu0 0.0
    %2600 = vmatprep.subr.mxu0 0.0
    %2601 = vmatpush1.msra.mxu0 0.0
    %2602 = vmatprep.subr.mxu0 0.0
    %2603 = vmatpush1.msra.mxu0 0.0
    %2604 = vmatprep.subr.mxu0 0.0
    %2605 = vmatpush1.msra.mxu0 0.0
    %2606 = vmatprep.subr.mxu0 0.0
    %2607 = vmatpush1.msra.mxu0 0.0
    %2608 = vmatprep.subr.mxu0 0.0
    %2609 = vmatpush1.msra.mxu0 0.0
    %2610 = vmatprep.subr.mxu0 0.0
    %2611 = vmatpush1.msra.mxu0 0.0
    %2612 = vmatprep.subr.mxu0 0.0
    %2613 = vmatpush1.msra.mxu0 0.0
    %2614 = vmatprep.subr.mxu0 0.0
    %2615 = vmatpush1.msra.mxu0 0.0
    %2616 = vmatprep.subr.mxu0 0.0
    %2617 = vmatpush1.msra.mxu0 0.0
    %2618 = vmatprep.subr.mxu0 0.0
    %2619 = vmatpush1.msra.mxu0 0.0
    %2620 = vmatprep.subr.mxu0 0.0
    %2621 = vmatpush1.msra.mxu0 0.0
    %2622 = vmatprep.subr.mxu0 0.0
    %2623 = vmatpush1.msra.mxu0 %v625
    %2624 = vmatprep.subr.mxu0 0.0
    %2625 = vmatpush2.msra.mxu0 0.0
    %2626 = vmatprep.subr.mxu0 0.0
    %2627 = vmatpush2.msra.mxu0 0.0
    %2628 = vmatprep.subr.mxu0 0.0
    %2629 = vmatpush2.msra.mxu0 0.0
    %2630 = vmatprep.subr.mxu0 0.0
    %2631 = vmatpush2.msra.mxu0 0.0
    %2632 = vmatprep.subr.mxu0 0.0
    %2633 = vmatpush2.msra.mxu0 0.0
    %2634 = vmatprep.subr.mxu0 0.0
    %2635 = vmatpush2.msra.mxu0 0.0
    %2636 = vmatprep.subr.mxu0 0.0
    %2637 = vmatpush2.msra.mxu0 0.0
    %2638 = vmatprep.subr.mxu0 0.0
    %2639 = vmatpush2.msra.mxu0 0.0
    %2640 = vmatprep.subr.mxu0 0.0
    %2641 = vmatpush2.msra.mxu0 0.0
    %2642 = vmatprep.subr.mxu0 0.0
    %2643 = vmatpush2.msra.mxu0 0.0
    %2644 = vmatprep.subr.mxu0 0.0
    %2645 = vmatpush2.msra.mxu0 0.0
    %2646 = vmatprep.subr.mxu0 0.0
    %2647 = vmatpush2.msra.mxu0 0.0
    %2648 = vmatprep.subr.mxu0 0.0
    %2649 = vmatpush2.msra.mxu0 0.0
    %2650 = vmatprep.subr.mxu0 0.0
    %2651 = vmatpush2.msra.mxu0 0.0
    %2652 = vmatprep.subr.mxu0 0.0
    %2653 = vmatpush2.msra.mxu0 0.0
    %2654 = vmatprep.subr.mxu0 0.0
    %2655 = vmatpush2.msra.mxu0 0.0
    %2656 = vmatprep.mubr.f32.mxu0 0.0
    %2657 = vmatmul.mubr.f32.gmra.mxu0 %v2590
    %v2658 = vpop.f32.mrf.mxu0
    %v2659 = vadd.f32 0.0, %v2658
    %v2660 = vpop.f32.mrf.mxu0
    %2661 = vdwg.mxu0
    %2662 = vmatprep.subr.mxu0 0.0
    %2663 = vmatpush1.msra.mxu0 0.0
    %2664 = vmatprep.subr.mxu0 0.0
    %2665 = vmatpush1.msra.mxu0 0.0
    %2666 = vmatprep.subr.mxu0 0.0
    %2667 = vmatpush1.msra.mxu0 0.0
    %2668 = vmatprep.subr.mxu0 0.0
    %2669 = vmatpush1.msra.mxu0 0.0
    %2670 = vmatprep.subr.mxu0 0.0
    %2671 = vmatpush1.msra.mxu0 0.0
    %2672 = vmatprep.subr.mxu0 0.0
    %2673 = vmatpush1.msra.mxu0 0.0
    %2674 = vmatprep.subr.mxu0 0.0
    %2675 = vmatpush1.msra.mxu0 0.0
    %2676 = vmatprep.subr.mxu0 0.0
    %2677 = vmatpush1.msra.mxu0 0.0
    %2678 = vmatprep.subr.mxu0 0.0
    %2679 = vmatpush1.msra.mxu0 0.0
    %2680 = vmatprep.subr.mxu0 0.0
    %2681 = vmatpush1.msra.mxu0 0.0
    %2682 = vmatprep.subr.mxu0 0.0
    %2683 = vmatpush1.msra.mxu0 0.0
    %2684 = vmatprep.subr.mxu0 0.0
    %2685 = vmatpush1.msra.mxu0 0.0
    %2686 = vmatprep.subr.mxu0 0.0
    %2687 = vmatpush1.msra.mxu0 0.0
    %2688 = vmatprep.subr.mxu0 0.0
    %2689 = vmatpush1.msra.mxu0 0.0
    %2690 = vmatprep.subr.mxu0 0.0
    %2691 = vmatpush1.msra.mxu0 0.0
    %2692 = vmatprep.subr.mxu0 0.0
    %2693 = vmatpush1.msra.mxu0 %v698
    %2694 = vmatprep.subr.mxu0 0.0
    %2695 = vmatpush2.msra.mxu0 0.0
    %2696 = vmatprep.subr.mxu0 0.0
    %2697 = vmatpush2.msra.mxu0 0.0
    %2698 = vmatprep.subr.mxu0 0.0
    %2699 = vmatpush2.msra.mxu0 0.0
    %2700 = vmatprep.subr.mxu0 0.0
    %2701 = vmatpush2.msra.mxu0 0.0
    %2702 = vmatprep.subr.mxu0 0.0
    %2703 = vmatpush2.msra.mxu0 0.0
    %2704 = vmatprep.subr.mxu0 0.0
    %2705 = vmatpush2.msra.mxu0 0.0
    %2706 = vmatprep.subr.mxu0 0.0
    %2707 = vmatpush2.msra.mxu0 0.0
    %2708 = vmatprep.subr.mxu0 0.0
    %2709 = vmatpush2.msra.mxu0 0.0
    %2710 = vmatprep.subr.mxu0 0.0
    %2711 = vmatpush2.msra.mxu0 0.0
    %2712 = vmatprep.subr.mxu0 0.0
    %2713 = vmatpush2.msra.mxu0 0.0
    %2714 = vmatprep.subr.mxu0 0.0
    %2715 = vmatpush2.msra.mxu0 0.0
    %2716 = vmatprep.subr.mxu0 0.0
    %2717 = vmatpush2.msra.mxu0 0.0
    %2718 = vmatprep.subr.mxu0 0.0
    %2719 = vmatpush2.msra.mxu0 0.0
    %2720 = vmatprep.subr.mxu0 0.0
    %2721 = vmatpush2.msra.mxu0 0.0
    %2722 = vmatprep.subr.mxu0 0.0
    %2723 = vmatpush2.msra.mxu0 0.0
    %2724 = vmatprep.subr.mxu0 0.0
    %2725 = vmatpush2.msra.mxu0 0.0
    %2726 = vmatprep.mubr.f32.mxu0 0.0
    %2727 = vmatmul.mubr.f32.gmra.mxu0 %v2590
    %v2728 = vpop.f32.mrf.mxu0
    %v2729 = vadd.f32 0.0, %v2728
    %v2730 = vpop.f32.mrf.mxu0
    %2731 = vdwg.mxu0
    %v2732 = vadd.f32 %v256, %v2659
    %v2733 = vxor.u32 %v2732, 2147483648
    %v2734 = vmul.f32 %v2733, 1.442695
    %v2735 = vpow.pop %v2734
    %v2736 = vadd.f32 %v2735, 1.0
    %v2737 = vrcp.pop %v2736
    %v2738 = vmul.f32 1.0, %v2737
    %v2739 = vadd.f32 %v413, %v2729
    %v2740 = vxor.u32 %v2739, 2147483648
    %v2741 = vmul.f32 %v2740, 1.442695
    %v2742 = vpow.pop %v2741
    %v2743 = vadd.f32 %v2742, 1.0
    %v2744 = vrcp.pop %v2743
    %v2745 = vmul.f32 1.0, %v2744
    %2746 = vmatprep.subr.mxu0 0.0
    %2747 = vmatpush1.msra.mxu0 0.0
    %2748 = vmatprep.subr.mxu0 0.0
    %2749 = vmatpush1.msra.mxu0 0.0
    %2750 = vmatprep.subr.mxu0 0.0
    %2751 = vmatpush1.msra.mxu0 0.0
    %2752 = vmatprep.subr.mxu0 0.0
    %2753 = vmatpush1.msra.mxu0 0.0
    %2754 = vmatprep.subr.mxu0 0.0
    %2755 = vmatpush1.msra.mxu0 0.0
    %2756 = vmatprep.subr.mxu0 0.0
    %2757 = vmatpush1.msra.mxu0 0.0
    %2758 = vmatprep.subr.mxu0 0.0
    %2759 = vmatpush1.msra.mxu0 0.0
    %2760 = vmatprep.subr.mxu0 0.0
    %2761 = vmatpush1.msra.mxu0 0.0
    %2762 = vmatprep.subr.mxu0 0.0
    %2763 = vmatpush1.msra.mxu0 0.0
    %2764 = vmatprep.subr.mxu0 0.0
    %2765 = vmatpush1.msra.mxu0 0.0
    %2766 = vmatprep.subr.mxu0 0.0
    %2767 = vmatpush1.msra.mxu0 0.0
    %2768 = vmatprep.subr.mxu0 0.0
    %2769 = vmatpush1.msra.mxu0 0.0
    %2770 = vmatprep.subr.mxu0 0.0
    %2771 = vmatpush1.msra.mxu0 0.0
    %2772 = vmatprep.subr.mxu0 0.0
    %2773 = vmatpush1.msra.mxu0 0.0
    %2774 = vmatprep.subr.mxu0 0.0
    %2775 = vmatpush1.msra.mxu0 0.0
    %2776 = vmatprep.subr.mxu0 0.0
    %2777 = vmatpush1.msra.mxu0 %v791
    %2778 = vmatprep.subr.mxu0 0.0
    %2779 = vmatpush2.msra.mxu0 0.0
    %2780 = vmatprep.subr.mxu0 0.0
    %2781 = vmatpush2.msra.mxu0 0.0
    %2782 = vmatprep.subr.mxu0 0.0
    %2783 = vmatpush2.msra.mxu0 0.0
    %2784 = vmatprep.subr.mxu0 0.0
    %2785 = vmatpush2.msra.mxu0 0.0
    %2786 = vmatprep.subr.mxu0 0.0
    %2787 = vmatpush2.msra.mxu0 0.0
    %2788 = vmatprep.subr.mxu0 0.0
    %2789 = vmatpush2.msra.mxu0 0.0
    %2790 = vmatprep.subr.mxu0 0.0
    %2791 = vmatpush2.msra.mxu0 0.0
    %2792 = vmatprep.subr.mxu0 0.0
    %2793 = vmatpush2.msra.mxu0 0.0
    %2794 = vmatprep.subr.mxu0 0.0
    %2795 = vmatpush2.msra.mxu0 0.0
    %2796 = vmatprep.subr.mxu0 0.0
    %2797 = vmatpush2.msra.mxu0 0.0
    %2798 = vmatprep.subr.mxu0 0.0
    %2799 = vmatpush2.msra.mxu0 0.0
    %2800 = vmatprep.subr.mxu0 0.0
    %2801 = vmatpush2.msra.mxu0 0.0
    %2802 = vmatprep.subr.mxu0 0.0
    %2803 = vmatpush2.msra.mxu0 0.0
    %2804 = vmatprep.subr.mxu0 0.0
    %2805 = vmatpush2.msra.mxu0 0.0
    %2806 = vmatprep.subr.mxu0 0.0
    %2807 = vmatpush2.msra.mxu0 0.0
    %2808 = vmatprep.subr.mxu0 0.0
    %2809 = vmatpush2.msra.mxu0 0.0
    %2810 = vmatprep.mubr.f32.mxu0 0.0
    %2811 = vmatmul.mubr.f32.gmra.mxu0 %v2590
    %v2812 = vpop.f32.mrf.mxu0
    %v2813 = vadd.f32 %v788, %v2812
    %v2814 = vpop.f32.mrf.mxu0
    %2815 = vdwg.mxu0
    %v2816 = vmul.f32 %v2738, %v2813
    %v2817 = vadd.f32 %v570, %v2816
    %v2818 = vtanh.pop %v2817
    %v2819 = vsub.f32 %v2542, %v2818
    %v2820 = vmul.f32 %v2745, %v2819
    %v2821 = vadd.f32 %v2818, %v2820
    %v2822 = vlaneseq
    %v2823 = vshrl.u32 %v2822, 7
    %v2824 = vsub.s32 7, %v2823
    %v2825 = vrot.slane %v617, %v2824
    %v2826 = vmul.f32 %v2821, %v2825
    %v2827 = vsel %vm619, %v2826, 0.0
    %2828 = vadd.xlane.f32.xlu0 %v2827
    %v2829 = vpop.xlane.xlu0 %2828
    %v2830 = vsel %vm619, %v2821, 0.0
    %2831 = vadd.xlane.f32.xlu0 %v2830
    %v2832 = vpop.xlane.xlu0 %2831
    %v2833 = vrot.slane %v2832, 4
    %v2834 = vadd.f32 %v2832, %v2833
    %v2835 = vrot.slane %v2834, 2
    %v2836 = vadd.f32 %v2834, %v2835
    %v2837 = vrot.slane %v2836, 1
    %v2838 = vadd.f32 %v2836, %v2837
    %s2839 = vtos %v2838
    %v2840 = vstv %s2839
    %v2841 = vmul.f32 %v2821, %v2821
    %v2842 = vsel %vm619, %v2841, 0.0
    %2843 = vadd.xlane.f32.xlu0 %v2842
    %v2844 = vpop.xlane.xlu0 %2843
    %v2845 = vrot.slane %v2844, 4
    %v2846 = vadd.f32 %v2844, %v2845
    %v2847 = vrot.slane %v2846, 2
    %v2848 = vadd.f32 %v2846, %v2847
    %v2849 = vrot.slane %v2848, 1
    %v2850 = vadd.f32 %v2848, %v2849
    %s2851 = vtos %v2850
    %v2852 = vstv %s2851
    %v2853 = vmul.f32 %v2840, 0.025
    %v2854 = vmul.f32 %v2852, 0.025
    %v2855 = vmul.f32 %v2853, %v2853
    %v2856 = vsub.f32 %v2854, %v2855
    %v2857 = vadd.f32 %v2856, 1e-05
    %v2858 = vrsqrt.pop %v2857
    %s2859 = sld [smem:[#allocation3 + $0x7]]
    %v2860 = vstv %s2859
    %v2861 = vmul.f32 %v2860, %v2829
    %s2862 = sld [smem:[#allocation5 + $0x7]]
    %v2863 = vstv %s2862
    %v2864 = vmul.f32 %v2863, %v2853
    %v2865 = vsub.f32 %v2861, %v2864
    %v2866 = vmul.f32 %v2858, %v2865
    %v2867 = vadd.f32 %v2588, %v2866
    %v2869 = vsel %vm619, %v2821, 0
    %2871 = vmatprep.subr.mxu0 0.0
    %2872 = vmatpush1.msra.mxu0 0.0
    %2873 = vmatprep.subr.mxu0 0.0
    %2874 = vmatpush1.msra.mxu0 0.0
    %2875 = vmatprep.subr.mxu0 0.0
    %2876 = vmatpush1.msra.mxu0 0.0
    %2877 = vmatprep.subr.mxu0 0.0
    %2878 = vmatpush1.msra.mxu0 0.0
    %2879 = vmatprep.subr.mxu0 0.0
    %2880 = vmatpush1.msra.mxu0 0.0
    %2881 = vmatprep.subr.mxu0 0.0
    %2882 = vmatpush1.msra.mxu0 0.0
    %2883 = vmatprep.subr.mxu0 0.0
    %2884 = vmatpush1.msra.mxu0 0.0
    %2885 = vmatprep.subr.mxu0 0.0
    %2886 = vmatpush1.msra.mxu0 0.0
    %2887 = vmatprep.subr.mxu0 0.0
    %2888 = vmatpush1.msra.mxu0 0.0
    %2889 = vmatprep.subr.mxu0 0.0
    %2890 = vmatpush1.msra.mxu0 0.0
    %2891 = vmatprep.subr.mxu0 0.0
    %2892 = vmatpush1.msra.mxu0 0.0
    %2893 = vmatprep.subr.mxu0 0.0
    %2894 = vmatpush1.msra.mxu0 0.0
    %2895 = vmatprep.subr.mxu0 0.0
    %2896 = vmatpush1.msra.mxu0 0.0
    %2897 = vmatprep.subr.mxu0 0.0
    %2898 = vmatpush1.msra.mxu0 0.0
    %2899 = vmatprep.subr.mxu0 0.0
    %2900 = vmatpush1.msra.mxu0 0.0
    %2901 = vmatprep.subr.mxu0 0.0
    %2902 = vmatpush1.msra.mxu0 %v625
    %2903 = vmatprep.subr.mxu0 0.0
    %2904 = vmatpush2.msra.mxu0 0.0
    %2905 = vmatprep.subr.mxu0 0.0
    %2906 = vmatpush2.msra.mxu0 0.0
    %2907 = vmatprep.subr.mxu0 0.0
    %2908 = vmatpush2.msra.mxu0 0.0
    %2909 = vmatprep.subr.mxu0 0.0
    %2910 = vmatpush2.msra.mxu0 0.0
    %2911 = vmatprep.subr.mxu0 0.0
    %2912 = vmatpush2.msra.mxu0 0.0
    %2913 = vmatprep.subr.mxu0 0.0
    %2914 = vmatpush2.msra.mxu0 0.0
    %2915 = vmatprep.subr.mxu0 0.0
    %2916 = vmatpush2.msra.mxu0 0.0
    %2917 = vmatprep.subr.mxu0 0.0
    %2918 = vmatpush2.msra.mxu0 0.0
    %2919 = vmatprep.subr.mxu0 0.0
    %2920 = vmatpush2.msra.mxu0 0.0
    %2921 = vmatprep.subr.mxu0 0.0
    %2922 = vmatpush2.msra.mxu0 0.0
    %2923 = vmatprep.subr.mxu0 0.0
    %2924 = vmatpush2.msra.mxu0 0.0
    %2925 = vmatprep.subr.mxu0 0.0
    %2926 = vmatpush2.msra.mxu0 0.0
    %2927 = vmatprep.subr.mxu0 0.0
    %2928 = vmatpush2.msra.mxu0 0.0
    %2929 = vmatprep.subr.mxu0 0.0
    %2930 = vmatpush2.msra.mxu0 0.0
    %2931 = vmatprep.subr.mxu0 0.0
    %2932 = vmatpush2.msra.mxu0 0.0
    %2933 = vmatprep.subr.mxu0 0.0
    %2934 = vmatpush2.msra.mxu0 0.0
    %2935 = vmatprep.mubr.f32.mxu0 0.0
    %2936 = vmatmul.mubr.f32.gmra.mxu0 %v2869
    %v2937 = vpop.f32.mrf.mxu0
    %v2938 = vadd.f32 0.0, %v2937
    %v2939 = vpop.f32.mrf.mxu0
    %2940 = vdwg.mxu0
    %2941 = vmatprep.subr.mxu0 0.0
    %2942 = vmatpush1.msra.mxu0 0.0
    %2943 = vmatprep.subr.mxu0 0.0
    %2944 = vmatpush1.msra.mxu0 0.0
    %2945 = vmatprep.subr.mxu0 0.0
    %2946 = vmatpush1.msra.mxu0 0.0
    %2947 = vmatprep.subr.mxu0 0.0
    %2948 = vmatpush1.msra.mxu0 0.0
    %2949 = vmatprep.subr.mxu0 0.0
    %2950 = vmatpush1.msra.mxu0 0.0
    %2951 = vmatprep.subr.mxu0 0.0
    %2952 = vmatpush1.msra.mxu0 0.0
    %2953 = vmatprep.subr.mxu0 0.0
    %2954 = vmatpush1.msra.mxu0 0.0
    %2955 = vmatprep.subr.mxu0 0.0
    %2956 = vmatpush1.msra.mxu0 0.0
    %2957 = vmatprep.subr.mxu0 0.0
    %2958 = vmatpush1.msra.mxu0 0.0
    %2959 = vmatprep.subr.mxu0 0.0
    %2960 = vmatpush1.msra.mxu0 0.0
    %2961 = vmatprep.subr.mxu0 0.0
    %2962 = vmatpush1.msra.mxu0 0.0
    %2963 = vmatprep.subr.mxu0 0.0
    %2964 = vmatpush1.msra.mxu0 0.0
    %2965 = vmatprep.subr.mxu0 0.0
    %2966 = vmatpush1.msra.mxu0 0.0
    %2967 = vmatprep.subr.mxu0 0.0
    %2968 = vmatpush1.msra.mxu0 0.0
    %2969 = vmatprep.subr.mxu0 0.0
    %2970 = vmatpush1.msra.mxu0 0.0
    %2971 = vmatprep.subr.mxu0 0.0
    %2972 = vmatpush1.msra.mxu0 %v698
    %2973 = vmatprep.subr.mxu0 0.0
    %2974 = vmatpush2.msra.mxu0 0.0
    %2975 = vmatprep.subr.mxu0 0.0
    %2976 = vmatpush2.msra.mxu0 0.0
    %2977 = vmatprep.subr.mxu0 0.0
    %2978 = vmatpush2.msra.mxu0 0.0
    %2979 = vmatprep.subr.mxu0 0.0
    %2980 = vmatpush2.msra.mxu0 0.0
    %2981 = vmatprep.subr.mxu0 0.0
    %2982 = vmatpush2.msra.mxu0 0.0
    %2983 = vmatprep.subr.mxu0 0.0
    %2984 = vmatpush2.msra.mxu0 0.0
    %2985 = vmatprep.subr.mxu0 0.0
    %2986 = vmatpush2.msra.mxu0 0.0
    %2987 = vmatprep.subr.mxu0 0.0
    %2988 = vmatpush2.msra.mxu0 0.0
    %2989 = vmatprep.subr.mxu0 0.0
    %2990 = vmatpush2.msra.mxu0 0.0
    %2991 = vmatprep.subr.mxu0 0.0
    %2992 = vmatpush2.msra.mxu0 0.0
    %2993 = vmatprep.subr.mxu0 0.0
    %2994 = vmatpush2.msra.mxu0 0.0
    %2995 = vmatprep.subr.mxu0 0.0
    %2996 = vmatpush2.msra.mxu0 0.0
    %2997 = vmatprep.subr.mxu0 0.0
    %2998 = vmatpush2.msra.mxu0 0.0
    %2999 = vmatprep.subr.mxu0 0.0
    %3000 = vmatpush2.msra.mxu0 0.0
    %3001 = vmatprep.subr.mxu0 0.0
    %3002 = vmatpush2.msra.mxu0 0.0
    %3003 = vmatprep.subr.mxu0 0.0
    %3004 = vmatpush2.msra.mxu0 0.0
    %3005 = vmatprep.mubr.f32.mxu0 0.0
    %3006 = vmatmul.mubr.f32.gmra.mxu0 %v2869
    %v3007 = vpop.f32.mrf.mxu0
    %v3008 = vadd.f32 0.0, %v3007
    %v3009 = vpop.f32.mrf.mxu0
    %3010 = vdwg.mxu0
    %v3011 = vadd.f32 %v261, %v2938
    %v3012 = vxor.u32 %v3011, 2147483648
    %v3013 = vmul.f32 %v3012, 1.442695
    %v3014 = vpow.pop %v3013
    %v3015 = vadd.f32 %v3014, 1.0
    %v3016 = vrcp.pop %v3015
    %v3017 = vmul.f32 1.0, %v3016
    %v3018 = vadd.f32 %v418, %v3008
    %v3019 = vxor.u32 %v3018, 2147483648
    %v3020 = vmul.f32 %v3019, 1.442695
    %v3021 = vpow.pop %v3020
    %v3022 = vadd.f32 %v3021, 1.0
    %v3023 = vrcp.pop %v3022
    %v3024 = vmul.f32 1.0, %v3023
    %3025 = vmatprep.subr.mxu0 0.0
    %3026 = vmatpush1.msra.mxu0 0.0
    %3027 = vmatprep.subr.mxu0 0.0
    %3028 = vmatpush1.msra.mxu0 0.0
    %3029 = vmatprep.subr.mxu0 0.0
    %3030 = vmatpush1.msra.mxu0 0.0
    %3031 = vmatprep.subr.mxu0 0.0
    %3032 = vmatpush1.msra.mxu0 0.0
    %3033 = vmatprep.subr.mxu0 0.0
    %3034 = vmatpush1.msra.mxu0 0.0
    %3035 = vmatprep.subr.mxu0 0.0
    %3036 = vmatpush1.msra.mxu0 0.0
    %3037 = vmatprep.subr.mxu0 0.0
    %3038 = vmatpush1.msra.mxu0 0.0
    %3039 = vmatprep.subr.mxu0 0.0
    %3040 = vmatpush1.msra.mxu0 0.0
    %3041 = vmatprep.subr.mxu0 0.0
    %3042 = vmatpush1.msra.mxu0 0.0
    %3043 = vmatprep.subr.mxu0 0.0
    %3044 = vmatpush1.msra.mxu0 0.0
    %3045 = vmatprep.subr.mxu0 0.0
    %3046 = vmatpush1.msra.mxu0 0.0
    %3047 = vmatprep.subr.mxu0 0.0
    %3048 = vmatpush1.msra.mxu0 0.0
    %3049 = vmatprep.subr.mxu0 0.0
    %3050 = vmatpush1.msra.mxu0 0.0
    %3051 = vmatprep.subr.mxu0 0.0
    %3052 = vmatpush1.msra.mxu0 0.0
    %3053 = vmatprep.subr.mxu0 0.0
    %3054 = vmatpush1.msra.mxu0 0.0
    %3055 = vmatprep.subr.mxu0 0.0
    %3056 = vmatpush1.msra.mxu0 %v791
    %3057 = vmatprep.subr.mxu0 0.0
    %3058 = vmatpush2.msra.mxu0 0.0
    %3059 = vmatprep.subr.mxu0 0.0
    %3060 = vmatpush2.msra.mxu0 0.0
    %3061 = vmatprep.subr.mxu0 0.0
    %3062 = vmatpush2.msra.mxu0 0.0
    %3063 = vmatprep.subr.mxu0 0.0
    %3064 = vmatpush2.msra.mxu0 0.0
    %3065 = vmatprep.subr.mxu0 0.0
    %3066 = vmatpush2.msra.mxu0 0.0
    %3067 = vmatprep.subr.mxu0 0.0
    %3068 = vmatpush2.msra.mxu0 0.0
    %3069 = vmatprep.subr.mxu0 0.0
    %3070 = vmatpush2.msra.mxu0 0.0
    %3071 = vmatprep.subr.mxu0 0.0
    %3072 = vmatpush2.msra.mxu0 0.0
    %3073 = vmatprep.subr.mxu0 0.0
    %3074 = vmatpush2.msra.mxu0 0.0
    %3075 = vmatprep.subr.mxu0 0.0
    %3076 = vmatpush2.msra.mxu0 0.0
    %3077 = vmatprep.subr.mxu0 0.0
    %3078 = vmatpush2.msra.mxu0 0.0
    %3079 = vmatprep.subr.mxu0 0.0
    %3080 = vmatpush2.msra.mxu0 0.0
    %3081 = vmatprep.subr.mxu0 0.0
    %3082 = vmatpush2.msra.mxu0 0.0
    %3083 = vmatprep.subr.mxu0 0.0
    %3084 = vmatpush2.msra.mxu0 0.0
    %3085 = vmatprep.subr.mxu0 0.0
    %3086 = vmatpush2.msra.mxu0 0.0
    %3087 = vmatprep.subr.mxu0 0.0
    %3088 = vmatpush2.msra.mxu0 0.0
    %3089 = vmatprep.mubr.f32.mxu0 0.0
    %3090 = vmatmul.mubr.f32.gmra.mxu0 %v2869
    %v3091 = vpop.f32.mrf.mxu0
    %v3092 = vadd.f32 %v788, %v3091
    %v3093 = vpop.f32.mrf.mxu0
    %3094 = vdwg.mxu0
    %v3095 = vmul.f32 %v3017, %v3092
    %v3096 = vadd.f32 %v575, %v3095
    %v3097 = vtanh.pop %v3096
    %v3098 = vsub.f32 %v2821, %v3097
    %v3099 = vmul.f32 %v3024, %v3098
    %v3100 = vadd.f32 %v3097, %v3099
    %v3101 = vlaneseq
    %v3102 = vshrl.u32 %v3101, 7
    %v3103 = vsub.s32 0, %v3102
    %v3104 = vrot.slane %v618, %v3103
    %v3105 = vmul.f32 %v3100, %v3104
    %v3106 = vsel %vm619, %v3105, 0.0
    %3107 = vadd.xlane.f32.xlu0 %v3106
    %v3108 = vpop.xlane.xlu0 %3107
    %v3109 = vsel %vm619, %v3100, 0.0
    %3110 = vadd.xlane.f32.xlu0 %v3109
    %v3111 = vpop.xlane.xlu0 %3110
    %v3112 = vrot.slane %v3111, 4
    %v3113 = vadd.f32 %v3111, %v3112
    %v3114 = vrot.slane %v3113, 2
    %v3115 = vadd.f32 %v3113, %v3114
    %v3116 = vrot.slane %v3115, 1
    %v3117 = vadd.f32 %v3115, %v3116
    %s3118 = vtos %v3117
    %v3119 = vstv %s3118
    %v3120 = vmul.f32 %v3100, %v3100
    %v3121 = vsel %vm619, %v3120, 0.0
    %3122 = vadd.xlane.f32.xlu0 %v3121
    %v3123 = vpop.xlane.xlu0 %3122
    %v3124 = vrot.slane %v3123, 4
    %v3125 = vadd.f32 %v3123, %v3124
    %v3126 = vrot.slane %v3125, 2
    %v3127 = vadd.f32 %v3125, %v3126
    %v3128 = vrot.slane %v3127, 1
    %v3129 = vadd.f32 %v3127, %v3128
    %s3130 = vtos %v3129
    %v3131 = vstv %s3130
    %v3132 = vmul.f32 %v3119, 0.025
    %v3133 = vmul.f32 %v3131, 0.025
    %v3134 = vmul.f32 %v3132, %v3132
    %v3135 = vsub.f32 %v3133, %v3134
    %v3136 = vadd.f32 %v3135, 1e-05
    %v3137 = vrsqrt.pop %v3136
    %s3138 = sld [smem:[#allocation3 + $0x8]]
    %v3139 = vstv %s3138
    %v3140 = vmul.f32 %v3139, %v3108
    %s3141 = sld [smem:[#allocation5 + $0x8]]
    %v3142 = vstv %s3141
    %v3143 = vmul.f32 %v3142, %v3132
    %v3144 = vsub.f32 %v3140, %v3143
    %v3145 = vmul.f32 %v3137, %v3144
    %v3146 = vadd.f32 %v2867, %v3145
    %v3148 = vsel %vm619, %v3100, 0
    %3150 = vmatprep.subr.mxu0 0.0
    %3151 = vmatpush1.msra.mxu0 0.0
    %3152 = vmatprep.subr.mxu0 0.0
    %3153 = vmatpush1.msra.mxu0 0.0
    %3154 = vmatprep.subr.mxu0 0.0
    %3155 = vmatpush1.msra.mxu0 0.0
    %3156 = vmatprep.subr.mxu0 0.0
    %3157 = vmatpush1.msra.mxu0 0.0
    %3158 = vmatprep.subr.mxu0 0.0
    %3159 = vmatpush1.msra.mxu0 0.0
    %3160 = vmatprep.subr.mxu0 0.0
    %3161 = vmatpush1.msra.mxu0 0.0
    %3162 = vmatprep.subr.mxu0 0.0
    %3163 = vmatpush1.msra.mxu0 0.0
    %3164 = vmatprep.subr.mxu0 0.0
    %3165 = vmatpush1.msra.mxu0 0.0
    %3166 = vmatprep.subr.mxu0 0.0
    %3167 = vmatpush1.msra.mxu0 0.0
    %3168 = vmatprep.subr.mxu0 0.0
    %3169 = vmatpush1.msra.mxu0 0.0
    %3170 = vmatprep.subr.mxu0 0.0
    %3171 = vmatpush1.msra.mxu0 0.0
    %3172 = vmatprep.subr.mxu0 0.0
    %3173 = vmatpush1.msra.mxu0 0.0
    %3174 = vmatprep.subr.mxu0 0.0
    %3175 = vmatpush1.msra.mxu0 0.0
    %3176 = vmatprep.subr.mxu0 0.0
    %3177 = vmatpush1.msra.mxu0 0.0
    %3178 = vmatprep.subr.mxu0 0.0
    %3179 = vmatpush1.msra.mxu0 0.0
    %3180 = vmatprep.subr.mxu0 0.0
    %3181 = vmatpush1.msra.mxu0 %v625
    %3182 = vmatprep.subr.mxu0 0.0
    %3183 = vmatpush2.msra.mxu0 0.0
    %3184 = vmatprep.subr.mxu0 0.0
    %3185 = vmatpush2.msra.mxu0 0.0
    %3186 = vmatprep.subr.mxu0 0.0
    %3187 = vmatpush2.msra.mxu0 0.0
    %3188 = vmatprep.subr.mxu0 0.0
    %3189 = vmatpush2.msra.mxu0 0.0
    %3190 = vmatprep.subr.mxu0 0.0
    %3191 = vmatpush2.msra.mxu0 0.0
    %3192 = vmatprep.subr.mxu0 0.0
    %3193 = vmatpush2.msra.mxu0 0.0
    %3194 = vmatprep.subr.mxu0 0.0
    %3195 = vmatpush2.msra.mxu0 0.0
    %3196 = vmatprep.subr.mxu0 0.0
    %3197 = vmatpush2.msra.mxu0 0.0
    %3198 = vmatprep.subr.mxu0 0.0
    %3199 = vmatpush2.msra.mxu0 0.0
    %3200 = vmatprep.subr.mxu0 0.0
    %3201 = vmatpush2.msra.mxu0 0.0
    %3202 = vmatprep.subr.mxu0 0.0
    %3203 = vmatpush2.msra.mxu0 0.0
    %3204 = vmatprep.subr.mxu0 0.0
    %3205 = vmatpush2.msra.mxu0 0.0
    %3206 = vmatprep.subr.mxu0 0.0
    %3207 = vmatpush2.msra.mxu0 0.0
    %3208 = vmatprep.subr.mxu0 0.0
    %3209 = vmatpush2.msra.mxu0 0.0
    %3210 = vmatprep.subr.mxu0 0.0
    %3211 = vmatpush2.msra.mxu0 0.0
    %3212 = vmatprep.subr.mxu0 0.0
    %3213 = vmatpush2.msra.mxu0 0.0
    %3214 = vmatprep.mubr.f32.mxu0 0.0
    %3215 = vmatmul.mubr.f32.gmra.mxu0 %v3148
    %v3216 = vpop.f32.mrf.mxu0
    %v3217 = vadd.f32 0.0, %v3216
    %v3218 = vpop.f32.mrf.mxu0
    %3219 = vdwg.mxu0
    %3220 = vmatprep.subr.mxu0 0.0
    %3221 = vmatpush1.msra.mxu0 0.0
    %3222 = vmatprep.subr.mxu0 0.0
    %3223 = vmatpush1.msra.mxu0 0.0
    %3224 = vmatprep.subr.mxu0 0.0
    %3225 = vmatpush1.msra.mxu0 0.0
    %3226 = vmatprep.subr.mxu0 0.0
    %3227 = vmatpush1.msra.mxu0 0.0
    %3228 = vmatprep.subr.mxu0 0.0
    %3229 = vmatpush1.msra.mxu0 0.0
    %3230 = vmatprep.subr.mxu0 0.0
    %3231 = vmatpush1.msra.mxu0 0.0
    %3232 = vmatprep.subr.mxu0 0.0
    %3233 = vmatpush1.msra.mxu0 0.0
    %3234 = vmatprep.subr.mxu0 0.0
    %3235 = vmatpush1.msra.mxu0 0.0
    %3236 = vmatprep.subr.mxu0 0.0
    %3237 = vmatpush1.msra.mxu0 0.0
    %3238 = vmatprep.subr.mxu0 0.0
    %3239 = vmatpush1.msra.mxu0 0.0
    %3240 = vmatprep.subr.mxu0 0.0
    %3241 = vmatpush1.msra.mxu0 0.0
    %3242 = vmatprep.subr.mxu0 0.0
    %3243 = vmatpush1.msra.mxu0 0.0
    %3244 = vmatprep.subr.mxu0 0.0
    %3245 = vmatpush1.msra.mxu0 0.0
    %3246 = vmatprep.subr.mxu0 0.0
    %3247 = vmatpush1.msra.mxu0 0.0
    %3248 = vmatprep.subr.mxu0 0.0
    %3249 = vmatpush1.msra.mxu0 0.0
    %3250 = vmatprep.subr.mxu0 0.0
    %3251 = vmatpush1.msra.mxu0 %v698
    %3252 = vmatprep.subr.mxu0 0.0
    %3253 = vmatpush2.msra.mxu0 0.0
    %3254 = vmatprep.subr.mxu0 0.0
    %3255 = vmatpush2.msra.mxu0 0.0
    %3256 = vmatprep.subr.mxu0 0.0
    %3257 = vmatpush2.msra.mxu0 0.0
    %3258 = vmatprep.subr.mxu0 0.0
    %3259 = vmatpush2.msra.mxu0 0.0
    %3260 = vmatprep.subr.mxu0 0.0
    %3261 = vmatpush2.msra.mxu0 0.0
    %3262 = vmatprep.subr.mxu0 0.0
    %3263 = vmatpush2.msra.mxu0 0.0
    %3264 = vmatprep.subr.mxu0 0.0
    %3265 = vmatpush2.msra.mxu0 0.0
    %3266 = vmatprep.subr.mxu0 0.0
    %3267 = vmatpush2.msra.mxu0 0.0
    %3268 = vmatprep.subr.mxu0 0.0
    %3269 = vmatpush2.msra.mxu0 0.0
    %3270 = vmatprep.subr.mxu0 0.0
    %3271 = vmatpush2.msra.mxu0 0.0
    %3272 = vmatprep.subr.mxu0 0.0
    %3273 = vmatpush2.msra.mxu0 0.0
    %3274 = vmatprep.subr.mxu0 0.0
    %3275 = vmatpush2.msra.mxu0 0.0
    %3276 = vmatprep.subr.mxu0 0.0
    %3277 = vmatpush2.msra.mxu0 0.0
    %3278 = vmatprep.subr.mxu0 0.0
    %3279 = vmatpush2.msra.mxu0 0.0
    %3280 = vmatprep.subr.mxu0 0.0
    %3281 = vmatpush2.msra.mxu0 0.0
    %3282 = vmatprep.subr.mxu0 0.0
    %3283 = vmatpush2.msra.mxu0 0.0
    %3284 = vmatprep.mubr.f32.mxu0 0.0
    %3285 = vmatmul.mubr.f32.gmra.mxu0 %v3148
    %v3286 = vpop.f32.mrf.mxu0
    %v3287 = vadd.f32 0.0, %v3286
    %v3288 = vpop.f32.mrf.mxu0
    %3289 = vdwg.mxu0
    %v3290 = vadd.f32 %v266, %v3217
    %v3291 = vxor.u32 %v3290, 2147483648
    %v3292 = vmul.f32 %v3291, 1.442695
    %v3293 = vpow.pop %v3292
    %v3294 = vadd.f32 %v3293, 1.0
    %v3295 = vrcp.pop %v3294
    %v3296 = vmul.f32 1.0, %v3295
    %v3297 = vadd.f32 %v423, %v3287
    %v3298 = vxor.u32 %v3297, 2147483648
    %v3299 = vmul.f32 %v3298, 1.442695
    %v3300 = vpow.pop %v3299
    %v3301 = vadd.f32 %v3300, 1.0
    %v3302 = vrcp.pop %v3301
    %v3303 = vmul.f32 1.0, %v3302
    %3304 = vmatprep.subr.mxu0 0.0
    %3305 = vmatpush1.msra.mxu0 0.0
    %3306 = vmatprep.subr.mxu0 0.0
    %3307 = vmatpush1.msra.mxu0 0.0
    %3308 = vmatprep.subr.mxu0 0.0
    %3309 = vmatpush1.msra.mxu0 0.0
    %3310 = vmatprep.subr.mxu0 0.0
    %3311 = vmatpush1.msra.mxu0 0.0
    %3312 = vmatprep.subr.mxu0 0.0
    %3313 = vmatpush1.msra.mxu0 0.0
    %3314 = vmatprep.subr.mxu0 0.0
    %3315 = vmatpush1.msra.mxu0 0.0
    %3316 = vmatprep.subr.mxu0 0.0
    %3317 = vmatpush1.msra.mxu0 0.0
    %3318 = vmatprep.subr.mxu0 0.0
    %3319 = vmatpush1.msra.mxu0 0.0
    %3320 = vmatprep.subr.mxu0 0.0
    %3321 = vmatpush1.msra.mxu0 0.0
    %3322 = vmatprep.subr.mxu0 0.0
    %3323 = vmatpush1.msra.mxu0 0.0
    %3324 = vmatprep.subr.mxu0 0.0
    %3325 = vmatpush1.msra.mxu0 0.0
    %3326 = vmatprep.subr.mxu0 0.0
    %3327 = vmatpush1.msra.mxu0 0.0
    %3328 = vmatprep.subr.mxu0 0.0
    %3329 = vmatpush1.msra.mxu0 0.0
    %3330 = vmatprep.subr.mxu0 0.0
    %3331 = vmatpush1.msra.mxu0 0.0
    %3332 = vmatprep.subr.mxu0 0.0
    %3333 = vmatpush1.msra.mxu0 0.0
    %3334 = vmatprep.subr.mxu0 0.0
    %3335 = vmatpush1.msra.mxu0 %v791
    %3336 = vmatprep.subr.mxu0 0.0
    %3337 = vmatpush2.msra.mxu0 0.0
    %3338 = vmatprep.subr.mxu0 0.0
    %3339 = vmatpush2.msra.mxu0 0.0
    %3340 = vmatprep.subr.mxu0 0.0
    %3341 = vmatpush2.msra.mxu0 0.0
    %3342 = vmatprep.subr.mxu0 0.0
    %3343 = vmatpush2.msra.mxu0 0.0
    %3344 = vmatprep.subr.mxu0 0.0
    %3345 = vmatpush2.msra.mxu0 0.0
    %3346 = vmatprep.subr.mxu0 0.0
    %3347 = vmatpush2.msra.mxu0 0.0
    %3348 = vmatprep.subr.mxu0 0.0
    %3349 = vmatpush2.msra.mxu0 0.0
    %3350 = vmatprep.subr.mxu0 0.0
    %3351 = vmatpush2.msra.mxu0 0.0
    %3352 = vmatprep.subr.mxu0 0.0
    %3353 = vmatpush2.msra.mxu0 0.0
    %3354 = vmatprep.subr.mxu0 0.0
    %3355 = vmatpush2.msra.mxu0 0.0
    %3356 = vmatprep.subr.mxu0 0.0
    %3357 = vmatpush2.msra.mxu0 0.0
    %3358 = vmatprep.subr.mxu0 0.0
    %3359 = vmatpush2.msra.mxu0 0.0
    %3360 = vmatprep.subr.mxu0 0.0
    %3361 = vmatpush2.msra.mxu0 0.0
    %3362 = vmatprep.subr.mxu0 0.0
    %3363 = vmatpush2.msra.mxu0 0.0
    %3364 = vmatprep.subr.mxu0 0.0
    %3365 = vmatpush2.msra.mxu0 0.0
    %3366 = vmatprep.subr.mxu0 0.0
    %3367 = vmatpush2.msra.mxu0 0.0
    %3368 = vmatprep.mubr.f32.mxu0 0.0
    %3369 = vmatmul.mubr.f32.gmra.mxu0 %v3148
    %v3370 = vpop.f32.mrf.mxu0
    %v3371 = vadd.f32 %v788, %v3370
    %v3372 = vpop.f32.mrf.mxu0
    %3373 = vdwg.mxu0
    %v3374 = vmul.f32 %v3296, %v3371
    %v3375 = vadd.f32 %v580, %v3374
    %v3376 = vtanh.pop %v3375
    %v3377 = vsub.f32 %v3100, %v3376
    %v3378 = vmul.f32 %v3303, %v3377
    %v3379 = vadd.f32 %v3376, %v3378
    %v3380 = vlaneseq
    %v3381 = vshrl.u32 %v3380, 7
    %v3382 = vsub.s32 1, %v3381
    %v3383 = vrot.slane %v618, %v3382
    %v3384 = vmul.f32 %v3379, %v3383
    %v3385 = vsel %vm619, %v3384, 0.0
    %3386 = vadd.xlane.f32.xlu0 %v3385
    %v3387 = vpop.xlane.xlu0 %3386
    %v3388 = vsel %vm619, %v3379, 0.0
    %3389 = vadd.xlane.f32.xlu0 %v3388
    %v3390 = vpop.xlane.xlu0 %3389
    %v3391 = vrot.slane %v3390, 4
    %v3392 = vadd.f32 %v3390, %v3391
    %v3393 = vrot.slane %v3392, 2
    %v3394 = vadd.f32 %v3392, %v3393
    %v3395 = vrot.slane %v3394, 1
    %v3396 = vadd.f32 %v3394, %v3395
    %s3397 = vtos %v3396
    %v3398 = vstv %s3397
    %v3399 = vmul.f32 %v3379, %v3379
    %v3400 = vsel %vm619, %v3399, 0.0
    %3401 = vadd.xlane.f32.xlu0 %v3400
    %v3402 = vpop.xlane.xlu0 %3401
    %v3403 = vrot.slane %v3402, 4
    %v3404 = vadd.f32 %v3402, %v3403
    %v3405 = vrot.slane %v3404, 2
    %v3406 = vadd.f32 %v3404, %v3405
    %v3407 = vrot.slane %v3406, 1
    %v3408 = vadd.f32 %v3406, %v3407
    %s3409 = vtos %v3408
    %v3410 = vstv %s3409
    %v3411 = vmul.f32 %v3398, 0.025
    %v3412 = vmul.f32 %v3410, 0.025
    %v3413 = vmul.f32 %v3411, %v3411
    %v3414 = vsub.f32 %v3412, %v3413
    %v3415 = vadd.f32 %v3414, 1e-05
    %v3416 = vrsqrt.pop %v3415
    %s3417 = sld [smem:[#allocation3 + $0x9]]
    %v3418 = vstv %s3417
    %v3419 = vmul.f32 %v3418, %v3387
    %s3420 = sld [smem:[#allocation5 + $0x9]]
    %v3421 = vstv %s3420
    %v3422 = vmul.f32 %v3421, %v3411
    %v3423 = vsub.f32 %v3419, %v3422
    %v3424 = vmul.f32 %v3416, %v3423
    %v3425 = vadd.f32 %v3146, %v3424
    %v3427 = vsel %vm619, %v3379, 0
    %3429 = vmatprep.subr.mxu0 0.0
    %3430 = vmatpush1.msra.mxu0 0.0
    %3431 = vmatprep.subr.mxu0 0.0
    %3432 = vmatpush1.msra.mxu0 0.0
    %3433 = vmatprep.subr.mxu0 0.0
    %3434 = vmatpush1.msra.mxu0 0.0
    %3435 = vmatprep.subr.mxu0 0.0
    %3436 = vmatpush1.msra.mxu0 0.0
    %3437 = vmatprep.subr.mxu0 0.0
    %3438 = vmatpush1.msra.mxu0 0.0
    %3439 = vmatprep.subr.mxu0 0.0
    %3440 = vmatpush1.msra.mxu0 0.0
    %3441 = vmatprep.subr.mxu0 0.0
    %3442 = vmatpush1.msra.mxu0 0.0
    %3443 = vmatprep.subr.mxu0 0.0
    %3444 = vmatpush1.msra.mxu0 0.0
    %3445 = vmatprep.subr.mxu0 0.0
    %3446 = vmatpush1.msra.mxu0 0.0
    %3447 = vmatprep.subr.mxu0 0.0
    %3448 = vmatpush1.msra.mxu0 0.0
    %3449 = vmatprep.subr.mxu0 0.0
    %3450 = vmatpush1.msra.mxu0 0.0
    %3451 = vmatprep.subr.mxu0 0.0
    %3452 = vmatpush1.msra.mxu0 0.0
    %3453 = vmatprep.subr.mxu0 0.0
    %3454 = vmatpush1.msra.mxu0 0.0
    %3455 = vmatprep.subr.mxu0 0.0
    %3456 = vmatpush1.msra.mxu0 0.0
    %3457 = vmatprep.subr.mxu0 0.0
    %3458 = vmatpush1.msra.mxu0 0.0
    %3459 = vmatprep.subr.mxu0 0.0
    %3460 = vmatpush1.msra.mxu0 %v625
    %3461 = vmatprep.subr.mxu0 0.0
    %3462 = vmatpush2.msra.mxu0 0.0
    %3463 = vmatprep.subr.mxu0 0.0
    %3464 = vmatpush2.msra.mxu0 0.0
    %3465 = vmatprep.subr.mxu0 0.0
    %3466 = vmatpush2.msra.mxu0 0.0
    %3467 = vmatprep.subr.mxu0 0.0
    %3468 = vmatpush2.msra.mxu0 0.0
    %3469 = vmatprep.subr.mxu0 0.0
    %3470 = vmatpush2.msra.mxu0 0.0
    %3471 = vmatprep.subr.mxu0 0.0
    %3472 = vmatpush2.msra.mxu0 0.0
    %3473 = vmatprep.subr.mxu0 0.0
    %3474 = vmatpush2.msra.mxu0 0.0
    %3475 = vmatprep.subr.mxu0 0.0
    %3476 = vmatpush2.msra.mxu0 0.0
    %3477 = vmatprep.subr.mxu0 0.0
    %3478 = vmatpush2.msra.mxu0 0.0
    %3479 = vmatprep.subr.mxu0 0.0
    %3480 = vmatpush2.msra.mxu0 0.0
    %3481 = vmatprep.subr.mxu0 0.0
    %3482 = vmatpush2.msra.mxu0 0.0
    %3483 = vmatprep.subr.mxu0 0.0
    %3484 = vmatpush2.msra.mxu0 0.0
    %3485 = vmatprep.subr.mxu0 0.0
    %3486 = vmatpush2.msra.mxu0 0.0
    %3487 = vmatprep.subr.mxu0 0.0
    %3488 = vmatpush2.msra.mxu0 0.0
    %3489 = vmatprep.subr.mxu0 0.0
    %3490 = vmatpush2.msra.mxu0 0.0
    %3491 = vmatprep.subr.mxu0 0.0
    %3492 = vmatpush2.msra.mxu0 0.0
    %3493 = vmatprep.mubr.f32.mxu0 0.0
    %3494 = vmatmul.mubr.f32.gmra.mxu0 %v3427
    %v3495 = vpop.f32.mrf.mxu0
    %v3496 = vadd.f32 0.0, %v3495
    %v3497 = vpop.f32.mrf.mxu0
    %3498 = vdwg.mxu0
    %3499 = vmatprep.subr.mxu0 0.0
    %3500 = vmatpush1.msra.mxu0 0.0
    %3501 = vmatprep.subr.mxu0 0.0
    %3502 = vmatpush1.msra.mxu0 0.0
    %3503 = vmatprep.subr.mxu0 0.0
    %3504 = vmatpush1.msra.mxu0 0.0
    %3505 = vmatprep.subr.mxu0 0.0
    %3506 = vmatpush1.msra.mxu0 0.0
    %3507 = vmatprep.subr.mxu0 0.0
    %3508 = vmatpush1.msra.mxu0 0.0
    %3509 = vmatprep.subr.mxu0 0.0
    %3510 = vmatpush1.msra.mxu0 0.0
    %3511 = vmatprep.subr.mxu0 0.0
    %3512 = vmatpush1.msra.mxu0 0.0
    %3513 = vmatprep.subr.mxu0 0.0
    %3514 = vmatpush1.msra.mxu0 0.0
    %3515 = vmatprep.subr.mxu0 0.0
    %3516 = vmatpush1.msra.mxu0 0.0
    %3517 = vmatprep.subr.mxu0 0.0
    %3518 = vmatpush1.msra.mxu0 0.0
    %3519 = vmatprep.subr.mxu0 0.0
    %3520 = vmatpush1.msra.mxu0 0.0
    %3521 = vmatprep.subr.mxu0 0.0
    %3522 = vmatpush1.msra.mxu0 0.0
    %3523 = vmatprep.subr.mxu0 0.0
    %3524 = vmatpush1.msra.mxu0 0.0
    %3525 = vmatprep.subr.mxu0 0.0
    %3526 = vmatpush1.msra.mxu0 0.0
    %3527 = vmatprep.subr.mxu0 0.0
    %3528 = vmatpush1.msra.mxu0 0.0
    %3529 = vmatprep.subr.mxu0 0.0
    %3530 = vmatpush1.msra.mxu0 %v698
    %3531 = vmatprep.subr.mxu0 0.0
    %3532 = vmatpush2.msra.mxu0 0.0
    %3533 = vmatprep.subr.mxu0 0.0
    %3534 = vmatpush2.msra.mxu0 0.0
    %3535 = vmatprep.subr.mxu0 0.0
    %3536 = vmatpush2.msra.mxu0 0.0
    %3537 = vmatprep.subr.mxu0 0.0
    %3538 = vmatpush2.msra.mxu0 0.0
    %3539 = vmatprep.subr.mxu0 0.0
    %3540 = vmatpush2.msra.mxu0 0.0
    %3541 = vmatprep.subr.mxu0 0.0
    %3542 = vmatpush2.msra.mxu0 0.0
    %3543 = vmatprep.subr.mxu0 0.0
    %3544 = vmatpush2.msra.mxu0 0.0
    %3545 = vmatprep.subr.mxu0 0.0
    %3546 = vmatpush2.msra.mxu0 0.0
    %3547 = vmatprep.subr.mxu0 0.0
    %3548 = vmatpush2.msra.mxu0 0.0
    %3549 = vmatprep.subr.mxu0 0.0
    %3550 = vmatpush2.msra.mxu0 0.0
    %3551 = vmatprep.subr.mxu0 0.0
    %3552 = vmatpush2.msra.mxu0 0.0
    %3553 = vmatprep.subr.mxu0 0.0
    %3554 = vmatpush2.msra.mxu0 0.0
    %3555 = vmatprep.subr.mxu0 0.0
    %3556 = vmatpush2.msra.mxu0 0.0
    %3557 = vmatprep.subr.mxu0 0.0
    %3558 = vmatpush2.msra.mxu0 0.0
    %3559 = vmatprep.subr.mxu0 0.0
    %3560 = vmatpush2.msra.mxu0 0.0
    %3561 = vmatprep.subr.mxu0 0.0
    %3562 = vmatpush2.msra.mxu0 0.0
    %3563 = vmatprep.mubr.f32.mxu0 0.0
    %3564 = vmatmul.mubr.f32.gmra.mxu0 %v3427
    %v3565 = vpop.f32.mrf.mxu0
    %v3566 = vadd.f32 0.0, %v3565
    %v3567 = vpop.f32.mrf.mxu0
    %3568 = vdwg.mxu0
    %v3569 = vadd.f32 %v271, %v3496
    %v3570 = vxor.u32 %v3569, 2147483648
    %v3571 = vmul.f32 %v3570, 1.442695
    %v3572 = vpow.pop %v3571
    %v3573 = vadd.f32 %v3572, 1.0
    %v3574 = vrcp.pop %v3573
    %v3575 = vmul.f32 1.0, %v3574
    %v3576 = vadd.f32 %v428, %v3566
    %v3577 = vxor.u32 %v3576, 2147483648
    %v3578 = vmul.f32 %v3577, 1.442695
    %v3579 = vpow.pop %v3578
    %v3580 = vadd.f32 %v3579, 1.0
    %v3581 = vrcp.pop %v3580
    %v3582 = vmul.f32 1.0, %v3581
    %3583 = vmatprep.subr.mxu0 0.0
    %3584 = vmatpush1.msra.mxu0 0.0
    %3585 = vmatprep.subr.mxu0 0.0
    %3586 = vmatpush1.msra.mxu0 0.0
    %3587 = vmatprep.subr.mxu0 0.0
    %3588 = vmatpush1.msra.mxu0 0.0
    %3589 = vmatprep.subr.mxu0 0.0
    %3590 = vmatpush1.msra.mxu0 0.0
    %3591 = vmatprep.subr.mxu0 0.0
    %3592 = vmatpush1.msra.mxu0 0.0
    %3593 = vmatprep.subr.mxu0 0.0
    %3594 = vmatpush1.msra.mxu0 0.0
    %3595 = vmatprep.subr.mxu0 0.0
    %3596 = vmatpush1.msra.mxu0 0.0
    %3597 = vmatprep.subr.mxu0 0.0
    %3598 = vmatpush1.msra.mxu0 0.0
    %3599 = vmatprep.subr.mxu0 0.0
    %3600 = vmatpush1.msra.mxu0 0.0
    %3601 = vmatprep.subr.mxu0 0.0
    %3602 = vmatpush1.msra.mxu0 0.0
    %3603 = vmatprep.subr.mxu0 0.0
    %3604 = vmatpush1.msra.mxu0 0.0
    %3605 = vmatprep.subr.mxu0 0.0
    %3606 = vmatpush1.msra.mxu0 0.0
    %3607 = vmatprep.subr.mxu0 0.0
    %3608 = vmatpush1.msra.mxu0 0.0
    %3609 = vmatprep.subr.mxu0 0.0
    %3610 = vmatpush1.msra.mxu0 0.0
    %3611 = vmatprep.subr.mxu0 0.0
    %3612 = vmatpush1.msra.mxu0 0.0
    %3613 = vmatprep.subr.mxu0 0.0
    %3614 = vmatpush1.msra.mxu0 %v791
    %3615 = vmatprep.subr.mxu0 0.0
    %3616 = vmatpush2.msra.mxu0 0.0
    %3617 = vmatprep.subr.mxu0 0.0
    %3618 = vmatpush2.msra.mxu0 0.0
    %3619 = vmatprep.subr.mxu0 0.0
    %3620 = vmatpush2.msra.mxu0 0.0
    %3621 = vmatprep.subr.mxu0 0.0
    %3622 = vmatpush2.msra.mxu0 0.0
    %3623 = vmatprep.subr.mxu0 0.0
    %3624 = vmatpush2.msra.mxu0 0.0
    %3625 = vmatprep.subr.mxu0 0.0
    %3626 = vmatpush2.msra.mxu0 0.0
    %3627 = vmatprep.subr.mxu0 0.0
    %3628 = vmatpush2.msra.mxu0 0.0
    %3629 = vmatprep.subr.mxu0 0.0
    %3630 = vmatpush2.msra.mxu0 0.0
    %3631 = vmatprep.subr.mxu0 0.0
    %3632 = vmatpush2.msra.mxu0 0.0
    %3633 = vmatprep.subr.mxu0 0.0
    %3634 = vmatpush2.msra.mxu0 0.0
    %3635 = vmatprep.subr.mxu0 0.0
    %3636 = vmatpush2.msra.mxu0 0.0
    %3637 = vmatprep.subr.mxu0 0.0
    %3638 = vmatpush2.msra.mxu0 0.0
    %3639 = vmatprep.subr.mxu0 0.0
    %3640 = vmatpush2.msra.mxu0 0.0
    %3641 = vmatprep.subr.mxu0 0.0
    %3642 = vmatpush2.msra.mxu0 0.0
    %3643 = vmatprep.subr.mxu0 0.0
    %3644 = vmatpush2.msra.mxu0 0.0
    %3645 = vmatprep.subr.mxu0 0.0
    %3646 = vmatpush2.msra.mxu0 0.0
    %3647 = vmatprep.mubr.f32.mxu0 0.0
    %3648 = vmatmul.mubr.f32.gmra.mxu0 %v3427
    %v3649 = vpop.f32.mrf.mxu0
    %v3650 = vadd.f32 %v788, %v3649
    %v3651 = vpop.f32.mrf.mxu0
    %3652 = vdwg.mxu0
    %v3653 = vmul.f32 %v3575, %v3650
    %v3654 = vadd.f32 %v585, %v3653
    %v3655 = vtanh.pop %v3654
    %v3656 = vsub.f32 %v3379, %v3655
    %v3657 = vmul.f32 %v3582, %v3656
    %v3658 = vadd.f32 %v3655, %v3657
    %v3659 = vlaneseq
    %v3660 = vshrl.u32 %v3659, 7
    %v3661 = vsub.s32 2, %v3660
    %v3662 = vrot.slane %v618, %v3661
    %v3663 = vmul.f32 %v3658, %v3662
    %v3664 = vsel %vm619, %v3663, 0.0
    %3665 = vadd.xlane.f32.xlu0 %v3664
    %v3666 = vpop.xlane.xlu0 %3665
    %v3667 = vsel %vm619, %v3658, 0.0
    %3668 = vadd.xlane.f32.xlu0 %v3667
    %v3669 = vpop.xlane.xlu0 %3668
    %v3670 = vrot.slane %v3669, 4
    %v3671 = vadd.f32 %v3669, %v3670
    %v3672 = vrot.slane %v3671, 2
    %v3673 = vadd.f32 %v3671, %v3672
    %v3674 = vrot.slane %v3673, 1
    %v3675 = vadd.f32 %v3673, %v3674
    %s3676 = vtos %v3675
    %v3677 = vstv %s3676
    %v3678 = vmul.f32 %v3658, %v3658
    %v3679 = vsel %vm619, %v3678, 0.0
    %3680 = vadd.xlane.f32.xlu0 %v3679
    %v3681 = vpop.xlane.xlu0 %3680
    %v3682 = vrot.slane %v3681, 4
    %v3683 = vadd.f32 %v3681, %v3682
    %v3684 = vrot.slane %v3683, 2
    %v3685 = vadd.f32 %v3683, %v3684
    %v3686 = vrot.slane %v3685, 1
    %v3687 = vadd.f32 %v3685, %v3686
    %s3688 = vtos %v3687
    %v3689 = vstv %s3688
    %v3690 = vmul.f32 %v3677, 0.025
    %v3691 = vmul.f32 %v3689, 0.025
    %v3692 = vmul.f32 %v3690, %v3690
    %v3693 = vsub.f32 %v3691, %v3692
    %v3694 = vadd.f32 %v3693, 1e-05
    %v3695 = vrsqrt.pop %v3694
    %s3696 = sld [smem:[#allocation3 + $0xa]]
    %v3697 = vstv %s3696
    %v3698 = vmul.f32 %v3697, %v3666
    %s3699 = sld [smem:[#allocation5 + $0xa]]
    %v3700 = vstv %s3699
    %v3701 = vmul.f32 %v3700, %v3690
    %v3702 = vsub.f32 %v3698, %v3701
    %v3703 = vmul.f32 %v3695, %v3702
    %v3704 = vadd.f32 %v3425, %v3703
    %v3706 = vsel %vm619, %v3658, 0
    %3708 = vmatprep.subr.mxu0 0.0
    %3709 = vmatpush1.msra.mxu0 0.0
    %3710 = vmatprep.subr.mxu0 0.0
    %3711 = vmatpush1.msra.mxu0 0.0
    %3712 = vmatprep.subr.mxu0 0.0
    %3713 = vmatpush1.msra.mxu0 0.0
    %3714 = vmatprep.subr.mxu0 0.0
    %3715 = vmatpush1.msra.mxu0 0.0
    %3716 = vmatprep.subr.mxu0 0.0
    %3717 = vmatpush1.msra.mxu0 0.0
    %3718 = vmatprep.subr.mxu0 0.0
    %3719 = vmatpush1.msra.mxu0 0.0
    %3720 = vmatprep.subr.mxu0 0.0
    %3721 = vmatpush1.msra.mxu0 0.0
    %3722 = vmatprep.subr.mxu0 0.0
    %3723 = vmatpush1.msra.mxu0 0.0
    %3724 = vmatprep.subr.mxu0 0.0
    %3725 = vmatpush1.msra.mxu0 0.0
    %3726 = vmatprep.subr.mxu0 0.0
    %3727 = vmatpush1.msra.mxu0 0.0
    %3728 = vmatprep.subr.mxu0 0.0
    %3729 = vmatpush1.msra.mxu0 0.0
    %3730 = vmatprep.subr.mxu0 0.0
    %3731 = vmatpush1.msra.mxu0 0.0
    %3732 = vmatprep.subr.mxu0 0.0
    %3733 = vmatpush1.msra.mxu0 0.0
    %3734 = vmatprep.subr.mxu0 0.0
    %3735 = vmatpush1.msra.mxu0 0.0
    %3736 = vmatprep.subr.mxu0 0.0
    %3737 = vmatpush1.msra.mxu0 0.0
    %3738 = vmatprep.subr.mxu0 0.0
    %3739 = vmatpush1.msra.mxu0 %v625
    %3740 = vmatprep.subr.mxu0 0.0
    %3741 = vmatpush2.msra.mxu0 0.0
    %3742 = vmatprep.subr.mxu0 0.0
    %3743 = vmatpush2.msra.mxu0 0.0
    %3744 = vmatprep.subr.mxu0 0.0
    %3745 = vmatpush2.msra.mxu0 0.0
    %3746 = vmatprep.subr.mxu0 0.0
    %3747 = vmatpush2.msra.mxu0 0.0
    %3748 = vmatprep.subr.mxu0 0.0
    %3749 = vmatpush2.msra.mxu0 0.0
    %3750 = vmatprep.subr.mxu0 0.0
    %3751 = vmatpush2.msra.mxu0 0.0
    %3752 = vmatprep.subr.mxu0 0.0
    %3753 = vmatpush2.msra.mxu0 0.0
    %3754 = vmatprep.subr.mxu0 0.0
    %3755 = vmatpush2.msra.mxu0 0.0
    %3756 = vmatprep.subr.mxu0 0.0
    %3757 = vmatpush2.msra.mxu0 0.0
    %3758 = vmatprep.subr.mxu0 0.0
    %3759 = vmatpush2.msra.mxu0 0.0
    %3760 = vmatprep.subr.mxu0 0.0
    %3761 = vmatpush2.msra.mxu0 0.0
    %3762 = vmatprep.subr.mxu0 0.0
    %3763 = vmatpush2.msra.mxu0 0.0
    %3764 = vmatprep.subr.mxu0 0.0
    %3765 = vmatpush2.msra.mxu0 0.0
    %3766 = vmatprep.subr.mxu0 0.0
    %3767 = vmatpush2.msra.mxu0 0.0
    %3768 = vmatprep.subr.mxu0 0.0
    %3769 = vmatpush2.msra.mxu0 0.0
    %3770 = vmatprep.subr.mxu0 0.0
    %3771 = vmatpush2.msra.mxu0 0.0
    %3772 = vmatprep.mubr.f32.mxu0 0.0
    %3773 = vmatmul.mubr.f32.gmra.mxu0 %v3706
    %v3774 = vpop.f32.mrf.mxu0
    %v3775 = vadd.f32 0.0, %v3774
    %v3776 = vpop.f32.mrf.mxu0
    %3777 = vdwg.mxu0
    %3778 = vmatprep.subr.mxu0 0.0
    %3779 = vmatpush1.msra.mxu0 0.0
    %3780 = vmatprep.subr.mxu0 0.0
    %3781 = vmatpush1.msra.mxu0 0.0
    %3782 = vmatprep.subr.mxu0 0.0
    %3783 = vmatpush1.msra.mxu0 0.0
    %3784 = vmatprep.subr.mxu0 0.0
    %3785 = vmatpush1.msra.mxu0 0.0
    %3786 = vmatprep.subr.mxu0 0.0
    %3787 = vmatpush1.msra.mxu0 0.0
    %3788 = vmatprep.subr.mxu0 0.0
    %3789 = vmatpush1.msra.mxu0 0.0
    %3790 = vmatprep.subr.mxu0 0.0
    %3791 = vmatpush1.msra.mxu0 0.0
    %3792 = vmatprep.subr.mxu0 0.0
    %3793 = vmatpush1.msra.mxu0 0.0
    %3794 = vmatprep.subr.mxu0 0.0
    %3795 = vmatpush1.msra.mxu0 0.0
    %3796 = vmatprep.subr.mxu0 0.0
    %3797 = vmatpush1.msra.mxu0 0.0
    %3798 = vmatprep.subr.mxu0 0.0
    %3799 = vmatpush1.msra.mxu0 0.0
    %3800 = vmatprep.subr.mxu0 0.0
    %3801 = vmatpush1.msra.mxu0 0.0
    %3802 = vmatprep.subr.mxu0 0.0
    %3803 = vmatpush1.msra.mxu0 0.0
    %3804 = vmatprep.subr.mxu0 0.0
    %3805 = vmatpush1.msra.mxu0 0.0
    %3806 = vmatprep.subr.mxu0 0.0
    %3807 = vmatpush1.msra.mxu0 0.0
    %3808 = vmatprep.subr.mxu0 0.0
    %3809 = vmatpush1.msra.mxu0 %v698
    %3810 = vmatprep.subr.mxu0 0.0
    %3811 = vmatpush2.msra.mxu0 0.0
    %3812 = vmatprep.subr.mxu0 0.0
    %3813 = vmatpush2.msra.mxu0 0.0
    %3814 = vmatprep.subr.mxu0 0.0
    %3815 = vmatpush2.msra.mxu0 0.0
    %3816 = vmatprep.subr.mxu0 0.0
    %3817 = vmatpush2.msra.mxu0 0.0
    %3818 = vmatprep.subr.mxu0 0.0
    %3819 = vmatpush2.msra.mxu0 0.0
    %3820 = vmatprep.subr.mxu0 0.0
    %3821 = vmatpush2.msra.mxu0 0.0
    %3822 = vmatprep.subr.mxu0 0.0
    %3823 = vmatpush2.msra.mxu0 0.0
    %3824 = vmatprep.subr.mxu0 0.0
    %3825 = vmatpush2.msra.mxu0 0.0
    %3826 = vmatprep.subr.mxu0 0.0
    %3827 = vmatpush2.msra.mxu0 0.0
    %3828 = vmatprep.subr.mxu0 0.0
    %3829 = vmatpush2.msra.mxu0 0.0
    %3830 = vmatprep.subr.mxu0 0.0
    %3831 = vmatpush2.msra.mxu0 0.0
    %3832 = vmatprep.subr.mxu0 0.0
    %3833 = vmatpush2.msra.mxu0 0.0
    %3834 = vmatprep.subr.mxu0 0.0
    %3835 = vmatpush2.msra.mxu0 0.0
    %3836 = vmatprep.subr.mxu0 0.0
    %3837 = vmatpush2.msra.mxu0 0.0
    %3838 = vmatprep.subr.mxu0 0.0
    %3839 = vmatpush2.msra.mxu0 0.0
    %3840 = vmatprep.subr.mxu0 0.0
    %3841 = vmatpush2.msra.mxu0 0.0
    %3842 = vmatprep.mubr.f32.mxu0 0.0
    %3843 = vmatmul.mubr.f32.gmra.mxu0 %v3706
    %v3844 = vpop.f32.mrf.mxu0
    %v3845 = vadd.f32 0.0, %v3844
    %v3846 = vpop.f32.mrf.mxu0
    %3847 = vdwg.mxu0
    %v3848 = vadd.f32 %v276, %v3775
    %v3849 = vxor.u32 %v3848, 2147483648
    %v3850 = vmul.f32 %v3849, 1.442695
    %v3851 = vpow.pop %v3850
    %v3852 = vadd.f32 %v3851, 1.0
    %v3853 = vrcp.pop %v3852
    %v3854 = vmul.f32 1.0, %v3853
    %v3855 = vadd.f32 %v433, %v3845
    %v3856 = vxor.u32 %v3855, 2147483648
    %v3857 = vmul.f32 %v3856, 1.442695
    %v3858 = vpow.pop %v3857
    %v3859 = vadd.f32 %v3858, 1.0
    %v3860 = vrcp.pop %v3859
    %v3861 = vmul.f32 1.0, %v3860
    %3862 = vmatprep.subr.mxu0 0.0
    %3863 = vmatpush1.msra.mxu0 0.0
    %3864 = vmatprep.subr.mxu0 0.0
    %3865 = vmatpush1.msra.mxu0 0.0
    %3866 = vmatprep.subr.mxu0 0.0
    %3867 = vmatpush1.msra.mxu0 0.0
    %3868 = vmatprep.subr.mxu0 0.0
    %3869 = vmatpush1.msra.mxu0 0.0
    %3870 = vmatprep.subr.mxu0 0.0
    %3871 = vmatpush1.msra.mxu0 0.0
    %3872 = vmatprep.subr.mxu0 0.0
    %3873 = vmatpush1.msra.mxu0 0.0
    %3874 = vmatprep.subr.mxu0 0.0
    %3875 = vmatpush1.msra.mxu0 0.0
    %3876 = vmatprep.subr.mxu0 0.0
    %3877 = vmatpush1.msra.mxu0 0.0
    %3878 = vmatprep.subr.mxu0 0.0
    %3879 = vmatpush1.msra.mxu0 0.0
    %3880 = vmatprep.subr.mxu0 0.0
    %3881 = vmatpush1.msra.mxu0 0.0
    %3882 = vmatprep.subr.mxu0 0.0
    %3883 = vmatpush1.msra.mxu0 0.0
    %3884 = vmatprep.subr.mxu0 0.0
    %3885 = vmatpush1.msra.mxu0 0.0
    %3886 = vmatprep.subr.mxu0 0.0
    %3887 = vmatpush1.msra.mxu0 0.0
    %3888 = vmatprep.subr.mxu0 0.0
    %3889 = vmatpush1.msra.mxu0 0.0
    %3890 = vmatprep.subr.mxu0 0.0
    %3891 = vmatpush1.msra.mxu0 0.0
    %3892 = vmatprep.subr.mxu0 0.0
    %3893 = vmatpush1.msra.mxu0 %v791
    %3894 = vmatprep.subr.mxu0 0.0
    %3895 = vmatpush2.msra.mxu0 0.0
    %3896 = vmatprep.subr.mxu0 0.0
    %3897 = vmatpush2.msra.mxu0 0.0
    %3898 = vmatprep.subr.mxu0 0.0
    %3899 = vmatpush2.msra.mxu0 0.0
    %3900 = vmatprep.subr.mxu0 0.0
    %3901 = vmatpush2.msra.mxu0 0.0
    %3902 = vmatprep.subr.mxu0 0.0
    %3903 = vmatpush2.msra.mxu0 0.0
    %3904 = vmatprep.subr.mxu0 0.0
    %3905 = vmatpush2.msra.mxu0 0.0
    %3906 = vmatprep.subr.mxu0 0.0
    %3907 = vmatpush2.msra.mxu0 0.0
    %3908 = vmatprep.subr.mxu0 0.0
    %3909 = vmatpush2.msra.mxu0 0.0
    %3910 = vmatprep.subr.mxu0 0.0
    %3911 = vmatpush2.msra.mxu0 0.0
    %3912 = vmatprep.subr.mxu0 0.0
    %3913 = vmatpush2.msra.mxu0 0.0
    %3914 = vmatprep.subr.mxu0 0.0
    %3915 = vmatpush2.msra.mxu0 0.0
    %3916 = vmatprep.subr.mxu0 0.0
    %3917 = vmatpush2.msra.mxu0 0.0
    %3918 = vmatprep.subr.mxu0 0.0
    %3919 = vmatpush2.msra.mxu0 0.0
    %3920 = vmatprep.subr.mxu0 0.0
    %3921 = vmatpush2.msra.mxu0 0.0
    %3922 = vmatprep.subr.mxu0 0.0
    %3923 = vmatpush2.msra.mxu0 0.0
    %3924 = vmatprep.subr.mxu0 0.0
    %3925 = vmatpush2.msra.mxu0 0.0
    %3926 = vmatprep.mubr.f32.mxu0 0.0
    %3927 = vmatmul.mubr.f32.gmra.mxu0 %v3706
    %v3928 = vpop.f32.mrf.mxu0
    %v3929 = vadd.f32 %v788, %v3928
    %v3930 = vpop.f32.mrf.mxu0
    %3931 = vdwg.mxu0
    %v3932 = vmul.f32 %v3854, %v3929
    %v3933 = vadd.f32 %v590, %v3932
    %v3934 = vtanh.pop %v3933
    %v3935 = vsub.f32 %v3658, %v3934
    %v3936 = vmul.f32 %v3861, %v3935
    %v3937 = vadd.f32 %v3934, %v3936
    %v3938 = vlaneseq
    %v3939 = vshrl.u32 %v3938, 7
    %v3940 = vsub.s32 3, %v3939
    %v3941 = vrot.slane %v618, %v3940
    %v3942 = vmul.f32 %v3937, %v3941
    %v3943 = vsel %vm619, %v3942, 0.0
    %3944 = vadd.xlane.f32.xlu0 %v3943
    %v3945 = vpop.xlane.xlu0 %3944
    %v3946 = vsel %vm619, %v3937, 0.0
    %3947 = vadd.xlane.f32.xlu0 %v3946
    %v3948 = vpop.xlane.xlu0 %3947
    %v3949 = vrot.slane %v3948, 4
    %v3950 = vadd.f32 %v3948, %v3949
    %v3951 = vrot.slane %v3950, 2
    %v3952 = vadd.f32 %v3950, %v3951
    %v3953 = vrot.slane %v3952, 1
    %v3954 = vadd.f32 %v3952, %v3953
    %s3955 = vtos %v3954
    %v3956 = vstv %s3955
    %v3957 = vmul.f32 %v3937, %v3937
    %v3958 = vsel %vm619, %v3957, 0.0
    %3959 = vadd.xlane.f32.xlu0 %v3958
    %v3960 = vpop.xlane.xlu0 %3959
    %v3961 = vrot.slane %v3960, 4
    %v3962 = vadd.f32 %v3960, %v3961
    %v3963 = vrot.slane %v3962, 2
    %v3964 = vadd.f32 %v3962, %v3963
    %v3965 = vrot.slane %v3964, 1
    %v3966 = vadd.f32 %v3964, %v3965
    %s3967 = vtos %v3966
    %v3968 = vstv %s3967
    %v3969 = vmul.f32 %v3956, 0.025
    %v3970 = vmul.f32 %v3968, 0.025
    %v3971 = vmul.f32 %v3969, %v3969
    %v3972 = vsub.f32 %v3970, %v3971
    %v3973 = vadd.f32 %v3972, 1e-05
    %v3974 = vrsqrt.pop %v3973
    %s3975 = sld [smem:[#allocation3 + $0xb]]
    %v3976 = vstv %s3975
    %v3977 = vmul.f32 %v3976, %v3945
    %s3978 = sld [smem:[#allocation5 + $0xb]]
    %v3979 = vstv %s3978
    %v3980 = vmul.f32 %v3979, %v3969
    %v3981 = vsub.f32 %v3977, %v3980
    %v3982 = vmul.f32 %v3974, %v3981
    %v3983 = vadd.f32 %v3704, %v3982
    %v3985 = vsel %vm619, %v3937, 0
    %3987 = vmatprep.subr.mxu0 0.0
    %3988 = vmatpush1.msra.mxu0 0.0
    %3989 = vmatprep.subr.mxu0 0.0
    %3990 = vmatpush1.msra.mxu0 0.0
    %3991 = vmatprep.subr.mxu0 0.0
    %3992 = vmatpush1.msra.mxu0 0.0
    %3993 = vmatprep.subr.mxu0 0.0
    %3994 = vmatpush1.msra.mxu0 0.0
    %3995 = vmatprep.subr.mxu0 0.0
    %3996 = vmatpush1.msra.mxu0 0.0
    %3997 = vmatprep.subr.mxu0 0.0
    %3998 = vmatpush1.msra.mxu0 0.0
    %3999 = vmatprep.subr.mxu0 0.0
    %4000 = vmatpush1.msra.mxu0 0.0
    %4001 = vmatprep.subr.mxu0 0.0
    %4002 = vmatpush1.msra.mxu0 0.0
    %4003 = vmatprep.subr.mxu0 0.0
    %4004 = vmatpush1.msra.mxu0 0.0
    %4005 = vmatprep.subr.mxu0 0.0
    %4006 = vmatpush1.msra.mxu0 0.0
    %4007 = vmatprep.subr.mxu0 0.0
    %4008 = vmatpush1.msra.mxu0 0.0
    %4009 = vmatprep.subr.mxu0 0.0
    %4010 = vmatpush1.msra.mxu0 0.0
    %4011 = vmatprep.subr.mxu0 0.0
    %4012 = vmatpush1.msra.mxu0 0.0
    %4013 = vmatprep.subr.mxu0 0.0
    %4014 = vmatpush1.msra.mxu0 0.0
    %4015 = vmatprep.subr.mxu0 0.0
    %4016 = vmatpush1.msra.mxu0 0.0
    %4017 = vmatprep.subr.mxu0 0.0
    %4018 = vmatpush1.msra.mxu0 %v625
    %4019 = vmatprep.subr.mxu0 0.0
    %4020 = vmatpush2.msra.mxu0 0.0
    %4021 = vmatprep.subr.mxu0 0.0
    %4022 = vmatpush2.msra.mxu0 0.0
    %4023 = vmatprep.subr.mxu0 0.0
    %4024 = vmatpush2.msra.mxu0 0.0
    %4025 = vmatprep.subr.mxu0 0.0
    %4026 = vmatpush2.msra.mxu0 0.0
    %4027 = vmatprep.subr.mxu0 0.0
    %4028 = vmatpush2.msra.mxu0 0.0
    %4029 = vmatprep.subr.mxu0 0.0
    %4030 = vmatpush2.msra.mxu0 0.0
    %4031 = vmatprep.subr.mxu0 0.0
    %4032 = vmatpush2.msra.mxu0 0.0
    %4033 = vmatprep.subr.mxu0 0.0
    %4034 = vmatpush2.msra.mxu0 0.0
    %4035 = vmatprep.subr.mxu0 0.0
    %4036 = vmatpush2.msra.mxu0 0.0
    %4037 = vmatprep.subr.mxu0 0.0
    %4038 = vmatpush2.msra.mxu0 0.0
    %4039 = vmatprep.subr.mxu0 0.0
    %4040 = vmatpush2.msra.mxu0 0.0
    %4041 = vmatprep.subr.mxu0 0.0
    %4042 = vmatpush2.msra.mxu0 0.0
    %4043 = vmatprep.subr.mxu0 0.0
    %4044 = vmatpush2.msra.mxu0 0.0
    %4045 = vmatprep.subr.mxu0 0.0
    %4046 = vmatpush2.msra.mxu0 0.0
    %4047 = vmatprep.subr.mxu0 0.0
    %4048 = vmatpush2.msra.mxu0 0.0
    %4049 = vmatprep.subr.mxu0 0.0
    %4050 = vmatpush2.msra.mxu0 0.0
    %4051 = vmatprep.mubr.f32.mxu0 0.0
    %4052 = vmatmul.mubr.f32.gmra.mxu0 %v3985
    %v4053 = vpop.f32.mrf.mxu0
    %v4054 = vadd.f32 0.0, %v4053
    %v4055 = vpop.f32.mrf.mxu0
    %4056 = vdwg.mxu0
    %4057 = vmatprep.subr.mxu0 0.0
    %4058 = vmatpush1.msra.mxu0 0.0
    %4059 = vmatprep.subr.mxu0 0.0
    %4060 = vmatpush1.msra.mxu0 0.0
    %4061 = vmatprep.subr.mxu0 0.0
    %4062 = vmatpush1.msra.mxu0 0.0
    %4063 = vmatprep.subr.mxu0 0.0
    %4064 = vmatpush1.msra.mxu0 0.0
    %4065 = vmatprep.subr.mxu0 0.0
    %4066 = vmatpush1.msra.mxu0 0.0
    %4067 = vmatprep.subr.mxu0 0.0
    %4068 = vmatpush1.msra.mxu0 0.0
    %4069 = vmatprep.subr.mxu0 0.0
    %4070 = vmatpush1.msra.mxu0 0.0
    %4071 = vmatprep.subr.mxu0 0.0
    %4072 = vmatpush1.msra.mxu0 0.0
    %4073 = vmatprep.subr.mxu0 0.0
    %4074 = vmatpush1.msra.mxu0 0.0
    %4075 = vmatprep.subr.mxu0 0.0
    %4076 = vmatpush1.msra.mxu0 0.0
    %4077 = vmatprep.subr.mxu0 0.0
    %4078 = vmatpush1.msra.mxu0 0.0
    %4079 = vmatprep.subr.mxu0 0.0
    %4080 = vmatpush1.msra.mxu0 0.0
    %4081 = vmatprep.subr.mxu0 0.0
    %4082 = vmatpush1.msra.mxu0 0.0
    %4083 = vmatprep.subr.mxu0 0.0
    %4084 = vmatpush1.msra.mxu0 0.0
    %4085 = vmatprep.subr.mxu0 0.0
    %4086 = vmatpush1.msra.mxu0 0.0
    %4087 = vmatprep.subr.mxu0 0.0
    %4088 = vmatpush1.msra.mxu0 %v698
    %4089 = vmatprep.subr.mxu0 0.0
    %4090 = vmatpush2.msra.mxu0 0.0
    %4091 = vmatprep.subr.mxu0 0.0
    %4092 = vmatpush2.msra.mxu0 0.0
    %4093 = vmatprep.subr.mxu0 0.0
    %4094 = vmatpush2.msra.mxu0 0.0
    %4095 = vmatprep.subr.mxu0 0.0
    %4096 = vmatpush2.msra.mxu0 0.0
    %4097 = vmatprep.subr.mxu0 0.0
    %4098 = vmatpush2.msra.mxu0 0.0
    %4099 = vmatprep.subr.mxu0 0.0
    %4100 = vmatpush2.msra.mxu0 0.0
    %4101 = vmatprep.subr.mxu0 0.0
    %4102 = vmatpush2.msra.mxu0 0.0
    %4103 = vmatprep.subr.mxu0 0.0
    %4104 = vmatpush2.msra.mxu0 0.0
    %4105 = vmatprep.subr.mxu0 0.0
    %4106 = vmatpush2.msra.mxu0 0.0
    %4107 = vmatprep.subr.mxu0 0.0
    %4108 = vmatpush2.msra.mxu0 0.0
    %4109 = vmatprep.subr.mxu0 0.0
    %4110 = vmatpush2.msra.mxu0 0.0
    %4111 = vmatprep.subr.mxu0 0.0
    %4112 = vmatpush2.msra.mxu0 0.0
    %4113 = vmatprep.subr.mxu0 0.0
    %4114 = vmatpush2.msra.mxu0 0.0
    %4115 = vmatprep.subr.mxu0 0.0
    %4116 = vmatpush2.msra.mxu0 0.0
    %4117 = vmatprep.subr.mxu0 0.0
    %4118 = vmatpush2.msra.mxu0 0.0
    %4119 = vmatprep.subr.mxu0 0.0
    %4120 = vmatpush2.msra.mxu0 0.0
    %4121 = vmatprep.mubr.f32.mxu0 0.0
    %4122 = vmatmul.mubr.f32.gmra.mxu0 %v3985
    %v4123 = vpop.f32.mrf.mxu0
    %v4124 = vadd.f32 0.0, %v4123
    %v4125 = vpop.f32.mrf.mxu0
    %4126 = vdwg.mxu0
    %v4127 = vadd.f32 %v281, %v4054
    %v4128 = vxor.u32 %v4127, 2147483648
    %v4129 = vmul.f32 %v4128, 1.442695
    %v4130 = vpow.pop %v4129
    %v4131 = vadd.f32 %v4130, 1.0
    %v4132 = vrcp.pop %v4131
    %v4133 = vmul.f32 1.0, %v4132
    %v4134 = vadd.f32 %v438, %v4124
    %v4135 = vxor.u32 %v4134, 2147483648
    %v4136 = vmul.f32 %v4135, 1.442695
    %v4137 = vpow.pop %v4136
    %v4138 = vadd.f32 %v4137, 1.0
    %v4139 = vrcp.pop %v4138
    %v4140 = vmul.f32 1.0, %v4139
    %4141 = vmatprep.subr.mxu0 0.0
    %4142 = vmatpush1.msra.mxu0 0.0
    %4143 = vmatprep.subr.mxu0 0.0
    %4144 = vmatpush1.msra.mxu0 0.0
    %4145 = vmatprep.subr.mxu0 0.0
    %4146 = vmatpush1.msra.mxu0 0.0
    %4147 = vmatprep.subr.mxu0 0.0
    %4148 = vmatpush1.msra.mxu0 0.0
    %4149 = vmatprep.subr.mxu0 0.0
    %4150 = vmatpush1.msra.mxu0 0.0
    %4151 = vmatprep.subr.mxu0 0.0
    %4152 = vmatpush1.msra.mxu0 0.0
    %4153 = vmatprep.subr.mxu0 0.0
    %4154 = vmatpush1.msra.mxu0 0.0
    %4155 = vmatprep.subr.mxu0 0.0
    %4156 = vmatpush1.msra.mxu0 0.0
    %4157 = vmatprep.subr.mxu0 0.0
    %4158 = vmatpush1.msra.mxu0 0.0
    %4159 = vmatprep.subr.mxu0 0.0
    %4160 = vmatpush1.msra.mxu0 0.0
    %4161 = vmatprep.subr.mxu0 0.0
    %4162 = vmatpush1.msra.mxu0 0.0
    %4163 = vmatprep.subr.mxu0 0.0
    %4164 = vmatpush1.msra.mxu0 0.0
    %4165 = vmatprep.subr.mxu0 0.0
    %4166 = vmatpush1.msra.mxu0 0.0
    %4167 = vmatprep.subr.mxu0 0.0
    %4168 = vmatpush1.msra.mxu0 0.0
    %4169 = vmatprep.subr.mxu0 0.0
    %4170 = vmatpush1.msra.mxu0 0.0
    %4171 = vmatprep.subr.mxu0 0.0
    %4172 = vmatpush1.msra.mxu0 %v791
    %4173 = vmatprep.subr.mxu0 0.0
    %4174 = vmatpush2.msra.mxu0 0.0
    %4175 = vmatprep.subr.mxu0 0.0
    %4176 = vmatpush2.msra.mxu0 0.0
    %4177 = vmatprep.subr.mxu0 0.0
    %4178 = vmatpush2.msra.mxu0 0.0
    %4179 = vmatprep.subr.mxu0 0.0
    %4180 = vmatpush2.msra.mxu0 0.0
    %4181 = vmatprep.subr.mxu0 0.0
    %4182 = vmatpush2.msra.mxu0 0.0
    %4183 = vmatprep.subr.mxu0 0.0
    %4184 = vmatpush2.msra.mxu0 0.0
    %4185 = vmatprep.subr.mxu0 0.0
    %4186 = vmatpush2.msra.mxu0 0.0
    %4187 = vmatprep.subr.mxu0 0.0
    %4188 = vmatpush2.msra.mxu0 0.0
    %4189 = vmatprep.subr.mxu0 0.0
    %4190 = vmatpush2.msra.mxu0 0.0
    %4191 = vmatprep.subr.mxu0 0.0
    %4192 = vmatpush2.msra.mxu0 0.0
    %4193 = vmatprep.subr.mxu0 0.0
    %4194 = vmatpush2.msra.mxu0 0.0
    %4195 = vmatprep.subr.mxu0 0.0
    %4196 = vmatpush2.msra.mxu0 0.0
    %4197 = vmatprep.subr.mxu0 0.0
    %4198 = vmatpush2.msra.mxu0 0.0
    %4199 = vmatprep.subr.mxu0 0.0
    %4200 = vmatpush2.msra.mxu0 0.0
    %4201 = vmatprep.subr.mxu0 0.0
    %4202 = vmatpush2.msra.mxu0 0.0
    %4203 = vmatprep.subr.mxu0 0.0
    %4204 = vmatpush2.msra.mxu0 0.0
    %4205 = vmatprep.mubr.f32.mxu0 0.0
    %4206 = vmatmul.mubr.f32.gmra.mxu0 %v3985
    %v4207 = vpop.f32.mrf.mxu0
    %v4208 = vadd.f32 %v788, %v4207
    %v4209 = vpop.f32.mrf.mxu0
    %4210 = vdwg.mxu0
    %v4211 = vmul.f32 %v4133, %v4208
    %v4212 = vadd.f32 %v595, %v4211
    %v4213 = vtanh.pop %v4212
    %v4214 = vsub.f32 %v3937, %v4213
    %v4215 = vmul.f32 %v4140, %v4214
    %v4216 = vadd.f32 %v4213, %v4215
    %v4217 = vlaneseq
    %v4218 = vshrl.u32 %v4217, 7
    %v4219 = vsub.s32 4, %v4218
    %v4220 = vrot.slane %v618, %v4219
    %v4221 = vmul.f32 %v4216, %v4220
    %v4222 = vsel %vm619, %v4221, 0.0
    %4223 = vadd.xlane.f32.xlu0 %v4222
    %v4224 = vpop.xlane.xlu0 %4223
    %v4225 = vsel %vm619, %v4216, 0.0
    %4226 = vadd.xlane.f32.xlu0 %v4225
    %v4227 = vpop.xlane.xlu0 %4226
    %v4228 = vrot.slane %v4227, 4
    %v4229 = vadd.f32 %v4227, %v4228
    %v4230 = vrot.slane %v4229, 2
    %v4231 = vadd.f32 %v4229, %v4230
    %v4232 = vrot.slane %v4231, 1
    %v4233 = vadd.f32 %v4231, %v4232
    %s4234 = vtos %v4233
    %v4235 = vstv %s4234
    %v4236 = vmul.f32 %v4216, %v4216
    %v4237 = vsel %vm619, %v4236, 0.0
    %4238 = vadd.xlane.f32.xlu0 %v4237
    %v4239 = vpop.xlane.xlu0 %4238
    %v4240 = vrot.slane %v4239, 4
    %v4241 = vadd.f32 %v4239, %v4240
    %v4242 = vrot.slane %v4241, 2
    %v4243 = vadd.f32 %v4241, %v4242
    %v4244 = vrot.slane %v4243, 1
    %v4245 = vadd.f32 %v4243, %v4244
    %s4246 = vtos %v4245
    %v4247 = vstv %s4246
    %v4248 = vmul.f32 %v4235, 0.025
    %v4249 = vmul.f32 %v4247, 0.025
    %v4250 = vmul.f32 %v4248, %v4248
    %v4251 = vsub.f32 %v4249, %v4250
    %v4252 = vadd.f32 %v4251, 1e-05
    %v4253 = vrsqrt.pop %v4252
    %s4254 = sld [smem:[#allocation3 + $0xc]]
    %v4255 = vstv %s4254
    %v4256 = vmul.f32 %v4255, %v4224
    %s4257 = sld [smem:[#allocation5 + $0xc]]
    %v4258 = vstv %s4257
    %v4259 = vmul.f32 %v4258, %v4248
    %v4260 = vsub.f32 %v4256, %v4259
    %v4261 = vmul.f32 %v4253, %v4260
    %v4262 = vadd.f32 %v3983, %v4261
    %v4264 = vsel %vm619, %v4216, 0
    %4266 = vmatprep.subr.mxu0 0.0
    %4267 = vmatpush1.msra.mxu0 0.0
    %4268 = vmatprep.subr.mxu0 0.0
    %4269 = vmatpush1.msra.mxu0 0.0
    %4270 = vmatprep.subr.mxu0 0.0
    %4271 = vmatpush1.msra.mxu0 0.0
    %4272 = vmatprep.subr.mxu0 0.0
    %4273 = vmatpush1.msra.mxu0 0.0
    %4274 = vmatprep.subr.mxu0 0.0
    %4275 = vmatpush1.msra.mxu0 0.0
    %4276 = vmatprep.subr.mxu0 0.0
    %4277 = vmatpush1.msra.mxu0 0.0
    %4278 = vmatprep.subr.mxu0 0.0
    %4279 = vmatpush1.msra.mxu0 0.0
    %4280 = vmatprep.subr.mxu0 0.0
    %4281 = vmatpush1.msra.mxu0 0.0
    %4282 = vmatprep.subr.mxu0 0.0
    %4283 = vmatpush1.msra.mxu0 0.0
    %4284 = vmatprep.subr.mxu0 0.0
    %4285 = vmatpush1.msra.mxu0 0.0
    %4286 = vmatprep.subr.mxu0 0.0
    %4287 = vmatpush1.msra.mxu0 0.0
    %4288 = vmatprep.subr.mxu0 0.0
    %4289 = vmatpush1.msra.mxu0 0.0
    %4290 = vmatprep.subr.mxu0 0.0
    %4291 = vmatpush1.msra.mxu0 0.0
    %4292 = vmatprep.subr.mxu0 0.0
    %4293 = vmatpush1.msra.mxu0 0.0
    %4294 = vmatprep.subr.mxu0 0.0
    %4295 = vmatpush1.msra.mxu0 0.0
    %4296 = vmatprep.subr.mxu0 0.0
    %4297 = vmatpush1.msra.mxu0 %v625
    %4298 = vmatprep.subr.mxu0 0.0
    %4299 = vmatpush2.msra.mxu0 0.0
    %4300 = vmatprep.subr.mxu0 0.0
    %4301 = vmatpush2.msra.mxu0 0.0
    %4302 = vmatprep.subr.mxu0 0.0
    %4303 = vmatpush2.msra.mxu0 0.0
    %4304 = vmatprep.subr.mxu0 0.0
    %4305 = vmatpush2.msra.mxu0 0.0
    %4306 = vmatprep.subr.mxu0 0.0
    %4307 = vmatpush2.msra.mxu0 0.0
    %4308 = vmatprep.subr.mxu0 0.0
    %4309 = vmatpush2.msra.mxu0 0.0
    %4310 = vmatprep.subr.mxu0 0.0
    %4311 = vmatpush2.msra.mxu0 0.0
    %4312 = vmatprep.subr.mxu0 0.0
    %4313 = vmatpush2.msra.mxu0 0.0
    %4314 = vmatprep.subr.mxu0 0.0
    %4315 = vmatpush2.msra.mxu0 0.0
    %4316 = vmatprep.subr.mxu0 0.0
    %4317 = vmatpush2.msra.mxu0 0.0
    %4318 = vmatprep.subr.mxu0 0.0
    %4319 = vmatpush2.msra.mxu0 0.0
    %4320 = vmatprep.subr.mxu0 0.0
    %4321 = vmatpush2.msra.mxu0 0.0
    %4322 = vmatprep.subr.mxu0 0.0
    %4323 = vmatpush2.msra.mxu0 0.0
    %4324 = vmatprep.subr.mxu0 0.0
    %4325 = vmatpush2.msra.mxu0 0.0
    %4326 = vmatprep.subr.mxu0 0.0
    %4327 = vmatpush2.msra.mxu0 0.0
    %4328 = vmatprep.subr.mxu0 0.0
    %4329 = vmatpush2.msra.mxu0 0.0
    %4330 = vmatprep.mubr.f32.mxu0 0.0
    %4331 = vmatmul.mubr.f32.gmra.mxu0 %v4264
    %v4332 = vpop.f32.mrf.mxu0
    %v4333 = vadd.f32 0.0, %v4332
    %v4334 = vpop.f32.mrf.mxu0
    %4335 = vdwg.mxu0
    %4336 = vmatprep.subr.mxu0 0.0
    %4337 = vmatpush1.msra.mxu0 0.0
    %4338 = vmatprep.subr.mxu0 0.0
    %4339 = vmatpush1.msra.mxu0 0.0
    %4340 = vmatprep.subr.mxu0 0.0
    %4341 = vmatpush1.msra.mxu0 0.0
    %4342 = vmatprep.subr.mxu0 0.0
    %4343 = vmatpush1.msra.mxu0 0.0
    %4344 = vmatprep.subr.mxu0 0.0
    %4345 = vmatpush1.msra.mxu0 0.0
    %4346 = vmatprep.subr.mxu0 0.0
    %4347 = vmatpush1.msra.mxu0 0.0
    %4348 = vmatprep.subr.mxu0 0.0
    %4349 = vmatpush1.msra.mxu0 0.0
    %4350 = vmatprep.subr.mxu0 0.0
    %4351 = vmatpush1.msra.mxu0 0.0
    %4352 = vmatprep.subr.mxu0 0.0
    %4353 = vmatpush1.msra.mxu0 0.0
    %4354 = vmatprep.subr.mxu0 0.0
    %4355 = vmatpush1.msra.mxu0 0.0
    %4356 = vmatprep.subr.mxu0 0.0
    %4357 = vmatpush1.msra.mxu0 0.0
    %4358 = vmatprep.subr.mxu0 0.0
    %4359 = vmatpush1.msra.mxu0 0.0
    %4360 = vmatprep.subr.mxu0 0.0
    %4361 = vmatpush1.msra.mxu0 0.0
    %4362 = vmatprep.subr.mxu0 0.0
    %4363 = vmatpush1.msra.mxu0 0.0
    %4364 = vmatprep.subr.mxu0 0.0
    %4365 = vmatpush1.msra.mxu0 0.0
    %4366 = vmatprep.subr.mxu0 0.0
    %4367 = vmatpush1.msra.mxu0 %v698
    %4368 = vmatprep.subr.mxu0 0.0
    %4369 = vmatpush2.msra.mxu0 0.0
    %4370 = vmatprep.subr.mxu0 0.0
    %4371 = vmatpush2.msra.mxu0 0.0
    %4372 = vmatprep.subr.mxu0 0.0
    %4373 = vmatpush2.msra.mxu0 0.0
    %4374 = vmatprep.subr.mxu0 0.0
    %4375 = vmatpush2.msra.mxu0 0.0
    %4376 = vmatprep.subr.mxu0 0.0
    %4377 = vmatpush2.msra.mxu0 0.0
    %4378 = vmatprep.subr.mxu0 0.0
    %4379 = vmatpush2.msra.mxu0 0.0
    %4380 = vmatprep.subr.mxu0 0.0
    %4381 = vmatpush2.msra.mxu0 0.0
    %4382 = vmatprep.subr.mxu0 0.0
    %4383 = vmatpush2.msra.mxu0 0.0
    %4384 = vmatprep.subr.mxu0 0.0
    %4385 = vmatpush2.msra.mxu0 0.0
    %4386 = vmatprep.subr.mxu0 0.0
    %4387 = vmatpush2.msra.mxu0 0.0
    %4388 = vmatprep.subr.mxu0 0.0
    %4389 = vmatpush2.msra.mxu0 0.0
    %4390 = vmatprep.subr.mxu0 0.0
    %4391 = vmatpush2.msra.mxu0 0.0
    %4392 = vmatprep.subr.mxu0 0.0
    %4393 = vmatpush2.msra.mxu0 0.0
    %4394 = vmatprep.subr.mxu0 0.0
    %4395 = vmatpush2.msra.mxu0 0.0
    %4396 = vmatprep.subr.mxu0 0.0
    %4397 = vmatpush2.msra.mxu0 0.0
    %4398 = vmatprep.subr.mxu0 0.0
    %4399 = vmatpush2.msra.mxu0 0.0
    %4400 = vmatprep.mubr.f32.mxu0 0.0
    %4401 = vmatmul.mubr.f32.gmra.mxu0 %v4264
    %v4402 = vpop.f32.mrf.mxu0
    %v4403 = vadd.f32 0.0, %v4402
    %v4404 = vpop.f32.mrf.mxu0
    %4405 = vdwg.mxu0
    %v4406 = vadd.f32 %v286, %v4333
    %v4407 = vxor.u32 %v4406, 2147483648
    %v4408 = vmul.f32 %v4407, 1.442695
    %v4409 = vpow.pop %v4408
    %v4410 = vadd.f32 %v4409, 1.0
    %v4411 = vrcp.pop %v4410
    %v4412 = vmul.f32 1.0, %v4411
    %v4413 = vadd.f32 %v443, %v4403
    %v4414 = vxor.u32 %v4413, 2147483648
    %v4415 = vmul.f32 %v4414, 1.442695
    %v4416 = vpow.pop %v4415
    %v4417 = vadd.f32 %v4416, 1.0
    %v4418 = vrcp.pop %v4417
    %v4419 = vmul.f32 1.0, %v4418
    %4420 = vmatprep.subr.mxu0 0.0
    %4421 = vmatpush1.msra.mxu0 0.0
    %4422 = vmatprep.subr.mxu0 0.0
    %4423 = vmatpush1.msra.mxu0 0.0
    %4424 = vmatprep.subr.mxu0 0.0
    %4425 = vmatpush1.msra.mxu0 0.0
    %4426 = vmatprep.subr.mxu0 0.0
    %4427 = vmatpush1.msra.mxu0 0.0
    %4428 = vmatprep.subr.mxu0 0.0
    %4429 = vmatpush1.msra.mxu0 0.0
    %4430 = vmatprep.subr.mxu0 0.0
    %4431 = vmatpush1.msra.mxu0 0.0
    %4432 = vmatprep.subr.mxu0 0.0
    %4433 = vmatpush1.msra.mxu0 0.0
    %4434 = vmatprep.subr.mxu0 0.0
    %4435 = vmatpush1.msra.mxu0 0.0
    %4436 = vmatprep.subr.mxu0 0.0
    %4437 = vmatpush1.msra.mxu0 0.0
    %4438 = vmatprep.subr.mxu0 0.0
    %4439 = vmatpush1.msra.mxu0 0.0
    %4440 = vmatprep.subr.mxu0 0.0
    %4441 = vmatpush1.msra.mxu0 0.0
    %4442 = vmatprep.subr.mxu0 0.0
    %4443 = vmatpush1.msra.mxu0 0.0
    %4444 = vmatprep.subr.mxu0 0.0
    %4445 = vmatpush1.msra.mxu0 0.0
    %4446 = vmatprep.subr.mxu0 0.0
    %4447 = vmatpush1.msra.mxu0 0.0
    %4448 = vmatprep.subr.mxu0 0.0
    %4449 = vmatpush1.msra.mxu0 0.0
    %4450 = vmatprep.subr.mxu0 0.0
    %4451 = vmatpush1.msra.mxu0 %v791
    %4452 = vmatprep.subr.mxu0 0.0
    %4453 = vmatpush2.msra.mxu0 0.0
    %4454 = vmatprep.subr.mxu0 0.0
    %4455 = vmatpush2.msra.mxu0 0.0
    %4456 = vmatprep.subr.mxu0 0.0
    %4457 = vmatpush2.msra.mxu0 0.0
    %4458 = vmatprep.subr.mxu0 0.0
    %4459 = vmatpush2.msra.mxu0 0.0
    %4460 = vmatprep.subr.mxu0 0.0
    %4461 = vmatpush2.msra.mxu0 0.0
    %4462 = vmatprep.subr.mxu0 0.0
    %4463 = vmatpush2.msra.mxu0 0.0
    %4464 = vmatprep.subr.mxu0 0.0
    %4465 = vmatpush2.msra.mxu0 0.0
    %4466 = vmatprep.subr.mxu0 0.0
    %4467 = vmatpush2.msra.mxu0 0.0
    %4468 = vmatprep.subr.mxu0 0.0
    %4469 = vmatpush2.msra.mxu0 0.0
    %4470 = vmatprep.subr.mxu0 0.0
    %4471 = vmatpush2.msra.mxu0 0.0
    %4472 = vmatprep.subr.mxu0 0.0
    %4473 = vmatpush2.msra.mxu0 0.0
    %4474 = vmatprep.subr.mxu0 0.0
    %4475 = vmatpush2.msra.mxu0 0.0
    %4476 = vmatprep.subr.mxu0 0.0
    %4477 = vmatpush2.msra.mxu0 0.0
    %4478 = vmatprep.subr.mxu0 0.0
    %4479 = vmatpush2.msra.mxu0 0.0
    %4480 = vmatprep.subr.mxu0 0.0
    %4481 = vmatpush2.msra.mxu0 0.0
    %4482 = vmatprep.subr.mxu0 0.0
    %4483 = vmatpush2.msra.mxu0 0.0
    %4484 = vmatprep.mubr.f32.mxu0 0.0
    %4485 = vmatmul.mubr.f32.gmra.mxu0 %v4264
    %v4486 = vpop.f32.mrf.mxu0
    %v4487 = vadd.f32 %v788, %v4486
    %v4488 = vpop.f32.mrf.mxu0
    %4489 = vdwg.mxu0
    %v4490 = vmul.f32 %v4412, %v4487
    %v4491 = vadd.f32 %v600, %v4490
    %v4492 = vtanh.pop %v4491
    %v4493 = vsub.f32 %v4216, %v4492
    %v4494 = vmul.f32 %v4419, %v4493
    %v4495 = vadd.f32 %v4492, %v4494
    %v4496 = vlaneseq
    %v4497 = vshrl.u32 %v4496, 7
    %v4498 = vsub.s32 5, %v4497
    %v4499 = vrot.slane %v618, %v4498
    %v4500 = vmul.f32 %v4495, %v4499
    %v4501 = vsel %vm619, %v4500, 0.0
    %4502 = vadd.xlane.f32.xlu0 %v4501
    %v4503 = vpop.xlane.xlu0 %4502
    %v4504 = vsel %vm619, %v4495, 0.0
    %4505 = vadd.xlane.f32.xlu0 %v4504
    %v4506 = vpop.xlane.xlu0 %4505
    %v4507 = vrot.slane %v4506, 4
    %v4508 = vadd.f32 %v4506, %v4507
    %v4509 = vrot.slane %v4508, 2
    %v4510 = vadd.f32 %v4508, %v4509
    %v4511 = vrot.slane %v4510, 1
    %v4512 = vadd.f32 %v4510, %v4511
    %s4513 = vtos %v4512
    %v4514 = vstv %s4513
    %v4515 = vmul.f32 %v4495, %v4495
    %v4516 = vsel %vm619, %v4515, 0.0
    %4517 = vadd.xlane.f32.xlu0 %v4516
    %v4518 = vpop.xlane.xlu0 %4517
    %v4519 = vrot.slane %v4518, 4
    %v4520 = vadd.f32 %v4518, %v4519
    %v4521 = vrot.slane %v4520, 2
    %v4522 = vadd.f32 %v4520, %v4521
    %v4523 = vrot.slane %v4522, 1
    %v4524 = vadd.f32 %v4522, %v4523
    %s4525 = vtos %v4524
    %v4526 = vstv %s4525
    %v4527 = vmul.f32 %v4514, 0.025
    %v4528 = vmul.f32 %v4526, 0.025
    %v4529 = vmul.f32 %v4527, %v4527
    %v4530 = vsub.f32 %v4528, %v4529
    %v4531 = vadd.f32 %v4530, 1e-05
    %v4532 = vrsqrt.pop %v4531
    %s4533 = sld [smem:[#allocation3 + $0xd]]
    %v4534 = vstv %s4533
    %v4535 = vmul.f32 %v4534, %v4503
    %s4536 = sld [smem:[#allocation5 + $0xd]]
    %v4537 = vstv %s4536
    %v4538 = vmul.f32 %v4537, %v4527
    %v4539 = vsub.f32 %v4535, %v4538
    %v4540 = vmul.f32 %v4532, %v4539
    %v4541 = vadd.f32 %v4262, %v4540
    %v4543 = vsel %vm619, %v4495, 0
    %4545 = vmatprep.subr.mxu0 0.0
    %4546 = vmatpush1.msra.mxu0 0.0
    %4547 = vmatprep.subr.mxu0 0.0
    %4548 = vmatpush1.msra.mxu0 0.0
    %4549 = vmatprep.subr.mxu0 0.0
    %4550 = vmatpush1.msra.mxu0 0.0
    %4551 = vmatprep.subr.mxu0 0.0
    %4552 = vmatpush1.msra.mxu0 0.0
    %4553 = vmatprep.subr.mxu0 0.0
    %4554 = vmatpush1.msra.mxu0 0.0
    %4555 = vmatprep.subr.mxu0 0.0
    %4556 = vmatpush1.msra.mxu0 0.0
    %4557 = vmatprep.subr.mxu0 0.0
    %4558 = vmatpush1.msra.mxu0 0.0
    %4559 = vmatprep.subr.mxu0 0.0
    %4560 = vmatpush1.msra.mxu0 0.0
    %4561 = vmatprep.subr.mxu0 0.0
    %4562 = vmatpush1.msra.mxu0 0.0
    %4563 = vmatprep.subr.mxu0 0.0
    %4564 = vmatpush1.msra.mxu0 0.0
    %4565 = vmatprep.subr.mxu0 0.0
    %4566 = vmatpush1.msra.mxu0 0.0
    %4567 = vmatprep.subr.mxu0 0.0
    %4568 = vmatpush1.msra.mxu0 0.0
    %4569 = vmatprep.subr.mxu0 0.0
    %4570 = vmatpush1.msra.mxu0 0.0
    %4571 = vmatprep.subr.mxu0 0.0
    %4572 = vmatpush1.msra.mxu0 0.0
    %4573 = vmatprep.subr.mxu0 0.0
    %4574 = vmatpush1.msra.mxu0 0.0
    %4575 = vmatprep.subr.mxu0 0.0
    %4576 = vmatpush1.msra.mxu0 %v625
    %4577 = vmatprep.subr.mxu0 0.0
    %4578 = vmatpush2.msra.mxu0 0.0
    %4579 = vmatprep.subr.mxu0 0.0
    %4580 = vmatpush2.msra.mxu0 0.0
    %4581 = vmatprep.subr.mxu0 0.0
    %4582 = vmatpush2.msra.mxu0 0.0
    %4583 = vmatprep.subr.mxu0 0.0
    %4584 = vmatpush2.msra.mxu0 0.0
    %4585 = vmatprep.subr.mxu0 0.0
    %4586 = vmatpush2.msra.mxu0 0.0
    %4587 = vmatprep.subr.mxu0 0.0
    %4588 = vmatpush2.msra.mxu0 0.0
    %4589 = vmatprep.subr.mxu0 0.0
    %4590 = vmatpush2.msra.mxu0 0.0
    %4591 = vmatprep.subr.mxu0 0.0
    %4592 = vmatpush2.msra.mxu0 0.0
    %4593 = vmatprep.subr.mxu0 0.0
    %4594 = vmatpush2.msra.mxu0 0.0
    %4595 = vmatprep.subr.mxu0 0.0
    %4596 = vmatpush2.msra.mxu0 0.0
    %4597 = vmatprep.subr.mxu0 0.0
    %4598 = vmatpush2.msra.mxu0 0.0
    %4599 = vmatprep.subr.mxu0 0.0
    %4600 = vmatpush2.msra.mxu0 0.0
    %4601 = vmatprep.subr.mxu0 0.0
    %4602 = vmatpush2.msra.mxu0 0.0
    %4603 = vmatprep.subr.mxu0 0.0
    %4604 = vmatpush2.msra.mxu0 0.0
    %4605 = vmatprep.subr.mxu0 0.0
    %4606 = vmatpush2.msra.mxu0 0.0
    %4607 = vmatprep.subr.mxu0 0.0
    %4608 = vmatpush2.msra.mxu0 0.0
    %4609 = vmatprep.mubr.f32.mxu0 0.0
    %4610 = vmatmul.mubr.f32.gmra.mxu0 %v4543
    %v4611 = vpop.f32.mrf.mxu0
    %v4612 = vadd.f32 0.0, %v4611
    %v4613 = vpop.f32.mrf.mxu0
    %4614 = vdwg.mxu0
    %4615 = vmatprep.subr.mxu0 0.0
    %4616 = vmatpush1.msra.mxu0 0.0
    %4617 = vmatprep.subr.mxu0 0.0
    %4618 = vmatpush1.msra.mxu0 0.0
    %4619 = vmatprep.subr.mxu0 0.0
    %4620 = vmatpush1.msra.mxu0 0.0
    %4621 = vmatprep.subr.mxu0 0.0
    %4622 = vmatpush1.msra.mxu0 0.0
    %4623 = vmatprep.subr.mxu0 0.0
    %4624 = vmatpush1.msra.mxu0 0.0
    %4625 = vmatprep.subr.mxu0 0.0
    %4626 = vmatpush1.msra.mxu0 0.0
    %4627 = vmatprep.subr.mxu0 0.0
    %4628 = vmatpush1.msra.mxu0 0.0
    %4629 = vmatprep.subr.mxu0 0.0
    %4630 = vmatpush1.msra.mxu0 0.0
    %4631 = vmatprep.subr.mxu0 0.0
    %4632 = vmatpush1.msra.mxu0 0.0
    %4633 = vmatprep.subr.mxu0 0.0
    %4634 = vmatpush1.msra.mxu0 0.0
    %4635 = vmatprep.subr.mxu0 0.0
    %4636 = vmatpush1.msra.mxu0 0.0
    %4637 = vmatprep.subr.mxu0 0.0
    %4638 = vmatpush1.msra.mxu0 0.0
    %4639 = vmatprep.subr.mxu0 0.0
    %4640 = vmatpush1.msra.mxu0 0.0
    %4641 = vmatprep.subr.mxu0 0.0
    %4642 = vmatpush1.msra.mxu0 0.0
    %4643 = vmatprep.subr.mxu0 0.0
    %4644 = vmatpush1.msra.mxu0 0.0
    %4645 = vmatprep.subr.mxu0 0.0
    %4646 = vmatpush1.msra.mxu0 %v698
    %4647 = vmatprep.subr.mxu0 0.0
    %4648 = vmatpush2.msra.mxu0 0.0
    %4649 = vmatprep.subr.mxu0 0.0
    %4650 = vmatpush2.msra.mxu0 0.0
    %4651 = vmatprep.subr.mxu0 0.0
    %4652 = vmatpush2.msra.mxu0 0.0
    %4653 = vmatprep.subr.mxu0 0.0
    %4654 = vmatpush2.msra.mxu0 0.0
    %4655 = vmatprep.subr.mxu0 0.0
    %4656 = vmatpush2.msra.mxu0 0.0
    %4657 = vmatprep.subr.mxu0 0.0
    %4658 = vmatpush2.msra.mxu0 0.0
    %4659 = vmatprep.subr.mxu0 0.0
    %4660 = vmatpush2.msra.mxu0 0.0
    %4661 = vmatprep.subr.mxu0 0.0
    %4662 = vmatpush2.msra.mxu0 0.0
    %4663 = vmatprep.subr.mxu0 0.0
    %4664 = vmatpush2.msra.mxu0 0.0
    %4665 = vmatprep.subr.mxu0 0.0
    %4666 = vmatpush2.msra.mxu0 0.0
    %4667 = vmatprep.subr.mxu0 0.0
    %4668 = vmatpush2.msra.mxu0 0.0
    %4669 = vmatprep.subr.mxu0 0.0
    %4670 = vmatpush2.msra.mxu0 0.0
    %4671 = vmatprep.subr.mxu0 0.0
    %4672 = vmatpush2.msra.mxu0 0.0
    %4673 = vmatprep.subr.mxu0 0.0
    %4674 = vmatpush2.msra.mxu0 0.0
    %4675 = vmatprep.subr.mxu0 0.0
    %4676 = vmatpush2.msra.mxu0 0.0
    %4677 = vmatprep.subr.mxu0 0.0
    %4678 = vmatpush2.msra.mxu0 0.0
    %4679 = vmatprep.mubr.f32.mxu0 0.0
    %4680 = vmatmul.mubr.f32.gmra.mxu0 %v4543
    %v4681 = vpop.f32.mrf.mxu0
    %v4682 = vadd.f32 0.0, %v4681
    %v4683 = vpop.f32.mrf.mxu0
    %4684 = vdwg.mxu0
    %v4685 = vadd.f32 %v291, %v4612
    %v4686 = vxor.u32 %v4685, 2147483648
    %v4687 = vmul.f32 %v4686, 1.442695
    %v4688 = vpow.pop %v4687
    %v4689 = vadd.f32 %v4688, 1.0
    %v4690 = vrcp.pop %v4689
    %v4691 = vmul.f32 1.0, %v4690
    %v4692 = vadd.f32 %v448, %v4682
    %v4693 = vxor.u32 %v4692, 2147483648
    %v4694 = vmul.f32 %v4693, 1.442695
    %v4695 = vpow.pop %v4694
    %v4696 = vadd.f32 %v4695, 1.0
    %v4697 = vrcp.pop %v4696
    %v4698 = vmul.f32 1.0, %v4697
    %4699 = vmatprep.subr.mxu0 0.0
    %4700 = vmatpush1.msra.mxu0 0.0
    %4701 = vmatprep.subr.mxu0 0.0
    %4702 = vmatpush1.msra.mxu0 0.0
    %4703 = vmatprep.subr.mxu0 0.0
    %4704 = vmatpush1.msra.mxu0 0.0
    %4705 = vmatprep.subr.mxu0 0.0
    %4706 = vmatpush1.msra.mxu0 0.0
    %4707 = vmatprep.subr.mxu0 0.0
    %4708 = vmatpush1.msra.mxu0 0.0
    %4709 = vmatprep.subr.mxu0 0.0
    %4710 = vmatpush1.msra.mxu0 0.0
    %4711 = vmatprep.subr.mxu0 0.0
    %4712 = vmatpush1.msra.mxu0 0.0
    %4713 = vmatprep.subr.mxu0 0.0
    %4714 = vmatpush1.msra.mxu0 0.0
    %4715 = vmatprep.subr.mxu0 0.0
    %4716 = vmatpush1.msra.mxu0 0.0
    %4717 = vmatprep.subr.mxu0 0.0
    %4718 = vmatpush1.msra.mxu0 0.0
    %4719 = vmatprep.subr.mxu0 0.0
    %4720 = vmatpush1.msra.mxu0 0.0
    %4721 = vmatprep.subr.mxu0 0.0
    %4722 = vmatpush1.msra.mxu0 0.0
    %4723 = vmatprep.subr.mxu0 0.0
    %4724 = vmatpush1.msra.mxu0 0.0
    %4725 = vmatprep.subr.mxu0 0.0
    %4726 = vmatpush1.msra.mxu0 0.0
    %4727 = vmatprep.subr.mxu0 0.0
    %4728 = vmatpush1.msra.mxu0 0.0
    %4729 = vmatprep.subr.mxu0 0.0
    %4730 = vmatpush1.msra.mxu0 %v791
    %4731 = vmatprep.subr.mxu0 0.0
    %4732 = vmatpush2.msra.mxu0 0.0
    %4733 = vmatprep.subr.mxu0 0.0
    %4734 = vmatpush2.msra.mxu0 0.0
    %4735 = vmatprep.subr.mxu0 0.0
    %4736 = vmatpush2.msra.mxu0 0.0
    %4737 = vmatprep.subr.mxu0 0.0
    %4738 = vmatpush2.msra.mxu0 0.0
    %4739 = vmatprep.subr.mxu0 0.0
    %4740 = vmatpush2.msra.mxu0 0.0
    %4741 = vmatprep.subr.mxu0 0.0
    %4742 = vmatpush2.msra.mxu0 0.0
    %4743 = vmatprep.subr.mxu0 0.0
    %4744 = vmatpush2.msra.mxu0 0.0
    %4745 = vmatprep.subr.mxu0 0.0
    %4746 = vmatpush2.msra.mxu0 0.0
    %4747 = vmatprep.subr.mxu0 0.0
    %4748 = vmatpush2.msra.mxu0 0.0
    %4749 = vmatprep.subr.mxu0 0.0
    %4750 = vmatpush2.msra.mxu0 0.0
    %4751 = vmatprep.subr.mxu0 0.0
    %4752 = vmatpush2.msra.mxu0 0.0
    %4753 = vmatprep.subr.mxu0 0.0
    %4754 = vmatpush2.msra.mxu0 0.0
    %4755 = vmatprep.subr.mxu0 0.0
    %4756 = vmatpush2.msra.mxu0 0.0
    %4757 = vmatprep.subr.mxu0 0.0
    %4758 = vmatpush2.msra.mxu0 0.0
    %4759 = vmatprep.subr.mxu0 0.0
    %4760 = vmatpush2.msra.mxu0 0.0
    %4761 = vmatprep.subr.mxu0 0.0
    %4762 = vmatpush2.msra.mxu0 0.0
    %4763 = vmatprep.mubr.f32.mxu0 0.0
    %4764 = vmatmul.mubr.f32.gmra.mxu0 %v4543
    %v4765 = vpop.f32.mrf.mxu0
    %v4766 = vadd.f32 %v788, %v4765
    %v4767 = vpop.f32.mrf.mxu0
    %4768 = vdwg.mxu0
    %v4769 = vmul.f32 %v4691, %v4766
    %v4770 = vadd.f32 %v605, %v4769
    %v4771 = vtanh.pop %v4770
    %v4772 = vsub.f32 %v4495, %v4771
    %v4773 = vmul.f32 %v4698, %v4772
    %v4774 = vadd.f32 %v4771, %v4773
    %v4775 = vlaneseq
    %v4776 = vshrl.u32 %v4775, 7
    %v4777 = vsub.s32 6, %v4776
    %v4778 = vrot.slane %v618, %v4777
    %v4779 = vmul.f32 %v4774, %v4778
    %v4780 = vsel %vm619, %v4779, 0.0
    %4781 = vadd.xlane.f32.xlu0 %v4780
    %v4782 = vpop.xlane.xlu0 %4781
    %v4783 = vsel %vm619, %v4774, 0.0
    %4784 = vadd.xlane.f32.xlu0 %v4783
    %v4785 = vpop.xlane.xlu0 %4784
    %v4786 = vrot.slane %v4785, 4
    %v4787 = vadd.f32 %v4785, %v4786
    %v4788 = vrot.slane %v4787, 2
    %v4789 = vadd.f32 %v4787, %v4788
    %v4790 = vrot.slane %v4789, 1
    %v4791 = vadd.f32 %v4789, %v4790
    %s4792 = vtos %v4791
    %v4793 = vstv %s4792
    %v4794 = vmul.f32 %v4774, %v4774
    %v4795 = vsel %vm619, %v4794, 0.0
    %4796 = vadd.xlane.f32.xlu0 %v4795
    %v4797 = vpop.xlane.xlu0 %4796
    %v4798 = vrot.slane %v4797, 4
    %v4799 = vadd.f32 %v4797, %v4798
    %v4800 = vrot.slane %v4799, 2
    %v4801 = vadd.f32 %v4799, %v4800
    %v4802 = vrot.slane %v4801, 1
    %v4803 = vadd.f32 %v4801, %v4802
    %s4804 = vtos %v4803
    %v4805 = vstv %s4804
    %v4806 = vmul.f32 %v4793, 0.025
    %v4807 = vmul.f32 %v4805, 0.025
    %v4808 = vmul.f32 %v4806, %v4806
    %v4809 = vsub.f32 %v4807, %v4808
    %v4810 = vadd.f32 %v4809, 1e-05
    %v4811 = vrsqrt.pop %v4810
    %s4812 = sld [smem:[#allocation3 + $0xe]]
    %v4813 = vstv %s4812
    %v4814 = vmul.f32 %v4813, %v4782
    %s4815 = sld [smem:[#allocation5 + $0xe]]
    %v4816 = vstv %s4815
    %v4817 = vmul.f32 %v4816, %v4806
    %v4818 = vsub.f32 %v4814, %v4817
    %v4819 = vmul.f32 %v4811, %v4818
    %v4820 = vadd.f32 %v4541, %v4819
    %v4822 = vsel %vm619, %v4774, 0
    %4824 = vmatprep.subr.mxu0 0.0
    %4825 = vmatpush1.msra.mxu0 0.0
    %4826 = vmatprep.subr.mxu0 0.0
    %4827 = vmatpush1.msra.mxu0 0.0
    %4828 = vmatprep.subr.mxu0 0.0
    %4829 = vmatpush1.msra.mxu0 0.0
    %4830 = vmatprep.subr.mxu0 0.0
    %4831 = vmatpush1.msra.mxu0 0.0
    %4832 = vmatprep.subr.mxu0 0.0
    %4833 = vmatpush1.msra.mxu0 0.0
    %4834 = vmatprep.subr.mxu0 0.0
    %4835 = vmatpush1.msra.mxu0 0.0
    %4836 = vmatprep.subr.mxu0 0.0
    %4837 = vmatpush1.msra.mxu0 0.0
    %4838 = vmatprep.subr.mxu0 0.0
    %4839 = vmatpush1.msra.mxu0 0.0
    %4840 = vmatprep.subr.mxu0 0.0
    %4841 = vmatpush1.msra.mxu0 0.0
    %4842 = vmatprep.subr.mxu0 0.0
    %4843 = vmatpush1.msra.mxu0 0.0
    %4844 = vmatprep.subr.mxu0 0.0
    %4845 = vmatpush1.msra.mxu0 0.0
    %4846 = vmatprep.subr.mxu0 0.0
    %4847 = vmatpush1.msra.mxu0 0.0
    %4848 = vmatprep.subr.mxu0 0.0
    %4849 = vmatpush1.msra.mxu0 0.0
    %4850 = vmatprep.subr.mxu0 0.0
    %4851 = vmatpush1.msra.mxu0 0.0
    %4852 = vmatprep.subr.mxu0 0.0
    %4853 = vmatpush1.msra.mxu0 0.0
    %4854 = vmatprep.subr.mxu0 0.0
    %4855 = vmatpush1.msra.mxu0 %v625
    %4856 = vmatprep.subr.mxu0 0.0
    %4857 = vmatpush2.msra.mxu0 0.0
    %4858 = vmatprep.subr.mxu0 0.0
    %4859 = vmatpush2.msra.mxu0 0.0
    %4860 = vmatprep.subr.mxu0 0.0
    %4861 = vmatpush2.msra.mxu0 0.0
    %4862 = vmatprep.subr.mxu0 0.0
    %4863 = vmatpush2.msra.mxu0 0.0
    %4864 = vmatprep.subr.mxu0 0.0
    %4865 = vmatpush2.msra.mxu0 0.0
    %4866 = vmatprep.subr.mxu0 0.0
    %4867 = vmatpush2.msra.mxu0 0.0
    %4868 = vmatprep.subr.mxu0 0.0
    %4869 = vmatpush2.msra.mxu0 0.0
    %4870 = vmatprep.subr.mxu0 0.0
    %4871 = vmatpush2.msra.mxu0 0.0
    %4872 = vmatprep.subr.mxu0 0.0
    %4873 = vmatpush2.msra.mxu0 0.0
    %4874 = vmatprep.subr.mxu0 0.0
    %4875 = vmatpush2.msra.mxu0 0.0
    %4876 = vmatprep.subr.mxu0 0.0
    %4877 = vmatpush2.msra.mxu0 0.0
    %4878 = vmatprep.subr.mxu0 0.0
    %4879 = vmatpush2.msra.mxu0 0.0
    %4880 = vmatprep.subr.mxu0 0.0
    %4881 = vmatpush2.msra.mxu0 0.0
    %4882 = vmatprep.subr.mxu0 0.0
    %4883 = vmatpush2.msra.mxu0 0.0
    %4884 = vmatprep.subr.mxu0 0.0
    %4885 = vmatpush2.msra.mxu0 0.0
    %4886 = vmatprep.subr.mxu0 0.0
    %4887 = vmatpush2.msra.mxu0 0.0
    %4888 = vmatprep.mubr.f32.mxu0 0.0
    %4889 = vmatmul.mubr.f32.gmra.mxu0 %v4822
    %v4890 = vpop.f32.mrf.mxu0
    %v4891 = vadd.f32 0.0, %v4890
    %v4892 = vpop.f32.mrf.mxu0
    %4893 = vdwg.mxu0
    %4894 = vmatprep.subr.mxu0 0.0
    %4895 = vmatpush1.msra.mxu0 0.0
    %4896 = vmatprep.subr.mxu0 0.0
    %4897 = vmatpush1.msra.mxu0 0.0
    %4898 = vmatprep.subr.mxu0 0.0
    %4899 = vmatpush1.msra.mxu0 0.0
    %4900 = vmatprep.subr.mxu0 0.0
    %4901 = vmatpush1.msra.mxu0 0.0
    %4902 = vmatprep.subr.mxu0 0.0
    %4903 = vmatpush1.msra.mxu0 0.0
    %4904 = vmatprep.subr.mxu0 0.0
    %4905 = vmatpush1.msra.mxu0 0.0
    %4906 = vmatprep.subr.mxu0 0.0
    %4907 = vmatpush1.msra.mxu0 0.0
    %4908 = vmatprep.subr.mxu0 0.0
    %4909 = vmatpush1.msra.mxu0 0.0
    %4910 = vmatprep.subr.mxu0 0.0
    %4911 = vmatpush1.msra.mxu0 0.0
    %4912 = vmatprep.subr.mxu0 0.0
    %4913 = vmatpush1.msra.mxu0 0.0
    %4914 = vmatprep.subr.mxu0 0.0
    %4915 = vmatpush1.msra.mxu0 0.0
    %4916 = vmatprep.subr.mxu0 0.0
    %4917 = vmatpush1.msra.mxu0 0.0
    %4918 = vmatprep.subr.mxu0 0.0
    %4919 = vmatpush1.msra.mxu0 0.0
    %4920 = vmatprep.subr.mxu0 0.0
    %4921 = vmatpush1.msra.mxu0 0.0
    %4922 = vmatprep.subr.mxu0 0.0
    %4923 = vmatpush1.msra.mxu0 0.0
    %4924 = vmatprep.subr.mxu0 0.0
    %4925 = vmatpush1.msra.mxu0 %v698
    %4926 = vmatprep.subr.mxu0 0.0
    %4927 = vmatpush2.msra.mxu0 0.0
    %4928 = vmatprep.subr.mxu0 0.0
    %4929 = vmatpush2.msra.mxu0 0.0
    %4930 = vmatprep.subr.mxu0 0.0
    %4931 = vmatpush2.msra.mxu0 0.0
    %4932 = vmatprep.subr.mxu0 0.0
    %4933 = vmatpush2.msra.mxu0 0.0
    %4934 = vmatprep.subr.mxu0 0.0
    %4935 = vmatpush2.msra.mxu0 0.0
    %4936 = vmatprep.subr.mxu0 0.0
    %4937 = vmatpush2.msra.mxu0 0.0
    %4938 = vmatprep.subr.mxu0 0.0
    %4939 = vmatpush2.msra.mxu0 0.0
    %4940 = vmatprep.subr.mxu0 0.0
    %4941 = vmatpush2.msra.mxu0 0.0
    %4942 = vmatprep.subr.mxu0 0.0
    %4943 = vmatpush2.msra.mxu0 0.0
    %4944 = vmatprep.subr.mxu0 0.0
    %4945 = vmatpush2.msra.mxu0 0.0
    %4946 = vmatprep.subr.mxu0 0.0
    %4947 = vmatpush2.msra.mxu0 0.0
    %4948 = vmatprep.subr.mxu0 0.0
    %4949 = vmatpush2.msra.mxu0 0.0
    %4950 = vmatprep.subr.mxu0 0.0
    %4951 = vmatpush2.msra.mxu0 0.0
    %4952 = vmatprep.subr.mxu0 0.0
    %4953 = vmatpush2.msra.mxu0 0.0
    %4954 = vmatprep.subr.mxu0 0.0
    %4955 = vmatpush2.msra.mxu0 0.0
    %4956 = vmatprep.subr.mxu0 0.0
    %4957 = vmatpush2.msra.mxu0 0.0
    %4958 = vmatprep.mubr.f32.mxu0 0.0
    %4959 = vmatmul.mubr.f32.gmra.mxu0 %v4822
    %v4960 = vpop.f32.mrf.mxu0
    %v4961 = vadd.f32 0.0, %v4960
    %v4962 = vpop.f32.mrf.mxu0
    %4963 = vdwg.mxu0
    %v4964 = vadd.f32 %v296, %v4891
    %v4965 = vxor.u32 %v4964, 2147483648
    %v4966 = vmul.f32 %v4965, 1.442695
    %v4967 = vpow.pop %v4966
    %v4968 = vadd.f32 %v4967, 1.0
    %v4969 = vrcp.pop %v4968
    %v4970 = vmul.f32 1.0, %v4969
    %v4971 = vadd.f32 %v453, %v4961
    %v4972 = vxor.u32 %v4971, 2147483648
    %v4973 = vmul.f32 %v4972, 1.442695
    %v4974 = vpow.pop %v4973
    %v4975 = vadd.f32 %v4974, 1.0
    %v4976 = vrcp.pop %v4975
    %v4977 = vmul.f32 1.0, %v4976
    %4978 = vmatprep.subr.mxu0 0.0
    %4979 = vmatpush1.msra.mxu0 0.0
    %4980 = vmatprep.subr.mxu0 0.0
    %4981 = vmatpush1.msra.mxu0 0.0
    %4982 = vmatprep.subr.mxu0 0.0
    %4983 = vmatpush1.msra.mxu0 0.0
    %4984 = vmatprep.subr.mxu0 0.0
    %4985 = vmatpush1.msra.mxu0 0.0
    %4986 = vmatprep.subr.mxu0 0.0
    %4987 = vmatpush1.msra.mxu0 0.0
    %4988 = vmatprep.subr.mxu0 0.0
    %4989 = vmatpush1.msra.mxu0 0.0
    %4990 = vmatprep.subr.mxu0 0.0
    %4991 = vmatpush1.msra.mxu0 0.0
    %4992 = vmatprep.subr.mxu0 0.0
    %4993 = vmatpush1.msra.mxu0 0.0
    %4994 = vmatprep.subr.mxu0 0.0
    %4995 = vmatpush1.msra.mxu0 0.0
    %4996 = vmatprep.subr.mxu0 0.0
    %4997 = vmatpush1.msra.mxu0 0.0
    %4998 = vmatprep.subr.mxu0 0.0
    %4999 = vmatpush1.msra.mxu0 0.0
    %5000 = vmatprep.subr.mxu0 0.0
    %5001 = vmatpush1.msra.mxu0 0.0
    %5002 = vmatprep.subr.mxu0 0.0
    %5003 = vmatpush1.msra.mxu0 0.0
    %5004 = vmatprep.subr.mxu0 0.0
    %5005 = vmatpush1.msra.mxu0 0.0
    %5006 = vmatprep.subr.mxu0 0.0
    %5007 = vmatpush1.msra.mxu0 0.0
    %5008 = vmatprep.subr.mxu0 0.0
    %5009 = vmatpush1.msra.mxu0 %v791
    %5010 = vmatprep.subr.mxu0 0.0
    %5011 = vmatpush2.msra.mxu0 0.0
    %5012 = vmatprep.subr.mxu0 0.0
    %5013 = vmatpush2.msra.mxu0 0.0
    %5014 = vmatprep.subr.mxu0 0.0
    %5015 = vmatpush2.msra.mxu0 0.0
    %5016 = vmatprep.subr.mxu0 0.0
    %5017 = vmatpush2.msra.mxu0 0.0
    %5018 = vmatprep.subr.mxu0 0.0
    %5019 = vmatpush2.msra.mxu0 0.0
    %5020 = vmatprep.subr.mxu0 0.0
    %5021 = vmatpush2.msra.mxu0 0.0
    %5022 = vmatprep.subr.mxu0 0.0
    %5023 = vmatpush2.msra.mxu0 0.0
    %5024 = vmatprep.subr.mxu0 0.0
    %5025 = vmatpush2.msra.mxu0 0.0
    %5026 = vmatprep.subr.mxu0 0.0
    %5027 = vmatpush2.msra.mxu0 0.0
    %5028 = vmatprep.subr.mxu0 0.0
    %5029 = vmatpush2.msra.mxu0 0.0
    %5030 = vmatprep.subr.mxu0 0.0
    %5031 = vmatpush2.msra.mxu0 0.0
    %5032 = vmatprep.subr.mxu0 0.0
    %5033 = vmatpush2.msra.mxu0 0.0
    %5034 = vmatprep.subr.mxu0 0.0
    %5035 = vmatpush2.msra.mxu0 0.0
    %5036 = vmatprep.subr.mxu0 0.0
    %5037 = vmatpush2.msra.mxu0 0.0
    %5038 = vmatprep.subr.mxu0 0.0
    %5039 = vmatpush2.msra.mxu0 0.0
    %5040 = vmatprep.subr.mxu0 0.0
    %5041 = vmatpush2.msra.mxu0 0.0
    %5042 = vmatprep.mubr.f32.mxu0 0.0
    %5043 = vmatmul.mubr.f32.gmra.mxu0 %v4822
    %v5044 = vpop.f32.mrf.mxu0
    %v5045 = vadd.f32 %v788, %v5044
    %v5046 = vpop.f32.mrf.mxu0
    %5047 = vdwg.mxu0
    %v5048 = vmul.f32 %v4970, %v5045
    %v5049 = vadd.f32 %v610, %v5048
    %v5050 = vtanh.pop %v5049
    %v5051 = vsub.f32 %v4774, %v5050
    %v5052 = vmul.f32 %v4977, %v5051
    %v5053 = vadd.f32 %v5050, %v5052
    %v5054 = vlaneseq
    %v5055 = vshrl.u32 %v5054, 7
    %v5056 = vsub.s32 7, %v5055
    %v5057 = vrot.slane %v618, %v5056
    %v5058 = vmul.f32 %v5053, %v5057
    %v5059 = vsel %vm619, %v5058, 0.0
    %5060 = vadd.xlane.f32.xlu0 %v5059
    %v5061 = vpop.xlane.xlu0 %5060
    %v5062 = vsel %vm619, %v5053, 0.0
    %5063 = vadd.xlane.f32.xlu0 %v5062
    %v5064 = vpop.xlane.xlu0 %5063
    %v5065 = vrot.slane %v5064, 4
    %v5066 = vadd.f32 %v5064, %v5065
    %v5067 = vrot.slane %v5066, 2
    %v5068 = vadd.f32 %v5066, %v5067
    %v5069 = vrot.slane %v5068, 1
    %v5070 = vadd.f32 %v5068, %v5069
    %s5071 = vtos %v5070
    %v5072 = vstv %s5071
    %v5073 = vmul.f32 %v5053, %v5053
    %v5074 = vsel %vm619, %v5073, 0.0
    %5075 = vadd.xlane.f32.xlu0 %v5074
    %v5076 = vpop.xlane.xlu0 %5075
    %v5077 = vrot.slane %v5076, 4
    %v5078 = vadd.f32 %v5076, %v5077
    %v5079 = vrot.slane %v5078, 2
    %v5080 = vadd.f32 %v5078, %v5079
    %v5081 = vrot.slane %v5080, 1
    %v5082 = vadd.f32 %v5080, %v5081
    %s5083 = vtos %v5082
    %v5084 = vstv %s5083
    %v5085 = vmul.f32 %v5072, 0.025
    %v5086 = vmul.f32 %v5084, 0.025
    %v5087 = vmul.f32 %v5085, %v5085
    %v5088 = vsub.f32 %v5086, %v5087
    %v5089 = vadd.f32 %v5088, 1e-05
    %v5090 = vrsqrt.pop %v5089
    %s5091 = sld [smem:[#allocation3 + $0xf]]
    %v5092 = vstv %s5091
    %v5093 = vmul.f32 %v5092, %v5061
    %s5094 = sld [smem:[#allocation5 + $0xf]]
    %v5095 = vstv %s5094
    %v5096 = vmul.f32 %v5095, %v5085
    %v5097 = vsub.f32 %v5093, %v5096
    %v5098 = vmul.f32 %v5090, %v5097
    %v5099 = vadd.f32 %v4820, %v5098
    %s5100 = sld [smem:[#allocation2]]
    %v5101 = vstv %s5100
    %v5102 = vadd.f32 %v5099, %v5101
    %v5103 = vxor.u32 %v5102, 2147483648
    %v5104 = vmul.f32 %v5103, 1.442695
    %v5105 = vpow.pop %v5104
    %v5106 = vadd.f32 %v5105, 1.0
    %v5107 = vrcp.pop %v5106
    %v5108 = vmul.f32 1.0, %v5107
    %vm5109 = vcmask 7168
    %5110 = vst.msk [vmem:[%s15] sm:$0xff] %vm5109, %v5108
    // Predicated region
    $region70: #{tpu_custom_call.1} parent=1 // pred_check
      _
    $region71: #{tpu_custom_call.1} parent=1 // pred_check_branch
      %5112 = sbr.rel (0) target = $region73
    $region72: #{tpu_custom_call.1} parent=1 // pred_region
      _
    $region73: #{tpu_custom_call.1} parent=1 // pred_fallthru
      _
    // Predicated region
    $region74: #{tpu_custom_call.1} parent=1 // pred_check
      _
    $region75: #{tpu_custom_call.1} parent=1 // pred_check_branch
      %5114 = sbr.rel (0) target = $region77
    $region76: #{tpu_custom_call.1} parent=1 // pred_region
      _
    $region77: #{tpu_custom_call.1} parent=1 // pred_fallthru
      _
    %5115 = vsyncpa [#allocation4], 1
    %5116 = vsyncpa [#allocation6], 1

</llo_original>
